<compile_context>
chip_gen: v5e
topology: v5e:2x2
jax: 0.10.0
libtpu: 0.0.40
codegen_flags: <defaults>
</compile_context>

<pallas_src>
import jax
import jax.numpy as jnp
from jax.experimental import pallas as pl
from jax.experimental.pallas import tpu as pltpu


# ----------------------------------------------------------------------------
# Mish: x * tanh(softplus(x)) == x * t / (t + 2)  with  t = e^x * (e^x + 2)
# One exp (EUP) + one approx reciprocal (EUP) instead of exp + log1p + tanh.
# ----------------------------------------------------------------------------
def _mish(x):
    e = jnp.exp(jnp.minimum(x, 20.0))            # clamp so exp never overflows
    t = e * (e + 2.0)
    y = x * t * pl.reciprocal(t + 2.0, approx=True)
    return jnp.where(x > 20.0, x, y)             # mish(x) ~= x for large x


# ----------------------------------------------------------------------------
# Pallas kernel: fused 5-layer MLP with Mish activations (one batch tile)
# ----------------------------------------------------------------------------
def _mlp_kernel(x_ref,
                w1_ref, b1_ref,
                w2_ref, b2_ref,
                w3_ref, b3_ref,
                w4_ref, b4_ref,
                w5_ref, b5_ref,
                o_ref):
    def layer(h_bf16, w_ref, b_ref, activate):
        # bf16 x bf16 -> f32 accumulate on the MXU; bias add + Mish stay f32.
        y = jnp.dot(h_bf16, w_ref[...], preferred_element_type=jnp.float32) + b_ref[...]
        if activate:
            return _mish(y).astype(jnp.bfloat16)  # bf16 intermediates: half the vst/vld
        return y                                  # final layer stays f32

    h = x_ref[...]                                # already bf16
    h = layer(h, w1_ref, b1_ref, True)
    h = layer(h, w2_ref, b2_ref, True)
    h = layer(h, w3_ref, b3_ref, True)
    h = layer(h, w4_ref, b4_ref, True)
    o_ref[...] = layer(h, w5_ref, b5_ref, False).astype(o_ref.dtype)


def _vmem_limit_bytes():
    """Generation-aware VMEM request (~48 MiB on v7x, ~96 MiB on v5e/v6e)."""
    cap = 128 * 1024 * 1024
    try:
        cap = getattr(pltpu.get_tpu_info(), "vmem_capacity_bytes", cap)
    except Exception:
        pass
    return int(min(cap * 3 // 4, 100 * 1024 * 1024))


def _pick_tile_n(n, vmem_cap_bytes):
    """Batch tile size: as large as the VMEM budget allows, multiple of 8."""
    is_small_vmem = vmem_cap_bytes <= 80 * 1024 * 1024    # v7x (64 MiB / TC)
    tile = 512 if is_small_vmem else 1024                 # v5e/v6e: 128 MiB VMEM
    padded_n = max(8, ((n + 7) // 8) * 8)
    tile_n = min(tile, padded_n)
    # On v7x keep >= 2 grid steps (when N allows) so the "parallel" batch axis
    # can actually split across the two TensorCores.
    if is_small_vmem and padded_n >= 16 and tile_n >= padded_n:
        tile_n = ((padded_n // 2 + 7) // 8) * 8
    return tile_n


def prepare_fc_params(fc_params):
    """One-time host/outside-jit prep: bf16 weights + (1, dout) f32 biases.

    Doing the f32->bf16 cast here (not inside the jitted forward) avoids
    re-reading ~11 MiB of f32 weights from HBM on every call.
    """
    return [(w.astype(jnp.bfloat16), b.reshape(1, -1).astype(jnp.float32))
            for w, b in fc_params]


def mlp_pallas(x, params):
    """x: (N, embed_dim) f32/bf16.  params: list of (W, b), W (in, out)."""
    n, embed_dim = x.shape
    out_dim = params[-1][0].shape[1]
    vmem_limit = _vmem_limit_bytes()
    tile_n = _pick_tile_n(n, vmem_limit)
    grid = (pl.cdiv(n, tile_n),)

    flat_args = [x.astype(jnp.bfloat16)]          # bf16 activations into the kernel
    in_specs = [pl.BlockSpec((tile_n, embed_dim), lambda i: (i, 0))]
    flops = 0
    transcendentals = 0
    bytes_accessed = n * embed_dim * 2 + n * out_dim * 4
    for li, (w, b) in enumerate(params):
        din, dout = w.shape
        flat_args.append(w if w.dtype == jnp.bfloat16 else w.astype(jnp.bfloat16))
        flat_args.append(b.reshape(1, -1).astype(jnp.float32))
        # Constant index_maps -> VMEM-resident; single-buffered since they are
        # DMA'd exactly once (saves ~5.6 MiB of VMEM vs default double-buffering).
        in_specs.append(pl.BlockSpec((din, dout), lambda i: (0, 0),
                                     pipeline_mode=pl.Buffered(1)))
        in_specs.append(pl.BlockSpec((1, dout), lambda i: (0, 0),
                                     pipeline_mode=pl.Buffered(1)))
        flops += 2 * n * din * dout
        if li < len(params) - 1:
            transcendentals += n * dout           # one exp per hidden element
        bytes_accessed += din * dout * 2 + dout * 4

    # Output kept f32 for fidelity to the PyTorch module (bf16 would further cut
    # HBM write traffic on v6e if downstream tolerated it).
    out_specs = pl.BlockSpec((tile_n, out_dim), lambda i: (i, 0))

    grid_spec = pltpu.PrefetchScalarGridSpec(
        num_scalar_prefetch=0,
        grid=grid,
        in_specs=in_specs,
        out_specs=out_specs,
    )

    return pl.pallas_call(
        _mlp_kernel,
        out_shape=jax.ShapeDtypeStruct((n, out_dim), jnp.float32),
        grid_spec=grid_spec,
        compiler_params=pltpu.CompilerParams(
            dimension_semantics=("parallel",),
            vmem_limit_bytes=vmem_limit,
        ),
        cost_estimate=pl.CostEstimate(
            flops=int(flops),
            transcendentals=int(transcendentals),
            bytes_accessed=int(bytes_accessed),
        ),
    )(*flat_args)


# ----------------------------------------------------------------------------
# EmbeddingBag (mode='mean') — data-dependent gather, plain JAX glue.
# TODO(synk): fuse into the Pallas kernel via scalar-prefetched offsets.
# ----------------------------------------------------------------------------
def embedding_bag_mean(emb_weight, text, offsets):
    """emb_weight: (V, E), text: (T,) int32, offsets: (B,) int32 -> (B, E)."""
    num_bags = offsets.shape[0]
    pos = jnp.arange(text.shape[0], dtype=jnp.int32)
    # bag id of each token: rightmost offset <= pos
    seg = jnp.searchsorted(offsets, pos, side="right").astype(jnp.int32) - 1
    gathered = emb_weight[text]                                   # (T, E)
    sums = jax.ops.segment_sum(gathered, seg, num_segments=num_bags)
    counts = jax.ops.segment_sum(jnp.ones_like(pos, dtype=jnp.float32),
                                 seg, num_segments=num_bags)
    return sums / jnp.maximum(counts, 1.0)[:, None]               # empty bags -> 0


# ----------------------------------------------------------------------------
# Full forward: zip_ssl(text, offsets)
# ----------------------------------------------------------------------------
def zip_ssl_forward(text, offsets, emb_weight, fc_params):
    embedded = embedding_bag_mean(emb_weight, text, offsets)      # (B, embed_dim)
    return mlp_pallas(embedded, fc_params)                        # (B, 2048)


# ----------------------------------------------------------------------------
# Deterministic parameter construction (synthetic, mirrors __init__ shapes)
# ----------------------------------------------------------------------------
def make_params(key, vocab_size, embed_dim):
    dims = [embed_dim, 128, 256, 512, 1024, 2048]
    keys = jax.random.split(key, 1 + 2 * (len(dims) - 1))
    # EmbeddingBag weight: uniform(-0.5, 0.5) as in init_weights()
    emb_weight = jax.random.uniform(keys[0], (vocab_size, embed_dim),
                                    jnp.float32, minval=-0.5, maxval=0.5)
    fc_params = []
    ki = 1
    for din, dout in zip(dims[:-1], dims[1:]):
        bound = 1.0 / jnp.sqrt(jnp.float32(din))
        w = jax.random.uniform(keys[ki], (din, dout), jnp.float32,
                               minval=-bound, maxval=bound)
        b = jax.random.uniform(keys[ki + 1], (dout,), jnp.float32,
                               minval=-bound, maxval=bound)
        fc_params.append((w, b))
        ki += 2
    return emb_weight, fc_params


# ----------------------------------------------------------------------------
# Pure-JAX reference that mirrors the kernel's dtype flow (bf16 matmul inputs,
# f32 accumulate, bf16 intermediates) but uses the canonical tanh(softplus(x))
# Mish, for a correctness check.
# ----------------------------------------------------------------------------
def reference_forward(text, offsets, emb_weight, fc_params):
    h = embedding_bag_mean(emb_weight, text, offsets)
    for i, (w, b) in enumerate(fc_params):
        y = jnp.dot(h.astype(jnp.bfloat16), w.astype(jnp.bfloat16),
                    preferred_element_type=jnp.float32) + b.reshape(1, -1)
        if i < len(fc_params) - 1:
            h = (y * jnp.tanh(jax.nn.softplus(y))).astype(jnp.bfloat16)
        else:
            h = y
    return h


if __name__ == "__main__":
    embed_dim = 32
    vocab_size = 1000      # small synthetic vocab (module default is 95811)
    num_bags = 8
    tokens_per_bag = 3

    key = jax.random.PRNGKey(0)
    pkey, tkey = jax.random.split(key)
    emb_weight, fc_params = make_params(pkey, vocab_size, embed_dim)
    fc_prepared = prepare_fc_params(fc_params)    # bf16 weights, cast once outside jit

    text = jax.random.randint(tkey, (num_bags * tokens_per_bag,), 0, vocab_size,
                              dtype=jnp.int32)
    offsets = jnp.arange(num_bags, dtype=jnp.int32) * tokens_per_bag

    fwd = jax.jit(zip_ssl_forward)
    out = fwd(text, offsets, emb_weight, fc_prepared)
    out = jax.block_until_ready(out)

    ref = reference_forward(text, offsets, emb_weight, fc_params)
    assert out.shape == (num_bags, 2048), out.shape
    assert jnp.allclose(out, ref, rtol=5e-3, atol=5e-3), "mismatch vs reference"

    print("KERNEL_OK")
</pallas_src>

<mosaic_0001>
module attributes {stable_mosaic.version = 11 : i64} {
  func.func @_mlp_kernel(%arg0: i32, %arg1: memref<8x32xbf16, #tpu.memory_space<vmem>>, %arg2: memref<32x128xbf16, #tpu.memory_space<vmem>>, %arg3: memref<1x128xf32, #tpu.memory_space<vmem>>, %arg4: memref<128x256xbf16, #tpu.memory_space<vmem>>, %arg5: memref<1x256xf32, #tpu.memory_space<vmem>>, %arg6: memref<256x512xbf16, #tpu.memory_space<vmem>>, %arg7: memref<1x512xf32, #tpu.memory_space<vmem>>, %arg8: memref<512x1024xbf16, #tpu.memory_space<vmem>>, %arg9: memref<1x1024xf32, #tpu.memory_space<vmem>>, %arg10: memref<1024x2048xbf16, #tpu.memory_space<vmem>>, %arg11: memref<1x2048xf32, #tpu.memory_space<vmem>>, %arg12: memref<8x2048xf32, #tpu.memory_space<vmem>>) attributes {dimension_semantics = [#tpu.dimension_semantics<parallel>], iteration_bounds = array<i64: 1>, scalar_prefetch = 0 : i64, scratch_operands = 0 : i64, tpu.core_type = #tpu.core_type<tc>, window_params = [{transform_indices = @transform_0, window_bounds = array<i64: 8, 32>}, {pipeline_mode = #tpu.pipeline_mode<synchronous>, transform_indices = @transform_1, window_bounds = array<i64: 32, 128>}, {pipeline_mode = #tpu.pipeline_mode<synchronous>, transform_indices = @transform_2, window_bounds = array<i64: 1, 128>}, {pipeline_mode = #tpu.pipeline_mode<synchronous>, transform_indices = @transform_3, window_bounds = array<i64: 128, 256>}, {pipeline_mode = #tpu.pipeline_mode<synchronous>, transform_indices = @transform_4, window_bounds = array<i64: 1, 256>}, {pipeline_mode = #tpu.pipeline_mode<synchronous>, transform_indices = @transform_5, window_bounds = array<i64: 256, 512>}, {pipeline_mode = #tpu.pipeline_mode<synchronous>, transform_indices = @transform_6, window_bounds = array<i64: 1, 512>}, {pipeline_mode = #tpu.pipeline_mode<synchronous>, transform_indices = @transform_7, window_bounds = array<i64: 512, 1024>}, {pipeline_mode = #tpu.pipeline_mode<synchronous>, transform_indices = @transform_8, window_bounds = array<i64: 1, 1024>}, {pipeline_mode = #tpu.pipeline_mode<synchronous>, transform_indices = @transform_9, window_bounds = array<i64: 1024, 2048>}, {pipeline_mode = #tpu.pipeline_mode<synchronous>, transform_indices = @transform_10, window_bounds = array<i64: 1, 2048>}, {transform_indices = @transform_11, window_bounds = array<i64: 8, 2048>}]} {
    %c0 = arith.constant 0 : index
    %c0_0 = arith.constant 0 : index
    %0 = vector.load %arg1[%c0, %c0_0] : memref<8x32xbf16, #tpu.memory_space<vmem>>, vector<8x32xbf16>
    %c0_1 = arith.constant 0 : index
    %c0_2 = arith.constant 0 : index
    %1 = vector.load %arg2[%c0_1, %c0_2] : memref<32x128xbf16, #tpu.memory_space<vmem>>, vector<32x128xbf16>
    %cst = arith.constant dense<0.000000e+00> : vector<8x128xf32>
    %2 = tpu.matmul %0, %1, %cst {dimension_numbers = #tpu.dot_dimension_numbers<[1], [0], [0], [1], [0, 0, 1, 1], [], []>} : vector<8x32xbf16>, vector<32x128xbf16>, vector<8x128xf32> -> vector<8x128xf32>
    %c0_3 = arith.constant 0 : index
    %c0_4 = arith.constant 0 : index
    %3 = vector.load %arg3[%c0_3, %c0_4] : memref<1x128xf32, #tpu.memory_space<vmem>>, vector<1x128xf32>
    %4 = vector.broadcast %3 : vector<1x128xf32> to vector<8x128xf32>
    %5 = arith.addf %2, %4 : vector<8x128xf32>
    %cst_5 = arith.constant 2.000000e+01 : f32
    %6 = vector.broadcast %cst_5 : f32 to vector<8x128xf32>
    %7 = arith.minimumf %5, %6 : vector<8x128xf32>
    %8 = math.exp %7 : vector<8x128xf32>
    %cst_6 = arith.constant 2.000000e+00 : f32
    %9 = vector.broadcast %cst_6 : f32 to vector<8x128xf32>
    %10 = arith.addf %8, %9 : vector<8x128xf32>
    %11 = arith.mulf %8, %10 : vector<8x128xf32>
    %12 = arith.mulf %5, %11 : vector<8x128xf32>
    %cst_7 = arith.constant 2.000000e+00 : f32
    %13 = vector.broadcast %cst_7 : f32 to vector<8x128xf32>
    %14 = arith.addf %11, %13 : vector<8x128xf32>
    %15 = tpu.reciprocal %14 {approx = true} : vector<8x128xf32> -> vector<8x128xf32>
    %16 = arith.mulf %12, %15 : vector<8x128xf32>
    %cst_8 = arith.constant 2.000000e+01 : f32
    %17 = vector.broadcast %cst_8 : f32 to vector<8x128xf32>
    %18 = arith.cmpf ogt, %5, %17 : vector<8x128xf32>
    %19 = arith.select %18, %5, %16 : vector<8x128xi1>, vector<8x128xf32>
    %20 = arith.truncf %19 : vector<8x128xf32> to vector<8x128xbf16>
    %c0_9 = arith.constant 0 : index
    %c0_10 = arith.constant 0 : index
    %21 = vector.load %arg4[%c0_9, %c0_10] : memref<128x256xbf16, #tpu.memory_space<vmem>>, vector<128x256xbf16>
    %cst_11 = arith.constant dense<0.000000e+00> : vector<8x256xf32>
    %22 = tpu.matmul %20, %21, %cst_11 {dimension_numbers = #tpu.dot_dimension_numbers<[1], [0], [0], [1], [0, 0, 1, 1], [], []>} : vector<8x128xbf16>, vector<128x256xbf16>, vector<8x256xf32> -> vector<8x256xf32>
    %c0_12 = arith.constant 0 : index
    %c0_13 = arith.constant 0 : index
    %23 = vector.load %arg5[%c0_12, %c0_13] : memref<1x256xf32, #tpu.memory_space<vmem>>, vector<1x256xf32>
    %24 = vector.broadcast %23 : vector<1x256xf32> to vector<8x256xf32>
    %25 = arith.addf %22, %24 : vector<8x256xf32>
    %cst_14 = arith.constant 2.000000e+01 : f32
    %26 = vector.broadcast %cst_14 : f32 to vector<8x256xf32>
    %27 = arith.minimumf %25, %26 : vector<8x256xf32>
    %28 = math.exp %27 : vector<8x256xf32>
    %cst_15 = arith.constant 2.000000e+00 : f32
    %29 = vector.broadcast %cst_15 : f32 to vector<8x256xf32>
    %30 = arith.addf %28, %29 : vector<8x256xf32>
    %31 = arith.mulf %28, %30 : vector<8x256xf32>
    %32 = arith.mulf %25, %31 : vector<8x256xf32>
    %cst_16 = arith.constant 2.000000e+00 : f32
    %33 = vector.broadcast %cst_16 : f32 to vector<8x256xf32>
    %34 = arith.addf %31, %33 : vector<8x256xf32>
    %35 = tpu.reciprocal %34 {approx = true} : vector<8x256xf32> -> vector<8x256xf32>
    %36 = arith.mulf %32, %35 : vector<8x256xf32>
    %cst_17 = arith.constant 2.000000e+01 : f32
    %37 = vector.broadcast %cst_17 : f32 to vector<8x256xf32>
    %38 = arith.cmpf ogt, %25, %37 : vector<8x256xf32>
    %39 = arith.select %38, %25, %36 : vector<8x256xi1>, vector<8x256xf32>
    %40 = arith.truncf %39 : vector<8x256xf32> to vector<8x256xbf16>
    %c0_18 = arith.constant 0 : index
    %c0_19 = arith.constant 0 : index
    %41 = vector.load %arg6[%c0_18, %c0_19] : memref<256x512xbf16, #tpu.memory_space<vmem>>, vector<256x512xbf16>
    %cst_20 = arith.constant dense<0.000000e+00> : vector<8x512xf32>
    %42 = tpu.matmul %40, %41, %cst_20 {dimension_numbers = #tpu.dot_dimension_numbers<[1], [0], [0], [1], [0, 0, 1, 1], [], []>} : vector<8x256xbf16>, vector<256x512xbf16>, vector<8x512xf32> -> vector<8x512xf32>
    %c0_21 = arith.constant 0 : index
    %c0_22 = arith.constant 0 : index
    %43 = vector.load %arg7[%c0_21, %c0_22] : memref<1x512xf32, #tpu.memory_space<vmem>>, vector<1x512xf32>
    %44 = vector.broadcast %43 : vector<1x512xf32> to vector<8x512xf32>
    %45 = arith.addf %42, %44 : vector<8x512xf32>
    %cst_23 = arith.constant 2.000000e+01 : f32
    %46 = vector.broadcast %cst_23 : f32 to vector<8x512xf32>
    %47 = arith.minimumf %45, %46 : vector<8x512xf32>
    %48 = math.exp %47 : vector<8x512xf32>
    %cst_24 = arith.constant 2.000000e+00 : f32
    %49 = vector.broadcast %cst_24 : f32 to vector<8x512xf32>
    %50 = arith.addf %48, %49 : vector<8x512xf32>
    %51 = arith.mulf %48, %50 : vector<8x512xf32>
    %52 = arith.mulf %45, %51 : vector<8x512xf32>
    %cst_25 = arith.constant 2.000000e+00 : f32
    %53 = vector.broadcast %cst_25 : f32 to vector<8x512xf32>
    %54 = arith.addf %51, %53 : vector<8x512xf32>
    %55 = tpu.reciprocal %54 {approx = true} : vector<8x512xf32> -> vector<8x512xf32>
    %56 = arith.mulf %52, %55 : vector<8x512xf32>
    %cst_26 = arith.constant 2.000000e+01 : f32
    %57 = vector.broadcast %cst_26 : f32 to vector<8x512xf32>
    %58 = arith.cmpf ogt, %45, %57 : vector<8x512xf32>
    %59 = arith.select %58, %45, %56 : vector<8x512xi1>, vector<8x512xf32>
    %60 = arith.truncf %59 : vector<8x512xf32> to vector<8x512xbf16>
    %c0_27 = arith.constant 0 : index
    %c0_28 = arith.constant 0 : index
    %61 = vector.load %arg8[%c0_27, %c0_28] : memref<512x1024xbf16, #tpu.memory_space<vmem>>, vector<512x1024xbf16>
    %cst_29 = arith.constant dense<0.000000e+00> : vector<8x1024xf32>
    %62 = tpu.matmul %60, %61, %cst_29 {dimension_numbers = #tpu.dot_dimension_numbers<[1], [0], [0], [1], [0, 0, 1, 1], [], []>} : vector<8x512xbf16>, vector<512x1024xbf16>, vector<8x1024xf32> -> vector<8x1024xf32>
    %c0_30 = arith.constant 0 : index
    %c0_31 = arith.constant 0 : index
    %63 = vector.load %arg9[%c0_30, %c0_31] : memref<1x1024xf32, #tpu.memory_space<vmem>>, vector<1x1024xf32>
    %64 = vector.broadcast %63 : vector<1x1024xf32> to vector<8x1024xf32>
    %65 = arith.addf %62, %64 : vector<8x1024xf32>
    %cst_32 = arith.constant 2.000000e+01 : f32
    %66 = vector.broadcast %cst_32 : f32 to vector<8x1024xf32>
    %67 = arith.minimumf %65, %66 : vector<8x1024xf32>
    %68 = math.exp %67 : vector<8x1024xf32>
    %cst_33 = arith.constant 2.000000e+00 : f32
    %69 = vector.broadcast %cst_33 : f32 to vector<8x1024xf32>
    %70 = arith.addf %68, %69 : vector<8x1024xf32>
    %71 = arith.mulf %68, %70 : vector<8x1024xf32>
    %72 = arith.mulf %65, %71 : vector<8x1024xf32>
    %cst_34 = arith.constant 2.000000e+00 : f32
    %73 = vector.broadcast %cst_34 : f32 to vector<8x1024xf32>
    %74 = arith.addf %71, %73 : vector<8x1024xf32>
    %75 = tpu.reciprocal %74 {approx = true} : vector<8x1024xf32> -> vector<8x1024xf32>
    %76 = arith.mulf %72, %75 : vector<8x1024xf32>
    %cst_35 = arith.constant 2.000000e+01 : f32
    %77 = vector.broadcast %cst_35 : f32 to vector<8x1024xf32>
    %78 = arith.cmpf ogt, %65, %77 : vector<8x1024xf32>
    %79 = arith.select %78, %65, %76 : vector<8x1024xi1>, vector<8x1024xf32>
    %80 = arith.truncf %79 : vector<8x1024xf32> to vector<8x1024xbf16>
    %c0_36 = arith.constant 0 : index
    %c0_37 = arith.constant 0 : index
    %81 = vector.load %arg10[%c0_36, %c0_37] : memref<1024x2048xbf16, #tpu.memory_space<vmem>>, vector<1024x2048xbf16>
    %cst_38 = arith.constant dense<0.000000e+00> : vector<8x2048xf32>
    %82 = tpu.matmul %80, %81, %cst_38 {dimension_numbers = #tpu.dot_dimension_numbers<[1], [0], [0], [1], [0, 0, 1, 1], [], []>} : vector<8x1024xbf16>, vector<1024x2048xbf16>, vector<8x2048xf32> -> vector<8x2048xf32>
    %c0_39 = arith.constant 0 : index
    %c0_40 = arith.constant 0 : index
    %83 = vector.load %arg11[%c0_39, %c0_40] : memref<1x2048xf32, #tpu.memory_space<vmem>>, vector<1x2048xf32>
    %84 = vector.broadcast %83 : vector<1x2048xf32> to vector<8x2048xf32>
    %85 = arith.addf %82, %84 : vector<8x2048xf32>
    %c0_41 = arith.constant 0 : index
    %c0_42 = arith.constant 0 : index
    %86 = vector.load %arg12[%c0_41, %c0_42] : memref<8x2048xf32, #tpu.memory_space<vmem>>, vector<8x2048xf32>
    tpu.vector_store %arg12[%c0_41, %c0_42], %85 {strides = array<i32>} : memref<8x2048xf32, #tpu.memory_space<vmem>>, vector<8x2048xf32>,
    return
  }
  func.func @transform_0(%arg0: i32) -> (i32, i32) {
    %c0_i32 = arith.constant 0 : i32
    %c0_i32_0 = arith.constant 0 : i32
    return %arg0, %c0_i32 : i32, i32
  }
  func.func @transform_1(%arg0: i32) -> (i32, i32) {
    %c0_i32 = arith.constant 0 : i32
    %c0_i32_0 = arith.constant 0 : i32
    %c0_i32_1 = arith.constant 0 : i32
    return %c0_i32, %c0_i32_0 : i32, i32
  }
  func.func @transform_2(%arg0: i32) -> (i32, i32) {
    %c0_i32 = arith.constant 0 : i32
    %c0_i32_0 = arith.constant 0 : i32
    %c0_i32_1 = arith.constant 0 : i32
    return %c0_i32, %c0_i32_0 : i32, i32
  }
  func.func @transform_3(%arg0: i32) -> (i32, i32) {
    %c0_i32 = arith.constant 0 : i32
    %c0_i32_0 = arith.constant 0 : i32
    %c0_i32_1 = arith.constant 0 : i32
    return %c0_i32, %c0_i32_0 : i32, i32
  }
  func.func @transform_4(%arg0: i32) -> (i32, i32) {
    %c0_i32 = arith.constant 0 : i32
    %c0_i32_0 = arith.constant 0 : i32
    %c0_i32_1 = arith.constant 0 : i32
    return %c0_i32, %c0_i32_0 : i32, i32
  }
  func.func @transform_5(%arg0: i32) -> (i32, i32) {
    %c0_i32 = arith.constant 0 : i32
    %c0_i32_0 = arith.constant 0 : i32
    %c0_i32_1 = arith.constant 0 : i32
    return %c0_i32, %c0_i32_0 : i32, i32
  }
  func.func @transform_6(%arg0: i32) -> (i32, i32) {
    %c0_i32 = arith.constant 0 : i32
    %c0_i32_0 = arith.constant 0 : i32
    %c0_i32_1 = arith.constant 0 : i32
    return %c0_i32, %c0_i32_0 : i32, i32
  }
  func.func @transform_7(%arg0: i32) -> (i32, i32) {
    %c0_i32 = arith.constant 0 : i32
    %c0_i32_0 = arith.constant 0 : i32
    %c0_i32_1 = arith.constant 0 : i32
    return %c0_i32, %c0_i32_0 : i32, i32
  }
  func.func @transform_8(%arg0: i32) -> (i32, i32) {
    %c0_i32 = arith.constant 0 : i32
    %c0_i32_0 = arith.constant 0 : i32
    %c0_i32_1 = arith.constant 0 : i32
    return %c0_i32, %c0_i32_0 : i32, i32
  }
  func.func @transform_9(%arg0: i32) -> (i32, i32) {
    %c0_i32 = arith.constant 0 : i32
    %c0_i32_0 = arith.constant 0 : i32
    %c0_i32_1 = arith.constant 0 : i32
    return %c0_i32, %c0_i32_0 : i32, i32
  }
  func.func @transform_10(%arg0: i32) -> (i32, i32) {
    %c0_i32 = arith.constant 0 : i32
    %c0_i32_0 = arith.constant 0 : i32
    %c0_i32_1 = arith.constant 0 : i32
    return %c0_i32, %c0_i32_0 : i32, i32
  }
  func.func @transform_11(%arg0: i32) -> (i32, i32) {
    %c0_i32 = arith.constant 0 : i32
    %c0_i32_0 = arith.constant 0 : i32
    return %arg0, %c0_i32 : i32, i32
  }
}

</mosaic_0001>

<llo_original>
// kernel: custom-call
$region0: #{custom-call}
  %s0 = inlined_call_operand.vmem [shape: u32[24], index: 0, kind: output, shape index: {}]

// kernel: zip_ssl_forward.1
$region0: #{zip_ssl_forward.1}
  #allocation0 [shape = 'u32[]', space=smem, size = 0x4, offset = 0x4, fixed_abs, tag = 'smem constant byte address 0x4 - core index']
  #allocation1 [shape = 'u32[72,128]{1,0:T(1,128)}', space=vmem, size = 0x9000, scoped, tag = 'internal scratch']
  %s0 = inlined_call_operand.vmem [shape: bf16[8,32], index: 0, kind: input, shape index: {}]
  %s1 = inlined_call_operand.hbm [shape: bf16[32,128], index: 1, kind: input, shape index: {}]
  %s2 = inlined_call_operand.hbm [shape: f32[1,128], index: 2, kind: input, shape index: {}]
  %s3 = inlined_call_operand.hbm [shape: bf16[128,256], index: 3, kind: input, shape index: {}]
  %s4 = inlined_call_operand.hbm [shape: f32[1,256], index: 4, kind: input, shape index: {}]
  %s5 = inlined_call_operand.hbm [shape: bf16[256,512], index: 5, kind: input, shape index: {}]
  %s6 = inlined_call_operand.hbm [shape: f32[1,512], index: 6, kind: input, shape index: {}]
  %s7 = inlined_call_operand.vmem [shape: bf16[512,1024], index: 7, kind: input, shape index: {}]
  %s8 = inlined_call_operand.hbm [shape: f32[1,1024], index: 8, kind: input, shape index: {}]
  %s9 = inlined_call_operand.hbm [shape: bf16[1024,2048], index: 9, kind: input, shape index: {}]
  %s10 = inlined_call_operand.hbm [shape: f32[1,2048], index: 10, kind: input, shape index: {}]
  %s11 = inlined_call_operand.hbm [shape: f32[8,2048], index: 11, kind: output, shape index: {}]
  %s12 = sld [smem:[#allocation0]]
  $region90: #{zip_ssl_forward.1} parent=0
    _
  %s14 = ssub.s32 1, %s12
  %s15 = scalar_select 0, %s14, %s12
  $region1: #{zip_ssl_forward.1} parent=0
    #allocation2 [shape = 'u8[8192]{0}', space=vmem, size = 0x2000, scoped, tag = 'input window, operand 1, single buffered']
    #allocation3 [shape = 's32[1]{0}', space=sflag, size = 0x4, scoped, tag = 'scoped memory for zip_ssl_forward.1']
    #allocation4 [shape = 's32[1]{0}', space=sflag, size = 0x4, scoped, tag = 'scoped memory for zip_ssl_forward.1']
    #allocation5 [shape = 'u8[512]{0}', space=vmem, size = 0x400, scoped, tag = 'input window, operand 2, single buffered']
    #allocation6 [shape = 's32[1]{0}', space=sflag, size = 0x4, scoped, tag = 'scoped memory for zip_ssl_forward.1']
    #allocation7 [shape = 'u8[65536]{0}', space=vmem, size = 0x10000, scoped, tag = 'input window, operand 3, single buffered']
    #allocation8 [shape = 'u8[1024]{0}', space=vmem, size = 0x400, scoped, tag = 'input window, operand 4, single buffered']
    #allocation9 [shape = 's32[1]{0}', space=sflag, size = 0x4, scoped, tag = 'scoped memory for zip_ssl_forward.1']
    #allocation10 [shape = 'u8[262144]{0}', space=vmem, size = 0x40000, scoped, tag = 'input window, operand 5, single buffered']
    #allocation11 [shape = 'u8[2048]{0}', space=vmem, size = 0x800, scoped, tag = 'input window, operand 6, single buffered']
    #allocation12 [shape = 's32[1]{0}', space=sflag, size = 0x4, scoped, tag = 'scoped memory for zip_ssl_forward.1']
    #allocation13 [shape = 'u8[4096]{0}', space=vmem, size = 0x1000, scoped, tag = 'input window, operand 8, single buffered']
    #allocation14 [shape = 'u8[4194304]{0}', space=vmem, size = 0x400000, scoped, tag = 'input window, operand 9, single buffered']
    #allocation15 [shape = 's32[1]{0}', space=sflag, size = 0x4, scoped, tag = 'scoped memory for zip_ssl_forward.1']
    #allocation16 [shape = 'u8[8192]{0}', space=vmem, size = 0x2000, scoped, tag = 'input window, operand 10, single buffered']
    #allocation17 [shape = 'u8[65536]{0}', space=vmem, size = 0x10000, scoped, tag = 'output window, operand 0, single buffered']
    %16 = vsyncpa [#allocation3], 0
    %17 = vsyncpa [#allocation6], 0
    %18 = vsyncpa [#allocation9], 0
    %19 = vsyncpa [#allocation12], 0
    %20 = vsyncpa [#allocation15], 0
    %21 = vsyncpa [#allocation4], 0
    // Predicated region
    $region2: #{zip_ssl_forward.1} parent=1 // pred_check
      _
    $region3: #{zip_ssl_forward.1} parent=1 // pred_check_branch
      %23 = sbr.rel (0) target = $region5
    $region4: #{zip_ssl_forward.1} parent=1 // pred_region
      _
    $region5: #{zip_ssl_forward.1} parent=1 // pred_fallthru
      _
    // Predicated region
    $region6: #{zip_ssl_forward.1} parent=1 // pred_check
      _
    $region7: #{zip_ssl_forward.1} parent=1 // pred_check_branch
      %25 = sbr.rel (0) target = $region9
    $region8: #{zip_ssl_forward.1} parent=1 // pred_region
      %27 = vsyncadd [#allocation3], 0
      %s28 = sshll.u32 %s1, 4
      %s29 = int_to_ptr.hbm [resolvable:$true] %s28
      %s30 = sshll.u32 [#allocation2], 4
      %s31 = int_to_ptr.vmem [resolvable:$true] %s30
      %36 = dma.hbm_to_vmem [thread:$0]  %s29, 256, %s31, [#allocation3], 64, 64, 4
    $region9: #{zip_ssl_forward.1} parent=1 // pred_fallthru
      _
    // Predicated region
    $region10: #{zip_ssl_forward.1} parent=1 // pred_check
      _
    $region11: #{zip_ssl_forward.1} parent=1 // pred_check_branch
      %38 = sbr.rel (0) target = $region13
    $region12: #{zip_ssl_forward.1} parent=1 // pred_region
      %40 = vsyncadd [#allocation6], 0
      %s42 = sshll.u32 %s2, 4
      %s43 = int_to_ptr.hbm [resolvable:$true] %s42
      %s44 = sshll.u32 [#allocation5], 4
      %s45 = int_to_ptr.vmem [resolvable:$true] %s44
      %47 = dma.hbm_to_vmem [thread:$0]  %s43, 16, %s45, [#allocation6]
    $region13: #{zip_ssl_forward.1} parent=1 // pred_fallthru
      _
    // Predicated region
    $region14: #{zip_ssl_forward.1} parent=1 // pred_check
      _
    $region15: #{zip_ssl_forward.1} parent=1 // pred_check_branch
      %49 = sbr.rel (0) target = $region17
    $region16: #{zip_ssl_forward.1} parent=1 // pred_region
      %51 = vsyncadd [#allocation6], 0
      %s52 = sshll.u32 %s3, 4
      %s53 = int_to_ptr.hbm [resolvable:$true] %s52
      %s54 = sshll.u32 [#allocation7], 4
      %s55 = int_to_ptr.vmem [resolvable:$true] %s54
      %60 = dma.hbm_to_vmem [thread:$0]  %s53, 2048, %s55, [#allocation6], 128, 128, 8
    $region17: #{zip_ssl_forward.1} parent=1 // pred_fallthru
      _
    // Predicated region
    $region18: #{zip_ssl_forward.1} parent=1 // pred_check
      _
    $region19: #{zip_ssl_forward.1} parent=1 // pred_check_branch
      %62 = sbr.rel (0) target = $region21
    $region20: #{zip_ssl_forward.1} parent=1 // pred_region
      %64 = vsyncadd [#allocation9], 0
      %s66 = sshll.u32 %s4, 4
      %s67 = int_to_ptr.hbm [resolvable:$true] %s66
      %s68 = sshll.u32 [#allocation8], 4
      %s69 = int_to_ptr.vmem [resolvable:$true] %s68
      %71 = dma.hbm_to_vmem [thread:$0]  %s67, 32, %s69, [#allocation9]
    $region21: #{zip_ssl_forward.1} parent=1 // pred_fallthru
      _
    // Predicated region
    $region22: #{zip_ssl_forward.1} parent=1 // pred_check
      _
    $region23: #{zip_ssl_forward.1} parent=1 // pred_check_branch
      %73 = sbr.rel (0) target = $region25
    $region24: #{zip_ssl_forward.1} parent=1 // pred_region
      %75 = vsyncadd [#allocation9], 0
      %s76 = sshll.u32 %s5, 4
      %s77 = int_to_ptr.hbm [resolvable:$true] %s76
      %s78 = sshll.u32 [#allocation10], 4
      %s79 = int_to_ptr.vmem [resolvable:$true] %s78
      %84 = dma.hbm_to_vmem [thread:$0]  %s77, 8192, %s79, [#allocation9], 256, 256, 16
    $region25: #{zip_ssl_forward.1} parent=1 // pred_fallthru
      _
    // Predicated region
    $region26: #{zip_ssl_forward.1} parent=1 // pred_check
      _
    $region27: #{zip_ssl_forward.1} parent=1 // pred_check_branch
      %86 = sbr.rel (0) target = $region29
    $region28: #{zip_ssl_forward.1} parent=1 // pred_region
      %88 = vsyncadd [#allocation12], 0
      %s90 = sshll.u32 %s6, 4
      %s91 = int_to_ptr.hbm [resolvable:$true] %s90
      %s92 = sshll.u32 [#allocation11], 4
      %s93 = int_to_ptr.vmem [resolvable:$true] %s92
      %95 = dma.hbm_to_vmem [thread:$0]  %s91, 64, %s93, [#allocation12]
    $region29: #{zip_ssl_forward.1} parent=1 // pred_fallthru
      _
    // Predicated region
    $region30: #{zip_ssl_forward.1} parent=1 // pred_check
      _
    $region31: #{zip_ssl_forward.1} parent=1 // pred_check_branch
      %97 = sbr.rel (0) target = $region33
    $region32: #{zip_ssl_forward.1} parent=1 // pred_region
      _
    $region33: #{zip_ssl_forward.1} parent=1 // pred_fallthru
      _
    // Predicated region
    $region34: #{zip_ssl_forward.1} parent=1 // pred_check
      _
    $region35: #{zip_ssl_forward.1} parent=1 // pred_check_branch
      %99 = sbr.rel (0) target = $region37
    $region36: #{zip_ssl_forward.1} parent=1 // pred_region
      %101 = vsyncadd [#allocation12], 0
      %s103 = sshll.u32 %s8, 4
      %s104 = int_to_ptr.hbm [resolvable:$true] %s103
      %s105 = sshll.u32 [#allocation13], 4
      %s106 = int_to_ptr.vmem [resolvable:$true] %s105
      %108 = dma.hbm_to_vmem [thread:$0]  %s104, 128, %s106, [#allocation12]
    $region37: #{zip_ssl_forward.1} parent=1 // pred_fallthru
      _
    // Predicated region
    $region38: #{zip_ssl_forward.1} parent=1 // pred_check
      _
    $region39: #{zip_ssl_forward.1} parent=1 // pred_check_branch
      %110 = sbr.rel (0) target = $region41
    $region40: #{zip_ssl_forward.1} parent=1 // pred_region
      %112 = vsyncadd [#allocation15], 0
      %s113 = sshll.u32 %s9, 4
      %s114 = int_to_ptr.hbm [resolvable:$true] %s113
      %s115 = sshll.u32 [#allocation14], 4
      %s116 = int_to_ptr.vmem [resolvable:$true] %s115
      %121 = dma.hbm_to_vmem [thread:$0]  %s114, 131072, %s116, [#allocation15], 1024, 1024, 64
    $region41: #{zip_ssl_forward.1} parent=1 // pred_fallthru
      _
    // Predicated region
    $region42: #{zip_ssl_forward.1} parent=1 // pred_check
      _
    $region43: #{zip_ssl_forward.1} parent=1 // pred_check_branch
      %123 = sbr.rel (0) target = $region45
    $region44: #{zip_ssl_forward.1} parent=1 // pred_region
      %125 = vsyncadd [#allocation15], 0
      %s127 = sshll.u32 %s10, 4
      %s128 = int_to_ptr.hbm [resolvable:$true] %s127
      %s129 = sshll.u32 [#allocation16], 4
      %s130 = int_to_ptr.vmem [resolvable:$true] %s129
      %132 = dma.hbm_to_vmem [thread:$0]  %s128, 256, %s130, [#allocation15]
    $region45: #{zip_ssl_forward.1} parent=1 // pred_fallthru
      _
    // Predicated region
    $region46: #{zip_ssl_forward.1} parent=1 // pred_check
      _
    $region47: #{zip_ssl_forward.1} parent=1 // pred_check_branch
      %134 = sbr.rel (0) target = $region49
    $region48: #{zip_ssl_forward.1} parent=1 // pred_region
      %136 = dma.done [#allocation3], 256
    $region49: #{zip_ssl_forward.1} parent=1 // pred_fallthru
      _
    // Predicated region
    $region50: #{zip_ssl_forward.1} parent=1 // pred_check
      _
    $region51: #{zip_ssl_forward.1} parent=1 // pred_check_branch
      %138 = sbr.rel (0) target = $region53
    $region52: #{zip_ssl_forward.1} parent=1 // pred_region
      %140 = dma.done [#allocation6], 16
    $region53: #{zip_ssl_forward.1} parent=1 // pred_fallthru
      _
    // Predicated region
    $region54: #{zip_ssl_forward.1} parent=1 // pred_check
      _
    $region55: #{zip_ssl_forward.1} parent=1 // pred_check_branch
      %142 = sbr.rel (0) target = $region57
    $region56: #{zip_ssl_forward.1} parent=1 // pred_region
      %144 = dma.done [#allocation6], 2048
    $region57: #{zip_ssl_forward.1} parent=1 // pred_fallthru
      _
    // Predicated region
    $region58: #{zip_ssl_forward.1} parent=1 // pred_check
      _
    $region59: #{zip_ssl_forward.1} parent=1 // pred_check_branch
      %146 = sbr.rel (0) target = $region61
    $region60: #{zip_ssl_forward.1} parent=1 // pred_region
      %148 = dma.done [#allocation9], 32
    $region61: #{zip_ssl_forward.1} parent=1 // pred_fallthru
      _
    // Predicated region
    $region62: #{zip_ssl_forward.1} parent=1 // pred_check
      _
    $region63: #{zip_ssl_forward.1} parent=1 // pred_check_branch
      %150 = sbr.rel (0) target = $region65
    $region64: #{zip_ssl_forward.1} parent=1 // pred_region
      %152 = dma.done [#allocation9], 8192
    $region65: #{zip_ssl_forward.1} parent=1 // pred_fallthru
      _
    // Predicated region
    $region66: #{zip_ssl_forward.1} parent=1 // pred_check
      _
    $region67: #{zip_ssl_forward.1} parent=1 // pred_check_branch
      %154 = sbr.rel (0) target = $region69
    $region68: #{zip_ssl_forward.1} parent=1 // pred_region
      %156 = dma.done [#allocation12], 64
    $region69: #{zip_ssl_forward.1} parent=1 // pred_fallthru
      _
    // Predicated region
    $region70: #{zip_ssl_forward.1} parent=1 // pred_check
      _
    $region71: #{zip_ssl_forward.1} parent=1 // pred_check_branch
      %158 = sbr.rel (0) target = $region73
    $region72: #{zip_ssl_forward.1} parent=1 // pred_region
      %160 = dma.done [#allocation12], 128
    $region73: #{zip_ssl_forward.1} parent=1 // pred_fallthru
      _
    // Predicated region
    $region74: #{zip_ssl_forward.1} parent=1 // pred_check
      _
    $region75: #{zip_ssl_forward.1} parent=1 // pred_check_branch
      %162 = sbr.rel (0) target = $region77
    $region76: #{zip_ssl_forward.1} parent=1 // pred_region
      %164 = dma.done [#allocation15], 131072
    $region77: #{zip_ssl_forward.1} parent=1 // pred_fallthru
      _
    // Predicated region
    $region78: #{zip_ssl_forward.1} parent=1 // pred_check
      _
    $region79: #{zip_ssl_forward.1} parent=1 // pred_check_branch
      %166 = sbr.rel (0) target = $region81
    $region80: #{zip_ssl_forward.1} parent=1 // pred_region
      %168 = dma.done [#allocation15], 256
    $region81: #{zip_ssl_forward.1} parent=1 // pred_fallthru
      _
    %v170 = vld [vmem:[%s0] sm:$0xf]
    %v171 = vld [vmem:[#allocation2] sm:$0xf]
    %v172 = vld [vmem:[#allocation2 + $0x4] sm:$0xf]
    %v173 = vld [vmem:[#allocation2 + $0x8] sm:$0xf]
    %v174 = vld [vmem:[#allocation2 + $0xc] sm:$0xf]
    %v175 = vld [vmem:[#allocation5] sm:$0x1]
    %v177 = vperm.slane %v175, 0
    %v183 = vunpack.c.l.b16 %v171
    %v184 = vunpack.c.l.b16 %v172
    %v185 = vunpack.c.l.b16 %v173
    %v186 = vunpack.c.l.b16 %v174
    %v187 = vpack.c.b16 %v184, %v183
    %v188 = vpack.c.b16 %v186, %v185
    %vm191 = vcmask 261120
    %v193 = vsel %vm191, %v170, 0
    %195 = vmatpush.bf16.msra.mxu0 0
    %196 = vmatpush.bf16.msra.mxu0 0
    %197 = vmatpush.bf16.msra.mxu0 0
    %198 = vmatpush.bf16.msra.mxu0 0
    %199 = vmatpush.bf16.msra.mxu0 0
    %200 = vmatpush.bf16.msra.mxu0 0
    %201 = vmatpush.bf16.msra.mxu0 %v188
    %202 = vmatpush.bf16.msra.mxu0 %v187
    %203 = vmatmul.bf16.gmra.mxu0 %v193
    %v204 = vpop.f32.mrf.mxu0
    %v205 = vadd.f32 %v177, %v204
    %v206 = vpop.f32.mrf.mxu0
    %207 = vdwg.mxu0
    %v208 = vmin.f32 %v205, 20.0
    %v209 = vmul.f32 %v208, 1.442695
    %v210 = vpow.pop %v209
    %v211 = vadd.f32 %v210, 2.0
    %v212 = vmul.f32 %v210, %v211
    %v213 = vmul.f32 %v205, %v212
    %v214 = vadd.f32 %v212, 2.0
    %v215 = vrcp.pop %v214
    %v216 = vmul.f32 %v213, %v215
    %vm217 = vcmp.gt.f32.partialorder %v205, 20.0
    %v218 = vsel %vm217, %v205, %v216
    %v219 = vpack.c.bf16 %v218, %v218
    %v220 = vld [vmem:[#allocation7] sm:$0xff]
    %v221 = vld [vmem:[#allocation7 + $0x8] sm:$0xff]
    %v222 = vld [vmem:[#allocation7 + $0x10] sm:$0xff]
    %v223 = vld [vmem:[#allocation7 + $0x18] sm:$0xff]
    %v224 = vld [vmem:[#allocation7 + $0x20] sm:$0xff]
    %v225 = vld [vmem:[#allocation7 + $0x28] sm:$0xff]
    %v226 = vld [vmem:[#allocation7 + $0x30] sm:$0xff]
    %v227 = vld [vmem:[#allocation7 + $0x38] sm:$0xff]
    %v228 = vld [vmem:[#allocation7 + $0x40] sm:$0xff]
    %v229 = vld [vmem:[#allocation7 + $0x48] sm:$0xff]
    %v230 = vld [vmem:[#allocation7 + $0x50] sm:$0xff]
    %v231 = vld [vmem:[#allocation7 + $0x58] sm:$0xff]
    %v232 = vld [vmem:[#allocation7 + $0x60] sm:$0xff]
    %v233 = vld [vmem:[#allocation7 + $0x68] sm:$0xff]
    %v234 = vld [vmem:[#allocation7 + $0x70] sm:$0xff]
    %v235 = vld [vmem:[#allocation7 + $0x78] sm:$0xff]
    %v236 = vld [vmem:[#allocation8] sm:$0x3]
    %v238 = vperm.slane %v236, 0
    %v239 = vperm.slane %v236, 1
    %v258 = vunpack.c.l.b16 %v220
    %v259 = vunpack.c.h.b16 %v220
    %v260 = vunpack.c.l.b16 %v221
    %v261 = vunpack.c.h.b16 %v221
    %v262 = vunpack.c.l.b16 %v222
    %v263 = vunpack.c.h.b16 %v222
    %v264 = vunpack.c.l.b16 %v223
    %v265 = vunpack.c.h.b16 %v223
    %v266 = vunpack.c.l.b16 %v224
    %v267 = vunpack.c.h.b16 %v224
    %v268 = vunpack.c.l.b16 %v225
    %v269 = vunpack.c.h.b16 %v225
    %v270 = vunpack.c.l.b16 %v226
    %v271 = vunpack.c.h.b16 %v226
    %v272 = vunpack.c.l.b16 %v227
    %v273 = vunpack.c.h.b16 %v227
    %v274 = vunpack.c.l.b16 %v228
    %v275 = vunpack.c.h.b16 %v228
    %v276 = vunpack.c.l.b16 %v229
    %v277 = vunpack.c.h.b16 %v229
    %v278 = vunpack.c.l.b16 %v230
    %v279 = vunpack.c.h.b16 %v230
    %v280 = vunpack.c.l.b16 %v231
    %v281 = vunpack.c.h.b16 %v231
    %v282 = vunpack.c.l.b16 %v232
    %v283 = vunpack.c.h.b16 %v232
    %v284 = vunpack.c.l.b16 %v233
    %v285 = vunpack.c.h.b16 %v233
    %v286 = vunpack.c.l.b16 %v234
    %v287 = vunpack.c.h.b16 %v234
    %v288 = vunpack.c.l.b16 %v235
    %v289 = vunpack.c.h.b16 %v235
    %v290 = vpack.c.b16 %v260, %v258
    %v291 = vpack.c.b16 %v261, %v259
    %v292 = vpack.c.b16 %v264, %v262
    %v293 = vpack.c.b16 %v265, %v263
    %v294 = vpack.c.b16 %v268, %v266
    %v295 = vpack.c.b16 %v269, %v267
    %v296 = vpack.c.b16 %v272, %v270
    %v297 = vpack.c.b16 %v273, %v271
    %v298 = vpack.c.b16 %v276, %v274
    %v299 = vpack.c.b16 %v277, %v275
    %v300 = vpack.c.b16 %v280, %v278
    %v301 = vpack.c.b16 %v281, %v279
    %v302 = vpack.c.b16 %v284, %v282
    %v303 = vpack.c.b16 %v285, %v283
    %v304 = vpack.c.b16 %v288, %v286
    %v305 = vpack.c.b16 %v289, %v287
    %322 = vmatpush.bf16.msra.mxu0 %v304
    %323 = vmatpush.bf16.msra.mxu0 %v302
    %324 = vmatpush.bf16.msra.mxu0 %v300
    %325 = vmatpush.bf16.msra.mxu0 %v298
    %326 = vmatpush.bf16.msra.mxu0 %v296
    %327 = vmatpush.bf16.msra.mxu0 %v294
    %328 = vmatpush.bf16.msra.mxu0 %v292
    %329 = vmatpush.bf16.msra.mxu0 %v290
    %330 = vmatmul.bf16.gmra.mxu0 %v219
    %v331 = vpop.f32.mrf.mxu0
    %v332 = vadd.f32 %v238, %v331
    %v333 = vpop.f32.mrf.mxu0
    %334 = vdwg.mxu0
    %335 = vmatpush.bf16.msra.mxu0 %v305
    %336 = vmatpush.bf16.msra.mxu0 %v303
    %337 = vmatpush.bf16.msra.mxu0 %v301
    %338 = vmatpush.bf16.msra.mxu0 %v299
    %339 = vmatpush.bf16.msra.mxu0 %v297
    %340 = vmatpush.bf16.msra.mxu0 %v295
    %341 = vmatpush.bf16.msra.mxu0 %v293
    %342 = vmatpush.bf16.msra.mxu0 %v291
    %343 = vmatmul.bf16.gmra.mxu0 %v219
    %v344 = vpop.f32.mrf.mxu0
    %v345 = vadd.f32 %v239, %v344
    %v346 = vpop.f32.mrf.mxu0
    %347 = vdwg.mxu0
    %v348 = vmin.f32 %v332, 20.0
    %v349 = vmin.f32 %v345, 20.0
    %v350 = vmul.f32 %v348, 1.442695
    %v351 = vpow.pop %v350
    %v352 = vmul.f32 %v349, 1.442695
    %v353 = vpow.pop %v352
    %v354 = vadd.f32 %v351, 2.0
    %v355 = vadd.f32 %v353, 2.0
    %v356 = vmul.f32 %v351, %v354
    %v357 = vmul.f32 %v353, %v355
    %v358 = vmul.f32 %v332, %v356
    %v359 = vmul.f32 %v345, %v357
    %v360 = vadd.f32 %v356, 2.0
    %v361 = vadd.f32 %v357, 2.0
    %v362 = vrcp.pop %v360
    %v363 = vrcp.pop %v361
    %v364 = vmul.f32 %v358, %v362
    %v365 = vmul.f32 %v359, %v363
    %vm366 = vcmp.gt.f32.partialorder %v332, 20.0
    %vm367 = vcmp.gt.f32.partialorder %v345, 20.0
    %v368 = vsel %vm366, %v332, %v364
    %v369 = vsel %vm367, %v345, %v365
    %v370 = vpack.c.bf16 %v368, %v368
    %v371 = vpack.c.bf16 %v369, %v369
    %v372 = vld [vmem:[#allocation10] sm:$0xff]
    %v373 = vld [vmem:[#allocation10 + $0x8] sm:$0xff]
    %v374 = vld [vmem:[#allocation10 + $0x10] sm:$0xff]
    %v375 = vld [vmem:[#allocation10 + $0x18] sm:$0xff]
    %v376 = vld [vmem:[#allocation10 + $0x20] sm:$0xff]
    %v377 = vld [vmem:[#allocation10 + $0x28] sm:$0xff]
    %v378 = vld [vmem:[#allocation10 + $0x30] sm:$0xff]
    %v379 = vld [vmem:[#allocation10 + $0x38] sm:$0xff]
    %v380 = vld [vmem:[#allocation10 + $0x40] sm:$0xff]
    %v381 = vld [vmem:[#allocation10 + $0x48] sm:$0xff]
    %v382 = vld [vmem:[#allocation10 + $0x50] sm:$0xff]
    %v383 = vld [vmem:[#allocation10 + $0x58] sm:$0xff]
    %v384 = vld [vmem:[#allocation10 + $0x60] sm:$0xff]
    %v385 = vld [vmem:[#allocation10 + $0x68] sm:$0xff]
    %v386 = vld [vmem:[#allocation10 + $0x70] sm:$0xff]
    %v387 = vld [vmem:[#allocation10 + $0x78] sm:$0xff]
    %v388 = vld [vmem:[#allocation10 + $0x80] sm:$0xff]
    %v389 = vld [vmem:[#allocation10 + $0x88] sm:$0xff]
    %v390 = vld [vmem:[#allocation10 + $0x90] sm:$0xff]
    %v391 = vld [vmem:[#allocation10 + $0x98] sm:$0xff]
    %v392 = vld [vmem:[#allocation10 + $0xa0] sm:$0xff]
    %v393 = vld [vmem:[#allocation10 + $0xa8] sm:$0xff]
    %v394 = vld [vmem:[#allocation10 + $0xb0] sm:$0xff]
    %v395 = vld [vmem:[#allocation10 + $0xb8] sm:$0xff]
    %v396 = vld [vmem:[#allocation10 + $0xc0] sm:$0xff]
    %v397 = vld [vmem:[#allocation10 + $0xc8] sm:$0xff]
    %v398 = vld [vmem:[#allocation10 + $0xd0] sm:$0xff]
    %v399 = vld [vmem:[#allocation10 + $0xd8] sm:$0xff]
    %v400 = vld [vmem:[#allocation10 + $0xe0] sm:$0xff]
    %v401 = vld [vmem:[#allocation10 + $0xe8] sm:$0xff]
    %v402 = vld [vmem:[#allocation10 + $0xf0] sm:$0xff]
    %v403 = vld [vmem:[#allocation10 + $0xf8] sm:$0xff]
    %v404 = vld [vmem:[#allocation10 + $0x100] sm:$0xff]
    %v405 = vld [vmem:[#allocation10 + $0x108] sm:$0xff]
    %v406 = vld [vmem:[#allocation10 + $0x110] sm:$0xff]
    %v407 = vld [vmem:[#allocation10 + $0x118] sm:$0xff]
    %v408 = vld [vmem:[#allocation10 + $0x120] sm:$0xff]
    %v409 = vld [vmem:[#allocation10 + $0x128] sm:$0xff]
    %v410 = vld [vmem:[#allocation10 + $0x130] sm:$0xff]
    %v411 = vld [vmem:[#allocation10 + $0x138] sm:$0xff]
    %v412 = vld [vmem:[#allocation10 + $0x140] sm:$0xff]
    %v413 = vld [vmem:[#allocation10 + $0x148] sm:$0xff]
    %v414 = vld [vmem:[#allocation10 + $0x150] sm:$0xff]
    %v415 = vld [vmem:[#allocation10 + $0x158] sm:$0xff]
    %v416 = vld [vmem:[#allocation10 + $0x160] sm:$0xff]
    %v417 = vld [vmem:[#allocation10 + $0x168] sm:$0xff]
    %v418 = vld [vmem:[#allocation10 + $0x170] sm:$0xff]
    %v419 = vld [vmem:[#allocation10 + $0x178] sm:$0xff]
    %v420 = vld [vmem:[#allocation10 + $0x180] sm:$0xff]
    %v421 = vld [vmem:[#allocation10 + $0x188] sm:$0xff]
    %v422 = vld [vmem:[#allocation10 + $0x190] sm:$0xff]
    %v423 = vld [vmem:[#allocation10 + $0x198] sm:$0xff]
    %v424 = vld [vmem:[#allocation10 + $0x1a0] sm:$0xff]
    %v425 = vld [vmem:[#allocation10 + $0x1a8] sm:$0xff]
    %v426 = vld [vmem:[#allocation10 + $0x1b0] sm:$0xff]
    %v427 = vld [vmem:[#allocation10 + $0x1b8] sm:$0xff]
    %v428 = vld [vmem:[#allocation10 + $0x1c0] sm:$0xff]
    %v429 = vld [vmem:[#allocation10 + $0x1c8] sm:$0xff]
    %v430 = vld [vmem:[#allocation10 + $0x1d0] sm:$0xff]
    %v431 = vld [vmem:[#allocation10 + $0x1d8] sm:$0xff]
    %v432 = vld [vmem:[#allocation10 + $0x1e0] sm:$0xff]
    %v433 = vld [vmem:[#allocation10 + $0x1e8] sm:$0xff]
    %v434 = vld [vmem:[#allocation10 + $0x1f0] sm:$0xff]
    %v435 = vld [vmem:[#allocation10 + $0x1f8] sm:$0xff]
    %v436 = vld [vmem:[#allocation11] sm:$0xf]
    %v438 = vperm.slane %v436, 0
    %v439 = vperm.slane %v436, 1
    %v440 = vperm.slane %v436, 2
    %v441 = vperm.slane %v436, 3
    %v510 = vunpack.c.l.b16 %v372
    %v511 = vunpack.c.h.b16 %v372
    %v512 = vunpack.c.l.b16 %v373
    %v513 = vunpack.c.h.b16 %v373
    %v514 = vunpack.c.l.b16 %v374
    %v515 = vunpack.c.h.b16 %v374
    %v516 = vunpack.c.l.b16 %v375
    %v517 = vunpack.c.h.b16 %v375
    %v518 = vunpack.c.l.b16 %v376
    %v519 = vunpack.c.h.b16 %v376
    %v520 = vunpack.c.l.b16 %v377
    %v521 = vunpack.c.h.b16 %v377
    %v522 = vunpack.c.l.b16 %v378
    %v523 = vunpack.c.h.b16 %v378
    %v524 = vunpack.c.l.b16 %v379
    %v525 = vunpack.c.h.b16 %v379
    %v526 = vunpack.c.l.b16 %v380
    %v527 = vunpack.c.h.b16 %v380
    %v528 = vunpack.c.l.b16 %v381
    %v529 = vunpack.c.h.b16 %v381
    %v530 = vunpack.c.l.b16 %v382
    %v531 = vunpack.c.h.b16 %v382
    %v532 = vunpack.c.l.b16 %v383
    %v533 = vunpack.c.h.b16 %v383
    %v534 = vunpack.c.l.b16 %v384
    %v535 = vunpack.c.h.b16 %v384
    %v536 = vunpack.c.l.b16 %v385
    %v537 = vunpack.c.h.b16 %v385
    %v538 = vunpack.c.l.b16 %v386
    %v539 = vunpack.c.h.b16 %v386
    %v540 = vunpack.c.l.b16 %v387
    %v541 = vunpack.c.h.b16 %v387
    %v542 = vunpack.c.l.b16 %v388
    %v543 = vunpack.c.h.b16 %v388
    %v544 = vunpack.c.l.b16 %v389
    %v545 = vunpack.c.h.b16 %v389
    %v546 = vunpack.c.l.b16 %v390
    %v547 = vunpack.c.h.b16 %v390
    %v548 = vunpack.c.l.b16 %v391
    %v549 = vunpack.c.h.b16 %v391
    %v550 = vunpack.c.l.b16 %v392
    %v551 = vunpack.c.h.b16 %v392
    %v552 = vunpack.c.l.b16 %v393
    %v553 = vunpack.c.h.b16 %v393
    %v554 = vunpack.c.l.b16 %v394
    %v555 = vunpack.c.h.b16 %v394
    %v556 = vunpack.c.l.b16 %v395
    %v557 = vunpack.c.h.b16 %v395
    %v558 = vunpack.c.l.b16 %v396
    %v559 = vunpack.c.h.b16 %v396
    %v560 = vunpack.c.l.b16 %v397
    %v561 = vunpack.c.h.b16 %v397
    %v562 = vunpack.c.l.b16 %v398
    %v563 = vunpack.c.h.b16 %v398
    %v564 = vunpack.c.l.b16 %v399
    %v565 = vunpack.c.h.b16 %v399
    %v566 = vunpack.c.l.b16 %v400
    %v567 = vunpack.c.h.b16 %v400
    %v568 = vunpack.c.l.b16 %v401
    %v569 = vunpack.c.h.b16 %v401
    %v570 = vunpack.c.l.b16 %v402
    %v571 = vunpack.c.h.b16 %v402
    %v572 = vunpack.c.l.b16 %v403
    %v573 = vunpack.c.h.b16 %v403
    %v574 = vunpack.c.l.b16 %v404
    %v575 = vunpack.c.h.b16 %v404
    %v576 = vunpack.c.l.b16 %v405
    %v577 = vunpack.c.h.b16 %v405
    %v578 = vunpack.c.l.b16 %v406
    %v579 = vunpack.c.h.b16 %v406
    %v580 = vunpack.c.l.b16 %v407
    %v581 = vunpack.c.h.b16 %v407
    %v582 = vunpack.c.l.b16 %v408
    %v583 = vunpack.c.h.b16 %v408
    %v584 = vunpack.c.l.b16 %v409
    %v585 = vunpack.c.h.b16 %v409
    %v586 = vunpack.c.l.b16 %v410
    %v587 = vunpack.c.h.b16 %v410
    %v588 = vunpack.c.l.b16 %v411
    %v589 = vunpack.c.h.b16 %v411
    %v590 = vunpack.c.l.b16 %v412
    %v591 = vunpack.c.h.b16 %v412
    %v592 = vunpack.c.l.b16 %v413
    %v593 = vunpack.c.h.b16 %v413
    %v594 = vunpack.c.l.b16 %v414
    %v595 = vunpack.c.h.b16 %v414
    %v596 = vunpack.c.l.b16 %v415
    %v597 = vunpack.c.h.b16 %v415
    %v598 = vunpack.c.l.b16 %v416
    %v599 = vunpack.c.h.b16 %v416
    %v600 = vunpack.c.l.b16 %v417
    %v601 = vunpack.c.h.b16 %v417
    %v602 = vunpack.c.l.b16 %v418
    %v603 = vunpack.c.h.b16 %v418
    %v604 = vunpack.c.l.b16 %v419
    %v605 = vunpack.c.h.b16 %v419
    %v606 = vunpack.c.l.b16 %v420
    %v607 = vunpack.c.h.b16 %v420
    %v608 = vunpack.c.l.b16 %v421
    %v609 = vunpack.c.h.b16 %v421
    %v610 = vunpack.c.l.b16 %v422
    %v611 = vunpack.c.h.b16 %v422
    %v612 = vunpack.c.l.b16 %v423
    %v613 = vunpack.c.h.b16 %v423
    %v614 = vunpack.c.l.b16 %v424
    %v615 = vunpack.c.h.b16 %v424
    %v616 = vunpack.c.l.b16 %v425
    %v617 = vunpack.c.h.b16 %v425
    %v618 = vunpack.c.l.b16 %v426
    %v619 = vunpack.c.h.b16 %v426
    %v620 = vunpack.c.l.b16 %v427
    %v621 = vunpack.c.h.b16 %v427
    %v622 = vunpack.c.l.b16 %v428
    %v623 = vunpack.c.h.b16 %v428
    %v624 = vunpack.c.l.b16 %v429
    %v625 = vunpack.c.h.b16 %v429
    %v626 = vunpack.c.l.b16 %v430
    %v627 = vunpack.c.h.b16 %v430
    %v628 = vunpack.c.l.b16 %v431
    %v629 = vunpack.c.h.b16 %v431
    %v630 = vunpack.c.l.b16 %v432
    %v631 = vunpack.c.h.b16 %v432
    %v632 = vunpack.c.l.b16 %v433
    %v633 = vunpack.c.h.b16 %v433
    %v634 = vunpack.c.l.b16 %v434
    %v635 = vunpack.c.h.b16 %v434
    %v636 = vunpack.c.l.b16 %v435
    %v637 = vunpack.c.h.b16 %v435
    %v638 = vpack.c.b16 %v514, %v510
    %v639 = vpack.c.b16 %v515, %v511
    %v640 = vpack.c.b16 %v516, %v512
    %v641 = vpack.c.b16 %v517, %v513
    %v642 = vpack.c.b16 %v522, %v518
    %v643 = vpack.c.b16 %v523, %v519
    %v644 = vpack.c.b16 %v524, %v520
    %v645 = vpack.c.b16 %v525, %v521
    %v646 = vpack.c.b16 %v530, %v526
    %v647 = vpack.c.b16 %v531, %v527
    %v648 = vpack.c.b16 %v532, %v528
    %v649 = vpack.c.b16 %v533, %v529
    %v650 = vpack.c.b16 %v538, %v534
    %v651 = vpack.c.b16 %v539, %v535
    %v652 = vpack.c.b16 %v540, %v536
    %v653 = vpack.c.b16 %v541, %v537
    %v654 = vpack.c.b16 %v546, %v542
    %v655 = vpack.c.b16 %v547, %v543
    %v656 = vpack.c.b16 %v548, %v544
    %v657 = vpack.c.b16 %v549, %v545
    %v658 = vpack.c.b16 %v554, %v550
    %v659 = vpack.c.b16 %v555, %v551
    %v660 = vpack.c.b16 %v556, %v552
    %v661 = vpack.c.b16 %v557, %v553
    %v662 = vpack.c.b16 %v562, %v558
    %v663 = vpack.c.b16 %v563, %v559
    %v664 = vpack.c.b16 %v564, %v560
    %v665 = vpack.c.b16 %v565, %v561
    %v666 = vpack.c.b16 %v570, %v566
    %v667 = vpack.c.b16 %v571, %v567
    %v668 = vpack.c.b16 %v572, %v568
    %v669 = vpack.c.b16 %v573, %v569
    %v670 = vpack.c.b16 %v578, %v574
    %v671 = vpack.c.b16 %v579, %v575
    %v672 = vpack.c.b16 %v580, %v576
    %v673 = vpack.c.b16 %v581, %v577
    %v674 = vpack.c.b16 %v586, %v582
    %v675 = vpack.c.b16 %v587, %v583
    %v676 = vpack.c.b16 %v588, %v584
    %v677 = vpack.c.b16 %v589, %v585
    %v678 = vpack.c.b16 %v594, %v590
    %v679 = vpack.c.b16 %v595, %v591
    %v680 = vpack.c.b16 %v596, %v592
    %v681 = vpack.c.b16 %v597, %v593
    %v682 = vpack.c.b16 %v602, %v598
    %v683 = vpack.c.b16 %v603, %v599
    %v684 = vpack.c.b16 %v604, %v600
    %v685 = vpack.c.b16 %v605, %v601
    %v686 = vpack.c.b16 %v610, %v606
    %v687 = vpack.c.b16 %v611, %v607
    %v688 = vpack.c.b16 %v612, %v608
    %v689 = vpack.c.b16 %v613, %v609
    %v690 = vpack.c.b16 %v618, %v614
    %v691 = vpack.c.b16 %v619, %v615
    %v692 = vpack.c.b16 %v620, %v616
    %v693 = vpack.c.b16 %v621, %v617
    %v694 = vpack.c.b16 %v626, %v622
    %v695 = vpack.c.b16 %v627, %v623
    %v696 = vpack.c.b16 %v628, %v624
    %v697 = vpack.c.b16 %v629, %v625
    %v698 = vpack.c.b16 %v634, %v630
    %v699 = vpack.c.b16 %v635, %v631
    %v700 = vpack.c.b16 %v636, %v632
    %v701 = vpack.c.b16 %v637, %v633
    %766 = vmatpush.bf16.msra.mxu0 %v666
    %767 = vmatpush.bf16.msra.mxu0 %v662
    %768 = vmatpush.bf16.msra.mxu0 %v658
    %769 = vmatpush.bf16.msra.mxu0 %v654
    %770 = vmatpush.bf16.msra.mxu0 %v650
    %771 = vmatpush.bf16.msra.mxu0 %v646
    %772 = vmatpush.bf16.msra.mxu0 %v642
    %773 = vmatpush.bf16.msra.mxu0 %v638
    %774 = vmatmul.bf16.gmra.mxu0 %v370
    %v775 = vpop.f32.mrf.mxu0
    %v776 = vadd.f32 %v438, %v775
    %v777 = vpop.f32.mrf.mxu0
    %778 = vdwg.mxu0
    %779 = vmatpush.bf16.msra.mxu0 %v698
    %780 = vmatpush.bf16.msra.mxu0 %v694
    %781 = vmatpush.bf16.msra.mxu0 %v690
    %782 = vmatpush.bf16.msra.mxu0 %v686
    %783 = vmatpush.bf16.msra.mxu0 %v682
    %784 = vmatpush.bf16.msra.mxu0 %v678
    %785 = vmatpush.bf16.msra.mxu0 %v674
    %786 = vmatpush.bf16.msra.mxu0 %v670
    %787 = vmatmul.bf16.gmra.mxu0 %v371
    %v788 = vpop.f32.mrf.mxu0
    %v789 = vadd.f32 %v776, %v788
    %v790 = vpop.f32.mrf.mxu0
    %791 = vdwg.mxu0
    %792 = vmatpush.bf16.msra.mxu0 %v667
    %793 = vmatpush.bf16.msra.mxu0 %v663
    %794 = vmatpush.bf16.msra.mxu0 %v659
    %795 = vmatpush.bf16.msra.mxu0 %v655
    %796 = vmatpush.bf16.msra.mxu0 %v651
    %797 = vmatpush.bf16.msra.mxu0 %v647
    %798 = vmatpush.bf16.msra.mxu0 %v643
    %799 = vmatpush.bf16.msra.mxu0 %v639
    %800 = vmatmul.bf16.gmra.mxu0 %v370
    %v801 = vpop.f32.mrf.mxu0
    %v802 = vadd.f32 %v439, %v801
    %v803 = vpop.f32.mrf.mxu0
    %804 = vdwg.mxu0
    %805 = vmatpush.bf16.msra.mxu0 %v699
    %806 = vmatpush.bf16.msra.mxu0 %v695
    %807 = vmatpush.bf16.msra.mxu0 %v691
    %808 = vmatpush.bf16.msra.mxu0 %v687
    %809 = vmatpush.bf16.msra.mxu0 %v683
    %810 = vmatpush.bf16.msra.mxu0 %v679
    %811 = vmatpush.bf16.msra.mxu0 %v675
    %812 = vmatpush.bf16.msra.mxu0 %v671
    %813 = vmatmul.bf16.gmra.mxu0 %v371
    %v814 = vpop.f32.mrf.mxu0
    %v815 = vadd.f32 %v802, %v814
    %v816 = vpop.f32.mrf.mxu0
    %817 = vdwg.mxu0
    %818 = vmatpush.bf16.msra.mxu0 %v668
    %819 = vmatpush.bf16.msra.mxu0 %v664
    %820 = vmatpush.bf16.msra.mxu0 %v660
    %821 = vmatpush.bf16.msra.mxu0 %v656
    %822 = vmatpush.bf16.msra.mxu0 %v652
    %823 = vmatpush.bf16.msra.mxu0 %v648
    %824 = vmatpush.bf16.msra.mxu0 %v644
    %825 = vmatpush.bf16.msra.mxu0 %v640
    %826 = vmatmul.bf16.gmra.mxu0 %v370
    %v827 = vpop.f32.mrf.mxu0
    %v828 = vadd.f32 %v440, %v827
    %v829 = vpop.f32.mrf.mxu0
    %830 = vdwg.mxu0
    %831 = vmatpush.bf16.msra.mxu0 %v700
    %832 = vmatpush.bf16.msra.mxu0 %v696
    %833 = vmatpush.bf16.msra.mxu0 %v692
    %834 = vmatpush.bf16.msra.mxu0 %v688
    %835 = vmatpush.bf16.msra.mxu0 %v684
    %836 = vmatpush.bf16.msra.mxu0 %v680
    %837 = vmatpush.bf16.msra.mxu0 %v676
    %838 = vmatpush.bf16.msra.mxu0 %v672
    %839 = vmatmul.bf16.gmra.mxu0 %v371
    %v840 = vpop.f32.mrf.mxu0
    %v841 = vadd.f32 %v828, %v840
    %v842 = vpop.f32.mrf.mxu0
    %843 = vdwg.mxu0
    %844 = vmatpush.bf16.msra.mxu0 %v669
    %845 = vmatpush.bf16.msra.mxu0 %v665
    %846 = vmatpush.bf16.msra.mxu0 %v661
    %847 = vmatpush.bf16.msra.mxu0 %v657
    %848 = vmatpush.bf16.msra.mxu0 %v653
    %849 = vmatpush.bf16.msra.mxu0 %v649
    %850 = vmatpush.bf16.msra.mxu0 %v645
    %851 = vmatpush.bf16.msra.mxu0 %v641
    %852 = vmatmul.bf16.gmra.mxu0 %v370
    %v853 = vpop.f32.mrf.mxu0
    %v854 = vadd.f32 %v441, %v853
    %v855 = vpop.f32.mrf.mxu0
    %856 = vdwg.mxu0
    %857 = vmatpush.bf16.msra.mxu0 %v701
    %858 = vmatpush.bf16.msra.mxu0 %v697
    %859 = vmatpush.bf16.msra.mxu0 %v693
    %860 = vmatpush.bf16.msra.mxu0 %v689
    %861 = vmatpush.bf16.msra.mxu0 %v685
    %862 = vmatpush.bf16.msra.mxu0 %v681
    %863 = vmatpush.bf16.msra.mxu0 %v677
    %864 = vmatpush.bf16.msra.mxu0 %v673
    %865 = vmatmul.bf16.gmra.mxu0 %v371
    %v866 = vpop.f32.mrf.mxu0
    %v867 = vadd.f32 %v854, %v866
    %v868 = vpop.f32.mrf.mxu0
    %869 = vdwg.mxu0
    %v870 = vmin.f32 %v789, 20.0
    %v871 = vmin.f32 %v815, 20.0
    %v872 = vmin.f32 %v841, 20.0
    %v873 = vmin.f32 %v867, 20.0
    %v874 = vmul.f32 %v870, 1.442695
    %v875 = vpow.pop %v874
    %v876 = vmul.f32 %v871, 1.442695
    %v877 = vpow.pop %v876
    %v878 = vmul.f32 %v872, 1.442695
    %v879 = vpow.pop %v878
    %v880 = vmul.f32 %v873, 1.442695
    %v881 = vpow.pop %v880
    %v882 = vadd.f32 %v875, 2.0
    %v883 = vadd.f32 %v877, 2.0
    %v884 = vadd.f32 %v879, 2.0
    %v885 = vadd.f32 %v881, 2.0
    %v886 = vmul.f32 %v875, %v882
    %v887 = vmul.f32 %v877, %v883
    %v888 = vmul.f32 %v879, %v884
    %v889 = vmul.f32 %v881, %v885
    %v890 = vmul.f32 %v789, %v886
    %v891 = vmul.f32 %v815, %v887
    %v892 = vmul.f32 %v841, %v888
    %v893 = vmul.f32 %v867, %v889
    %v894 = vadd.f32 %v886, 2.0
    %v895 = vadd.f32 %v887, 2.0
    %v896 = vadd.f32 %v888, 2.0
    %v897 = vadd.f32 %v889, 2.0
    %v898 = vrcp.pop %v894
    %v899 = vrcp.pop %v895
    %v900 = vrcp.pop %v896
    %v901 = vrcp.pop %v897
    %v902 = vmul.f32 %v890, %v898
    %v903 = vmul.f32 %v891, %v899
    %v904 = vmul.f32 %v892, %v900
    %v905 = vmul.f32 %v893, %v901
    %vm906 = vcmp.gt.f32.partialorder %v789, 20.0
    %vm907 = vcmp.gt.f32.partialorder %v815, 20.0
    %vm908 = vcmp.gt.f32.partialorder %v841, 20.0
    %vm909 = vcmp.gt.f32.partialorder %v867, 20.0
    %v910 = vsel %vm906, %v789, %v902
    %v911 = vsel %vm907, %v815, %v903
    %v912 = vsel %vm908, %v841, %v904
    %v913 = vsel %vm909, %v867, %v905
    %v914 = vpack.c.bf16 %v910, %v910
    %v915 = vpack.c.bf16 %v911, %v911
    %v916 = vpack.c.bf16 %v912, %v912
    %v917 = vpack.c.bf16 %v913, %v913
    %v918 = vld [vmem:[%s7] sm:$0xff]
    %v919 = vld [vmem:[%s7 + $0x8] sm:$0xff]
    %v920 = vld [vmem:[%s7 + $0x10] sm:$0xff]
    %v921 = vld [vmem:[%s7 + $0x18] sm:$0xff]
    %v922 = vld [vmem:[%s7 + $0x20] sm:$0xff]
    %v923 = vld [vmem:[%s7 + $0x28] sm:$0xff]
    %v924 = vld [vmem:[%s7 + $0x30] sm:$0xff]
    %v925 = vld [vmem:[%s7 + $0x38] sm:$0xff]
    %v926 = vld [vmem:[%s7 + $0x40] sm:$0xff]
    %v927 = vld [vmem:[%s7 + $0x48] sm:$0xff]
    %v928 = vld [vmem:[%s7 + $0x50] sm:$0xff]
    %v929 = vld [vmem:[%s7 + $0x58] sm:$0xff]
    %v930 = vld [vmem:[%s7 + $0x60] sm:$0xff]
    %v931 = vld [vmem:[%s7 + $0x68] sm:$0xff]
    %v932 = vld [vmem:[%s7 + $0x70] sm:$0xff]
    %v933 = vld [vmem:[%s7 + $0x78] sm:$0xff]
    %v934 = vld [vmem:[%s7 + $0x80] sm:$0xff]
    %v935 = vld [vmem:[%s7 + $0x88] sm:$0xff]
    %v936 = vld [vmem:[%s7 + $0x90] sm:$0xff]
    %v937 = vld [vmem:[%s7 + $0x98] sm:$0xff]
    %v938 = vld [vmem:[%s7 + $0xa0] sm:$0xff]
    %v939 = vld [vmem:[%s7 + $0xa8] sm:$0xff]
    %v940 = vld [vmem:[%s7 + $0xb0] sm:$0xff]
    %v941 = vld [vmem:[%s7 + $0xb8] sm:$0xff]
    %v942 = vld [vmem:[%s7 + $0xc0] sm:$0xff]
    %v943 = vld [vmem:[%s7 + $0xc8] sm:$0xff]
    %v944 = vld [vmem:[%s7 + $0xd0] sm:$0xff]
    %v945 = vld [vmem:[%s7 + $0xd8] sm:$0xff]
    %v946 = vld [vmem:[%s7 + $0xe0] sm:$0xff]
    %v947 = vld [vmem:[%s7 + $0xe8] sm:$0xff]
    %v948 = vld [vmem:[%s7 + $0xf0] sm:$0xff]
    %v949 = vld [vmem:[%s7 + $0xf8] sm:$0xff]
    %v950 = vld [vmem:[%s7 + $0x100] sm:$0xff]
    %v951 = vld [vmem:[%s7 + $0x108] sm:$0xff]
    %v952 = vld [vmem:[%s7 + $0x110] sm:$0xff]
    %v953 = vld [vmem:[%s7 + $0x118] sm:$0xff]
    %v954 = vld [vmem:[%s7 + $0x120] sm:$0xff]
    %v955 = vld [vmem:[%s7 + $0x128] sm:$0xff]
    %v956 = vld [vmem:[%s7 + $0x130] sm:$0xff]
    %v957 = vld [vmem:[%s7 + $0x138] sm:$0xff]
    %v958 = vld [vmem:[%s7 + $0x140] sm:$0xff]
    %v959 = vld [vmem:[%s7 + $0x148] sm:$0xff]
    %v960 = vld [vmem:[%s7 + $0x150] sm:$0xff]
    %v961 = vld [vmem:[%s7 + $0x158] sm:$0xff]
    %v962 = vld [vmem:[%s7 + $0x160] sm:$0xff]
    %v963 = vld [vmem:[%s7 + $0x168] sm:$0xff]
    %v964 = vld [vmem:[%s7 + $0x170] sm:$0xff]
    %v965 = vld [vmem:[%s7 + $0x178] sm:$0xff]
    %v966 = vld [vmem:[%s7 + $0x180] sm:$0xff]
    %v967 = vld [vmem:[%s7 + $0x188] sm:$0xff]
    %v968 = vld [vmem:[%s7 + $0x190] sm:$0xff]
    %v969 = vld [vmem:[%s7 + $0x198] sm:$0xff]
    %v970 = vld [vmem:[%s7 + $0x1a0] sm:$0xff]
    %v971 = vld [vmem:[%s7 + $0x1a8] sm:$0xff]
    %v972 = vld [vmem:[%s7 + $0x1b0] sm:$0xff]
    %v973 = vld [vmem:[%s7 + $0x1b8] sm:$0xff]
    %v974 = vld [vmem:[%s7 + $0x1c0] sm:$0xff]
    %v975 = vld [vmem:[%s7 + $0x1c8] sm:$0xff]
    %v976 = vld [vmem:[%s7 + $0x1d0] sm:$0xff]
    %v977 = vld [vmem:[%s7 + $0x1d8] sm:$0xff]
    %v978 = vld [vmem:[%s7 + $0x1e0] sm:$0xff]
    %v979 = vld [vmem:[%s7 + $0x1e8] sm:$0xff]
    %v980 = vld [vmem:[%s7 + $0x1f0] sm:$0xff]
    %v981 = vld [vmem:[%s7 + $0x1f8] sm:$0xff]
    %v982 = vld [vmem:[%s7 + $0x200] sm:$0xff]
    %v983 = vld [vmem:[%s7 + $0x208] sm:$0xff]
    %v984 = vld [vmem:[%s7 + $0x210] sm:$0xff]
    %v985 = vld [vmem:[%s7 + $0x218] sm:$0xff]
    %v986 = vld [vmem:[%s7 + $0x220] sm:$0xff]
    %v987 = vld [vmem:[%s7 + $0x228] sm:$0xff]
    %v988 = vld [vmem:[%s7 + $0x230] sm:$0xff]
    %v989 = vld [vmem:[%s7 + $0x238] sm:$0xff]
    %v990 = vld [vmem:[%s7 + $0x240] sm:$0xff]
    %v991 = vld [vmem:[%s7 + $0x248] sm:$0xff]
    %v992 = vld [vmem:[%s7 + $0x250] sm:$0xff]
    %v993 = vld [vmem:[%s7 + $0x258] sm:$0xff]
    %v994 = vld [vmem:[%s7 + $0x260] sm:$0xff]
    %v995 = vld [vmem:[%s7 + $0x268] sm:$0xff]
    %v996 = vld [vmem:[%s7 + $0x270] sm:$0xff]
    %v997 = vld [vmem:[%s7 + $0x278] sm:$0xff]
    %v998 = vld [vmem:[%s7 + $0x280] sm:$0xff]
    %v999 = vld [vmem:[%s7 + $0x288] sm:$0xff]
    %v1000 = vld [vmem:[%s7 + $0x290] sm:$0xff]
    %v1001 = vld [vmem:[%s7 + $0x298] sm:$0xff]
    %v1002 = vld [vmem:[%s7 + $0x2a0] sm:$0xff]
    %v1003 = vld [vmem:[%s7 + $0x2a8] sm:$0xff]
    %v1004 = vld [vmem:[%s7 + $0x2b0] sm:$0xff]
    %v1005 = vld [vmem:[%s7 + $0x2b8] sm:$0xff]
    %v1006 = vld [vmem:[%s7 + $0x2c0] sm:$0xff]
    %v1007 = vld [vmem:[%s7 + $0x2c8] sm:$0xff]
    %v1008 = vld [vmem:[%s7 + $0x2d0] sm:$0xff]
    %v1009 = vld [vmem:[%s7 + $0x2d8] sm:$0xff]
    %v1010 = vld [vmem:[%s7 + $0x2e0] sm:$0xff]
    %v1011 = vld [vmem:[%s7 + $0x2e8] sm:$0xff]
    %v1012 = vld [vmem:[%s7 + $0x2f0] sm:$0xff]
    %v1013 = vld [vmem:[%s7 + $0x2f8] sm:$0xff]
    %v1014 = vld [vmem:[%s7 + $0x300] sm:$0xff]
    %v1015 = vld [vmem:[%s7 + $0x308] sm:$0xff]
    %v1016 = vld [vmem:[%s7 + $0x310] sm:$0xff]
    %v1017 = vld [vmem:[%s7 + $0x318] sm:$0xff]
    %v1018 = vld [vmem:[%s7 + $0x320] sm:$0xff]
    %v1019 = vld [vmem:[%s7 + $0x328] sm:$0xff]
    %v1020 = vld [vmem:[%s7 + $0x330] sm:$0xff]
    %v1021 = vld [vmem:[%s7 + $0x338] sm:$0xff]
    %v1022 = vld [vmem:[%s7 + $0x340] sm:$0xff]
    %v1023 = vld [vmem:[%s7 + $0x348] sm:$0xff]
    %v1024 = vld [vmem:[%s7 + $0x350] sm:$0xff]
    %v1025 = vld [vmem:[%s7 + $0x358] sm:$0xff]
    %v1026 = vld [vmem:[%s7 + $0x360] sm:$0xff]
    %v1027 = vld [vmem:[%s7 + $0x368] sm:$0xff]
    %v1028 = vld [vmem:[%s7 + $0x370] sm:$0xff]
    %v1029 = vld [vmem:[%s7 + $0x378] sm:$0xff]
    %v1030 = vld [vmem:[%s7 + $0x380] sm:$0xff]
    %v1031 = vld [vmem:[%s7 + $0x388] sm:$0xff]
    %v1032 = vld [vmem:[%s7 + $0x390] sm:$0xff]
    %v1033 = vld [vmem:[%s7 + $0x398] sm:$0xff]
    %v1034 = vld [vmem:[%s7 + $0x3a0] sm:$0xff]
    %v1035 = vld [vmem:[%s7 + $0x3a8] sm:$0xff]
    %v1036 = vld [vmem:[%s7 + $0x3b0] sm:$0xff]
    %v1037 = vld [vmem:[%s7 + $0x3b8] sm:$0xff]
    %v1038 = vld [vmem:[%s7 + $0x3c0] sm:$0xff]
    %v1039 = vld [vmem:[%s7 + $0x3c8] sm:$0xff]
    %v1040 = vld [vmem:[%s7 + $0x3d0] sm:$0xff]
    %v1041 = vld [vmem:[%s7 + $0x3d8] sm:$0xff]
    %v1042 = vld [vmem:[%s7 + $0x3e0] sm:$0xff]
    %v1043 = vld [vmem:[%s7 + $0x3e8] sm:$0xff]
    %v1044 = vld [vmem:[%s7 + $0x3f0] sm:$0xff]
    %v1045 = vld [vmem:[%s7 + $0x3f8] sm:$0xff]
    %v1046 = vld [vmem:[%s7 + $0x400] sm:$0xff]
    %v1047 = vld [vmem:[%s7 + $0x408] sm:$0xff]
    %v1048 = vld [vmem:[%s7 + $0x410] sm:$0xff]
    %v1049 = vld [vmem:[%s7 + $0x418] sm:$0xff]
    %v1050 = vld [vmem:[%s7 + $0x420] sm:$0xff]
    %v1051 = vld [vmem:[%s7 + $0x428] sm:$0xff]
    %v1052 = vld [vmem:[%s7 + $0x430] sm:$0xff]
    %v1053 = vld [vmem:[%s7 + $0x438] sm:$0xff]
    %v1054 = vld [vmem:[%s7 + $0x440] sm:$0xff]
    %v1055 = vld [vmem:[%s7 + $0x448] sm:$0xff]
    %v1056 = vld [vmem:[%s7 + $0x450] sm:$0xff]
    %v1057 = vld [vmem:[%s7 + $0x458] sm:$0xff]
    %v1058 = vld [vmem:[%s7 + $0x460] sm:$0xff]
    %v1059 = vld [vmem:[%s7 + $0x468] sm:$0xff]
    %v1060 = vld [vmem:[%s7 + $0x470] sm:$0xff]
    %v1061 = vld [vmem:[%s7 + $0x478] sm:$0xff]
    %v1062 = vld [vmem:[%s7 + $0x480] sm:$0xff]
    %v1063 = vld [vmem:[%s7 + $0x488] sm:$0xff]
    %v1064 = vld [vmem:[%s7 + $0x490] sm:$0xff]
    %v1065 = vld [vmem:[%s7 + $0x498] sm:$0xff]
    %v1066 = vld [vmem:[%s7 + $0x4a0] sm:$0xff]
    %v1067 = vld [vmem:[%s7 + $0x4a8] sm:$0xff]
    %v1068 = vld [vmem:[%s7 + $0x4b0] sm:$0xff]
    %v1069 = vld [vmem:[%s7 + $0x4b8] sm:$0xff]
    %v1070 = vld [vmem:[%s7 + $0x4c0] sm:$0xff]
    %v1071 = vld [vmem:[%s7 + $0x4c8] sm:$0xff]
    %v1072 = vld [vmem:[%s7 + $0x4d0] sm:$0xff]
    %v1073 = vld [vmem:[%s7 + $0x4d8] sm:$0xff]
    %v1074 = vld [vmem:[%s7 + $0x4e0] sm:$0xff]
    %v1075 = vld [vmem:[%s7 + $0x4e8] sm:$0xff]
    %v1076 = vld [vmem:[%s7 + $0x4f0] sm:$0xff]
    %v1077 = vld [vmem:[%s7 + $0x4f8] sm:$0xff]
    %v1078 = vld [vmem:[%s7 + $0x500] sm:$0xff]
    %v1079 = vld [vmem:[%s7 + $0x508] sm:$0xff]
    %v1080 = vld [vmem:[%s7 + $0x510] sm:$0xff]
    %v1081 = vld [vmem:[%s7 + $0x518] sm:$0xff]
    %v1082 = vld [vmem:[%s7 + $0x520] sm:$0xff]
    %v1083 = vld [vmem:[%s7 + $0x528] sm:$0xff]
    %v1084 = vld [vmem:[%s7 + $0x530] sm:$0xff]
    %v1085 = vld [vmem:[%s7 + $0x538] sm:$0xff]
    %v1086 = vld [vmem:[%s7 + $0x540] sm:$0xff]
    %v1087 = vld [vmem:[%s7 + $0x548] sm:$0xff]
    %v1088 = vld [vmem:[%s7 + $0x550] sm:$0xff]
    %v1089 = vld [vmem:[%s7 + $0x558] sm:$0xff]
    %v1090 = vld [vmem:[%s7 + $0x560] sm:$0xff]
    %v1091 = vld [vmem:[%s7 + $0x568] sm:$0xff]
    %v1092 = vld [vmem:[%s7 + $0x570] sm:$0xff]
    %v1093 = vld [vmem:[%s7 + $0x578] sm:$0xff]
    %v1094 = vld [vmem:[%s7 + $0x580] sm:$0xff]
    %v1095 = vld [vmem:[%s7 + $0x588] sm:$0xff]
    %v1096 = vld [vmem:[%s7 + $0x590] sm:$0xff]
    %v1097 = vld [vmem:[%s7 + $0x598] sm:$0xff]
    %v1098 = vld [vmem:[%s7 + $0x5a0] sm:$0xff]
    %v1099 = vld [vmem:[%s7 + $0x5a8] sm:$0xff]
    %v1100 = vld [vmem:[%s7 + $0x5b0] sm:$0xff]
    %v1101 = vld [vmem:[%s7 + $0x5b8] sm:$0xff]
    %v1102 = vld [vmem:[%s7 + $0x5c0] sm:$0xff]
    %v1103 = vld [vmem:[%s7 + $0x5c8] sm:$0xff]
    %v1104 = vld [vmem:[%s7 + $0x5d0] sm:$0xff]
    %v1105 = vld [vmem:[%s7 + $0x5d8] sm:$0xff]
    %v1106 = vld [vmem:[%s7 + $0x5e0] sm:$0xff]
    %v1107 = vld [vmem:[%s7 + $0x5e8] sm:$0xff]
    %v1108 = vld [vmem:[%s7 + $0x5f0] sm:$0xff]
    %v1109 = vld [vmem:[%s7 + $0x5f8] sm:$0xff]
    %v1110 = vld [vmem:[%s7 + $0x600] sm:$0xff]
    %v1111 = vld [vmem:[%s7 + $0x608] sm:$0xff]
    %v1112 = vld [vmem:[%s7 + $0x610] sm:$0xff]
    %v1113 = vld [vmem:[%s7 + $0x618] sm:$0xff]
    %v1114 = vld [vmem:[%s7 + $0x620] sm:$0xff]
    %v1115 = vld [vmem:[%s7 + $0x628] sm:$0xff]
    %v1116 = vld [vmem:[%s7 + $0x630] sm:$0xff]
    %v1117 = vld [vmem:[%s7 + $0x638] sm:$0xff]
    %v1118 = vld [vmem:[%s7 + $0x640] sm:$0xff]
    %v1119 = vld [vmem:[%s7 + $0x648] sm:$0xff]
    %v1120 = vld [vmem:[%s7 + $0x650] sm:$0xff]
    %v1121 = vld [vmem:[%s7 + $0x658] sm:$0xff]
    %v1122 = vld [vmem:[%s7 + $0x660] sm:$0xff]
    %v1123 = vld [vmem:[%s7 + $0x668] sm:$0xff]
    %v1124 = vld [vmem:[%s7 + $0x670] sm:$0xff]
    %v1125 = vld [vmem:[%s7 + $0x678] sm:$0xff]
    %v1126 = vld [vmem:[%s7 + $0x680] sm:$0xff]
    %v1127 = vld [vmem:[%s7 + $0x688] sm:$0xff]
    %v1128 = vld [vmem:[%s7 + $0x690] sm:$0xff]
    %v1129 = vld [vmem:[%s7 + $0x698] sm:$0xff]
    %v1130 = vld [vmem:[%s7 + $0x6a0] sm:$0xff]
    %v1131 = vld [vmem:[%s7 + $0x6a8] sm:$0xff]
    %v1132 = vld [vmem:[%s7 + $0x6b0] sm:$0xff]
    %v1133 = vld [vmem:[%s7 + $0x6b8] sm:$0xff]
    %v1134 = vld [vmem:[%s7 + $0x6c0] sm:$0xff]
    %v1135 = vld [vmem:[%s7 + $0x6c8] sm:$0xff]
    %v1136 = vld [vmem:[%s7 + $0x6d0] sm:$0xff]
    %v1137 = vld [vmem:[%s7 + $0x6d8] sm:$0xff]
    %v1138 = vld [vmem:[%s7 + $0x6e0] sm:$0xff]
    %v1139 = vld [vmem:[%s7 + $0x6e8] sm:$0xff]
    %v1140 = vld [vmem:[%s7 + $0x6f0] sm:$0xff]
    %v1141 = vld [vmem:[%s7 + $0x6f8] sm:$0xff]
    %v1142 = vld [vmem:[%s7 + $0x700] sm:$0xff]
    %v1143 = vld [vmem:[%s7 + $0x708] sm:$0xff]
    %v1144 = vld [vmem:[%s7 + $0x710] sm:$0xff]
    %v1145 = vld [vmem:[%s7 + $0x718] sm:$0xff]
    %v1146 = vld [vmem:[%s7 + $0x720] sm:$0xff]
    %v1147 = vld [vmem:[%s7 + $0x728] sm:$0xff]
    %v1148 = vld [vmem:[%s7 + $0x730] sm:$0xff]
    %v1149 = vld [vmem:[%s7 + $0x738] sm:$0xff]
    %v1150 = vld [vmem:[%s7 + $0x740] sm:$0xff]
    %v1151 = vld [vmem:[%s7 + $0x748] sm:$0xff]
    %v1152 = vld [vmem:[%s7 + $0x750] sm:$0xff]
    %v1153 = vld [vmem:[%s7 + $0x758] sm:$0xff]
    %v1154 = vld [vmem:[%s7 + $0x760] sm:$0xff]
    %v1155 = vld [vmem:[%s7 + $0x768] sm:$0xff]
    %v1156 = vld [vmem:[%s7 + $0x770] sm:$0xff]
    %v1157 = vld [vmem:[%s7 + $0x778] sm:$0xff]
    %v1158 = vld [vmem:[%s7 + $0x780] sm:$0xff]
    %v1159 = vld [vmem:[%s7 + $0x788] sm:$0xff]
    %v1160 = vld [vmem:[%s7 + $0x790] sm:$0xff]
    %v1161 = vld [vmem:[%s7 + $0x798] sm:$0xff]
    %v1162 = vld [vmem:[%s7 + $0x7a0] sm:$0xff]
    %v1163 = vld [vmem:[%s7 + $0x7a8] sm:$0xff]
    %v1164 = vld [vmem:[%s7 + $0x7b0] sm:$0xff]
    %v1165 = vld [vmem:[%s7 + $0x7b8] sm:$0xff]
    %v1166 = vld [vmem:[%s7 + $0x7c0] sm:$0xff]
    %v1167 = vld [vmem:[%s7 + $0x7c8] sm:$0xff]
    %v1168 = vld [vmem:[%s7 + $0x7d0] sm:$0xff]
    %v1169 = vld [vmem:[%s7 + $0x7d8] sm:$0xff]
    %v1170 = vld [vmem:[%s7 + $0x7e0] sm:$0xff]
    %v1171 = vld [vmem:[%s7 + $0x7e8] sm:$0xff]
    %v1172 = vld [vmem:[%s7 + $0x7f0] sm:$0xff]
    %v1173 = vld [vmem:[%s7 + $0x7f8] sm:$0xff]
    %v1174 = vld [vmem:[#allocation13] sm:$0xff]
    %v1176 = vperm.slane %v1174, 0
    %v1177 = vperm.slane %v1174, 1
    %v1178 = vperm.slane %v1174, 2
    %v1179 = vperm.slane %v1174, 3
    %v1180 = vperm.slane %v1174, 4
    %v1181 = vperm.slane %v1174, 5
    %v1182 = vperm.slane %v1174, 6
    %v1183 = vperm.slane %v1174, 7
    %v1448 = vunpack.c.l.b16 %v918
    %v1449 = vunpack.c.h.b16 %v918
    %v1450 = vunpack.c.l.b16 %v919
    %v1451 = vunpack.c.h.b16 %v919
    %v1452 = vunpack.c.l.b16 %v920
    %v1453 = vunpack.c.h.b16 %v920
    %v1454 = vunpack.c.l.b16 %v921
    %v1455 = vunpack.c.h.b16 %v921
    %v1456 = vunpack.c.l.b16 %v922
    %v1457 = vunpack.c.h.b16 %v922
    %v1458 = vunpack.c.l.b16 %v923
    %v1459 = vunpack.c.h.b16 %v923
    %v1460 = vunpack.c.l.b16 %v924
    %v1461 = vunpack.c.h.b16 %v924
    %v1462 = vunpack.c.l.b16 %v925
    %v1463 = vunpack.c.h.b16 %v925
    %v1464 = vunpack.c.l.b16 %v926
    %v1465 = vunpack.c.h.b16 %v926
    %v1466 = vunpack.c.l.b16 %v927
    %v1467 = vunpack.c.h.b16 %v927
    %v1468 = vunpack.c.l.b16 %v928
    %v1469 = vunpack.c.h.b16 %v928
    %v1470 = vunpack.c.l.b16 %v929
    %v1471 = vunpack.c.h.b16 %v929
    %v1472 = vunpack.c.l.b16 %v930
    %v1473 = vunpack.c.h.b16 %v930
    %v1474 = vunpack.c.l.b16 %v931
    %v1475 = vunpack.c.h.b16 %v931
    %v1476 = vunpack.c.l.b16 %v932
    %v1477 = vunpack.c.h.b16 %v932
    %v1478 = vunpack.c.l.b16 %v933
    %v1479 = vunpack.c.h.b16 %v933
    %v1480 = vunpack.c.l.b16 %v934
    %v1481 = vunpack.c.h.b16 %v934
    %v1482 = vunpack.c.l.b16 %v935
    %v1483 = vunpack.c.h.b16 %v935
    %v1484 = vunpack.c.l.b16 %v936
    %v1485 = vunpack.c.h.b16 %v936
    %v1486 = vunpack.c.l.b16 %v937
    %v1487 = vunpack.c.h.b16 %v937
    %v1488 = vunpack.c.l.b16 %v938
    %v1489 = vunpack.c.h.b16 %v938
    %v1490 = vunpack.c.l.b16 %v939
    %v1491 = vunpack.c.h.b16 %v939
    %v1492 = vunpack.c.l.b16 %v940
    %v1493 = vunpack.c.h.b16 %v940
    %v1494 = vunpack.c.l.b16 %v941
    %v1495 = vunpack.c.h.b16 %v941
    %v1496 = vunpack.c.l.b16 %v942
    %v1497 = vunpack.c.h.b16 %v942
    %v1498 = vunpack.c.l.b16 %v943
    %v1499 = vunpack.c.h.b16 %v943
    %v1500 = vunpack.c.l.b16 %v944
    %v1501 = vunpack.c.h.b16 %v944
    %v1502 = vunpack.c.l.b16 %v945
    %v1503 = vunpack.c.h.b16 %v945
    %v1504 = vunpack.c.l.b16 %v946
    %v1505 = vunpack.c.h.b16 %v946
    %v1506 = vunpack.c.l.b16 %v947
    %v1507 = vunpack.c.h.b16 %v947
    %v1508 = vunpack.c.l.b16 %v948
    %v1509 = vunpack.c.h.b16 %v948
    %v1510 = vunpack.c.l.b16 %v949
    %v1511 = vunpack.c.h.b16 %v949
    %v1512 = vunpack.c.l.b16 %v950
    %v1513 = vunpack.c.h.b16 %v950
    %v1514 = vunpack.c.l.b16 %v951
    %v1515 = vunpack.c.h.b16 %v951
    %v1516 = vunpack.c.l.b16 %v952
    %v1517 = vunpack.c.h.b16 %v952
    %v1518 = vunpack.c.l.b16 %v953
    %v1519 = vunpack.c.h.b16 %v953
    %v1520 = vunpack.c.l.b16 %v954
    %v1521 = vunpack.c.h.b16 %v954
    %v1522 = vunpack.c.l.b16 %v955
    %v1523 = vunpack.c.h.b16 %v955
    %v1524 = vunpack.c.l.b16 %v956
    %v1525 = vunpack.c.h.b16 %v956
    %v1526 = vunpack.c.l.b16 %v957
    %v1527 = vunpack.c.h.b16 %v957
    %v1528 = vunpack.c.l.b16 %v958
    %v1529 = vunpack.c.h.b16 %v958
    %v1530 = vunpack.c.l.b16 %v959
    %v1531 = vunpack.c.h.b16 %v959
    %v1532 = vunpack.c.l.b16 %v960
    %v1533 = vunpack.c.h.b16 %v960
    %v1534 = vunpack.c.l.b16 %v961
    %v1535 = vunpack.c.h.b16 %v961
    %v1536 = vunpack.c.l.b16 %v962
    %v1537 = vunpack.c.h.b16 %v962
    %v1538 = vunpack.c.l.b16 %v963
    %v1539 = vunpack.c.h.b16 %v963
    %v1540 = vunpack.c.l.b16 %v964
    %v1541 = vunpack.c.h.b16 %v964
    %v1542 = vunpack.c.l.b16 %v965
    %v1543 = vunpack.c.h.b16 %v965
    %v1544 = vunpack.c.l.b16 %v966
    %v1545 = vunpack.c.h.b16 %v966
    %v1546 = vunpack.c.l.b16 %v967
    %v1547 = vunpack.c.h.b16 %v967
    %v1548 = vunpack.c.l.b16 %v968
    %v1549 = vunpack.c.h.b16 %v968
    %v1550 = vunpack.c.l.b16 %v969
    %v1551 = vunpack.c.h.b16 %v969
    %v1552 = vunpack.c.l.b16 %v970
    %v1553 = vunpack.c.h.b16 %v970
    %v1554 = vunpack.c.l.b16 %v971
    %v1555 = vunpack.c.h.b16 %v971
    %v1556 = vunpack.c.l.b16 %v972
    %v1557 = vunpack.c.h.b16 %v972
    %v1558 = vunpack.c.l.b16 %v973
    %v1559 = vunpack.c.h.b16 %v973
    %v1560 = vunpack.c.l.b16 %v974
    %v1561 = vunpack.c.h.b16 %v974
    %v1562 = vunpack.c.l.b16 %v975
    %v1563 = vunpack.c.h.b16 %v975
    %v1564 = vunpack.c.l.b16 %v976
    %v1565 = vunpack.c.h.b16 %v976
    %v1566 = vunpack.c.l.b16 %v977
    %v1567 = vunpack.c.h.b16 %v977
    %v1568 = vunpack.c.l.b16 %v978
    %v1569 = vunpack.c.h.b16 %v978
    %v1570 = vunpack.c.l.b16 %v979
    %v1571 = vunpack.c.h.b16 %v979
    %v1572 = vunpack.c.l.b16 %v980
    %v1573 = vunpack.c.h.b16 %v980
    %v1574 = vunpack.c.l.b16 %v981
    %v1575 = vunpack.c.h.b16 %v981
    %v1576 = vunpack.c.l.b16 %v982
    %v1577 = vunpack.c.h.b16 %v982
    %v1578 = vunpack.c.l.b16 %v983
    %v1579 = vunpack.c.h.b16 %v983
    %v1580 = vunpack.c.l.b16 %v984
    %v1581 = vunpack.c.h.b16 %v984
    %v1582 = vunpack.c.l.b16 %v985
    %v1583 = vunpack.c.h.b16 %v985
    %v1584 = vunpack.c.l.b16 %v986
    %v1585 = vunpack.c.h.b16 %v986
    %v1586 = vunpack.c.l.b16 %v987
    %v1587 = vunpack.c.h.b16 %v987
    %v1588 = vunpack.c.l.b16 %v988
    %v1589 = vunpack.c.h.b16 %v988
    %v1590 = vunpack.c.l.b16 %v989
    %v1591 = vunpack.c.h.b16 %v989
    %v1592 = vunpack.c.l.b16 %v990
    %v1593 = vunpack.c.h.b16 %v990
    %v1594 = vunpack.c.l.b16 %v991
    %v1595 = vunpack.c.h.b16 %v991
    %v1596 = vunpack.c.l.b16 %v992
    %v1597 = vunpack.c.h.b16 %v992
    %v1598 = vunpack.c.l.b16 %v993
    %v1599 = vunpack.c.h.b16 %v993
    %v1600 = vunpack.c.l.b16 %v994
    %v1601 = vunpack.c.h.b16 %v994
    %v1602 = vunpack.c.l.b16 %v995
    %v1603 = vunpack.c.h.b16 %v995
    %v1604 = vunpack.c.l.b16 %v996
    %v1605 = vunpack.c.h.b16 %v996
    %v1606 = vunpack.c.l.b16 %v997
    %v1607 = vunpack.c.h.b16 %v997
    %v1608 = vunpack.c.l.b16 %v998
    %v1609 = vunpack.c.h.b16 %v998
    %v1610 = vunpack.c.l.b16 %v999
    %v1611 = vunpack.c.h.b16 %v999
    %v1612 = vunpack.c.l.b16 %v1000
    %v1613 = vunpack.c.h.b16 %v1000
    %v1614 = vunpack.c.l.b16 %v1001
    %v1615 = vunpack.c.h.b16 %v1001
    %v1616 = vunpack.c.l.b16 %v1002
    %v1617 = vunpack.c.h.b16 %v1002
    %v1618 = vunpack.c.l.b16 %v1003
    %v1619 = vunpack.c.h.b16 %v1003
    %v1620 = vunpack.c.l.b16 %v1004
    %v1621 = vunpack.c.h.b16 %v1004
    %v1622 = vunpack.c.l.b16 %v1005
    %v1623 = vunpack.c.h.b16 %v1005
    %v1624 = vunpack.c.l.b16 %v1006
    %v1625 = vunpack.c.h.b16 %v1006
    %v1626 = vunpack.c.l.b16 %v1007
    %v1627 = vunpack.c.h.b16 %v1007
    %v1628 = vunpack.c.l.b16 %v1008
    %v1629 = vunpack.c.h.b16 %v1008
    %v1630 = vunpack.c.l.b16 %v1009
    %v1631 = vunpack.c.h.b16 %v1009
    %v1632 = vunpack.c.l.b16 %v1010
    %v1633 = vunpack.c.h.b16 %v1010
    %v1634 = vunpack.c.l.b16 %v1011
    %v1635 = vunpack.c.h.b16 %v1011
    %v1636 = vunpack.c.l.b16 %v1012
    %v1637 = vunpack.c.h.b16 %v1012
    %v1638 = vunpack.c.l.b16 %v1013
    %v1639 = vunpack.c.h.b16 %v1013
    %v1640 = vunpack.c.l.b16 %v1014
    %v1641 = vunpack.c.h.b16 %v1014
    %v1642 = vunpack.c.l.b16 %v1015
    %v1643 = vunpack.c.h.b16 %v1015
    %v1644 = vunpack.c.l.b16 %v1016
    %v1645 = vunpack.c.h.b16 %v1016
    %v1646 = vunpack.c.l.b16 %v1017
    %v1647 = vunpack.c.h.b16 %v1017
    %v1648 = vunpack.c.l.b16 %v1018
    %v1649 = vunpack.c.h.b16 %v1018
    %v1650 = vunpack.c.l.b16 %v1019
    %v1651 = vunpack.c.h.b16 %v1019
    %v1652 = vunpack.c.l.b16 %v1020
    %v1653 = vunpack.c.h.b16 %v1020
    %v1654 = vunpack.c.l.b16 %v1021
    %v1655 = vunpack.c.h.b16 %v1021
    %v1656 = vunpack.c.l.b16 %v1022
    %v1657 = vunpack.c.h.b16 %v1022
    %v1658 = vunpack.c.l.b16 %v1023
    %v1659 = vunpack.c.h.b16 %v1023
    %v1660 = vunpack.c.l.b16 %v1024
    %v1661 = vunpack.c.h.b16 %v1024
    %v1662 = vunpack.c.l.b16 %v1025
    %v1663 = vunpack.c.h.b16 %v1025
    %v1664 = vunpack.c.l.b16 %v1026
    %v1665 = vunpack.c.h.b16 %v1026
    %v1666 = vunpack.c.l.b16 %v1027
    %v1667 = vunpack.c.h.b16 %v1027
    %v1668 = vunpack.c.l.b16 %v1028
    %v1669 = vunpack.c.h.b16 %v1028
    %v1670 = vunpack.c.l.b16 %v1029
    %v1671 = vunpack.c.h.b16 %v1029
    %v1672 = vunpack.c.l.b16 %v1030
    %v1673 = vunpack.c.h.b16 %v1030
    %v1674 = vunpack.c.l.b16 %v1031
    %v1675 = vunpack.c.h.b16 %v1031
    %v1676 = vunpack.c.l.b16 %v1032
    %v1677 = vunpack.c.h.b16 %v1032
    %v1678 = vunpack.c.l.b16 %v1033
    %v1679 = vunpack.c.h.b16 %v1033
    %v1680 = vunpack.c.l.b16 %v1034
    %v1681 = vunpack.c.h.b16 %v1034
    %v1682 = vunpack.c.l.b16 %v1035
    %v1683 = vunpack.c.h.b16 %v1035
    %v1684 = vunpack.c.l.b16 %v1036
    %v1685 = vunpack.c.h.b16 %v1036
    %v1686 = vunpack.c.l.b16 %v1037
    %v1687 = vunpack.c.h.b16 %v1037
    %v1688 = vunpack.c.l.b16 %v1038
    %v1689 = vunpack.c.h.b16 %v1038
    %v1690 = vunpack.c.l.b16 %v1039
    %v1691 = vunpack.c.h.b16 %v1039
    %v1692 = vunpack.c.l.b16 %v1040
    %v1693 = vunpack.c.h.b16 %v1040
    %v1694 = vunpack.c.l.b16 %v1041
    %v1695 = vunpack.c.h.b16 %v1041
    %v1696 = vunpack.c.l.b16 %v1042
    %v1697 = vunpack.c.h.b16 %v1042
    %v1698 = vunpack.c.l.b16 %v1043
    %v1699 = vunpack.c.h.b16 %v1043
    %v1700 = vunpack.c.l.b16 %v1044
    %v1701 = vunpack.c.h.b16 %v1044
    %v1702 = vunpack.c.l.b16 %v1045
    %v1703 = vunpack.c.h.b16 %v1045
    %v1704 = vunpack.c.l.b16 %v1046
    %v1705 = vunpack.c.h.b16 %v1046
    %v1706 = vunpack.c.l.b16 %v1047
    %v1707 = vunpack.c.h.b16 %v1047
    %v1708 = vunpack.c.l.b16 %v1048
    %v1709 = vunpack.c.h.b16 %v1048
    %v1710 = vunpack.c.l.b16 %v1049
    %v1711 = vunpack.c.h.b16 %v1049
    %v1712 = vunpack.c.l.b16 %v1050
    %v1713 = vunpack.c.h.b16 %v1050
    %v1714 = vunpack.c.l.b16 %v1051
    %v1715 = vunpack.c.h.b16 %v1051
    %v1716 = vunpack.c.l.b16 %v1052
    %v1717 = vunpack.c.h.b16 %v1052
    %v1718 = vunpack.c.l.b16 %v1053
    %v1719 = vunpack.c.h.b16 %v1053
    %v1720 = vunpack.c.l.b16 %v1054
    %v1721 = vunpack.c.h.b16 %v1054
    %v1722 = vunpack.c.l.b16 %v1055
    %v1723 = vunpack.c.h.b16 %v1055
    %v1724 = vunpack.c.l.b16 %v1056
    %v1725 = vunpack.c.h.b16 %v1056
    %v1726 = vunpack.c.l.b16 %v1057
    %v1727 = vunpack.c.h.b16 %v1057
    %v1728 = vunpack.c.l.b16 %v1058
    %v1729 = vunpack.c.h.b16 %v1058
    %v1730 = vunpack.c.l.b16 %v1059
    %v1731 = vunpack.c.h.b16 %v1059
    %v1732 = vunpack.c.l.b16 %v1060
    %v1733 = vunpack.c.h.b16 %v1060
    %v1734 = vunpack.c.l.b16 %v1061
    %v1735 = vunpack.c.h.b16 %v1061
    %v1736 = vunpack.c.l.b16 %v1062
    %v1737 = vunpack.c.h.b16 %v1062
    %v1738 = vunpack.c.l.b16 %v1063
    %v1739 = vunpack.c.h.b16 %v1063
    %v1740 = vunpack.c.l.b16 %v1064
    %v1741 = vunpack.c.h.b16 %v1064
    %v1742 = vunpack.c.l.b16 %v1065
    %v1743 = vunpack.c.h.b16 %v1065
    %v1744 = vunpack.c.l.b16 %v1066
    %v1745 = vunpack.c.h.b16 %v1066
    %v1746 = vunpack.c.l.b16 %v1067
    %v1747 = vunpack.c.h.b16 %v1067
    %v1748 = vunpack.c.l.b16 %v1068
    %v1749 = vunpack.c.h.b16 %v1068
    %v1750 = vunpack.c.l.b16 %v1069
    %v1751 = vunpack.c.h.b16 %v1069
    %v1752 = vunpack.c.l.b16 %v1070
    %v1753 = vunpack.c.h.b16 %v1070
    %v1754 = vunpack.c.l.b16 %v1071
    %v1755 = vunpack.c.h.b16 %v1071
    %v1756 = vunpack.c.l.b16 %v1072
    %v1757 = vunpack.c.h.b16 %v1072
    %v1758 = vunpack.c.l.b16 %v1073
    %v1759 = vunpack.c.h.b16 %v1073
    %v1760 = vunpack.c.l.b16 %v1074
    %v1761 = vunpack.c.h.b16 %v1074
    %v1762 = vunpack.c.l.b16 %v1075
    %v1763 = vunpack.c.h.b16 %v1075
    %v1764 = vunpack.c.l.b16 %v1076
    %v1765 = vunpack.c.h.b16 %v1076
    %v1766 = vunpack.c.l.b16 %v1077
    %v1767 = vunpack.c.h.b16 %v1077
    %v1768 = vunpack.c.l.b16 %v1078
    %v1769 = vunpack.c.h.b16 %v1078
    %v1770 = vunpack.c.l.b16 %v1079
    %v1771 = vunpack.c.h.b16 %v1079
    %v1772 = vunpack.c.l.b16 %v1080
    %v1773 = vunpack.c.h.b16 %v1080
    %v1774 = vunpack.c.l.b16 %v1081
    %v1775 = vunpack.c.h.b16 %v1081
    %v1776 = vunpack.c.l.b16 %v1082
    %v1777 = vunpack.c.h.b16 %v1082
    %v1778 = vunpack.c.l.b16 %v1083
    %v1779 = vunpack.c.h.b16 %v1083
    %v1780 = vunpack.c.l.b16 %v1084
    %v1781 = vunpack.c.h.b16 %v1084
    %v1782 = vunpack.c.l.b16 %v1085
    %v1783 = vunpack.c.h.b16 %v1085
    %v1784 = vunpack.c.l.b16 %v1086
    %v1785 = vunpack.c.h.b16 %v1086
    %v1786 = vunpack.c.l.b16 %v1087
    %v1787 = vunpack.c.h.b16 %v1087
    %v1788 = vunpack.c.l.b16 %v1088
    %v1789 = vunpack.c.h.b16 %v1088
    %v1790 = vunpack.c.l.b16 %v1089
    %v1791 = vunpack.c.h.b16 %v1089
    %v1792 = vunpack.c.l.b16 %v1090
    %v1793 = vunpack.c.h.b16 %v1090
    %v1794 = vunpack.c.l.b16 %v1091
    %v1795 = vunpack.c.h.b16 %v1091
    %v1796 = vunpack.c.l.b16 %v1092
    %v1797 = vunpack.c.h.b16 %v1092
    %v1798 = vunpack.c.l.b16 %v1093
    %v1799 = vunpack.c.h.b16 %v1093
    %v1800 = vunpack.c.l.b16 %v1094
    %v1801 = vunpack.c.h.b16 %v1094
    %v1802 = vunpack.c.l.b16 %v1095
    %v1803 = vunpack.c.h.b16 %v1095
    %v1804 = vunpack.c.l.b16 %v1096
    %v1805 = vunpack.c.h.b16 %v1096
    %v1806 = vunpack.c.l.b16 %v1097
    %v1807 = vunpack.c.h.b16 %v1097
    %v1808 = vunpack.c.l.b16 %v1098
    %v1809 = vunpack.c.h.b16 %v1098
    %v1810 = vunpack.c.l.b16 %v1099
    %v1811 = vunpack.c.h.b16 %v1099
    %v1812 = vunpack.c.l.b16 %v1100
    %v1813 = vunpack.c.h.b16 %v1100
    %v1814 = vunpack.c.l.b16 %v1101
    %v1815 = vunpack.c.h.b16 %v1101
    %v1816 = vunpack.c.l.b16 %v1102
    %v1817 = vunpack.c.h.b16 %v1102
    %v1818 = vunpack.c.l.b16 %v1103
    %v1819 = vunpack.c.h.b16 %v1103
    %v1820 = vunpack.c.l.b16 %v1104
    %v1821 = vunpack.c.h.b16 %v1104
    %v1822 = vunpack.c.l.b16 %v1105
    %v1823 = vunpack.c.h.b16 %v1105
    %v1824 = vunpack.c.l.b16 %v1106
    %v1825 = vunpack.c.h.b16 %v1106
    %v1826 = vunpack.c.l.b16 %v1107
    %v1827 = vunpack.c.h.b16 %v1107
    %v1828 = vunpack.c.l.b16 %v1108
    %v1829 = vunpack.c.h.b16 %v1108
    %v1830 = vunpack.c.l.b16 %v1109
    %v1831 = vunpack.c.h.b16 %v1109
    %v1832 = vunpack.c.l.b16 %v1110
    %v1833 = vunpack.c.h.b16 %v1110
    %v1834 = vunpack.c.l.b16 %v1111
    %v1835 = vunpack.c.h.b16 %v1111
    %v1836 = vunpack.c.l.b16 %v1112
    %v1837 = vunpack.c.h.b16 %v1112
    %v1838 = vunpack.c.l.b16 %v1113
    %v1839 = vunpack.c.h.b16 %v1113
    %v1840 = vunpack.c.l.b16 %v1114
    %v1841 = vunpack.c.h.b16 %v1114
    %v1842 = vunpack.c.l.b16 %v1115
    %v1843 = vunpack.c.h.b16 %v1115
    %v1844 = vunpack.c.l.b16 %v1116
    %v1845 = vunpack.c.h.b16 %v1116
    %v1846 = vunpack.c.l.b16 %v1117
    %v1847 = vunpack.c.h.b16 %v1117
    %v1848 = vunpack.c.l.b16 %v1118
    %v1849 = vunpack.c.h.b16 %v1118
    %v1850 = vunpack.c.l.b16 %v1119
    %v1851 = vunpack.c.h.b16 %v1119
    %v1852 = vunpack.c.l.b16 %v1120
    %v1853 = vunpack.c.h.b16 %v1120
    %v1854 = vunpack.c.l.b16 %v1121
    %v1855 = vunpack.c.h.b16 %v1121
    %v1856 = vunpack.c.l.b16 %v1122
    %v1857 = vunpack.c.h.b16 %v1122
    %v1858 = vunpack.c.l.b16 %v1123
    %v1859 = vunpack.c.h.b16 %v1123
    %v1860 = vunpack.c.l.b16 %v1124
    %v1861 = vunpack.c.h.b16 %v1124
    %v1862 = vunpack.c.l.b16 %v1125
    %v1863 = vunpack.c.h.b16 %v1125
    %v1864 = vunpack.c.l.b16 %v1126
    %v1865 = vunpack.c.h.b16 %v1126
    %v1866 = vunpack.c.l.b16 %v1127
    %v1867 = vunpack.c.h.b16 %v1127
    %v1868 = vunpack.c.l.b16 %v1128
    %v1869 = vunpack.c.h.b16 %v1128
    %v1870 = vunpack.c.l.b16 %v1129
    %v1871 = vunpack.c.h.b16 %v1129
    %v1872 = vunpack.c.l.b16 %v1130
    %v1873 = vunpack.c.h.b16 %v1130
    %v1874 = vunpack.c.l.b16 %v1131
    %v1875 = vunpack.c.h.b16 %v1131
    %v1876 = vunpack.c.l.b16 %v1132
    %v1877 = vunpack.c.h.b16 %v1132
    %v1878 = vunpack.c.l.b16 %v1133
    %v1879 = vunpack.c.h.b16 %v1133
    %v1880 = vunpack.c.l.b16 %v1134
    %v1881 = vunpack.c.h.b16 %v1134
    %v1882 = vunpack.c.l.b16 %v1135
    %v1883 = vunpack.c.h.b16 %v1135
    %v1884 = vunpack.c.l.b16 %v1136
    %v1885 = vunpack.c.h.b16 %v1136
    %v1886 = vunpack.c.l.b16 %v1137
    %v1887 = vunpack.c.h.b16 %v1137
    %v1888 = vunpack.c.l.b16 %v1138
    %v1889 = vunpack.c.h.b16 %v1138
    %v1890 = vunpack.c.l.b16 %v1139
    %v1891 = vunpack.c.h.b16 %v1139
    %v1892 = vunpack.c.l.b16 %v1140
    %v1893 = vunpack.c.h.b16 %v1140
    %v1894 = vunpack.c.l.b16 %v1141
    %v1895 = vunpack.c.h.b16 %v1141
    %v1896 = vunpack.c.l.b16 %v1142
    %v1897 = vunpack.c.h.b16 %v1142
    %v1898 = vunpack.c.l.b16 %v1143
    %v1899 = vunpack.c.h.b16 %v1143
    %v1900 = vunpack.c.l.b16 %v1144
    %v1901 = vunpack.c.h.b16 %v1144
    %v1902 = vunpack.c.l.b16 %v1145
    %v1903 = vunpack.c.h.b16 %v1145
    %v1904 = vunpack.c.l.b16 %v1146
    %v1905 = vunpack.c.h.b16 %v1146
    %v1906 = vunpack.c.l.b16 %v1147
    %v1907 = vunpack.c.h.b16 %v1147
    %v1908 = vunpack.c.l.b16 %v1148
    %v1909 = vunpack.c.h.b16 %v1148
    %v1910 = vunpack.c.l.b16 %v1149
    %v1911 = vunpack.c.h.b16 %v1149
    %v1912 = vunpack.c.l.b16 %v1150
    %v1913 = vunpack.c.h.b16 %v1150
    %v1914 = vunpack.c.l.b16 %v1151
    %v1915 = vunpack.c.h.b16 %v1151
    %v1916 = vunpack.c.l.b16 %v1152
    %v1917 = vunpack.c.h.b16 %v1152
    %v1918 = vunpack.c.l.b16 %v1153
    %v1919 = vunpack.c.h.b16 %v1153
    %v1920 = vunpack.c.l.b16 %v1154
    %v1921 = vunpack.c.h.b16 %v1154
    %v1922 = vunpack.c.l.b16 %v1155
    %v1923 = vunpack.c.h.b16 %v1155
    %v1924 = vunpack.c.l.b16 %v1156
    %v1925 = vunpack.c.h.b16 %v1156
    %v1926 = vunpack.c.l.b16 %v1157
    %v1927 = vunpack.c.h.b16 %v1157
    %v1928 = vunpack.c.l.b16 %v1158
    %v1929 = vunpack.c.h.b16 %v1158
    %v1930 = vunpack.c.l.b16 %v1159
    %v1931 = vunpack.c.h.b16 %v1159
    %v1932 = vunpack.c.l.b16 %v1160
    %v1933 = vunpack.c.h.b16 %v1160
    %v1934 = vunpack.c.l.b16 %v1161
    %v1935 = vunpack.c.h.b16 %v1161
    %v1936 = vunpack.c.l.b16 %v1162
    %v1937 = vunpack.c.h.b16 %v1162
    %v1938 = vunpack.c.l.b16 %v1163
    %v1939 = vunpack.c.h.b16 %v1163
    %v1940 = vunpack.c.l.b16 %v1164
    %v1941 = vunpack.c.h.b16 %v1164
    %v1942 = vunpack.c.l.b16 %v1165
    %v1943 = vunpack.c.h.b16 %v1165
    %v1944 = vunpack.c.l.b16 %v1166
    %v1945 = vunpack.c.h.b16 %v1166
    %v1946 = vunpack.c.l.b16 %v1167
    %v1947 = vunpack.c.h.b16 %v1167
    %v1948 = vunpack.c.l.b16 %v1168
    %v1949 = vunpack.c.h.b16 %v1168
    %v1950 = vunpack.c.l.b16 %v1169
    %v1951 = vunpack.c.h.b16 %v1169
    %v1952 = vunpack.c.l.b16 %v1170
    %v1953 = vunpack.c.h.b16 %v1170
    %v1954 = vunpack.c.l.b16 %v1171
    %v1955 = vunpack.c.h.b16 %v1171
    %v1956 = vunpack.c.l.b16 %v1172
    %v1957 = vunpack.c.h.b16 %v1172
    %v1958 = vunpack.c.l.b16 %v1173
    %v1959 = vunpack.c.h.b16 %v1173
    %v1960 = vpack.c.b16 %v1456, %v1448
    %v1961 = vpack.c.b16 %v1457, %v1449
    %v1962 = vpack.c.b16 %v1458, %v1450
    %v1963 = vpack.c.b16 %v1459, %v1451
    %v1964 = vpack.c.b16 %v1460, %v1452
    %v1965 = vpack.c.b16 %v1461, %v1453
    %v1966 = vpack.c.b16 %v1462, %v1454
    %v1967 = vpack.c.b16 %v1463, %v1455
    %v1968 = vpack.c.b16 %v1472, %v1464
    %v1969 = vpack.c.b16 %v1473, %v1465
    %v1970 = vpack.c.b16 %v1474, %v1466
    %v1971 = vpack.c.b16 %v1475, %v1467
    %v1972 = vpack.c.b16 %v1476, %v1468
    %v1973 = vpack.c.b16 %v1477, %v1469
    %v1974 = vpack.c.b16 %v1478, %v1470
    %v1975 = vpack.c.b16 %v1479, %v1471
    %v1976 = vpack.c.b16 %v1488, %v1480
    %v1977 = vpack.c.b16 %v1489, %v1481
    %v1978 = vpack.c.b16 %v1490, %v1482
    %v1979 = vpack.c.b16 %v1491, %v1483
    %v1980 = vpack.c.b16 %v1492, %v1484
    %v1981 = vpack.c.b16 %v1493, %v1485
    %v1982 = vpack.c.b16 %v1494, %v1486
    %v1983 = vpack.c.b16 %v1495, %v1487
    %v1984 = vpack.c.b16 %v1504, %v1496
    %v1985 = vpack.c.b16 %v1505, %v1497
    %v1986 = vpack.c.b16 %v1506, %v1498
    %v1987 = vpack.c.b16 %v1507, %v1499
    %v1988 = vpack.c.b16 %v1508, %v1500
    %v1989 = vpack.c.b16 %v1509, %v1501
    %v1990 = vpack.c.b16 %v1510, %v1502
    %v1991 = vpack.c.b16 %v1511, %v1503
    %v1992 = vpack.c.b16 %v1520, %v1512
    %v1993 = vpack.c.b16 %v1521, %v1513
    %v1994 = vpack.c.b16 %v1522, %v1514
    %v1995 = vpack.c.b16 %v1523, %v1515
    %v1996 = vpack.c.b16 %v1524, %v1516
    %v1997 = vpack.c.b16 %v1525, %v1517
    %v1998 = vpack.c.b16 %v1526, %v1518
    %v1999 = vpack.c.b16 %v1527, %v1519
    %v2000 = vpack.c.b16 %v1536, %v1528
    %v2001 = vpack.c.b16 %v1537, %v1529
    %v2002 = vpack.c.b16 %v1538, %v1530
    %v2003 = vpack.c.b16 %v1539, %v1531
    %v2004 = vpack.c.b16 %v1540, %v1532
    %v2005 = vpack.c.b16 %v1541, %v1533
    %v2006 = vpack.c.b16 %v1542, %v1534
    %v2007 = vpack.c.b16 %v1543, %v1535
    %v2008 = vpack.c.b16 %v1552, %v1544
    %v2009 = vpack.c.b16 %v1553, %v1545
    %v2010 = vpack.c.b16 %v1554, %v1546
    %v2011 = vpack.c.b16 %v1555, %v1547
    %v2012 = vpack.c.b16 %v1556, %v1548
    %v2013 = vpack.c.b16 %v1557, %v1549
    %v2014 = vpack.c.b16 %v1558, %v1550
    %v2015 = vpack.c.b16 %v1559, %v1551
    %v2016 = vpack.c.b16 %v1568, %v1560
    %v2017 = vpack.c.b16 %v1569, %v1561
    %v2018 = vpack.c.b16 %v1570, %v1562
    %v2019 = vpack.c.b16 %v1571, %v1563
    %v2020 = vpack.c.b16 %v1572, %v1564
    %v2021 = vpack.c.b16 %v1573, %v1565
    %v2022 = vpack.c.b16 %v1574, %v1566
    %v2023 = vpack.c.b16 %v1575, %v1567
    %v2024 = vpack.c.b16 %v1584, %v1576
    %v2025 = vpack.c.b16 %v1585, %v1577
    %v2026 = vpack.c.b16 %v1586, %v1578
    %v2027 = vpack.c.b16 %v1587, %v1579
    %v2028 = vpack.c.b16 %v1588, %v1580
    %v2029 = vpack.c.b16 %v1589, %v1581
    %v2030 = vpack.c.b16 %v1590, %v1582
    %v2031 = vpack.c.b16 %v1591, %v1583
    %v2032 = vpack.c.b16 %v1600, %v1592
    %v2033 = vpack.c.b16 %v1601, %v1593
    %v2034 = vpack.c.b16 %v1602, %v1594
    %v2035 = vpack.c.b16 %v1603, %v1595
    %v2036 = vpack.c.b16 %v1604, %v1596
    %v2037 = vpack.c.b16 %v1605, %v1597
    %v2038 = vpack.c.b16 %v1606, %v1598
    %v2039 = vpack.c.b16 %v1607, %v1599
    %v2040 = vpack.c.b16 %v1616, %v1608
    %v2041 = vpack.c.b16 %v1617, %v1609
    %v2042 = vpack.c.b16 %v1618, %v1610
    %v2043 = vpack.c.b16 %v1619, %v1611
    %v2044 = vpack.c.b16 %v1620, %v1612
    %v2045 = vpack.c.b16 %v1621, %v1613
    %v2046 = vpack.c.b16 %v1622, %v1614
    %v2047 = vpack.c.b16 %v1623, %v1615
    %v2048 = vpack.c.b16 %v1632, %v1624
    %v2049 = vpack.c.b16 %v1633, %v1625
    %v2050 = vpack.c.b16 %v1634, %v1626
    %v2051 = vpack.c.b16 %v1635, %v1627
    %v2052 = vpack.c.b16 %v1636, %v1628
    %v2053 = vpack.c.b16 %v1637, %v1629
    %v2054 = vpack.c.b16 %v1638, %v1630
    %v2055 = vpack.c.b16 %v1639, %v1631
    %v2056 = vpack.c.b16 %v1648, %v1640
    %v2057 = vpack.c.b16 %v1649, %v1641
    %v2058 = vpack.c.b16 %v1650, %v1642
    %v2059 = vpack.c.b16 %v1651, %v1643
    %v2060 = vpack.c.b16 %v1652, %v1644
    %v2061 = vpack.c.b16 %v1653, %v1645
    %v2062 = vpack.c.b16 %v1654, %v1646
    %v2063 = vpack.c.b16 %v1655, %v1647
    %v2064 = vpack.c.b16 %v1664, %v1656
    %v2065 = vpack.c.b16 %v1665, %v1657
    %v2066 = vpack.c.b16 %v1666, %v1658
    %v2067 = vpack.c.b16 %v1667, %v1659
    %v2068 = vpack.c.b16 %v1668, %v1660
    %v2069 = vpack.c.b16 %v1669, %v1661
    %v2070 = vpack.c.b16 %v1670, %v1662
    %v2071 = vpack.c.b16 %v1671, %v1663
    %v2072 = vpack.c.b16 %v1680, %v1672
    %v2073 = vpack.c.b16 %v1681, %v1673
    %v2074 = vpack.c.b16 %v1682, %v1674
    %v2075 = vpack.c.b16 %v1683, %v1675
    %v2076 = vpack.c.b16 %v1684, %v1676
    %v2077 = vpack.c.b16 %v1685, %v1677
    %v2078 = vpack.c.b16 %v1686, %v1678
    %v2079 = vpack.c.b16 %v1687, %v1679
    %v2080 = vpack.c.b16 %v1696, %v1688
    %v2081 = vpack.c.b16 %v1697, %v1689
    %v2082 = vpack.c.b16 %v1698, %v1690
    %v2083 = vpack.c.b16 %v1699, %v1691
    %v2084 = vpack.c.b16 %v1700, %v1692
    %v2085 = vpack.c.b16 %v1701, %v1693
    %v2086 = vpack.c.b16 %v1702, %v1694
    %v2087 = vpack.c.b16 %v1703, %v1695
    %v2088 = vpack.c.b16 %v1712, %v1704
    %v2089 = vpack.c.b16 %v1713, %v1705
    %v2090 = vpack.c.b16 %v1714, %v1706
    %v2091 = vpack.c.b16 %v1715, %v1707
    %v2092 = vpack.c.b16 %v1716, %v1708
    %v2093 = vpack.c.b16 %v1717, %v1709
    %v2094 = vpack.c.b16 %v1718, %v1710
    %v2095 = vpack.c.b16 %v1719, %v1711
    %v2096 = vpack.c.b16 %v1728, %v1720
    %v2097 = vpack.c.b16 %v1729, %v1721
    %v2098 = vpack.c.b16 %v1730, %v1722
    %v2099 = vpack.c.b16 %v1731, %v1723
    %v2100 = vpack.c.b16 %v1732, %v1724
    %v2101 = vpack.c.b16 %v1733, %v1725
    %v2102 = vpack.c.b16 %v1734, %v1726
    %v2103 = vpack.c.b16 %v1735, %v1727
    %v2104 = vpack.c.b16 %v1744, %v1736
    %v2105 = vpack.c.b16 %v1745, %v1737
    %v2106 = vpack.c.b16 %v1746, %v1738
    %v2107 = vpack.c.b16 %v1747, %v1739
    %v2108 = vpack.c.b16 %v1748, %v1740
    %v2109 = vpack.c.b16 %v1749, %v1741
    %v2110 = vpack.c.b16 %v1750, %v1742
    %v2111 = vpack.c.b16 %v1751, %v1743
    %v2112 = vpack.c.b16 %v1760, %v1752
    %v2113 = vpack.c.b16 %v1761, %v1753
    %v2114 = vpack.c.b16 %v1762, %v1754
    %v2115 = vpack.c.b16 %v1763, %v1755
    %v2116 = vpack.c.b16 %v1764, %v1756
    %v2117 = vpack.c.b16 %v1765, %v1757
    %v2118 = vpack.c.b16 %v1766, %v1758
    %v2119 = vpack.c.b16 %v1767, %v1759
    %v2120 = vpack.c.b16 %v1776, %v1768
    %v2121 = vpack.c.b16 %v1777, %v1769
    %v2122 = vpack.c.b16 %v1778, %v1770
    %v2123 = vpack.c.b16 %v1779, %v1771
    %v2124 = vpack.c.b16 %v1780, %v1772
    %v2125 = vpack.c.b16 %v1781, %v1773
    %v2126 = vpack.c.b16 %v1782, %v1774
    %v2127 = vpack.c.b16 %v1783, %v1775
    %v2128 = vpack.c.b16 %v1792, %v1784
    %v2129 = vpack.c.b16 %v1793, %v1785
    %v2130 = vpack.c.b16 %v1794, %v1786
    %v2131 = vpack.c.b16 %v1795, %v1787
    %v2132 = vpack.c.b16 %v1796, %v1788
    %v2133 = vpack.c.b16 %v1797, %v1789
    %v2134 = vpack.c.b16 %v1798, %v1790
    %v2135 = vpack.c.b16 %v1799, %v1791
    %v2136 = vpack.c.b16 %v1808, %v1800
    %v2137 = vpack.c.b16 %v1809, %v1801
    %v2138 = vpack.c.b16 %v1810, %v1802
    %v2139 = vpack.c.b16 %v1811, %v1803
    %v2140 = vpack.c.b16 %v1812, %v1804
    %v2141 = vpack.c.b16 %v1813, %v1805
    %v2142 = vpack.c.b16 %v1814, %v1806
    %v2143 = vpack.c.b16 %v1815, %v1807
    %v2144 = vpack.c.b16 %v1824, %v1816
    %v2145 = vpack.c.b16 %v1825, %v1817
    %v2146 = vpack.c.b16 %v1826, %v1818
    %v2147 = vpack.c.b16 %v1827, %v1819
    %v2148 = vpack.c.b16 %v1828, %v1820
    %v2149 = vpack.c.b16 %v1829, %v1821
    %v2150 = vpack.c.b16 %v1830, %v1822
    %v2151 = vpack.c.b16 %v1831, %v1823
    %v2152 = vpack.c.b16 %v1840, %v1832
    %v2153 = vpack.c.b16 %v1841, %v1833
    %v2154 = vpack.c.b16 %v1842, %v1834
    %v2155 = vpack.c.b16 %v1843, %v1835
    %v2156 = vpack.c.b16 %v1844, %v1836
    %v2157 = vpack.c.b16 %v1845, %v1837
    %v2158 = vpack.c.b16 %v1846, %v1838
    %v2159 = vpack.c.b16 %v1847, %v1839
    %v2160 = vpack.c.b16 %v1856, %v1848
    %v2161 = vpack.c.b16 %v1857, %v1849
    %v2162 = vpack.c.b16 %v1858, %v1850
    %v2163 = vpack.c.b16 %v1859, %v1851
    %v2164 = vpack.c.b16 %v1860, %v1852
    %v2165 = vpack.c.b16 %v1861, %v1853
    %v2166 = vpack.c.b16 %v1862, %v1854
    %v2167 = vpack.c.b16 %v1863, %v1855
    %v2168 = vpack.c.b16 %v1872, %v1864
    %v2169 = vpack.c.b16 %v1873, %v1865
    %v2170 = vpack.c.b16 %v1874, %v1866
    %v2171 = vpack.c.b16 %v1875, %v1867
    %v2172 = vpack.c.b16 %v1876, %v1868
    %v2173 = vpack.c.b16 %v1877, %v1869
    %v2174 = vpack.c.b16 %v1878, %v1870
    %v2175 = vpack.c.b16 %v1879, %v1871
    %v2176 = vpack.c.b16 %v1888, %v1880
    %v2177 = vpack.c.b16 %v1889, %v1881
    %v2178 = vpack.c.b16 %v1890, %v1882
    %v2179 = vpack.c.b16 %v1891, %v1883
    %v2180 = vpack.c.b16 %v1892, %v1884
    %v2181 = vpack.c.b16 %v1893, %v1885
    %v2182 = vpack.c.b16 %v1894, %v1886
    %v2183 = vpack.c.b16 %v1895, %v1887
    %v2184 = vpack.c.b16 %v1904, %v1896
    %v2185 = vpack.c.b16 %v1905, %v1897
    %v2186 = vpack.c.b16 %v1906, %v1898
    %v2187 = vpack.c.b16 %v1907, %v1899
    %v2188 = vpack.c.b16 %v1908, %v1900
    %v2189 = vpack.c.b16 %v1909, %v1901
    %v2190 = vpack.c.b16 %v1910, %v1902
    %v2191 = vpack.c.b16 %v1911, %v1903
    %v2192 = vpack.c.b16 %v1920, %v1912
    %v2193 = vpack.c.b16 %v1921, %v1913
    %v2194 = vpack.c.b16 %v1922, %v1914
    %v2195 = vpack.c.b16 %v1923, %v1915
    %v2196 = vpack.c.b16 %v1924, %v1916
    %v2197 = vpack.c.b16 %v1925, %v1917
    %v2198 = vpack.c.b16 %v1926, %v1918
    %v2199 = vpack.c.b16 %v1927, %v1919
    %v2200 = vpack.c.b16 %v1936, %v1928
    %v2201 = vpack.c.b16 %v1937, %v1929
    %v2202 = vpack.c.b16 %v1938, %v1930
    %v2203 = vpack.c.b16 %v1939, %v1931
    %v2204 = vpack.c.b16 %v1940, %v1932
    %v2205 = vpack.c.b16 %v1941, %v1933
    %v2206 = vpack.c.b16 %v1942, %v1934
    %v2207 = vpack.c.b16 %v1943, %v1935
    %v2208 = vpack.c.b16 %v1952, %v1944
    %v2209 = vpack.c.b16 %v1953, %v1945
    %v2210 = vpack.c.b16 %v1954, %v1946
    %v2211 = vpack.c.b16 %v1955, %v1947
    %v2212 = vpack.c.b16 %v1956, %v1948
    %v2213 = vpack.c.b16 %v1957, %v1949
    %v2214 = vpack.c.b16 %v1958, %v1950
    %v2215 = vpack.c.b16 %v1959, %v1951
    %2472 = vmatpush.bf16.msra.mxu0 %v2016
    %2473 = vmatpush.bf16.msra.mxu0 %v2008
    %2474 = vmatpush.bf16.msra.mxu0 %v2000
    %2475 = vmatpush.bf16.msra.mxu0 %v1992
    %2476 = vmatpush.bf16.msra.mxu0 %v1984
    %2477 = vmatpush.bf16.msra.mxu0 %v1976
    %2478 = vmatpush.bf16.msra.mxu0 %v1968
    %2479 = vmatpush.bf16.msra.mxu0 %v1960
    %2480 = vmatmul.bf16.gmra.mxu0 %v914
    %v2481 = vpop.f32.mrf.mxu0
    %v2482 = vadd.f32 %v1176, %v2481
    %v2483 = vpop.f32.mrf.mxu0
    %2484 = vdwg.mxu0
    %2485 = vmatpush.bf16.msra.mxu0 %v2080
    %2486 = vmatpush.bf16.msra.mxu0 %v2072
    %2487 = vmatpush.bf16.msra.mxu0 %v2064
    %2488 = vmatpush.bf16.msra.mxu0 %v2056
    %2489 = vmatpush.bf16.msra.mxu0 %v2048
    %2490 = vmatpush.bf16.msra.mxu0 %v2040
    %2491 = vmatpush.bf16.msra.mxu0 %v2032
    %2492 = vmatpush.bf16.msra.mxu0 %v2024
    %2493 = vmatmul.bf16.gmra.mxu0 %v915
    %v2494 = vpop.f32.mrf.mxu0
    %v2495 = vadd.f32 %v2482, %v2494
    %v2496 = vpop.f32.mrf.mxu0
    %2497 = vdwg.mxu0
    %2498 = vmatpush.bf16.msra.mxu0 %v2144
    %2499 = vmatpush.bf16.msra.mxu0 %v2136
    %2500 = vmatpush.bf16.msra.mxu0 %v2128
    %2501 = vmatpush.bf16.msra.mxu0 %v2120
    %2502 = vmatpush.bf16.msra.mxu0 %v2112
    %2503 = vmatpush.bf16.msra.mxu0 %v2104
    %2504 = vmatpush.bf16.msra.mxu0 %v2096
    %2505 = vmatpush.bf16.msra.mxu0 %v2088
    %2506 = vmatmul.bf16.gmra.mxu0 %v916
    %v2507 = vpop.f32.mrf.mxu0
    %v2508 = vadd.f32 %v2495, %v2507
    %v2509 = vpop.f32.mrf.mxu0
    %2510 = vdwg.mxu0
    %2511 = vmatpush.bf16.msra.mxu0 %v2208
    %2512 = vmatpush.bf16.msra.mxu0 %v2200
    %2513 = vmatpush.bf16.msra.mxu0 %v2192
    %2514 = vmatpush.bf16.msra.mxu0 %v2184
    %2515 = vmatpush.bf16.msra.mxu0 %v2176
    %2516 = vmatpush.bf16.msra.mxu0 %v2168
    %2517 = vmatpush.bf16.msra.mxu0 %v2160
    %2518 = vmatpush.bf16.msra.mxu0 %v2152
    %2519 = vmatmul.bf16.gmra.mxu0 %v917
    %v2520 = vpop.f32.mrf.mxu0
    %v2521 = vadd.f32 %v2508, %v2520
    %v2522 = vpop.f32.mrf.mxu0
    %2523 = vdwg.mxu0
    %2524 = vmatpush.bf16.msra.mxu0 %v2017
    %2525 = vmatpush.bf16.msra.mxu0 %v2009
    %2526 = vmatpush.bf16.msra.mxu0 %v2001
    %2527 = vmatpush.bf16.msra.mxu0 %v1993
    %2528 = vmatpush.bf16.msra.mxu0 %v1985
    %2529 = vmatpush.bf16.msra.mxu0 %v1977
    %2530 = vmatpush.bf16.msra.mxu0 %v1969
    %2531 = vmatpush.bf16.msra.mxu0 %v1961
    %2532 = vmatmul.bf16.gmra.mxu0 %v914
    %v2533 = vpop.f32.mrf.mxu0
    %v2534 = vadd.f32 %v1177, %v2533
    %v2535 = vpop.f32.mrf.mxu0
    %2536 = vdwg.mxu0
    %2537 = vmatpush.bf16.msra.mxu0 %v2081
    %2538 = vmatpush.bf16.msra.mxu0 %v2073
    %2539 = vmatpush.bf16.msra.mxu0 %v2065
    %2540 = vmatpush.bf16.msra.mxu0 %v2057
    %2541 = vmatpush.bf16.msra.mxu0 %v2049
    %2542 = vmatpush.bf16.msra.mxu0 %v2041
    %2543 = vmatpush.bf16.msra.mxu0 %v2033
    %2544 = vmatpush.bf16.msra.mxu0 %v2025
    %2545 = vmatmul.bf16.gmra.mxu0 %v915
    %v2546 = vpop.f32.mrf.mxu0
    %v2547 = vadd.f32 %v2534, %v2546
    %v2548 = vpop.f32.mrf.mxu0
    %2549 = vdwg.mxu0
    %2550 = vmatpush.bf16.msra.mxu0 %v2145
    %2551 = vmatpush.bf16.msra.mxu0 %v2137
    %2552 = vmatpush.bf16.msra.mxu0 %v2129
    %2553 = vmatpush.bf16.msra.mxu0 %v2121
    %2554 = vmatpush.bf16.msra.mxu0 %v2113
    %2555 = vmatpush.bf16.msra.mxu0 %v2105
    %2556 = vmatpush.bf16.msra.mxu0 %v2097
    %2557 = vmatpush.bf16.msra.mxu0 %v2089
    %2558 = vmatmul.bf16.gmra.mxu0 %v916
    %v2559 = vpop.f32.mrf.mxu0
    %v2560 = vadd.f32 %v2547, %v2559
    %v2561 = vpop.f32.mrf.mxu0
    %2562 = vdwg.mxu0
    %2563 = vmatpush.bf16.msra.mxu0 %v2209
    %2564 = vmatpush.bf16.msra.mxu0 %v2201
    %2565 = vmatpush.bf16.msra.mxu0 %v2193
    %2566 = vmatpush.bf16.msra.mxu0 %v2185
    %2567 = vmatpush.bf16.msra.mxu0 %v2177
    %2568 = vmatpush.bf16.msra.mxu0 %v2169
    %2569 = vmatpush.bf16.msra.mxu0 %v2161
    %2570 = vmatpush.bf16.msra.mxu0 %v2153
    %2571 = vmatmul.bf16.gmra.mxu0 %v917
    %v2572 = vpop.f32.mrf.mxu0
    %v2573 = vadd.f32 %v2560, %v2572
    %v2574 = vpop.f32.mrf.mxu0
    %2575 = vdwg.mxu0
    %2576 = vmatpush.bf16.msra.mxu0 %v2018
    %2577 = vmatpush.bf16.msra.mxu0 %v2010
    %2578 = vmatpush.bf16.msra.mxu0 %v2002
    %2579 = vmatpush.bf16.msra.mxu0 %v1994
    %2580 = vmatpush.bf16.msra.mxu0 %v1986
    %2581 = vmatpush.bf16.msra.mxu0 %v1978
    %2582 = vmatpush.bf16.msra.mxu0 %v1970
    %2583 = vmatpush.bf16.msra.mxu0 %v1962
    %2584 = vmatmul.bf16.gmra.mxu0 %v914
    %v2585 = vpop.f32.mrf.mxu0
    %v2586 = vadd.f32 %v1178, %v2585
    %v2587 = vpop.f32.mrf.mxu0
    %2588 = vdwg.mxu0
    %2589 = vmatpush.bf16.msra.mxu0 %v2082
    %2590 = vmatpush.bf16.msra.mxu0 %v2074
    %2591 = vmatpush.bf16.msra.mxu0 %v2066
    %2592 = vmatpush.bf16.msra.mxu0 %v2058
    %2593 = vmatpush.bf16.msra.mxu0 %v2050
    %2594 = vmatpush.bf16.msra.mxu0 %v2042
    %2595 = vmatpush.bf16.msra.mxu0 %v2034
    %2596 = vmatpush.bf16.msra.mxu0 %v2026
    %2597 = vmatmul.bf16.gmra.mxu0 %v915
    %v2598 = vpop.f32.mrf.mxu0
    %v2599 = vadd.f32 %v2586, %v2598
    %v2600 = vpop.f32.mrf.mxu0
    %2601 = vdwg.mxu0
    %2602 = vmatpush.bf16.msra.mxu0 %v2146
    %2603 = vmatpush.bf16.msra.mxu0 %v2138
    %2604 = vmatpush.bf16.msra.mxu0 %v2130
    %2605 = vmatpush.bf16.msra.mxu0 %v2122
    %2606 = vmatpush.bf16.msra.mxu0 %v2114
    %2607 = vmatpush.bf16.msra.mxu0 %v2106
    %2608 = vmatpush.bf16.msra.mxu0 %v2098
    %2609 = vmatpush.bf16.msra.mxu0 %v2090
    %2610 = vmatmul.bf16.gmra.mxu0 %v916
    %v2611 = vpop.f32.mrf.mxu0
    %v2612 = vadd.f32 %v2599, %v2611
    %v2613 = vpop.f32.mrf.mxu0
    %2614 = vdwg.mxu0
    %2615 = vmatpush.bf16.msra.mxu0 %v2210
    %2616 = vmatpush.bf16.msra.mxu0 %v2202
    %2617 = vmatpush.bf16.msra.mxu0 %v2194
    %2618 = vmatpush.bf16.msra.mxu0 %v2186
    %2619 = vmatpush.bf16.msra.mxu0 %v2178
    %2620 = vmatpush.bf16.msra.mxu0 %v2170
    %2621 = vmatpush.bf16.msra.mxu0 %v2162
    %2622 = vmatpush.bf16.msra.mxu0 %v2154
    %2623 = vmatmul.bf16.gmra.mxu0 %v917
    %v2624 = vpop.f32.mrf.mxu0
    %v2625 = vadd.f32 %v2612, %v2624
    %v2626 = vpop.f32.mrf.mxu0
    %2627 = vdwg.mxu0
    %2628 = vmatpush.bf16.msra.mxu0 %v2019
    %2629 = vmatpush.bf16.msra.mxu0 %v2011
    %2630 = vmatpush.bf16.msra.mxu0 %v2003
    %2631 = vmatpush.bf16.msra.mxu0 %v1995
    %2632 = vmatpush.bf16.msra.mxu0 %v1987
    %2633 = vmatpush.bf16.msra.mxu0 %v1979
    %2634 = vmatpush.bf16.msra.mxu0 %v1971
    %2635 = vmatpush.bf16.msra.mxu0 %v1963
    %2636 = vmatmul.bf16.gmra.mxu0 %v914
    %v2637 = vpop.f32.mrf.mxu0
    %v2638 = vadd.f32 %v1179, %v2637
    %v2639 = vpop.f32.mrf.mxu0
    %2640 = vdwg.mxu0
    %2641 = vmatpush.bf16.msra.mxu0 %v2083
    %2642 = vmatpush.bf16.msra.mxu0 %v2075
    %2643 = vmatpush.bf16.msra.mxu0 %v2067
    %2644 = vmatpush.bf16.msra.mxu0 %v2059
    %2645 = vmatpush.bf16.msra.mxu0 %v2051
    %2646 = vmatpush.bf16.msra.mxu0 %v2043
    %2647 = vmatpush.bf16.msra.mxu0 %v2035
    %2648 = vmatpush.bf16.msra.mxu0 %v2027
    %2649 = vmatmul.bf16.gmra.mxu0 %v915
    %v2650 = vpop.f32.mrf.mxu0
    %v2651 = vadd.f32 %v2638, %v2650
    %v2652 = vpop.f32.mrf.mxu0
    %2653 = vdwg.mxu0
    %2654 = vmatpush.bf16.msra.mxu0 %v2147
    %2655 = vmatpush.bf16.msra.mxu0 %v2139
    %2656 = vmatpush.bf16.msra.mxu0 %v2131
    %2657 = vmatpush.bf16.msra.mxu0 %v2123
    %2658 = vmatpush.bf16.msra.mxu0 %v2115
    %2659 = vmatpush.bf16.msra.mxu0 %v2107
    %2660 = vmatpush.bf16.msra.mxu0 %v2099
    %2661 = vmatpush.bf16.msra.mxu0 %v2091
    %2662 = vmatmul.bf16.gmra.mxu0 %v916
    %v2663 = vpop.f32.mrf.mxu0
    %v2664 = vadd.f32 %v2651, %v2663
    %v2665 = vpop.f32.mrf.mxu0
    %2666 = vdwg.mxu0
    %2667 = vmatpush.bf16.msra.mxu0 %v2211
    %2668 = vmatpush.bf16.msra.mxu0 %v2203
    %2669 = vmatpush.bf16.msra.mxu0 %v2195
    %2670 = vmatpush.bf16.msra.mxu0 %v2187
    %2671 = vmatpush.bf16.msra.mxu0 %v2179
    %2672 = vmatpush.bf16.msra.mxu0 %v2171
    %2673 = vmatpush.bf16.msra.mxu0 %v2163
    %2674 = vmatpush.bf16.msra.mxu0 %v2155
    %2675 = vmatmul.bf16.gmra.mxu0 %v917
    %v2676 = vpop.f32.mrf.mxu0
    %v2677 = vadd.f32 %v2664, %v2676
    %v2678 = vpop.f32.mrf.mxu0
    %2679 = vdwg.mxu0
    %2680 = vmatpush.bf16.msra.mxu0 %v2020
    %2681 = vmatpush.bf16.msra.mxu0 %v2012
    %2682 = vmatpush.bf16.msra.mxu0 %v2004
    %2683 = vmatpush.bf16.msra.mxu0 %v1996
    %2684 = vmatpush.bf16.msra.mxu0 %v1988
    %2685 = vmatpush.bf16.msra.mxu0 %v1980
    %2686 = vmatpush.bf16.msra.mxu0 %v1972
    %2687 = vmatpush.bf16.msra.mxu0 %v1964
    %2688 = vmatmul.bf16.gmra.mxu0 %v914
    %v2689 = vpop.f32.mrf.mxu0
    %v2690 = vadd.f32 %v1180, %v2689
    %v2691 = vpop.f32.mrf.mxu0
    %2692 = vdwg.mxu0
    %2693 = vmatpush.bf16.msra.mxu0 %v2084
    %2694 = vmatpush.bf16.msra.mxu0 %v2076
    %2695 = vmatpush.bf16.msra.mxu0 %v2068
    %2696 = vmatpush.bf16.msra.mxu0 %v2060
    %2697 = vmatpush.bf16.msra.mxu0 %v2052
    %2698 = vmatpush.bf16.msra.mxu0 %v2044
    %2699 = vmatpush.bf16.msra.mxu0 %v2036
    %2700 = vmatpush.bf16.msra.mxu0 %v2028
    %2701 = vmatmul.bf16.gmra.mxu0 %v915
    %v2702 = vpop.f32.mrf.mxu0
    %v2703 = vadd.f32 %v2690, %v2702
    %v2704 = vpop.f32.mrf.mxu0
    %2705 = vdwg.mxu0
    %2706 = vmatpush.bf16.msra.mxu0 %v2148
    %2707 = vmatpush.bf16.msra.mxu0 %v2140
    %2708 = vmatpush.bf16.msra.mxu0 %v2132
    %2709 = vmatpush.bf16.msra.mxu0 %v2124
    %2710 = vmatpush.bf16.msra.mxu0 %v2116
    %2711 = vmatpush.bf16.msra.mxu0 %v2108
    %2712 = vmatpush.bf16.msra.mxu0 %v2100
    %2713 = vmatpush.bf16.msra.mxu0 %v2092
    %2714 = vmatmul.bf16.gmra.mxu0 %v916
    %v2715 = vpop.f32.mrf.mxu0
    %v2716 = vadd.f32 %v2703, %v2715
    %v2717 = vpop.f32.mrf.mxu0
    %2718 = vdwg.mxu0
    %2719 = vmatpush.bf16.msra.mxu0 %v2212
    %2720 = vmatpush.bf16.msra.mxu0 %v2204
    %2721 = vmatpush.bf16.msra.mxu0 %v2196
    %2722 = vmatpush.bf16.msra.mxu0 %v2188
    %2723 = vmatpush.bf16.msra.mxu0 %v2180
    %2724 = vmatpush.bf16.msra.mxu0 %v2172
    %2725 = vmatpush.bf16.msra.mxu0 %v2164
    %2726 = vmatpush.bf16.msra.mxu0 %v2156
    %2727 = vmatmul.bf16.gmra.mxu0 %v917
    %v2728 = vpop.f32.mrf.mxu0
    %v2729 = vadd.f32 %v2716, %v2728
    %v2730 = vpop.f32.mrf.mxu0
    %2731 = vdwg.mxu0
    %2732 = vmatpush.bf16.msra.mxu0 %v2021
    %2733 = vmatpush.bf16.msra.mxu0 %v2013
    %2734 = vmatpush.bf16.msra.mxu0 %v2005
    %2735 = vmatpush.bf16.msra.mxu0 %v1997
    %2736 = vmatpush.bf16.msra.mxu0 %v1989
    %2737 = vmatpush.bf16.msra.mxu0 %v1981
    %2738 = vmatpush.bf16.msra.mxu0 %v1973
    %2739 = vmatpush.bf16.msra.mxu0 %v1965
    %2740 = vmatmul.bf16.gmra.mxu0 %v914
    %v2741 = vpop.f32.mrf.mxu0
    %v2742 = vadd.f32 %v1181, %v2741
    %v2743 = vpop.f32.mrf.mxu0
    %2744 = vdwg.mxu0
    %2745 = vmatpush.bf16.msra.mxu0 %v2085
    %2746 = vmatpush.bf16.msra.mxu0 %v2077
    %2747 = vmatpush.bf16.msra.mxu0 %v2069
    %2748 = vmatpush.bf16.msra.mxu0 %v2061
    %2749 = vmatpush.bf16.msra.mxu0 %v2053
    %2750 = vmatpush.bf16.msra.mxu0 %v2045
    %2751 = vmatpush.bf16.msra.mxu0 %v2037
    %2752 = vmatpush.bf16.msra.mxu0 %v2029
    %2753 = vmatmul.bf16.gmra.mxu0 %v915
    %v2754 = vpop.f32.mrf.mxu0
    %v2755 = vadd.f32 %v2742, %v2754
    %v2756 = vpop.f32.mrf.mxu0
    %2757 = vdwg.mxu0
    %2758 = vmatpush.bf16.msra.mxu0 %v2149
    %2759 = vmatpush.bf16.msra.mxu0 %v2141
    %2760 = vmatpush.bf16.msra.mxu0 %v2133
    %2761 = vmatpush.bf16.msra.mxu0 %v2125
    %2762 = vmatpush.bf16.msra.mxu0 %v2117
    %2763 = vmatpush.bf16.msra.mxu0 %v2109
    %2764 = vmatpush.bf16.msra.mxu0 %v2101
    %2765 = vmatpush.bf16.msra.mxu0 %v2093
    %2766 = vmatmul.bf16.gmra.mxu0 %v916
    %v2767 = vpop.f32.mrf.mxu0
    %v2768 = vadd.f32 %v2755, %v2767
    %v2769 = vpop.f32.mrf.mxu0
    %2770 = vdwg.mxu0
    %2771 = vmatpush.bf16.msra.mxu0 %v2213
    %2772 = vmatpush.bf16.msra.mxu0 %v2205
    %2773 = vmatpush.bf16.msra.mxu0 %v2197
    %2774 = vmatpush.bf16.msra.mxu0 %v2189
    %2775 = vmatpush.bf16.msra.mxu0 %v2181
    %2776 = vmatpush.bf16.msra.mxu0 %v2173
    %2777 = vmatpush.bf16.msra.mxu0 %v2165
    %2778 = vmatpush.bf16.msra.mxu0 %v2157
    %2779 = vmatmul.bf16.gmra.mxu0 %v917
    %v2780 = vpop.f32.mrf.mxu0
    %v2781 = vadd.f32 %v2768, %v2780
    %v2782 = vpop.f32.mrf.mxu0
    %2783 = vdwg.mxu0
    %2784 = vmatpush.bf16.msra.mxu0 %v2022
    %2785 = vmatpush.bf16.msra.mxu0 %v2014
    %2786 = vmatpush.bf16.msra.mxu0 %v2006
    %2787 = vmatpush.bf16.msra.mxu0 %v1998
    %2788 = vmatpush.bf16.msra.mxu0 %v1990
    %2789 = vmatpush.bf16.msra.mxu0 %v1982
    %2790 = vmatpush.bf16.msra.mxu0 %v1974
    %2791 = vmatpush.bf16.msra.mxu0 %v1966
    %2792 = vmatmul.bf16.gmra.mxu0 %v914
    %v2793 = vpop.f32.mrf.mxu0
    %v2794 = vadd.f32 %v1182, %v2793
    %v2795 = vpop.f32.mrf.mxu0
    %2796 = vdwg.mxu0
    %2797 = vmatpush.bf16.msra.mxu0 %v2086
    %2798 = vmatpush.bf16.msra.mxu0 %v2078
    %2799 = vmatpush.bf16.msra.mxu0 %v2070
    %2800 = vmatpush.bf16.msra.mxu0 %v2062
    %2801 = vmatpush.bf16.msra.mxu0 %v2054
    %2802 = vmatpush.bf16.msra.mxu0 %v2046
    %2803 = vmatpush.bf16.msra.mxu0 %v2038
    %2804 = vmatpush.bf16.msra.mxu0 %v2030
    %2805 = vmatmul.bf16.gmra.mxu0 %v915
    %v2806 = vpop.f32.mrf.mxu0
    %v2807 = vadd.f32 %v2794, %v2806
    %v2808 = vpop.f32.mrf.mxu0
    %2809 = vdwg.mxu0
    %2810 = vmatpush.bf16.msra.mxu0 %v2150
    %2811 = vmatpush.bf16.msra.mxu0 %v2142
    %2812 = vmatpush.bf16.msra.mxu0 %v2134
    %2813 = vmatpush.bf16.msra.mxu0 %v2126
    %2814 = vmatpush.bf16.msra.mxu0 %v2118
    %2815 = vmatpush.bf16.msra.mxu0 %v2110
    %2816 = vmatpush.bf16.msra.mxu0 %v2102
    %2817 = vmatpush.bf16.msra.mxu0 %v2094
    %2818 = vmatmul.bf16.gmra.mxu0 %v916
    %v2819 = vpop.f32.mrf.mxu0
    %v2820 = vadd.f32 %v2807, %v2819
    %v2821 = vpop.f32.mrf.mxu0
    %2822 = vdwg.mxu0
    %2823 = vmatpush.bf16.msra.mxu0 %v2214
    %2824 = vmatpush.bf16.msra.mxu0 %v2206
    %2825 = vmatpush.bf16.msra.mxu0 %v2198
    %2826 = vmatpush.bf16.msra.mxu0 %v2190
    %2827 = vmatpush.bf16.msra.mxu0 %v2182
    %2828 = vmatpush.bf16.msra.mxu0 %v2174
    %2829 = vmatpush.bf16.msra.mxu0 %v2166
    %2830 = vmatpush.bf16.msra.mxu0 %v2158
    %2831 = vmatmul.bf16.gmra.mxu0 %v917
    %v2832 = vpop.f32.mrf.mxu0
    %v2833 = vadd.f32 %v2820, %v2832
    %v2834 = vpop.f32.mrf.mxu0
    %2835 = vdwg.mxu0
    %2836 = vmatpush.bf16.msra.mxu0 %v2023
    %2837 = vmatpush.bf16.msra.mxu0 %v2015
    %2838 = vmatpush.bf16.msra.mxu0 %v2007
    %2839 = vmatpush.bf16.msra.mxu0 %v1999
    %2840 = vmatpush.bf16.msra.mxu0 %v1991
    %2841 = vmatpush.bf16.msra.mxu0 %v1983
    %2842 = vmatpush.bf16.msra.mxu0 %v1975
    %2843 = vmatpush.bf16.msra.mxu0 %v1967
    %2844 = vmatmul.bf16.gmra.mxu0 %v914
    %v2845 = vpop.f32.mrf.mxu0
    %v2846 = vadd.f32 %v1183, %v2845
    %v2847 = vpop.f32.mrf.mxu0
    %2848 = vdwg.mxu0
    %2849 = vmatpush.bf16.msra.mxu0 %v2087
    %2850 = vmatpush.bf16.msra.mxu0 %v2079
    %2851 = vmatpush.bf16.msra.mxu0 %v2071
    %2852 = vmatpush.bf16.msra.mxu0 %v2063
    %2853 = vmatpush.bf16.msra.mxu0 %v2055
    %2854 = vmatpush.bf16.msra.mxu0 %v2047
    %2855 = vmatpush.bf16.msra.mxu0 %v2039
    %2856 = vmatpush.bf16.msra.mxu0 %v2031
    %2857 = vmatmul.bf16.gmra.mxu0 %v915
    %v2858 = vpop.f32.mrf.mxu0
    %v2859 = vadd.f32 %v2846, %v2858
    %v2860 = vpop.f32.mrf.mxu0
    %2861 = vdwg.mxu0
    %2862 = vmatpush.bf16.msra.mxu0 %v2151
    %2863 = vmatpush.bf16.msra.mxu0 %v2143
    %2864 = vmatpush.bf16.msra.mxu0 %v2135
    %2865 = vmatpush.bf16.msra.mxu0 %v2127
    %2866 = vmatpush.bf16.msra.mxu0 %v2119
    %2867 = vmatpush.bf16.msra.mxu0 %v2111
    %2868 = vmatpush.bf16.msra.mxu0 %v2103
    %2869 = vmatpush.bf16.msra.mxu0 %v2095
    %2870 = vmatmul.bf16.gmra.mxu0 %v916
    %v2871 = vpop.f32.mrf.mxu0
    %v2872 = vadd.f32 %v2859, %v2871
    %v2873 = vpop.f32.mrf.mxu0
    %2874 = vdwg.mxu0
    %2875 = vmatpush.bf16.msra.mxu0 %v2215
    %2876 = vmatpush.bf16.msra.mxu0 %v2207
    %2877 = vmatpush.bf16.msra.mxu0 %v2199
    %2878 = vmatpush.bf16.msra.mxu0 %v2191
    %2879 = vmatpush.bf16.msra.mxu0 %v2183
    %2880 = vmatpush.bf16.msra.mxu0 %v2175
    %2881 = vmatpush.bf16.msra.mxu0 %v2167
    %2882 = vmatpush.bf16.msra.mxu0 %v2159
    %2883 = vmatmul.bf16.gmra.mxu0 %v917
    %v2884 = vpop.f32.mrf.mxu0
    %v2885 = vadd.f32 %v2872, %v2884
    %v2886 = vpop.f32.mrf.mxu0
    %2887 = vdwg.mxu0
    %v2888 = vmin.f32 %v2521, 20.0
    %v2889 = vmin.f32 %v2573, 20.0
    %v2890 = vmin.f32 %v2625, 20.0
    %v2891 = vmin.f32 %v2677, 20.0
    %v2892 = vmin.f32 %v2729, 20.0
    %v2893 = vmin.f32 %v2781, 20.0
    %v2894 = vmin.f32 %v2833, 20.0
    %v2895 = vmin.f32 %v2885, 20.0
    %v2896 = vmul.f32 %v2888, 1.442695
    %v2897 = vpow.pop %v2896
    %v2898 = vmul.f32 %v2889, 1.442695
    %v2899 = vpow.pop %v2898
    %v2900 = vmul.f32 %v2890, 1.442695
    %v2901 = vpow.pop %v2900
    %v2902 = vmul.f32 %v2891, 1.442695
    %v2903 = vpow.pop %v2902
    %v2904 = vmul.f32 %v2892, 1.442695
    %v2905 = vpow.pop %v2904
    %v2906 = vmul.f32 %v2893, 1.442695
    %v2907 = vpow.pop %v2906
    %v2908 = vmul.f32 %v2894, 1.442695
    %v2909 = vpow.pop %v2908
    %v2910 = vmul.f32 %v2895, 1.442695
    %v2911 = vpow.pop %v2910
    %v2912 = vadd.f32 %v2897, 2.0
    %v2913 = vadd.f32 %v2899, 2.0
    %v2914 = vadd.f32 %v2901, 2.0
    %v2915 = vadd.f32 %v2903, 2.0
    %v2916 = vadd.f32 %v2905, 2.0
    %v2917 = vadd.f32 %v2907, 2.0
    %v2918 = vadd.f32 %v2909, 2.0
    %v2919 = vadd.f32 %v2911, 2.0
    %v2920 = vmul.f32 %v2897, %v2912
    %v2921 = vmul.f32 %v2899, %v2913
    %v2922 = vmul.f32 %v2901, %v2914
    %v2923 = vmul.f32 %v2903, %v2915
    %v2924 = vmul.f32 %v2905, %v2916
    %v2925 = vmul.f32 %v2907, %v2917
    %v2926 = vmul.f32 %v2909, %v2918
    %v2927 = vmul.f32 %v2911, %v2919
    %v2928 = vmul.f32 %v2521, %v2920
    %v2929 = vmul.f32 %v2573, %v2921
    %v2930 = vmul.f32 %v2625, %v2922
    %v2931 = vmul.f32 %v2677, %v2923
    %v2932 = vmul.f32 %v2729, %v2924
    %v2933 = vmul.f32 %v2781, %v2925
    %v2934 = vmul.f32 %v2833, %v2926
    %v2935 = vmul.f32 %v2885, %v2927
    %v2936 = vadd.f32 %v2920, 2.0
    %v2937 = vadd.f32 %v2921, 2.0
    %v2938 = vadd.f32 %v2922, 2.0
    %v2939 = vadd.f32 %v2923, 2.0
    %v2940 = vadd.f32 %v2924, 2.0
    %v2941 = vadd.f32 %v2925, 2.0
    %v2942 = vadd.f32 %v2926, 2.0
    %v2943 = vadd.f32 %v2927, 2.0
    %v2944 = vrcp.pop %v2936
    %v2945 = vrcp.pop %v2937
    %v2946 = vrcp.pop %v2938
    %v2947 = vrcp.pop %v2939
    %v2948 = vrcp.pop %v2940
    %v2949 = vrcp.pop %v2941
    %v2950 = vrcp.pop %v2942
    %v2951 = vrcp.pop %v2943
    %v2952 = vmul.f32 %v2928, %v2944
    %v2953 = vmul.f32 %v2929, %v2945
    %v2954 = vmul.f32 %v2930, %v2946
    %v2955 = vmul.f32 %v2931, %v2947
    %v2956 = vmul.f32 %v2932, %v2948
    %v2957 = vmul.f32 %v2933, %v2949
    %v2958 = vmul.f32 %v2934, %v2950
    %v2959 = vmul.f32 %v2935, %v2951
    %vm2960 = vcmp.gt.f32.partialorder %v2521, 20.0
    %vm2961 = vcmp.gt.f32.partialorder %v2573, 20.0
    %vm2962 = vcmp.gt.f32.partialorder %v2625, 20.0
    %vm2963 = vcmp.gt.f32.partialorder %v2677, 20.0
    %vm2964 = vcmp.gt.f32.partialorder %v2729, 20.0
    %vm2965 = vcmp.gt.f32.partialorder %v2781, 20.0
    %vm2966 = vcmp.gt.f32.partialorder %v2833, 20.0
    %vm2967 = vcmp.gt.f32.partialorder %v2885, 20.0
    %v2968 = vsel %vm2960, %v2521, %v2952
    %v2969 = vsel %vm2961, %v2573, %v2953
    %v2970 = vsel %vm2962, %v2625, %v2954
    %v2971 = vsel %vm2963, %v2677, %v2955
    %v2972 = vsel %vm2964, %v2729, %v2956
    %v2973 = vsel %vm2965, %v2781, %v2957
    %v2974 = vsel %vm2966, %v2833, %v2958
    %v2975 = vsel %vm2967, %v2885, %v2959
    %v2976 = vpack.c.bf16 %v2968, %v2968
    %v2977 = vpack.c.bf16 %v2969, %v2969
    %v2978 = vpack.c.bf16 %v2970, %v2970
    %v2979 = vpack.c.bf16 %v2971, %v2971
    %v2980 = vpack.c.bf16 %v2972, %v2972
    %v2981 = vpack.c.bf16 %v2973, %v2973
    %v2982 = vpack.c.bf16 %v2974, %v2974
    %v2983 = vpack.c.bf16 %v2975, %v2975
    %v2984 = vld [vmem:[#allocation14] sm:$0xff]
    %v2985 = vld [vmem:[#allocation14 + $0x8] sm:$0xff]
    %v2986 = vld [vmem:[#allocation14 + $0x10] sm:$0xff]
    %v2987 = vld [vmem:[#allocation14 + $0x18] sm:$0xff]
    %v2988 = vld [vmem:[#allocation14 + $0x20] sm:$0xff]
    %v2989 = vld [vmem:[#allocation14 + $0x28] sm:$0xff]
    %v2990 = vld [vmem:[#allocation14 + $0x30] sm:$0xff]
    %v2991 = vld [vmem:[#allocation14 + $0x38] sm:$0xff]
    %v2992 = vld [vmem:[#allocation14 + $0x40] sm:$0xff]
    %v2993 = vld [vmem:[#allocation14 + $0x48] sm:$0xff]
    %v2994 = vld [vmem:[#allocation14 + $0x50] sm:$0xff]
    %v2995 = vld [vmem:[#allocation14 + $0x58] sm:$0xff]
    %v2996 = vld [vmem:[#allocation14 + $0x60] sm:$0xff]
    %v2997 = vld [vmem:[#allocation14 + $0x68] sm:$0xff]
    %v2998 = vld [vmem:[#allocation14 + $0x70] sm:$0xff]
    %v2999 = vld [vmem:[#allocation14 + $0x78] sm:$0xff]
    %v3000 = vld [vmem:[#allocation14 + $0x80] sm:$0xff]
    %v3001 = vld [vmem:[#allocation14 + $0x88] sm:$0xff]
    %v3002 = vld [vmem:[#allocation14 + $0x90] sm:$0xff]
    %v3003 = vld [vmem:[#allocation14 + $0x98] sm:$0xff]
    %v3004 = vld [vmem:[#allocation14 + $0xa0] sm:$0xff]
    %v3005 = vld [vmem:[#allocation14 + $0xa8] sm:$0xff]
    %v3006 = vld [vmem:[#allocation14 + $0xb0] sm:$0xff]
    %v3007 = vld [vmem:[#allocation14 + $0xb8] sm:$0xff]
    %v3008 = vld [vmem:[#allocation14 + $0xc0] sm:$0xff]
    %v3009 = vld [vmem:[#allocation14 + $0xc8] sm:$0xff]
    %v3010 = vld [vmem:[#allocation14 + $0xd0] sm:$0xff]
    %v3011 = vld [vmem:[#allocation14 + $0xd8] sm:$0xff]
    %v3012 = vld [vmem:[#allocation14 + $0xe0] sm:$0xff]
    %v3013 = vld [vmem:[#allocation14 + $0xe8] sm:$0xff]
    %v3014 = vld [vmem:[#allocation14 + $0xf0] sm:$0xff]
    %v3015 = vld [vmem:[#allocation14 + $0xf8] sm:$0xff]
    %v3016 = vld [vmem:[#allocation14 + $0x100] sm:$0xff]
    %v3017 = vld [vmem:[#allocation14 + $0x108] sm:$0xff]
    %v3018 = vld [vmem:[#allocation14 + $0x110] sm:$0xff]
    %v3019 = vld [vmem:[#allocation14 + $0x118] sm:$0xff]
    %v3020 = vld [vmem:[#allocation14 + $0x120] sm:$0xff]
    %v3021 = vld [vmem:[#allocation14 + $0x128] sm:$0xff]
    %v3022 = vld [vmem:[#allocation14 + $0x130] sm:$0xff]
    %v3023 = vld [vmem:[#allocation14 + $0x138] sm:$0xff]
    %v3024 = vld [vmem:[#allocation14 + $0x140] sm:$0xff]
    %v3025 = vld [vmem:[#allocation14 + $0x148] sm:$0xff]
    %v3026 = vld [vmem:[#allocation14 + $0x150] sm:$0xff]
    %v3027 = vld [vmem:[#allocation14 + $0x158] sm:$0xff]
    %v3028 = vld [vmem:[#allocation14 + $0x160] sm:$0xff]
    %v3029 = vld [vmem:[#allocation14 + $0x168] sm:$0xff]
    %v3030 = vld [vmem:[#allocation14 + $0x170] sm:$0xff]
    %v3031 = vld [vmem:[#allocation14 + $0x178] sm:$0xff]
    %v3032 = vld [vmem:[#allocation14 + $0x180] sm:$0xff]
    %v3033 = vld [vmem:[#allocation14 + $0x188] sm:$0xff]
    %v3034 = vld [vmem:[#allocation14 + $0x190] sm:$0xff]
    %v3035 = vld [vmem:[#allocation14 + $0x198] sm:$0xff]
    %v3036 = vld [vmem:[#allocation14 + $0x1a0] sm:$0xff]
    %v3037 = vld [vmem:[#allocation14 + $0x1a8] sm:$0xff]
    %v3038 = vld [vmem:[#allocation14 + $0x1b0] sm:$0xff]
    %v3039 = vld [vmem:[#allocation14 + $0x1b8] sm:$0xff]
    %v3040 = vld [vmem:[#allocation14 + $0x1c0] sm:$0xff]
    %v3041 = vld [vmem:[#allocation14 + $0x1c8] sm:$0xff]
    %v3042 = vld [vmem:[#allocation14 + $0x1d0] sm:$0xff]
    %v3043 = vld [vmem:[#allocation14 + $0x1d8] sm:$0xff]
    %v3044 = vld [vmem:[#allocation14 + $0x1e0] sm:$0xff]
    %v3045 = vld [vmem:[#allocation14 + $0x1e8] sm:$0xff]
    %v3046 = vld [vmem:[#allocation14 + $0x1f0] sm:$0xff]
    %v3047 = vld [vmem:[#allocation14 + $0x1f8] sm:$0xff]
    %v3048 = vld [vmem:[#allocation14 + $0x200] sm:$0xff]
    %v3049 = vld [vmem:[#allocation14 + $0x208] sm:$0xff]
    %v3050 = vld [vmem:[#allocation14 + $0x210] sm:$0xff]
    %v3051 = vld [vmem:[#allocation14 + $0x218] sm:$0xff]
    %v3052 = vld [vmem:[#allocation14 + $0x220] sm:$0xff]
    %v3053 = vld [vmem:[#allocation14 + $0x228] sm:$0xff]
    %v3054 = vld [vmem:[#allocation14 + $0x230] sm:$0xff]
    %v3055 = vld [vmem:[#allocation14 + $0x238] sm:$0xff]
    %v3056 = vld [vmem:[#allocation14 + $0x240] sm:$0xff]
    %v3057 = vld [vmem:[#allocation14 + $0x248] sm:$0xff]
    %v3058 = vld [vmem:[#allocation14 + $0x250] sm:$0xff]
    %v3059 = vld [vmem:[#allocation14 + $0x258] sm:$0xff]
    %v3060 = vld [vmem:[#allocation14 + $0x260] sm:$0xff]
    %v3061 = vld [vmem:[#allocation14 + $0x268] sm:$0xff]
    %v3062 = vld [vmem:[#allocation14 + $0x270] sm:$0xff]
    %v3063 = vld [vmem:[#allocation14 + $0x278] sm:$0xff]
    %v3064 = vld [vmem:[#allocation14 + $0x280] sm:$0xff]
    %v3065 = vld [vmem:[#allocation14 + $0x288] sm:$0xff]
    %v3066 = vld [vmem:[#allocation14 + $0x290] sm:$0xff]
    %v3067 = vld [vmem:[#allocation14 + $0x298] sm:$0xff]
    %v3068 = vld [vmem:[#allocation14 + $0x2a0] sm:$0xff]
    %v3069 = vld [vmem:[#allocation14 + $0x2a8] sm:$0xff]
    %v3070 = vld [vmem:[#allocation14 + $0x2b0] sm:$0xff]
    %v3071 = vld [vmem:[#allocation14 + $0x2b8] sm:$0xff]
    %v3072 = vld [vmem:[#allocation14 + $0x2c0] sm:$0xff]
    %v3073 = vld [vmem:[#allocation14 + $0x2c8] sm:$0xff]
    %v3074 = vld [vmem:[#allocation14 + $0x2d0] sm:$0xff]
    %v3075 = vld [vmem:[#allocation14 + $0x2d8] sm:$0xff]
    %v3076 = vld [vmem:[#allocation14 + $0x2e0] sm:$0xff]
    %v3077 = vld [vmem:[#allocation14 + $0x2e8] sm:$0xff]
    %v3078 = vld [vmem:[#allocation14 + $0x2f0] sm:$0xff]
    %v3079 = vld [vmem:[#allocation14 + $0x2f8] sm:$0xff]
    %v3080 = vld [vmem:[#allocation14 + $0x300] sm:$0xff]
    %v3081 = vld [vmem:[#allocation14 + $0x308] sm:$0xff]
    %v3082 = vld [vmem:[#allocation14 + $0x310] sm:$0xff]
    %v3083 = vld [vmem:[#allocation14 + $0x318] sm:$0xff]
    %v3084 = vld [vmem:[#allocation14 + $0x320] sm:$0xff]
    %v3085 = vld [vmem:[#allocation14 + $0x328] sm:$0xff]
    %v3086 = vld [vmem:[#allocation14 + $0x330] sm:$0xff]
    %v3087 = vld [vmem:[#allocation14 + $0x338] sm:$0xff]
    %v3088 = vld [vmem:[#allocation14 + $0x340] sm:$0xff]
    %v3089 = vld [vmem:[#allocation14 + $0x348] sm:$0xff]
    %v3090 = vld [vmem:[#allocation14 + $0x350] sm:$0xff]
    %v3091 = vld [vmem:[#allocation14 + $0x358] sm:$0xff]
    %v3092 = vld [vmem:[#allocation14 + $0x360] sm:$0xff]
    %v3093 = vld [vmem:[#allocation14 + $0x368] sm:$0xff]
    %v3094 = vld [vmem:[#allocation14 + $0x370] sm:$0xff]
    %v3095 = vld [vmem:[#allocation14 + $0x378] sm:$0xff]
    %v3096 = vld [vmem:[#allocation14 + $0x380] sm:$0xff]
    %v3097 = vld [vmem:[#allocation14 + $0x388] sm:$0xff]
    %v3098 = vld [vmem:[#allocation14 + $0x390] sm:$0xff]
    %v3099 = vld [vmem:[#allocation14 + $0x398] sm:$0xff]
    %v3100 = vld [vmem:[#allocation14 + $0x3a0] sm:$0xff]
    %v3101 = vld [vmem:[#allocation14 + $0x3a8] sm:$0xff]
    %v3102 = vld [vmem:[#allocation14 + $0x3b0] sm:$0xff]
    %v3103 = vld [vmem:[#allocation14 + $0x3b8] sm:$0xff]
    %v3104 = vld [vmem:[#allocation14 + $0x3c0] sm:$0xff]
    %v3105 = vld [vmem:[#allocation14 + $0x3c8] sm:$0xff]
    %v3106 = vld [vmem:[#allocation14 + $0x3d0] sm:$0xff]
    %v3107 = vld [vmem:[#allocation14 + $0x3d8] sm:$0xff]
    %v3108 = vld [vmem:[#allocation14 + $0x3e0] sm:$0xff]
    %v3109 = vld [vmem:[#allocation14 + $0x3e8] sm:$0xff]
    %v3110 = vld [vmem:[#allocation14 + $0x3f0] sm:$0xff]
    %v3111 = vld [vmem:[#allocation14 + $0x3f8] sm:$0xff]
    %v3112 = vld [vmem:[#allocation14 + $0x400] sm:$0xff]
    %v3113 = vld [vmem:[#allocation14 + $0x408] sm:$0xff]
    %v3114 = vld [vmem:[#allocation14 + $0x410] sm:$0xff]
    %v3115 = vld [vmem:[#allocation14 + $0x418] sm:$0xff]
    %v3116 = vld [vmem:[#allocation14 + $0x420] sm:$0xff]
    %v3117 = vld [vmem:[#allocation14 + $0x428] sm:$0xff]
    %v3118 = vld [vmem:[#allocation14 + $0x430] sm:$0xff]
    %v3119 = vld [vmem:[#allocation14 + $0x438] sm:$0xff]
    %v3120 = vld [vmem:[#allocation14 + $0x440] sm:$0xff]
    %v3121 = vld [vmem:[#allocation14 + $0x448] sm:$0xff]
    %v3122 = vld [vmem:[#allocation14 + $0x450] sm:$0xff]
    %v3123 = vld [vmem:[#allocation14 + $0x458] sm:$0xff]
    %v3124 = vld [vmem:[#allocation14 + $0x460] sm:$0xff]
    %v3125 = vld [vmem:[#allocation14 + $0x468] sm:$0xff]
    %v3126 = vld [vmem:[#allocation14 + $0x470] sm:$0xff]
    %v3127 = vld [vmem:[#allocation14 + $0x478] sm:$0xff]
    %v3128 = vld [vmem:[#allocation14 + $0x480] sm:$0xff]
    %v3129 = vld [vmem:[#allocation14 + $0x488] sm:$0xff]
    %v3130 = vld [vmem:[#allocation14 + $0x490] sm:$0xff]
    %v3131 = vld [vmem:[#allocation14 + $0x498] sm:$0xff]
    %v3132 = vld [vmem:[#allocation14 + $0x4a0] sm:$0xff]
    %v3133 = vld [vmem:[#allocation14 + $0x4a8] sm:$0xff]
    %v3134 = vld [vmem:[#allocation14 + $0x4b0] sm:$0xff]
    %v3135 = vld [vmem:[#allocation14 + $0x4b8] sm:$0xff]
    %v3136 = vld [vmem:[#allocation14 + $0x4c0] sm:$0xff]
    %v3137 = vld [vmem:[#allocation14 + $0x4c8] sm:$0xff]
    %v3138 = vld [vmem:[#allocation14 + $0x4d0] sm:$0xff]
    %v3139 = vld [vmem:[#allocation14 + $0x4d8] sm:$0xff]
    %v3140 = vld [vmem:[#allocation14 + $0x4e0] sm:$0xff]
    %v3141 = vld [vmem:[#allocation14 + $0x4e8] sm:$0xff]
    %v3142 = vld [vmem:[#allocation14 + $0x4f0] sm:$0xff]
    %v3143 = vld [vmem:[#allocation14 + $0x4f8] sm:$0xff]
    %v3144 = vld [vmem:[#allocation14 + $0x500] sm:$0xff]
    %v3145 = vld [vmem:[#allocation14 + $0x508] sm:$0xff]
    %v3146 = vld [vmem:[#allocation14 + $0x510] sm:$0xff]
    %v3147 = vld [vmem:[#allocation14 + $0x518] sm:$0xff]
    %v3148 = vld [vmem:[#allocation14 + $0x520] sm:$0xff]
    %v3149 = vld [vmem:[#allocation14 + $0x528] sm:$0xff]
    %v3150 = vld [vmem:[#allocation14 + $0x530] sm:$0xff]
    %v3151 = vld [vmem:[#allocation14 + $0x538] sm:$0xff]
    %v3152 = vld [vmem:[#allocation14 + $0x540] sm:$0xff]
    %v3153 = vld [vmem:[#allocation14 + $0x548] sm:$0xff]
    %v3154 = vld [vmem:[#allocation14 + $0x550] sm:$0xff]
    %v3155 = vld [vmem:[#allocation14 + $0x558] sm:$0xff]
    %v3156 = vld [vmem:[#allocation14 + $0x560] sm:$0xff]
    %v3157 = vld [vmem:[#allocation14 + $0x568] sm:$0xff]
    %v3158 = vld [vmem:[#allocation14 + $0x570] sm:$0xff]
    %v3159 = vld [vmem:[#allocation14 + $0x578] sm:$0xff]
    %v3160 = vld [vmem:[#allocation14 + $0x580] sm:$0xff]
    %v3161 = vld [vmem:[#allocation14 + $0x588] sm:$0xff]
    %v3162 = vld [vmem:[#allocation14 + $0x590] sm:$0xff]
    %v3163 = vld [vmem:[#allocation14 + $0x598] sm:$0xff]
    %v3164 = vld [vmem:[#allocation14 + $0x5a0] sm:$0xff]
    %v3165 = vld [vmem:[#allocation14 + $0x5a8] sm:$0xff]
    %v3166 = vld [vmem:[#allocation14 + $0x5b0] sm:$0xff]
    %v3167 = vld [vmem:[#allocation14 + $0x5b8] sm:$0xff]
    %v3168 = vld [vmem:[#allocation14 + $0x5c0] sm:$0xff]
    %v3169 = vld [vmem:[#allocation14 + $0x5c8] sm:$0xff]
    %v3170 = vld [vmem:[#allocation14 + $0x5d0] sm:$0xff]
    %v3171 = vld [vmem:[#allocation14 + $0x5d8] sm:$0xff]
    %v3172 = vld [vmem:[#allocation14 + $0x5e0] sm:$0xff]
    %v3173 = vld [vmem:[#allocation14 + $0x5e8] sm:$0xff]
    %v3174 = vld [vmem:[#allocation14 + $0x5f0] sm:$0xff]
    %v3175 = vld [vmem:[#allocation14 + $0x5f8] sm:$0xff]
    %v3176 = vld [vmem:[#allocation14 + $0x600] sm:$0xff]
    %v3177 = vld [vmem:[#allocation14 + $0x608] sm:$0xff]
    %v3178 = vld [vmem:[#allocation14 + $0x610] sm:$0xff]
    %v3179 = vld [vmem:[#allocation14 + $0x618] sm:$0xff]
    %v3180 = vld [vmem:[#allocation14 + $0x620] sm:$0xff]
    %v3181 = vld [vmem:[#allocation14 + $0x628] sm:$0xff]
    %v3182 = vld [vmem:[#allocation14 + $0x630] sm:$0xff]
    %v3183 = vld [vmem:[#allocation14 + $0x638] sm:$0xff]
    %v3184 = vld [vmem:[#allocation14 + $0x640] sm:$0xff]
    %v3185 = vld [vmem:[#allocation14 + $0x648] sm:$0xff]
    %v3186 = vld [vmem:[#allocation14 + $0x650] sm:$0xff]
    %v3187 = vld [vmem:[#allocation14 + $0x658] sm:$0xff]
    %v3188 = vld [vmem:[#allocation14 + $0x660] sm:$0xff]
    %v3189 = vld [vmem:[#allocation14 + $0x668] sm:$0xff]
    %v3190 = vld [vmem:[#allocation14 + $0x670] sm:$0xff]
    %v3191 = vld [vmem:[#allocation14 + $0x678] sm:$0xff]
    %v3192 = vld [vmem:[#allocation14 + $0x680] sm:$0xff]
    %v3193 = vld [vmem:[#allocation14 + $0x688] sm:$0xff]
    %v3194 = vld [vmem:[#allocation14 + $0x690] sm:$0xff]
    %v3195 = vld [vmem:[#allocation14 + $0x698] sm:$0xff]
    %v3196 = vld [vmem:[#allocation14 + $0x6a0] sm:$0xff]
    %v3197 = vld [vmem:[#allocation14 + $0x6a8] sm:$0xff]
    %v3198 = vld [vmem:[#allocation14 + $0x6b0] sm:$0xff]
    %v3199 = vld [vmem:[#allocation14 + $0x6b8] sm:$0xff]
    %v3200 = vld [vmem:[#allocation14 + $0x6c0] sm:$0xff]
    %v3201 = vld [vmem:[#allocation14 + $0x6c8] sm:$0xff]
    %v3202 = vld [vmem:[#allocation14 + $0x6d0] sm:$0xff]
    %v3203 = vld [vmem:[#allocation14 + $0x6d8] sm:$0xff]
    %v3204 = vld [vmem:[#allocation14 + $0x6e0] sm:$0xff]
    %v3205 = vld [vmem:[#allocation14 + $0x6e8] sm:$0xff]
    %v3206 = vld [vmem:[#allocation14 + $0x6f0] sm:$0xff]
    %v3207 = vld [vmem:[#allocation14 + $0x6f8] sm:$0xff]
    %v3208 = vld [vmem:[#allocation14 + $0x700] sm:$0xff]
    %v3209 = vld [vmem:[#allocation14 + $0x708] sm:$0xff]
    %v3210 = vld [vmem:[#allocation14 + $0x710] sm:$0xff]
    %v3211 = vld [vmem:[#allocation14 + $0x718] sm:$0xff]
    %v3212 = vld [vmem:[#allocation14 + $0x720] sm:$0xff]
    %v3213 = vld [vmem:[#allocation14 + $0x728] sm:$0xff]
    %v3214 = vld [vmem:[#allocation14 + $0x730] sm:$0xff]
    %v3215 = vld [vmem:[#allocation14 + $0x738] sm:$0xff]
    %v3216 = vld [vmem:[#allocation14 + $0x740] sm:$0xff]
    %v3217 = vld [vmem:[#allocation14 + $0x748] sm:$0xff]
    %v3218 = vld [vmem:[#allocation14 + $0x750] sm:$0xff]
    %v3219 = vld [vmem:[#allocation14 + $0x758] sm:$0xff]
    %v3220 = vld [vmem:[#allocation14 + $0x760] sm:$0xff]
    %v3221 = vld [vmem:[#allocation14 + $0x768] sm:$0xff]
    %v3222 = vld [vmem:[#allocation14 + $0x770] sm:$0xff]
    %v3223 = vld [vmem:[#allocation14 + $0x778] sm:$0xff]
    %v3224 = vld [vmem:[#allocation14 + $0x780] sm:$0xff]
    %v3225 = vld [vmem:[#allocation14 + $0x788] sm:$0xff]
    %v3226 = vld [vmem:[#allocation14 + $0x790] sm:$0xff]
    %v3227 = vld [vmem:[#allocation14 + $0x798] sm:$0xff]
    %v3228 = vld [vmem:[#allocation14 + $0x7a0] sm:$0xff]
    %v3229 = vld [vmem:[#allocation14 + $0x7a8] sm:$0xff]
    %v3230 = vld [vmem:[#allocation14 + $0x7b0] sm:$0xff]
    %v3231 = vld [vmem:[#allocation14 + $0x7b8] sm:$0xff]
    %v3232 = vld [vmem:[#allocation14 + $0x7c0] sm:$0xff]
    %v3233 = vld [vmem:[#allocation14 + $0x7c8] sm:$0xff]
    %v3234 = vld [vmem:[#allocation14 + $0x7d0] sm:$0xff]
    %v3235 = vld [vmem:[#allocation14 + $0x7d8] sm:$0xff]
    %v3236 = vld [vmem:[#allocation14 + $0x7e0] sm:$0xff]
    %v3237 = vld [vmem:[#allocation14 + $0x7e8] sm:$0xff]
    %v3238 = vld [vmem:[#allocation14 + $0x7f0] sm:$0xff]
    %v3239 = vld [vmem:[#allocation14 + $0x7f8] sm:$0xff]
    %v3240 = vld [vmem:[#allocation14 + $0x800] sm:$0xff]
    %v3241 = vld [vmem:[#allocation14 + $0x808] sm:$0xff]
    %v3242 = vld [vmem:[#allocation14 + $0x810] sm:$0xff]
    %v3243 = vld [vmem:[#allocation14 + $0x818] sm:$0xff]
    %v3244 = vld [vmem:[#allocation14 + $0x820] sm:$0xff]
    %v3245 = vld [vmem:[#allocation14 + $0x828] sm:$0xff]
    %v3246 = vld [vmem:[#allocation14 + $0x830] sm:$0xff]
    %v3247 = vld [vmem:[#allocation14 + $0x838] sm:$0xff]
    %v3248 = vld [vmem:[#allocation14 + $0x840] sm:$0xff]
    %v3249 = vld [vmem:[#allocation14 + $0x848] sm:$0xff]
    %v3250 = vld [vmem:[#allocation14 + $0x850] sm:$0xff]
    %v3251 = vld [vmem:[#allocation14 + $0x858] sm:$0xff]
    %v3252 = vld [vmem:[#allocation14 + $0x860] sm:$0xff]
    %v3253 = vld [vmem:[#allocation14 + $0x868] sm:$0xff]
    %v3254 = vld [vmem:[#allocation14 + $0x870] sm:$0xff]
    %v3255 = vld [vmem:[#allocation14 + $0x878] sm:$0xff]
    %v3256 = vld [vmem:[#allocation14 + $0x880] sm:$0xff]
    %v3257 = vld [vmem:[#allocation14 + $0x888] sm:$0xff]
    %v3258 = vld [vmem:[#allocation14 + $0x890] sm:$0xff]
    %v3259 = vld [vmem:[#allocation14 + $0x898] sm:$0xff]
    %v3260 = vld [vmem:[#allocation14 + $0x8a0] sm:$0xff]
    %v3261 = vld [vmem:[#allocation14 + $0x8a8] sm:$0xff]
    %v3262 = vld [vmem:[#allocation14 + $0x8b0] sm:$0xff]
    %v3263 = vld [vmem:[#allocation14 + $0x8b8] sm:$0xff]
    %v3264 = vld [vmem:[#allocation14 + $0x8c0] sm:$0xff]
    %v3265 = vld [vmem:[#allocation14 + $0x8c8] sm:$0xff]
    %v3266 = vld [vmem:[#allocation14 + $0x8d0] sm:$0xff]
    %v3267 = vld [vmem:[#allocation14 + $0x8d8] sm:$0xff]
    %v3268 = vld [vmem:[#allocation14 + $0x8e0] sm:$0xff]
    %v3269 = vld [vmem:[#allocation14 + $0x8e8] sm:$0xff]
    %v3270 = vld [vmem:[#allocation14 + $0x8f0] sm:$0xff]
    %v3271 = vld [vmem:[#allocation14 + $0x8f8] sm:$0xff]
    %v3272 = vld [vmem:[#allocation14 + $0x900] sm:$0xff]
    %v3273 = vld [vmem:[#allocation14 + $0x908] sm:$0xff]
    %v3274 = vld [vmem:[#allocation14 + $0x910] sm:$0xff]
    %v3275 = vld [vmem:[#allocation14 + $0x918] sm:$0xff]
    %v3276 = vld [vmem:[#allocation14 + $0x920] sm:$0xff]
    %v3277 = vld [vmem:[#allocation14 + $0x928] sm:$0xff]
    %v3278 = vld [vmem:[#allocation14 + $0x930] sm:$0xff]
    %v3279 = vld [vmem:[#allocation14 + $0x938] sm:$0xff]
    %v3280 = vld [vmem:[#allocation14 + $0x940] sm:$0xff]
    %v3281 = vld [vmem:[#allocation14 + $0x948] sm:$0xff]
    %v3282 = vld [vmem:[#allocation14 + $0x950] sm:$0xff]
    %v3283 = vld [vmem:[#allocation14 + $0x958] sm:$0xff]
    %v3284 = vld [vmem:[#allocation14 + $0x960] sm:$0xff]
    %v3285 = vld [vmem:[#allocation14 + $0x968] sm:$0xff]
    %v3286 = vld [vmem:[#allocation14 + $0x970] sm:$0xff]
    %v3287 = vld [vmem:[#allocation14 + $0x978] sm:$0xff]
    %v3288 = vld [vmem:[#allocation14 + $0x980] sm:$0xff]
    %v3289 = vld [vmem:[#allocation14 + $0x988] sm:$0xff]
    %v3290 = vld [vmem:[#allocation14 + $0x990] sm:$0xff]
    %v3291 = vld [vmem:[#allocation14 + $0x998] sm:$0xff]
    %v3292 = vld [vmem:[#allocation14 + $0x9a0] sm:$0xff]
    %v3293 = vld [vmem:[#allocation14 + $0x9a8] sm:$0xff]
    %v3294 = vld [vmem:[#allocation14 + $0x9b0] sm:$0xff]
    %v3295 = vld [vmem:[#allocation14 + $0x9b8] sm:$0xff]
    %v3296 = vld [vmem:[#allocation14 + $0x9c0] sm:$0xff]
    %v3297 = vld [vmem:[#allocation14 + $0x9c8] sm:$0xff]
    %v3298 = vld [vmem:[#allocation14 + $0x9d0] sm:$0xff]
    %v3299 = vld [vmem:[#allocation14 + $0x9d8] sm:$0xff]
    %v3300 = vld [vmem:[#allocation14 + $0x9e0] sm:$0xff]
    %v3301 = vld [vmem:[#allocation14 + $0x9e8] sm:$0xff]
    %v3302 = vld [vmem:[#allocation14 + $0x9f0] sm:$0xff]
    %v3303 = vld [vmem:[#allocation14 + $0x9f8] sm:$0xff]
    %v3304 = vld [vmem:[#allocation14 + $0xa00] sm:$0xff]
    %v3305 = vld [vmem:[#allocation14 + $0xa08] sm:$0xff]
    %v3306 = vld [vmem:[#allocation14 + $0xa10] sm:$0xff]
    %v3307 = vld [vmem:[#allocation14 + $0xa18] sm:$0xff]
    %v3308 = vld [vmem:[#allocation14 + $0xa20] sm:$0xff]
    %v3309 = vld [vmem:[#allocation14 + $0xa28] sm:$0xff]
    %v3310 = vld [vmem:[#allocation14 + $0xa30] sm:$0xff]
    %v3311 = vld [vmem:[#allocation14 + $0xa38] sm:$0xff]
    %v3312 = vld [vmem:[#allocation14 + $0xa40] sm:$0xff]
    %v3313 = vld [vmem:[#allocation14 + $0xa48] sm:$0xff]
    %v3314 = vld [vmem:[#allocation14 + $0xa50] sm:$0xff]
    %v3315 = vld [vmem:[#allocation14 + $0xa58] sm:$0xff]
    %v3316 = vld [vmem:[#allocation14 + $0xa60] sm:$0xff]
    %v3317 = vld [vmem:[#allocation14 + $0xa68] sm:$0xff]
    %v3318 = vld [vmem:[#allocation14 + $0xa70] sm:$0xff]
    %v3319 = vld [vmem:[#allocation14 + $0xa78] sm:$0xff]
    %v3320 = vld [vmem:[#allocation14 + $0xa80] sm:$0xff]
    %v3321 = vld [vmem:[#allocation14 + $0xa88] sm:$0xff]
    %v3322 = vld [vmem:[#allocation14 + $0xa90] sm:$0xff]
    %v3323 = vld [vmem:[#allocation14 + $0xa98] sm:$0xff]
    %v3324 = vld [vmem:[#allocation14 + $0xaa0] sm:$0xff]
    %v3325 = vld [vmem:[#allocation14 + $0xaa8] sm:$0xff]
    %v3326 = vld [vmem:[#allocation14 + $0xab0] sm:$0xff]
    %v3327 = vld [vmem:[#allocation14 + $0xab8] sm:$0xff]
    %v3328 = vld [vmem:[#allocation14 + $0xac0] sm:$0xff]
    %v3329 = vld [vmem:[#allocation14 + $0xac8] sm:$0xff]
    %v3330 = vld [vmem:[#allocation14 + $0xad0] sm:$0xff]
    %v3331 = vld [vmem:[#allocation14 + $0xad8] sm:$0xff]
    %v3332 = vld [vmem:[#allocation14 + $0xae0] sm:$0xff]
    %v3333 = vld [vmem:[#allocation14 + $0xae8] sm:$0xff]
    %v3334 = vld [vmem:[#allocation14 + $0xaf0] sm:$0xff]
    %v3335 = vld [vmem:[#allocation14 + $0xaf8] sm:$0xff]
    %v3336 = vld [vmem:[#allocation14 + $0xb00] sm:$0xff]
    %v3337 = vld [vmem:[#allocation14 + $0xb08] sm:$0xff]
    %v3338 = vld [vmem:[#allocation14 + $0xb10] sm:$0xff]
    %v3339 = vld [vmem:[#allocation14 + $0xb18] sm:$0xff]
    %v3340 = vld [vmem:[#allocation14 + $0xb20] sm:$0xff]
    %v3341 = vld [vmem:[#allocation14 + $0xb28] sm:$0xff]
    %v3342 = vld [vmem:[#allocation14 + $0xb30] sm:$0xff]
    %v3343 = vld [vmem:[#allocation14 + $0xb38] sm:$0xff]
    %v3344 = vld [vmem:[#allocation14 + $0xb40] sm:$0xff]
    %v3345 = vld [vmem:[#allocation14 + $0xb48] sm:$0xff]
    %v3346 = vld [vmem:[#allocation14 + $0xb50] sm:$0xff]
    %v3347 = vld [vmem:[#allocation14 + $0xb58] sm:$0xff]
    %v3348 = vld [vmem:[#allocation14 + $0xb60] sm:$0xff]
    %v3349 = vld [vmem:[#allocation14 + $0xb68] sm:$0xff]
    %v3350 = vld [vmem:[#allocation14 + $0xb70] sm:$0xff]
    %v3351 = vld [vmem:[#allocation14 + $0xb78] sm:$0xff]
    %v3352 = vld [vmem:[#allocation14 + $0xb80] sm:$0xff]
    %v3353 = vld [vmem:[#allocation14 + $0xb88] sm:$0xff]
    %v3354 = vld [vmem:[#allocation14 + $0xb90] sm:$0xff]
    %v3355 = vld [vmem:[#allocation14 + $0xb98] sm:$0xff]
    %v3356 = vld [vmem:[#allocation14 + $0xba0] sm:$0xff]
    %v3357 = vld [vmem:[#allocation14 + $0xba8] sm:$0xff]
    %v3358 = vld [vmem:[#allocation14 + $0xbb0] sm:$0xff]
    %v3359 = vld [vmem:[#allocation14 + $0xbb8] sm:$0xff]
    %v3360 = vld [vmem:[#allocation14 + $0xbc0] sm:$0xff]
    %v3361 = vld [vmem:[#allocation14 + $0xbc8] sm:$0xff]
    %v3362 = vld [vmem:[#allocation14 + $0xbd0] sm:$0xff]
    %v3363 = vld [vmem:[#allocation14 + $0xbd8] sm:$0xff]
    %v3364 = vld [vmem:[#allocation14 + $0xbe0] sm:$0xff]
    %v3365 = vld [vmem:[#allocation14 + $0xbe8] sm:$0xff]
    %v3366 = vld [vmem:[#allocation14 + $0xbf0] sm:$0xff]
    %v3367 = vld [vmem:[#allocation14 + $0xbf8] sm:$0xff]
    %v3368 = vld [vmem:[#allocation14 + $0xc00] sm:$0xff]
    %v3369 = vld [vmem:[#allocation14 + $0xc08] sm:$0xff]
    %v3370 = vld [vmem:[#allocation14 + $0xc10] sm:$0xff]
    %v3371 = vld [vmem:[#allocation14 + $0xc18] sm:$0xff]
    %v3372 = vld [vmem:[#allocation14 + $0xc20] sm:$0xff]
    %v3373 = vld [vmem:[#allocation14 + $0xc28] sm:$0xff]
    %v3374 = vld [vmem:[#allocation14 + $0xc30] sm:$0xff]
    %v3375 = vld [vmem:[#allocation14 + $0xc38] sm:$0xff]
    %v3376 = vld [vmem:[#allocation14 + $0xc40] sm:$0xff]
    %v3377 = vld [vmem:[#allocation14 + $0xc48] sm:$0xff]
    %v3378 = vld [vmem:[#allocation14 + $0xc50] sm:$0xff]
    %v3379 = vld [vmem:[#allocation14 + $0xc58] sm:$0xff]
    %v3380 = vld [vmem:[#allocation14 + $0xc60] sm:$0xff]
    %v3381 = vld [vmem:[#allocation14 + $0xc68] sm:$0xff]
    %v3382 = vld [vmem:[#allocation14 + $0xc70] sm:$0xff]
    %v3383 = vld [vmem:[#allocation14 + $0xc78] sm:$0xff]
    %v3384 = vld [vmem:[#allocation14 + $0xc80] sm:$0xff]
    %v3385 = vld [vmem:[#allocation14 + $0xc88] sm:$0xff]
    %v3386 = vld [vmem:[#allocation14 + $0xc90] sm:$0xff]
    %v3387 = vld [vmem:[#allocation14 + $0xc98] sm:$0xff]
    %v3388 = vld [vmem:[#allocation14 + $0xca0] sm:$0xff]
    %v3389 = vld [vmem:[#allocation14 + $0xca8] sm:$0xff]
    %v3390 = vld [vmem:[#allocation14 + $0xcb0] sm:$0xff]
    %v3391 = vld [vmem:[#allocation14 + $0xcb8] sm:$0xff]
    %v3392 = vld [vmem:[#allocation14 + $0xcc0] sm:$0xff]
    %v3393 = vld [vmem:[#allocation14 + $0xcc8] sm:$0xff]
    %v3394 = vld [vmem:[#allocation14 + $0xcd0] sm:$0xff]
    %v3395 = vld [vmem:[#allocation14 + $0xcd8] sm:$0xff]
    %v3396 = vld [vmem:[#allocation14 + $0xce0] sm:$0xff]
    %v3397 = vld [vmem:[#allocation14 + $0xce8] sm:$0xff]
    %v3398 = vld [vmem:[#allocation14 + $0xcf0] sm:$0xff]
    %v3399 = vld [vmem:[#allocation14 + $0xcf8] sm:$0xff]
    %v3400 = vld [vmem:[#allocation14 + $0xd00] sm:$0xff]
    %v3401 = vld [vmem:[#allocation14 + $0xd08] sm:$0xff]
    %v3402 = vld [vmem:[#allocation14 + $0xd10] sm:$0xff]
    %v3403 = vld [vmem:[#allocation14 + $0xd18] sm:$0xff]
    %v3404 = vld [vmem:[#allocation14 + $0xd20] sm:$0xff]
    %v3405 = vld [vmem:[#allocation14 + $0xd28] sm:$0xff]
    %v3406 = vld [vmem:[#allocation14 + $0xd30] sm:$0xff]
    %v3407 = vld [vmem:[#allocation14 + $0xd38] sm:$0xff]
    %v3408 = vld [vmem:[#allocation14 + $0xd40] sm:$0xff]
    %v3409 = vld [vmem:[#allocation14 + $0xd48] sm:$0xff]
    %v3410 = vld [vmem:[#allocation14 + $0xd50] sm:$0xff]
    %v3411 = vld [vmem:[#allocation14 + $0xd58] sm:$0xff]
    %v3412 = vld [vmem:[#allocation14 + $0xd60] sm:$0xff]
    %v3413 = vld [vmem:[#allocation14 + $0xd68] sm:$0xff]
    %v3414 = vld [vmem:[#allocation14 + $0xd70] sm:$0xff]
    %v3415 = vld [vmem:[#allocation14 + $0xd78] sm:$0xff]
    %v3416 = vld [vmem:[#allocation14 + $0xd80] sm:$0xff]
    %v3417 = vld [vmem:[#allocation14 + $0xd88] sm:$0xff]
    %v3418 = vld [vmem:[#allocation14 + $0xd90] sm:$0xff]
    %v3419 = vld [vmem:[#allocation14 + $0xd98] sm:$0xff]
    %v3420 = vld [vmem:[#allocation14 + $0xda0] sm:$0xff]
    %v3421 = vld [vmem:[#allocation14 + $0xda8] sm:$0xff]
    %v3422 = vld [vmem:[#allocation14 + $0xdb0] sm:$0xff]
    %v3423 = vld [vmem:[#allocation14 + $0xdb8] sm:$0xff]
    %v3424 = vld [vmem:[#allocation14 + $0xdc0] sm:$0xff]
    %v3425 = vld [vmem:[#allocation14 + $0xdc8] sm:$0xff]
    %v3426 = vld [vmem:[#allocation14 + $0xdd0] sm:$0xff]
    %v3427 = vld [vmem:[#allocation14 + $0xdd8] sm:$0xff]
    %v3428 = vld [vmem:[#allocation14 + $0xde0] sm:$0xff]
    %v3429 = vld [vmem:[#allocation14 + $0xde8] sm:$0xff]
    %v3430 = vld [vmem:[#allocation14 + $0xdf0] sm:$0xff]
    %v3431 = vld [vmem:[#allocation14 + $0xdf8] sm:$0xff]
    %v3432 = vld [vmem:[#allocation14 + $0xe00] sm:$0xff]
    %v3433 = vld [vmem:[#allocation14 + $0xe08] sm:$0xff]
    %v3434 = vld [vmem:[#allocation14 + $0xe10] sm:$0xff]
    %v3435 = vld [vmem:[#allocation14 + $0xe18] sm:$0xff]
    %v3436 = vld [vmem:[#allocation14 + $0xe20] sm:$0xff]
    %v3437 = vld [vmem:[#allocation14 + $0xe28] sm:$0xff]
    %v3438 = vld [vmem:[#allocation14 + $0xe30] sm:$0xff]
    %v3439 = vld [vmem:[#allocation14 + $0xe38] sm:$0xff]
    %v3440 = vld [vmem:[#allocation14 + $0xe40] sm:$0xff]
    %v3441 = vld [vmem:[#allocation14 + $0xe48] sm:$0xff]
    %v3442 = vld [vmem:[#allocation14 + $0xe50] sm:$0xff]
    %v3443 = vld [vmem:[#allocation14 + $0xe58] sm:$0xff]
    %v3444 = vld [vmem:[#allocation14 + $0xe60] sm:$0xff]
    %v3445 = vld [vmem:[#allocation14 + $0xe68] sm:$0xff]
    %v3446 = vld [vmem:[#allocation14 + $0xe70] sm:$0xff]
    %v3447 = vld [vmem:[#allocation14 + $0xe78] sm:$0xff]
    %v3448 = vld [vmem:[#allocation14 + $0xe80] sm:$0xff]
    %v3449 = vld [vmem:[#allocation14 + $0xe88] sm:$0xff]
    %v3450 = vld [vmem:[#allocation14 + $0xe90] sm:$0xff]
    %v3451 = vld [vmem:[#allocation14 + $0xe98] sm:$0xff]
    %v3452 = vld [vmem:[#allocation14 + $0xea0] sm:$0xff]
    %v3453 = vld [vmem:[#allocation14 + $0xea8] sm:$0xff]
    %v3454 = vld [vmem:[#allocation14 + $0xeb0] sm:$0xff]
    %v3455 = vld [vmem:[#allocation14 + $0xeb8] sm:$0xff]
    %v3456 = vld [vmem:[#allocation14 + $0xec0] sm:$0xff]
    %v3457 = vld [vmem:[#allocation14 + $0xec8] sm:$0xff]
    %v3458 = vld [vmem:[#allocation14 + $0xed0] sm:$0xff]
    %v3459 = vld [vmem:[#allocation14 + $0xed8] sm:$0xff]
    %v3460 = vld [vmem:[#allocation14 + $0xee0] sm:$0xff]
    %v3461 = vld [vmem:[#allocation14 + $0xee8] sm:$0xff]
    %v3462 = vld [vmem:[#allocation14 + $0xef0] sm:$0xff]
    %v3463 = vld [vmem:[#allocation14 + $0xef8] sm:$0xff]
    %v3464 = vld [vmem:[#allocation14 + $0xf00] sm:$0xff]
    %v3465 = vld [vmem:[#allocation14 + $0xf08] sm:$0xff]
    %v3466 = vld [vmem:[#allocation14 + $0xf10] sm:$0xff]
    %v3467 = vld [vmem:[#allocation14 + $0xf18] sm:$0xff]
    %v3468 = vld [vmem:[#allocation14 + $0xf20] sm:$0xff]
    %v3469 = vld [vmem:[#allocation14 + $0xf28] sm:$0xff]
    %v3470 = vld [vmem:[#allocation14 + $0xf30] sm:$0xff]
    %v3471 = vld [vmem:[#allocation14 + $0xf38] sm:$0xff]
    %v3472 = vld [vmem:[#allocation14 + $0xf40] sm:$0xff]
    %v3473 = vld [vmem:[#allocation14 + $0xf48] sm:$0xff]
    %v3474 = vld [vmem:[#allocation14 + $0xf50] sm:$0xff]
    %v3475 = vld [vmem:[#allocation14 + $0xf58] sm:$0xff]
    %v3476 = vld [vmem:[#allocation14 + $0xf60] sm:$0xff]
    %v3477 = vld [vmem:[#allocation14 + $0xf68] sm:$0xff]
    %v3478 = vld [vmem:[#allocation14 + $0xf70] sm:$0xff]
    %v3479 = vld [vmem:[#allocation14 + $0xf78] sm:$0xff]
    %v3480 = vld [vmem:[#allocation14 + $0xf80] sm:$0xff]
    %v3481 = vld [vmem:[#allocation14 + $0xf88] sm:$0xff]
    %v3482 = vld [vmem:[#allocation14 + $0xf90] sm:$0xff]
    %v3483 = vld [vmem:[#allocation14 + $0xf98] sm:$0xff]
    %v3484 = vld [vmem:[#allocation14 + $0xfa0] sm:$0xff]
    %v3485 = vld [vmem:[#allocation14 + $0xfa8] sm:$0xff]
    %v3486 = vld [vmem:[#allocation14 + $0xfb0] sm:$0xff]
    %v3487 = vld [vmem:[#allocation14 + $0xfb8] sm:$0xff]
    %v3488 = vld [vmem:[#allocation14 + $0xfc0] sm:$0xff]
    %v3489 = vld [vmem:[#allocation14 + $0xfc8] sm:$0xff]
    %v3490 = vld [vmem:[#allocation14 + $0xfd0] sm:$0xff]
    %v3491 = vld [vmem:[#allocation14 + $0xfd8] sm:$0xff]
    %v3492 = vld [vmem:[#allocation14 + $0xfe0] sm:$0xff]
    %v3493 = vld [vmem:[#allocation14 + $0xfe8] sm:$0xff]
    %v3494 = vld [vmem:[#allocation14 + $0xff0] sm:$0xff]
    %v3495 = vld [vmem:[#allocation14 + $0xff8] sm:$0xff]
    %v3496 = vld [vmem:[#allocation14 + $0x1000] sm:$0xff]
    %v3497 = vld [vmem:[#allocation14 + $0x1008] sm:$0xff]
    %v3498 = vld [vmem:[#allocation14 + $0x1010] sm:$0xff]
    %v3499 = vld [vmem:[#allocation14 + $0x1018] sm:$0xff]
    %v3500 = vld [vmem:[#allocation14 + $0x1020] sm:$0xff]
    %v3501 = vld [vmem:[#allocation14 + $0x1028] sm:$0xff]
    %v3502 = vld [vmem:[#allocation14 + $0x1030] sm:$0xff]
    %v3503 = vld [vmem:[#allocation14 + $0x1038] sm:$0xff]
    %v3504 = vld [vmem:[#allocation14 + $0x1040] sm:$0xff]
    %v3505 = vld [vmem:[#allocation14 + $0x1048] sm:$0xff]
    %v3506 = vld [vmem:[#allocation14 + $0x1050] sm:$0xff]
    %v3507 = vld [vmem:[#allocation14 + $0x1058] sm:$0xff]
    %v3508 = vld [vmem:[#allocation14 + $0x1060] sm:$0xff]
    %v3509 = vld [vmem:[#allocation14 + $0x1068] sm:$0xff]
    %v3510 = vld [vmem:[#allocation14 + $0x1070] sm:$0xff]
    %v3511 = vld [vmem:[#allocation14 + $0x1078] sm:$0xff]
    %v3512 = vld [vmem:[#allocation14 + $0x1080] sm:$0xff]
    %v3513 = vld [vmem:[#allocation14 + $0x1088] sm:$0xff]
    %v3514 = vld [vmem:[#allocation14 + $0x1090] sm:$0xff]
    %v3515 = vld [vmem:[#allocation14 + $0x1098] sm:$0xff]
    %v3516 = vld [vmem:[#allocation14 + $0x10a0] sm:$0xff]
    %v3517 = vld [vmem:[#allocation14 + $0x10a8] sm:$0xff]
    %v3518 = vld [vmem:[#allocation14 + $0x10b0] sm:$0xff]
    %v3519 = vld [vmem:[#allocation14 + $0x10b8] sm:$0xff]
    %v3520 = vld [vmem:[#allocation14 + $0x10c0] sm:$0xff]
    %v3521 = vld [vmem:[#allocation14 + $0x10c8] sm:$0xff]
    %v3522 = vld [vmem:[#allocation14 + $0x10d0] sm:$0xff]
    %v3523 = vld [vmem:[#allocation14 + $0x10d8] sm:$0xff]
    %v3524 = vld [vmem:[#allocation14 + $0x10e0] sm:$0xff]
    %v3525 = vld [vmem:[#allocation14 + $0x10e8] sm:$0xff]
    %v3526 = vld [vmem:[#allocation14 + $0x10f0] sm:$0xff]
    %v3527 = vld [vmem:[#allocation14 + $0x10f8] sm:$0xff]
    %v3528 = vld [vmem:[#allocation14 + $0x1100] sm:$0xff]
    %v3529 = vld [vmem:[#allocation14 + $0x1108] sm:$0xff]
    %v3530 = vld [vmem:[#allocation14 + $0x1110] sm:$0xff]
    %v3531 = vld [vmem:[#allocation14 + $0x1118] sm:$0xff]
    %v3532 = vld [vmem:[#allocation14 + $0x1120] sm:$0xff]
    %v3533 = vld [vmem:[#allocation14 + $0x1128] sm:$0xff]
    %v3534 = vld [vmem:[#allocation14 + $0x1130] sm:$0xff]
    %v3535 = vld [vmem:[#allocation14 + $0x1138] sm:$0xff]
    %v3536 = vld [vmem:[#allocation14 + $0x1140] sm:$0xff]
    %v3537 = vld [vmem:[#allocation14 + $0x1148] sm:$0xff]
    %v3538 = vld [vmem:[#allocation14 + $0x1150] sm:$0xff]
    %v3539 = vld [vmem:[#allocation14 + $0x1158] sm:$0xff]
    %v3540 = vld [vmem:[#allocation14 + $0x1160] sm:$0xff]
    %v3541 = vld [vmem:[#allocation14 + $0x1168] sm:$0xff]
    %v3542 = vld [vmem:[#allocation14 + $0x1170] sm:$0xff]
    %v3543 = vld [vmem:[#allocation14 + $0x1178] sm:$0xff]
    %v3544 = vld [vmem:[#allocation14 + $0x1180] sm:$0xff]
    %v3545 = vld [vmem:[#allocation14 + $0x1188] sm:$0xff]
    %v3546 = vld [vmem:[#allocation14 + $0x1190] sm:$0xff]
    %v3547 = vld [vmem:[#allocation14 + $0x1198] sm:$0xff]
    %v3548 = vld [vmem:[#allocation14 + $0x11a0] sm:$0xff]
    %v3549 = vld [vmem:[#allocation14 + $0x11a8] sm:$0xff]
    %v3550 = vld [vmem:[#allocation14 + $0x11b0] sm:$0xff]
    %v3551 = vld [vmem:[#allocation14 + $0x11b8] sm:$0xff]
    %v3552 = vld [vmem:[#allocation14 + $0x11c0] sm:$0xff]
    %v3553 = vld [vmem:[#allocation14 + $0x11c8] sm:$0xff]
    %v3554 = vld [vmem:[#allocation14 + $0x11d0] sm:$0xff]
    %v3555 = vld [vmem:[#allocation14 + $0x11d8] sm:$0xff]
    %v3556 = vld [vmem:[#allocation14 + $0x11e0] sm:$0xff]
    %v3557 = vld [vmem:[#allocation14 + $0x11e8] sm:$0xff]
    %v3558 = vld [vmem:[#allocation14 + $0x11f0] sm:$0xff]
    %v3559 = vld [vmem:[#allocation14 + $0x11f8] sm:$0xff]
    %v3560 = vld [vmem:[#allocation14 + $0x1200] sm:$0xff]
    %v3561 = vld [vmem:[#allocation14 + $0x1208] sm:$0xff]
    %v3562 = vld [vmem:[#allocation14 + $0x1210] sm:$0xff]
    %v3563 = vld [vmem:[#allocation14 + $0x1218] sm:$0xff]
    %v3564 = vld [vmem:[#allocation14 + $0x1220] sm:$0xff]
    %v3565 = vld [vmem:[#allocation14 + $0x1228] sm:$0xff]
    %v3566 = vld [vmem:[#allocation14 + $0x1230] sm:$0xff]
    %v3567 = vld [vmem:[#allocation14 + $0x1238] sm:$0xff]
    %v3568 = vld [vmem:[#allocation14 + $0x1240] sm:$0xff]
    %v3569 = vld [vmem:[#allocation14 + $0x1248] sm:$0xff]
    %v3570 = vld [vmem:[#allocation14 + $0x1250] sm:$0xff]
    %v3571 = vld [vmem:[#allocation14 + $0x1258] sm:$0xff]
    %v3572 = vld [vmem:[#allocation14 + $0x1260] sm:$0xff]
    %v3573 = vld [vmem:[#allocation14 + $0x1268] sm:$0xff]
    %v3574 = vld [vmem:[#allocation14 + $0x1270] sm:$0xff]
    %v3575 = vld [vmem:[#allocation14 + $0x1278] sm:$0xff]
    %v3576 = vld [vmem:[#allocation14 + $0x1280] sm:$0xff]
    %v3577 = vld [vmem:[#allocation14 + $0x1288] sm:$0xff]
    %v3578 = vld [vmem:[#allocation14 + $0x1290] sm:$0xff]
    %v3579 = vld [vmem:[#allocation14 + $0x1298] sm:$0xff]
    %v3580 = vld [vmem:[#allocation14 + $0x12a0] sm:$0xff]
    %v3581 = vld [vmem:[#allocation14 + $0x12a8] sm:$0xff]
    %v3582 = vld [vmem:[#allocation14 + $0x12b0] sm:$0xff]
    %v3583 = vld [vmem:[#allocation14 + $0x12b8] sm:$0xff]
    %v3584 = vld [vmem:[#allocation14 + $0x12c0] sm:$0xff]
    %v3585 = vld [vmem:[#allocation14 + $0x12c8] sm:$0xff]
    %v3586 = vld [vmem:[#allocation14 + $0x12d0] sm:$0xff]
    %v3587 = vld [vmem:[#allocation14 + $0x12d8] sm:$0xff]
    %v3588 = vld [vmem:[#allocation14 + $0x12e0] sm:$0xff]
    %v3589 = vld [vmem:[#allocation14 + $0x12e8] sm:$0xff]
    %v3590 = vld [vmem:[#allocation14 + $0x12f0] sm:$0xff]
    %v3591 = vld [vmem:[#allocation14 + $0x12f8] sm:$0xff]
    %v3592 = vld [vmem:[#allocation14 + $0x1300] sm:$0xff]
    %v3593 = vld [vmem:[#allocation14 + $0x1308] sm:$0xff]
    %v3594 = vld [vmem:[#allocation14 + $0x1310] sm:$0xff]
    %v3595 = vld [vmem:[#allocation14 + $0x1318] sm:$0xff]
    %v3596 = vld [vmem:[#allocation14 + $0x1320] sm:$0xff]
    %v3597 = vld [vmem:[#allocation14 + $0x1328] sm:$0xff]
    %v3598 = vld [vmem:[#allocation14 + $0x1330] sm:$0xff]
    %v3599 = vld [vmem:[#allocation14 + $0x1338] sm:$0xff]
    %v3600 = vld [vmem:[#allocation14 + $0x1340] sm:$0xff]
    %v3601 = vld [vmem:[#allocation14 + $0x1348] sm:$0xff]
    %v3602 = vld [vmem:[#allocation14 + $0x1350] sm:$0xff]
    %v3603 = vld [vmem:[#allocation14 + $0x1358] sm:$0xff]
    %v3604 = vld [vmem:[#allocation14 + $0x1360] sm:$0xff]
    %v3605 = vld [vmem:[#allocation14 + $0x1368] sm:$0xff]
    %v3606 = vld [vmem:[#allocation14 + $0x1370] sm:$0xff]
    %v3607 = vld [vmem:[#allocation14 + $0x1378] sm:$0xff]
    %v3608 = vld [vmem:[#allocation14 + $0x1380] sm:$0xff]
    %v3609 = vld [vmem:[#allocation14 + $0x1388] sm:$0xff]
    %v3610 = vld [vmem:[#allocation14 + $0x1390] sm:$0xff]
    %v3611 = vld [vmem:[#allocation14 + $0x1398] sm:$0xff]
    %v3612 = vld [vmem:[#allocation14 + $0x13a0] sm:$0xff]
    %v3613 = vld [vmem:[#allocation14 + $0x13a8] sm:$0xff]
    %v3614 = vld [vmem:[#allocation14 + $0x13b0] sm:$0xff]
    %v3615 = vld [vmem:[#allocation14 + $0x13b8] sm:$0xff]
    %v3616 = vld [vmem:[#allocation14 + $0x13c0] sm:$0xff]
    %v3617 = vld [vmem:[#allocation14 + $0x13c8] sm:$0xff]
    %v3618 = vld [vmem:[#allocation14 + $0x13d0] sm:$0xff]
    %v3619 = vld [vmem:[#allocation14 + $0x13d8] sm:$0xff]
    %v3620 = vld [vmem:[#allocation14 + $0x13e0] sm:$0xff]
    %v3621 = vld [vmem:[#allocation14 + $0x13e8] sm:$0xff]
    %v3622 = vld [vmem:[#allocation14 + $0x13f0] sm:$0xff]
    %v3623 = vld [vmem:[#allocation14 + $0x13f8] sm:$0xff]
    %v3624 = vld [vmem:[#allocation14 + $0x1400] sm:$0xff]
    %v3625 = vld [vmem:[#allocation14 + $0x1408] sm:$0xff]
    %v3626 = vld [vmem:[#allocation14 + $0x1410] sm:$0xff]
    %v3627 = vld [vmem:[#allocation14 + $0x1418] sm:$0xff]
    %v3628 = vld [vmem:[#allocation14 + $0x1420] sm:$0xff]
    %v3629 = vld [vmem:[#allocation14 + $0x1428] sm:$0xff]
    %v3630 = vld [vmem:[#allocation14 + $0x1430] sm:$0xff]
    %v3631 = vld [vmem:[#allocation14 + $0x1438] sm:$0xff]
    %v3632 = vld [vmem:[#allocation14 + $0x1440] sm:$0xff]
    %v3633 = vld [vmem:[#allocation14 + $0x1448] sm:$0xff]
    %v3634 = vld [vmem:[#allocation14 + $0x1450] sm:$0xff]
    %v3635 = vld [vmem:[#allocation14 + $0x1458] sm:$0xff]
    %v3636 = vld [vmem:[#allocation14 + $0x1460] sm:$0xff]
    %v3637 = vld [vmem:[#allocation14 + $0x1468] sm:$0xff]
    %v3638 = vld [vmem:[#allocation14 + $0x1470] sm:$0xff]
    %v3639 = vld [vmem:[#allocation14 + $0x1478] sm:$0xff]
    %v3640 = vld [vmem:[#allocation14 + $0x1480] sm:$0xff]
    %v3641 = vld [vmem:[#allocation14 + $0x1488] sm:$0xff]
    %v3642 = vld [vmem:[#allocation14 + $0x1490] sm:$0xff]
    %v3643 = vld [vmem:[#allocation14 + $0x1498] sm:$0xff]
    %v3644 = vld [vmem:[#allocation14 + $0x14a0] sm:$0xff]
    %v3645 = vld [vmem:[#allocation14 + $0x14a8] sm:$0xff]
    %v3646 = vld [vmem:[#allocation14 + $0x14b0] sm:$0xff]
    %v3647 = vld [vmem:[#allocation14 + $0x14b8] sm:$0xff]
    %v3648 = vld [vmem:[#allocation14 + $0x14c0] sm:$0xff]
    %v3649 = vld [vmem:[#allocation14 + $0x14c8] sm:$0xff]
    %v3650 = vld [vmem:[#allocation14 + $0x14d0] sm:$0xff]
    %v3651 = vld [vmem:[#allocation14 + $0x14d8] sm:$0xff]
    %v3652 = vld [vmem:[#allocation14 + $0x14e0] sm:$0xff]
    %v3653 = vld [vmem:[#allocation14 + $0x14e8] sm:$0xff]
    %v3654 = vld [vmem:[#allocation14 + $0x14f0] sm:$0xff]
    %v3655 = vld [vmem:[#allocation14 + $0x14f8] sm:$0xff]
    %v3656 = vld [vmem:[#allocation14 + $0x1500] sm:$0xff]
    %v3657 = vld [vmem:[#allocation14 + $0x1508] sm:$0xff]
    %v3658 = vld [vmem:[#allocation14 + $0x1510] sm:$0xff]
    %v3659 = vld [vmem:[#allocation14 + $0x1518] sm:$0xff]
    %v3660 = vld [vmem:[#allocation14 + $0x1520] sm:$0xff]
    %v3661 = vld [vmem:[#allocation14 + $0x1528] sm:$0xff]
    %v3662 = vld [vmem:[#allocation14 + $0x1530] sm:$0xff]
    %v3663 = vld [vmem:[#allocation14 + $0x1538] sm:$0xff]
    %v3664 = vld [vmem:[#allocation14 + $0x1540] sm:$0xff]
    %v3665 = vld [vmem:[#allocation14 + $0x1548] sm:$0xff]
    %v3666 = vld [vmem:[#allocation14 + $0x1550] sm:$0xff]
    %v3667 = vld [vmem:[#allocation14 + $0x1558] sm:$0xff]
    %v3668 = vld [vmem:[#allocation14 + $0x1560] sm:$0xff]
    %v3669 = vld [vmem:[#allocation14 + $0x1568] sm:$0xff]
    %v3670 = vld [vmem:[#allocation14 + $0x1570] sm:$0xff]
    %v3671 = vld [vmem:[#allocation14 + $0x1578] sm:$0xff]
    %v3672 = vld [vmem:[#allocation14 + $0x1580] sm:$0xff]
    %v3673 = vld [vmem:[#allocation14 + $0x1588] sm:$0xff]
    %v3674 = vld [vmem:[#allocation14 + $0x1590] sm:$0xff]
    %v3675 = vld [vmem:[#allocation14 + $0x1598] sm:$0xff]
    %v3676 = vld [vmem:[#allocation14 + $0x15a0] sm:$0xff]
    %v3677 = vld [vmem:[#allocation14 + $0x15a8] sm:$0xff]
    %v3678 = vld [vmem:[#allocation14 + $0x15b0] sm:$0xff]
    %v3679 = vld [vmem:[#allocation14 + $0x15b8] sm:$0xff]
    %v3680 = vld [vmem:[#allocation14 + $0x15c0] sm:$0xff]
    %v3681 = vld [vmem:[#allocation14 + $0x15c8] sm:$0xff]
    %v3682 = vld [vmem:[#allocation14 + $0x15d0] sm:$0xff]
    %v3683 = vld [vmem:[#allocation14 + $0x15d8] sm:$0xff]
    %v3684 = vld [vmem:[#allocation14 + $0x15e0] sm:$0xff]
    %v3685 = vld [vmem:[#allocation14 + $0x15e8] sm:$0xff]
    %v3686 = vld [vmem:[#allocation14 + $0x15f0] sm:$0xff]
    %v3687 = vld [vmem:[#allocation14 + $0x15f8] sm:$0xff]
    %v3688 = vld [vmem:[#allocation14 + $0x1600] sm:$0xff]
    %v3689 = vld [vmem:[#allocation14 + $0x1608] sm:$0xff]
    %v3690 = vld [vmem:[#allocation14 + $0x1610] sm:$0xff]
    %v3691 = vld [vmem:[#allocation14 + $0x1618] sm:$0xff]
    %v3692 = vld [vmem:[#allocation14 + $0x1620] sm:$0xff]
    %v3693 = vld [vmem:[#allocation14 + $0x1628] sm:$0xff]
    %v3694 = vld [vmem:[#allocation14 + $0x1630] sm:$0xff]
    %v3695 = vld [vmem:[#allocation14 + $0x1638] sm:$0xff]
    %v3696 = vld [vmem:[#allocation14 + $0x1640] sm:$0xff]
    %v3697 = vld [vmem:[#allocation14 + $0x1648] sm:$0xff]
    %v3698 = vld [vmem:[#allocation14 + $0x1650] sm:$0xff]
    %v3699 = vld [vmem:[#allocation14 + $0x1658] sm:$0xff]
    %v3700 = vld [vmem:[#allocation14 + $0x1660] sm:$0xff]
    %v3701 = vld [vmem:[#allocation14 + $0x1668] sm:$0xff]
    %v3702 = vld [vmem:[#allocation14 + $0x1670] sm:$0xff]
    %v3703 = vld [vmem:[#allocation14 + $0x1678] sm:$0xff]
    %v3704 = vld [vmem:[#allocation14 + $0x1680] sm:$0xff]
    %v3705 = vld [vmem:[#allocation14 + $0x1688] sm:$0xff]
    %v3706 = vld [vmem:[#allocation14 + $0x1690] sm:$0xff]
    %v3707 = vld [vmem:[#allocation14 + $0x1698] sm:$0xff]
    %v3708 = vld [vmem:[#allocation14 + $0x16a0] sm:$0xff]
    %v3709 = vld [vmem:[#allocation14 + $0x16a8] sm:$0xff]
    %v3710 = vld [vmem:[#allocation14 + $0x16b0] sm:$0xff]
    %v3711 = vld [vmem:[#allocation14 + $0x16b8] sm:$0xff]
    %v3712 = vld [vmem:[#allocation14 + $0x16c0] sm:$0xff]
    %v3713 = vld [vmem:[#allocation14 + $0x16c8] sm:$0xff]
    %v3714 = vld [vmem:[#allocation14 + $0x16d0] sm:$0xff]
    %v3715 = vld [vmem:[#allocation14 + $0x16d8] sm:$0xff]
    %v3716 = vld [vmem:[#allocation14 + $0x16e0] sm:$0xff]
    %v3717 = vld [vmem:[#allocation14 + $0x16e8] sm:$0xff]
    %v3718 = vld [vmem:[#allocation14 + $0x16f0] sm:$0xff]
    %v3719 = vld [vmem:[#allocation14 + $0x16f8] sm:$0xff]
    %v3720 = vld [vmem:[#allocation14 + $0x1700] sm:$0xff]
    %v3721 = vld [vmem:[#allocation14 + $0x1708] sm:$0xff]
    %v3722 = vld [vmem:[#allocation14 + $0x1710] sm:$0xff]
    %v3723 = vld [vmem:[#allocation14 + $0x1718] sm:$0xff]
    %v3724 = vld [vmem:[#allocation14 + $0x1720] sm:$0xff]
    %v3725 = vld [vmem:[#allocation14 + $0x1728] sm:$0xff]
    %v3726 = vld [vmem:[#allocation14 + $0x1730] sm:$0xff]
    %v3727 = vld [vmem:[#allocation14 + $0x1738] sm:$0xff]
    %v3728 = vld [vmem:[#allocation14 + $0x1740] sm:$0xff]
    %v3729 = vld [vmem:[#allocation14 + $0x1748] sm:$0xff]
    %v3730 = vld [vmem:[#allocation14 + $0x1750] sm:$0xff]
    %v3731 = vld [vmem:[#allocation14 + $0x1758] sm:$0xff]
    %v3732 = vld [vmem:[#allocation14 + $0x1760] sm:$0xff]
    %v3733 = vld [vmem:[#allocation14 + $0x1768] sm:$0xff]
    %v3734 = vld [vmem:[#allocation14 + $0x1770] sm:$0xff]
    %v3735 = vld [vmem:[#allocation14 + $0x1778] sm:$0xff]
    %v3736 = vld [vmem:[#allocation14 + $0x1780] sm:$0xff]
    %v3737 = vld [vmem:[#allocation14 + $0x1788] sm:$0xff]
    %v3738 = vld [vmem:[#allocation14 + $0x1790] sm:$0xff]
    %v3739 = vld [vmem:[#allocation14 + $0x1798] sm:$0xff]
    %v3740 = vld [vmem:[#allocation14 + $0x17a0] sm:$0xff]
    %v3741 = vld [vmem:[#allocation14 + $0x17a8] sm:$0xff]
    %v3742 = vld [vmem:[#allocation14 + $0x17b0] sm:$0xff]
    %v3743 = vld [vmem:[#allocation14 + $0x17b8] sm:$0xff]
    %v3744 = vld [vmem:[#allocation14 + $0x17c0] sm:$0xff]
    %v3745 = vld [vmem:[#allocation14 + $0x17c8] sm:$0xff]
    %v3746 = vld [vmem:[#allocation14 + $0x17d0] sm:$0xff]
    %v3747 = vld [vmem:[#allocation14 + $0x17d8] sm:$0xff]
    %v3748 = vld [vmem:[#allocation14 + $0x17e0] sm:$0xff]
    %v3749 = vld [vmem:[#allocation14 + $0x17e8] sm:$0xff]
    %v3750 = vld [vmem:[#allocation14 + $0x17f0] sm:$0xff]
    %v3751 = vld [vmem:[#allocation14 + $0x17f8] sm:$0xff]
    %v3752 = vld [vmem:[#allocation14 + $0x1800] sm:$0xff]
    %v3753 = vld [vmem:[#allocation14 + $0x1808] sm:$0xff]
    %v3754 = vld [vmem:[#allocation14 + $0x1810] sm:$0xff]
    %v3755 = vld [vmem:[#allocation14 + $0x1818] sm:$0xff]
    %v3756 = vld [vmem:[#allocation14 + $0x1820] sm:$0xff]
    %v3757 = vld [vmem:[#allocation14 + $0x1828] sm:$0xff]
    %v3758 = vld [vmem:[#allocation14 + $0x1830] sm:$0xff]
    %v3759 = vld [vmem:[#allocation14 + $0x1838] sm:$0xff]
    %v3760 = vld [vmem:[#allocation14 + $0x1840] sm:$0xff]
    %v3761 = vld [vmem:[#allocation14 + $0x1848] sm:$0xff]
    %v3762 = vld [vmem:[#allocation14 + $0x1850] sm:$0xff]
    %v3763 = vld [vmem:[#allocation14 + $0x1858] sm:$0xff]
    %v3764 = vld [vmem:[#allocation14 + $0x1860] sm:$0xff]
    %v3765 = vld [vmem:[#allocation14 + $0x1868] sm:$0xff]
    %v3766 = vld [vmem:[#allocation14 + $0x1870] sm:$0xff]
    %v3767 = vld [vmem:[#allocation14 + $0x1878] sm:$0xff]
    %v3768 = vld [vmem:[#allocation14 + $0x1880] sm:$0xff]
    %v3769 = vld [vmem:[#allocation14 + $0x1888] sm:$0xff]
    %v3770 = vld [vmem:[#allocation14 + $0x1890] sm:$0xff]
    %v3771 = vld [vmem:[#allocation14 + $0x1898] sm:$0xff]
    %v3772 = vld [vmem:[#allocation14 + $0x18a0] sm:$0xff]
    %v3773 = vld [vmem:[#allocation14 + $0x18a8] sm:$0xff]
    %v3774 = vld [vmem:[#allocation14 + $0x18b0] sm:$0xff]
    %v3775 = vld [vmem:[#allocation14 + $0x18b8] sm:$0xff]
    %v3776 = vld [vmem:[#allocation14 + $0x18c0] sm:$0xff]
    %v3777 = vld [vmem:[#allocation14 + $0x18c8] sm:$0xff]
    %v3778 = vld [vmem:[#allocation14 + $0x18d0] sm:$0xff]
    %v3779 = vld [vmem:[#allocation14 + $0x18d8] sm:$0xff]
    %v3780 = vld [vmem:[#allocation14 + $0x18e0] sm:$0xff]
    %v3781 = vld [vmem:[#allocation14 + $0x18e8] sm:$0xff]
    %v3782 = vld [vmem:[#allocation14 + $0x18f0] sm:$0xff]
    %v3783 = vld [vmem:[#allocation14 + $0x18f8] sm:$0xff]
    %v3784 = vld [vmem:[#allocation14 + $0x1900] sm:$0xff]
    %v3785 = vld [vmem:[#allocation14 + $0x1908] sm:$0xff]
    %v3786 = vld [vmem:[#allocation14 + $0x1910] sm:$0xff]
    %v3787 = vld [vmem:[#allocation14 + $0x1918] sm:$0xff]
    %v3788 = vld [vmem:[#allocation14 + $0x1920] sm:$0xff]
    %v3789 = vld [vmem:[#allocation14 + $0x1928] sm:$0xff]
    %v3790 = vld [vmem:[#allocation14 + $0x1930] sm:$0xff]
    %v3791 = vld [vmem:[#allocation14 + $0x1938] sm:$0xff]
    %v3792 = vld [vmem:[#allocation14 + $0x1940] sm:$0xff]
    %v3793 = vld [vmem:[#allocation14 + $0x1948] sm:$0xff]
    %v3794 = vld [vmem:[#allocation14 + $0x1950] sm:$0xff]
    %v3795 = vld [vmem:[#allocation14 + $0x1958] sm:$0xff]
    %v3796 = vld [vmem:[#allocation14 + $0x1960] sm:$0xff]
    %v3797 = vld [vmem:[#allocation14 + $0x1968] sm:$0xff]
    %v3798 = vld [vmem:[#allocation14 + $0x1970] sm:$0xff]
    %v3799 = vld [vmem:[#allocation14 + $0x1978] sm:$0xff]
    %v3800 = vld [vmem:[#allocation14 + $0x1980] sm:$0xff]
    %v3801 = vld [vmem:[#allocation14 + $0x1988] sm:$0xff]
    %v3802 = vld [vmem:[#allocation14 + $0x1990] sm:$0xff]
    %v3803 = vld [vmem:[#allocation14 + $0x1998] sm:$0xff]
    %v3804 = vld [vmem:[#allocation14 + $0x19a0] sm:$0xff]
    %v3805 = vld [vmem:[#allocation14 + $0x19a8] sm:$0xff]
    %v3806 = vld [vmem:[#allocation14 + $0x19b0] sm:$0xff]
    %v3807 = vld [vmem:[#allocation14 + $0x19b8] sm:$0xff]
    %v3808 = vld [vmem:[#allocation14 + $0x19c0] sm:$0xff]
    %v3809 = vld [vmem:[#allocation14 + $0x19c8] sm:$0xff]
    %v3810 = vld [vmem:[#allocation14 + $0x19d0] sm:$0xff]
    %v3811 = vld [vmem:[#allocation14 + $0x19d8] sm:$0xff]
    %v3812 = vld [vmem:[#allocation14 + $0x19e0] sm:$0xff]
    %v3813 = vld [vmem:[#allocation14 + $0x19e8] sm:$0xff]
    %v3814 = vld [vmem:[#allocation14 + $0x19f0] sm:$0xff]
    %v3815 = vld [vmem:[#allocation14 + $0x19f8] sm:$0xff]
    %v3816 = vld [vmem:[#allocation14 + $0x1a00] sm:$0xff]
    %v3817 = vld [vmem:[#allocation14 + $0x1a08] sm:$0xff]
    %v3818 = vld [vmem:[#allocation14 + $0x1a10] sm:$0xff]
    %v3819 = vld [vmem:[#allocation14 + $0x1a18] sm:$0xff]
    %v3820 = vld [vmem:[#allocation14 + $0x1a20] sm:$0xff]
    %v3821 = vld [vmem:[#allocation14 + $0x1a28] sm:$0xff]
    %v3822 = vld [vmem:[#allocation14 + $0x1a30] sm:$0xff]
    %v3823 = vld [vmem:[#allocation14 + $0x1a38] sm:$0xff]
    %v3824 = vld [vmem:[#allocation14 + $0x1a40] sm:$0xff]
    %v3825 = vld [vmem:[#allocation14 + $0x1a48] sm:$0xff]
    %v3826 = vld [vmem:[#allocation14 + $0x1a50] sm:$0xff]
    %v3827 = vld [vmem:[#allocation14 + $0x1a58] sm:$0xff]
    %v3828 = vld [vmem:[#allocation14 + $0x1a60] sm:$0xff]
    %v3829 = vld [vmem:[#allocation14 + $0x1a68] sm:$0xff]
    %v3830 = vld [vmem:[#allocation14 + $0x1a70] sm:$0xff]
    %v3831 = vld [vmem:[#allocation14 + $0x1a78] sm:$0xff]
    %v3832 = vld [vmem:[#allocation14 + $0x1a80] sm:$0xff]
    %v3833 = vld [vmem:[#allocation14 + $0x1a88] sm:$0xff]
    %v3834 = vld [vmem:[#allocation14 + $0x1a90] sm:$0xff]
    %v3835 = vld [vmem:[#allocation14 + $0x1a98] sm:$0xff]
    %v3836 = vld [vmem:[#allocation14 + $0x1aa0] sm:$0xff]
    %v3837 = vld [vmem:[#allocation14 + $0x1aa8] sm:$0xff]
    %v3838 = vld [vmem:[#allocation14 + $0x1ab0] sm:$0xff]
    %v3839 = vld [vmem:[#allocation14 + $0x1ab8] sm:$0xff]
    %v3840 = vld [vmem:[#allocation14 + $0x1ac0] sm:$0xff]
    %v3841 = vld [vmem:[#allocation14 + $0x1ac8] sm:$0xff]
    %v3842 = vld [vmem:[#allocation14 + $0x1ad0] sm:$0xff]
    %v3843 = vld [vmem:[#allocation14 + $0x1ad8] sm:$0xff]
    %v3844 = vld [vmem:[#allocation14 + $0x1ae0] sm:$0xff]
    %v3845 = vld [vmem:[#allocation14 + $0x1ae8] sm:$0xff]
    %v3846 = vld [vmem:[#allocation14 + $0x1af0] sm:$0xff]
    %v3847 = vld [vmem:[#allocation14 + $0x1af8] sm:$0xff]
    %v3848 = vld [vmem:[#allocation14 + $0x1b00] sm:$0xff]
    %v3849 = vld [vmem:[#allocation14 + $0x1b08] sm:$0xff]
    %v3850 = vld [vmem:[#allocation14 + $0x1b10] sm:$0xff]
    %v3851 = vld [vmem:[#allocation14 + $0x1b18] sm:$0xff]
    %v3852 = vld [vmem:[#allocation14 + $0x1b20] sm:$0xff]
    %v3853 = vld [vmem:[#allocation14 + $0x1b28] sm:$0xff]
    %v3854 = vld [vmem:[#allocation14 + $0x1b30] sm:$0xff]
    %v3855 = vld [vmem:[#allocation14 + $0x1b38] sm:$0xff]
    %v3856 = vld [vmem:[#allocation14 + $0x1b40] sm:$0xff]
    %v3857 = vld [vmem:[#allocation14 + $0x1b48] sm:$0xff]
    %v3858 = vld [vmem:[#allocation14 + $0x1b50] sm:$0xff]
    %v3859 = vld [vmem:[#allocation14 + $0x1b58] sm:$0xff]
    %v3860 = vld [vmem:[#allocation14 + $0x1b60] sm:$0xff]
    %v3861 = vld [vmem:[#allocation14 + $0x1b68] sm:$0xff]
    %v3862 = vld [vmem:[#allocation14 + $0x1b70] sm:$0xff]
    %v3863 = vld [vmem:[#allocation14 + $0x1b78] sm:$0xff]
    %v3864 = vld [vmem:[#allocation14 + $0x1b80] sm:$0xff]
    %v3865 = vld [vmem:[#allocation14 + $0x1b88] sm:$0xff]
    %v3866 = vld [vmem:[#allocation14 + $0x1b90] sm:$0xff]
    %v3867 = vld [vmem:[#allocation14 + $0x1b98] sm:$0xff]
    %v3868 = vld [vmem:[#allocation14 + $0x1ba0] sm:$0xff]
    %v3869 = vld [vmem:[#allocation14 + $0x1ba8] sm:$0xff]
    %v3870 = vld [vmem:[#allocation14 + $0x1bb0] sm:$0xff]
    %v3871 = vld [vmem:[#allocation14 + $0x1bb8] sm:$0xff]
    %v3872 = vld [vmem:[#allocation14 + $0x1bc0] sm:$0xff]
    %v3873 = vld [vmem:[#allocation14 + $0x1bc8] sm:$0xff]
    %v3874 = vld [vmem:[#allocation14 + $0x1bd0] sm:$0xff]
    %v3875 = vld [vmem:[#allocation14 + $0x1bd8] sm:$0xff]
    %v3876 = vld [vmem:[#allocation14 + $0x1be0] sm:$0xff]
    %v3877 = vld [vmem:[#allocation14 + $0x1be8] sm:$0xff]
    %v3878 = vld [vmem:[#allocation14 + $0x1bf0] sm:$0xff]
    %v3879 = vld [vmem:[#allocation14 + $0x1bf8] sm:$0xff]
    %v3880 = vld [vmem:[#allocation14 + $0x1c00] sm:$0xff]
    %v3881 = vld [vmem:[#allocation14 + $0x1c08] sm:$0xff]
    %v3882 = vld [vmem:[#allocation14 + $0x1c10] sm:$0xff]
    %v3883 = vld [vmem:[#allocation14 + $0x1c18] sm:$0xff]
    %v3884 = vld [vmem:[#allocation14 + $0x1c20] sm:$0xff]
    %v3885 = vld [vmem:[#allocation14 + $0x1c28] sm:$0xff]
    %v3886 = vld [vmem:[#allocation14 + $0x1c30] sm:$0xff]
    %v3887 = vld [vmem:[#allocation14 + $0x1c38] sm:$0xff]
    %v3888 = vld [vmem:[#allocation14 + $0x1c40] sm:$0xff]
    %v3889 = vld [vmem:[#allocation14 + $0x1c48] sm:$0xff]
    %v3890 = vld [vmem:[#allocation14 + $0x1c50] sm:$0xff]
    %v3891 = vld [vmem:[#allocation14 + $0x1c58] sm:$0xff]
    %v3892 = vld [vmem:[#allocation14 + $0x1c60] sm:$0xff]
    %v3893 = vld [vmem:[#allocation14 + $0x1c68] sm:$0xff]
    %v3894 = vld [vmem:[#allocation14 + $0x1c70] sm:$0xff]
    %v3895 = vld [vmem:[#allocation14 + $0x1c78] sm:$0xff]
    %v3896 = vld [vmem:[#allocation14 + $0x1c80] sm:$0xff]
    %v3897 = vld [vmem:[#allocation14 + $0x1c88] sm:$0xff]
    %v3898 = vld [vmem:[#allocation14 + $0x1c90] sm:$0xff]
    %v3899 = vld [vmem:[#allocation14 + $0x1c98] sm:$0xff]
    %v3900 = vld [vmem:[#allocation14 + $0x1ca0] sm:$0xff]
    %v3901 = vld [vmem:[#allocation14 + $0x1ca8] sm:$0xff]
    %v3902 = vld [vmem:[#allocation14 + $0x1cb0] sm:$0xff]
    %v3903 = vld [vmem:[#allocation14 + $0x1cb8] sm:$0xff]
    %v3904 = vld [vmem:[#allocation14 + $0x1cc0] sm:$0xff]
    %v3905 = vld [vmem:[#allocation14 + $0x1cc8] sm:$0xff]
    %v3906 = vld [vmem:[#allocation14 + $0x1cd0] sm:$0xff]
    %v3907 = vld [vmem:[#allocation14 + $0x1cd8] sm:$0xff]
    %v3908 = vld [vmem:[#allocation14 + $0x1ce0] sm:$0xff]
    %v3909 = vld [vmem:[#allocation14 + $0x1ce8] sm:$0xff]
    %v3910 = vld [vmem:[#allocation14 + $0x1cf0] sm:$0xff]
    %v3911 = vld [vmem:[#allocation14 + $0x1cf8] sm:$0xff]
    %v3912 = vld [vmem:[#allocation14 + $0x1d00] sm:$0xff]
    %v3913 = vld [vmem:[#allocation14 + $0x1d08] sm:$0xff]
    %v3914 = vld [vmem:[#allocation14 + $0x1d10] sm:$0xff]
    %v3915 = vld [vmem:[#allocation14 + $0x1d18] sm:$0xff]
    %v3916 = vld [vmem:[#allocation14 + $0x1d20] sm:$0xff]
    %v3917 = vld [vmem:[#allocation14 + $0x1d28] sm:$0xff]
    %v3918 = vld [vmem:[#allocation14 + $0x1d30] sm:$0xff]
    %v3919 = vld [vmem:[#allocation14 + $0x1d38] sm:$0xff]
    %v3920 = vld [vmem:[#allocation14 + $0x1d40] sm:$0xff]
    %v3921 = vld [vmem:[#allocation14 + $0x1d48] sm:$0xff]
    %v3922 = vld [vmem:[#allocation14 + $0x1d50] sm:$0xff]
    %v3923 = vld [vmem:[#allocation14 + $0x1d58] sm:$0xff]
    %v3924 = vld [vmem:[#allocation14 + $0x1d60] sm:$0xff]
    %v3925 = vld [vmem:[#allocation14 + $0x1d68] sm:$0xff]
    %v3926 = vld [vmem:[#allocation14 + $0x1d70] sm:$0xff]
    %v3927 = vld [vmem:[#allocation14 + $0x1d78] sm:$0xff]
    %v3928 = vld [vmem:[#allocation14 + $0x1d80] sm:$0xff]
    %v3929 = vld [vmem:[#allocation14 + $0x1d88] sm:$0xff]
    %v3930 = vld [vmem:[#allocation14 + $0x1d90] sm:$0xff]
    %v3931 = vld [vmem:[#allocation14 + $0x1d98] sm:$0xff]
    %v3932 = vld [vmem:[#allocation14 + $0x1da0] sm:$0xff]
    %v3933 = vld [vmem:[#allocation14 + $0x1da8] sm:$0xff]
    %v3934 = vld [vmem:[#allocation14 + $0x1db0] sm:$0xff]
    %v3935 = vld [vmem:[#allocation14 + $0x1db8] sm:$0xff]
    %v3936 = vld [vmem:[#allocation14 + $0x1dc0] sm:$0xff]
    %v3937 = vld [vmem:[#allocation14 + $0x1dc8] sm:$0xff]
    %v3938 = vld [vmem:[#allocation14 + $0x1dd0] sm:$0xff]
    %v3939 = vld [vmem:[#allocation14 + $0x1dd8] sm:$0xff]
    %v3940 = vld [vmem:[#allocation14 + $0x1de0] sm:$0xff]
    %v3941 = vld [vmem:[#allocation14 + $0x1de8] sm:$0xff]
    %v3942 = vld [vmem:[#allocation14 + $0x1df0] sm:$0xff]
    %v3943 = vld [vmem:[#allocation14 + $0x1df8] sm:$0xff]
    %v3944 = vld [vmem:[#allocation14 + $0x1e00] sm:$0xff]
    %v3945 = vld [vmem:[#allocation14 + $0x1e08] sm:$0xff]
    %v3946 = vld [vmem:[#allocation14 + $0x1e10] sm:$0xff]
    %v3947 = vld [vmem:[#allocation14 + $0x1e18] sm:$0xff]
    %v3948 = vld [vmem:[#allocation14 + $0x1e20] sm:$0xff]
    %v3949 = vld [vmem:[#allocation14 + $0x1e28] sm:$0xff]
    %v3950 = vld [vmem:[#allocation14 + $0x1e30] sm:$0xff]
    %v3951 = vld [vmem:[#allocation14 + $0x1e38] sm:$0xff]
    %v3952 = vld [vmem:[#allocation14 + $0x1e40] sm:$0xff]
    %v3953 = vld [vmem:[#allocation14 + $0x1e48] sm:$0xff]
    %v3954 = vld [vmem:[#allocation14 + $0x1e50] sm:$0xff]
    %v3955 = vld [vmem:[#allocation14 + $0x1e58] sm:$0xff]
    %v3956 = vld [vmem:[#allocation14 + $0x1e60] sm:$0xff]
    %v3957 = vld [vmem:[#allocation14 + $0x1e68] sm:$0xff]
    %v3958 = vld [vmem:[#allocation14 + $0x1e70] sm:$0xff]
    %v3959 = vld [vmem:[#allocation14 + $0x1e78] sm:$0xff]
    %v3960 = vld [vmem:[#allocation14 + $0x1e80] sm:$0xff]
    %v3961 = vld [vmem:[#allocation14 + $0x1e88] sm:$0xff]
    %v3962 = vld [vmem:[#allocation14 + $0x1e90] sm:$0xff]
    %v3963 = vld [vmem:[#allocation14 + $0x1e98] sm:$0xff]
    %v3964 = vld [vmem:[#allocation14 + $0x1ea0] sm:$0xff]
    %v3965 = vld [vmem:[#allocation14 + $0x1ea8] sm:$0xff]
    %v3966 = vld [vmem:[#allocation14 + $0x1eb0] sm:$0xff]
    %v3967 = vld [vmem:[#allocation14 + $0x1eb8] sm:$0xff]
    %v3968 = vld [vmem:[#allocation14 + $0x1ec0] sm:$0xff]
    %v3969 = vld [vmem:[#allocation14 + $0x1ec8] sm:$0xff]
    %v3970 = vld [vmem:[#allocation14 + $0x1ed0] sm:$0xff]
    %v3971 = vld [vmem:[#allocation14 + $0x1ed8] sm:$0xff]
    %v3972 = vld [vmem:[#allocation14 + $0x1ee0] sm:$0xff]
    %v3973 = vld [vmem:[#allocation14 + $0x1ee8] sm:$0xff]
    %v3974 = vld [vmem:[#allocation14 + $0x1ef0] sm:$0xff]
    %v3975 = vld [vmem:[#allocation14 + $0x1ef8] sm:$0xff]
    %v3976 = vld [vmem:[#allocation14 + $0x1f00] sm:$0xff]
    %v3977 = vld [vmem:[#allocation14 + $0x1f08] sm:$0xff]
    %v3978 = vld [vmem:[#allocation14 + $0x1f10] sm:$0xff]
    %v3979 = vld [vmem:[#allocation14 + $0x1f18] sm:$0xff]
    %v3980 = vld [vmem:[#allocation14 + $0x1f20] sm:$0xff]
    %v3981 = vld [vmem:[#allocation14 + $0x1f28] sm:$0xff]
    %v3982 = vld [vmem:[#allocation14 + $0x1f30] sm:$0xff]
    %v3983 = vld [vmem:[#allocation14 + $0x1f38] sm:$0xff]
    %v3984 = vld [vmem:[#allocation14 + $0x1f40] sm:$0xff]
    %v3985 = vld [vmem:[#allocation14 + $0x1f48] sm:$0xff]
    %v3986 = vld [vmem:[#allocation14 + $0x1f50] sm:$0xff]
    %v3987 = vld [vmem:[#allocation14 + $0x1f58] sm:$0xff]
    %v3988 = vld [vmem:[#allocation14 + $0x1f60] sm:$0xff]
    %v3989 = vld [vmem:[#allocation14 + $0x1f68] sm:$0xff]
    %v3990 = vld [vmem:[#allocation14 + $0x1f70] sm:$0xff]
    %v3991 = vld [vmem:[#allocation14 + $0x1f78] sm:$0xff]
    %v3992 = vld [vmem:[#allocation14 + $0x1f80] sm:$0xff]
    %v3993 = vld [vmem:[#allocation14 + $0x1f88] sm:$0xff]
    %v3994 = vld [vmem:[#allocation14 + $0x1f90] sm:$0xff]
    %v3995 = vld [vmem:[#allocation14 + $0x1f98] sm:$0xff]
    %v3996 = vld [vmem:[#allocation14 + $0x1fa0] sm:$0xff]
    %v3997 = vld [vmem:[#allocation14 + $0x1fa8] sm:$0xff]
    %v3998 = vld [vmem:[#allocation14 + $0x1fb0] sm:$0xff]
    %v3999 = vld [vmem:[#allocation14 + $0x1fb8] sm:$0xff]
    %v4000 = vld [vmem:[#allocation14 + $0x1fc0] sm:$0xff]
    %v4001 = vld [vmem:[#allocation14 + $0x1fc8] sm:$0xff]
    %v4002 = vld [vmem:[#allocation14 + $0x1fd0] sm:$0xff]
    %v4003 = vld [vmem:[#allocation14 + $0x1fd8] sm:$0xff]
    %v4004 = vld [vmem:[#allocation14 + $0x1fe0] sm:$0xff]
    %v4005 = vld [vmem:[#allocation14 + $0x1fe8] sm:$0xff]
    %v4006 = vld [vmem:[#allocation14 + $0x1ff0] sm:$0xff]
    %v4007 = vld [vmem:[#allocation14 + $0x1ff8] sm:$0xff]
    %v4008 = vld [vmem:[#allocation16] sm:$0xff]
    %v4009 = vld [vmem:[#allocation16 + $0x8] sm:$0xff]
    %v4012 = vperm.slane %v4008, 0
    %v4013 = vperm.slane %v4008, 1
    %v4014 = vperm.slane %v4008, 2
    %v4015 = vperm.slane %v4008, 3
    %v4016 = vperm.slane %v4008, 4
    %v4017 = vperm.slane %v4008, 5
    %v4018 = vperm.slane %v4008, 6
    %v4019 = vperm.slane %v4008, 7
    %v4020 = vperm.slane %v4009, 0
    %v4021 = vperm.slane %v4009, 1
    %v4022 = vperm.slane %v4009, 2
    %v4023 = vperm.slane %v4009, 3
    %v4024 = vperm.slane %v4009, 4
    %v4025 = vperm.slane %v4009, 5
    %v4026 = vperm.slane %v4009, 6
    %v4027 = vperm.slane %v4009, 7
    %v5068 = vunpack.c.l.b16 %v2984
    %v5069 = vunpack.c.h.b16 %v2984
    %v5070 = vunpack.c.l.b16 %v2985
    %v5071 = vunpack.c.h.b16 %v2985
    %v5072 = vunpack.c.l.b16 %v2986
    %v5073 = vunpack.c.h.b16 %v2986
    %v5074 = vunpack.c.l.b16 %v2987
    %v5075 = vunpack.c.h.b16 %v2987
    %v5076 = vunpack.c.l.b16 %v2988
    %v5077 = vunpack.c.h.b16 %v2988
    %v5078 = vunpack.c.l.b16 %v2989
    %v5079 = vunpack.c.h.b16 %v2989
    %v5080 = vunpack.c.l.b16 %v2990
    %v5081 = vunpack.c.h.b16 %v2990
    %v5082 = vunpack.c.l.b16 %v2991
    %v5083 = vunpack.c.h.b16 %v2991
    %v5084 = vunpack.c.l.b16 %v2992
    %v5085 = vunpack.c.h.b16 %v2992
    %v5086 = vunpack.c.l.b16 %v2993
    %v5087 = vunpack.c.h.b16 %v2993
    %v5088 = vunpack.c.l.b16 %v2994
    %v5089 = vunpack.c.h.b16 %v2994
    %v5090 = vunpack.c.l.b16 %v2995
    %v5091 = vunpack.c.h.b16 %v2995
    %v5092 = vunpack.c.l.b16 %v2996
    %v5093 = vunpack.c.h.b16 %v2996
    %v5094 = vunpack.c.l.b16 %v2997
    %v5095 = vunpack.c.h.b16 %v2997
    %v5096 = vunpack.c.l.b16 %v2998
    %v5097 = vunpack.c.h.b16 %v2998
    %v5098 = vunpack.c.l.b16 %v2999
    %v5099 = vunpack.c.h.b16 %v2999
    %v5100 = vunpack.c.l.b16 %v3000
    %v5101 = vunpack.c.h.b16 %v3000
    %v5102 = vunpack.c.l.b16 %v3001
    %v5103 = vunpack.c.h.b16 %v3001
    %v5104 = vunpack.c.l.b16 %v3002
    %v5105 = vunpack.c.h.b16 %v3002
    %v5106 = vunpack.c.l.b16 %v3003
    %v5107 = vunpack.c.h.b16 %v3003
    %v5108 = vunpack.c.l.b16 %v3004
    %v5109 = vunpack.c.h.b16 %v3004
    %v5110 = vunpack.c.l.b16 %v3005
    %v5111 = vunpack.c.h.b16 %v3005
    %v5112 = vunpack.c.l.b16 %v3006
    %v5113 = vunpack.c.h.b16 %v3006
    %v5114 = vunpack.c.l.b16 %v3007
    %v5115 = vunpack.c.h.b16 %v3007
    %v5116 = vunpack.c.l.b16 %v3008
    %v5117 = vunpack.c.h.b16 %v3008
    %v5118 = vunpack.c.l.b16 %v3009
    %v5119 = vunpack.c.h.b16 %v3009
    %v5120 = vunpack.c.l.b16 %v3010
    %v5121 = vunpack.c.h.b16 %v3010
    %v5122 = vunpack.c.l.b16 %v3011
    %v5123 = vunpack.c.h.b16 %v3011
    %v5124 = vunpack.c.l.b16 %v3012
    %v5125 = vunpack.c.h.b16 %v3012
    %v5126 = vunpack.c.l.b16 %v3013
    %v5127 = vunpack.c.h.b16 %v3013
    %v5128 = vunpack.c.l.b16 %v3014
    %v5129 = vunpack.c.h.b16 %v3014
    %v5130 = vunpack.c.l.b16 %v3015
    %v5131 = vunpack.c.h.b16 %v3015
    %v5132 = vunpack.c.l.b16 %v3016
    %v5133 = vunpack.c.h.b16 %v3016
    %v5134 = vunpack.c.l.b16 %v3017
    %v5135 = vunpack.c.h.b16 %v3017
    %v5136 = vunpack.c.l.b16 %v3018
    %v5137 = vunpack.c.h.b16 %v3018
    %v5138 = vunpack.c.l.b16 %v3019
    %v5139 = vunpack.c.h.b16 %v3019
    %v5140 = vunpack.c.l.b16 %v3020
    %v5141 = vunpack.c.h.b16 %v3020
    %v5142 = vunpack.c.l.b16 %v3021
    %v5143 = vunpack.c.h.b16 %v3021
    %v5144 = vunpack.c.l.b16 %v3022
    %v5145 = vunpack.c.h.b16 %v3022
    %v5146 = vunpack.c.l.b16 %v3023
    %v5147 = vunpack.c.h.b16 %v3023
    %v5148 = vunpack.c.l.b16 %v3024
    %v5149 = vunpack.c.h.b16 %v3024
    %v5150 = vunpack.c.l.b16 %v3025
    %v5151 = vunpack.c.h.b16 %v3025
    %v5152 = vunpack.c.l.b16 %v3026
    %v5153 = vunpack.c.h.b16 %v3026
    %v5154 = vunpack.c.l.b16 %v3027
    %v5155 = vunpack.c.h.b16 %v3027
    %v5156 = vunpack.c.l.b16 %v3028
    %v5157 = vunpack.c.h.b16 %v3028
    %v5158 = vunpack.c.l.b16 %v3029
    %v5159 = vunpack.c.h.b16 %v3029
    %v5160 = vunpack.c.l.b16 %v3030
    %v5161 = vunpack.c.h.b16 %v3030
    %v5162 = vunpack.c.l.b16 %v3031
    %v5163 = vunpack.c.h.b16 %v3031
    %v5164 = vunpack.c.l.b16 %v3032
    %v5165 = vunpack.c.h.b16 %v3032
    %v5166 = vunpack.c.l.b16 %v3033
    %v5167 = vunpack.c.h.b16 %v3033
    %v5168 = vunpack.c.l.b16 %v3034
    %v5169 = vunpack.c.h.b16 %v3034
    %v5170 = vunpack.c.l.b16 %v3035
    %v5171 = vunpack.c.h.b16 %v3035
    %v5172 = vunpack.c.l.b16 %v3036
    %v5173 = vunpack.c.h.b16 %v3036
    %v5174 = vunpack.c.l.b16 %v3037
    %v5175 = vunpack.c.h.b16 %v3037
    %v5176 = vunpack.c.l.b16 %v3038
    %v5177 = vunpack.c.h.b16 %v3038
    %v5178 = vunpack.c.l.b16 %v3039
    %v5179 = vunpack.c.h.b16 %v3039
    %v5180 = vunpack.c.l.b16 %v3040
    %v5181 = vunpack.c.h.b16 %v3040
    %v5182 = vunpack.c.l.b16 %v3041
    %v5183 = vunpack.c.h.b16 %v3041
    %v5184 = vunpack.c.l.b16 %v3042
    %v5185 = vunpack.c.h.b16 %v3042
    %v5186 = vunpack.c.l.b16 %v3043
    %v5187 = vunpack.c.h.b16 %v3043
    %v5188 = vunpack.c.l.b16 %v3044
    %v5189 = vunpack.c.h.b16 %v3044
    %v5190 = vunpack.c.l.b16 %v3045
    %v5191 = vunpack.c.h.b16 %v3045
    %v5192 = vunpack.c.l.b16 %v3046
    %v5193 = vunpack.c.h.b16 %v3046
    %v5194 = vunpack.c.l.b16 %v3047
    %v5195 = vunpack.c.h.b16 %v3047
    %v5196 = vunpack.c.l.b16 %v3048
    %v5197 = vunpack.c.h.b16 %v3048
    %v5198 = vunpack.c.l.b16 %v3049
    %v5199 = vunpack.c.h.b16 %v3049
    %v5200 = vunpack.c.l.b16 %v3050
    %v5201 = vunpack.c.h.b16 %v3050
    %v5202 = vunpack.c.l.b16 %v3051
    %v5203 = vunpack.c.h.b16 %v3051
    %v5204 = vunpack.c.l.b16 %v3052
    %v5205 = vunpack.c.h.b16 %v3052
    %v5206 = vunpack.c.l.b16 %v3053
    %v5207 = vunpack.c.h.b16 %v3053
    %v5208 = vunpack.c.l.b16 %v3054
    %v5209 = vunpack.c.h.b16 %v3054
    %v5210 = vunpack.c.l.b16 %v3055
    %v5211 = vunpack.c.h.b16 %v3055
    %v5212 = vunpack.c.l.b16 %v3056
    %v5213 = vunpack.c.h.b16 %v3056
    %v5214 = vunpack.c.l.b16 %v3057
    %v5215 = vunpack.c.h.b16 %v3057
    %v5216 = vunpack.c.l.b16 %v3058
    %v5217 = vunpack.c.h.b16 %v3058
    %v5218 = vunpack.c.l.b16 %v3059
    %v5219 = vunpack.c.h.b16 %v3059
    %v5220 = vunpack.c.l.b16 %v3060
    %v5221 = vunpack.c.h.b16 %v3060
    %v5222 = vunpack.c.l.b16 %v3061
    %v5223 = vunpack.c.h.b16 %v3061
    %v5224 = vunpack.c.l.b16 %v3062
    %v5225 = vunpack.c.h.b16 %v3062
    %v5226 = vunpack.c.l.b16 %v3063
    %v5227 = vunpack.c.h.b16 %v3063
    %v5228 = vunpack.c.l.b16 %v3064
    %v5229 = vunpack.c.h.b16 %v3064
    %v5230 = vunpack.c.l.b16 %v3065
    %v5231 = vunpack.c.h.b16 %v3065
    %v5232 = vunpack.c.l.b16 %v3066
    %v5233 = vunpack.c.h.b16 %v3066
    %v5234 = vunpack.c.l.b16 %v3067
    %v5235 = vunpack.c.h.b16 %v3067
    %v5236 = vunpack.c.l.b16 %v3068
    %v5237 = vunpack.c.h.b16 %v3068
    %v5238 = vunpack.c.l.b16 %v3069
    %v5239 = vunpack.c.h.b16 %v3069
    %v5240 = vunpack.c.l.b16 %v3070
    %v5241 = vunpack.c.h.b16 %v3070
    %v5242 = vunpack.c.l.b16 %v3071
    %v5243 = vunpack.c.h.b16 %v3071
    %v5244 = vunpack.c.l.b16 %v3072
    %v5245 = vunpack.c.h.b16 %v3072
    %v5246 = vunpack.c.l.b16 %v3073
    %v5247 = vunpack.c.h.b16 %v3073
    %v5248 = vunpack.c.l.b16 %v3074
    %v5249 = vunpack.c.h.b16 %v3074
    %v5250 = vunpack.c.l.b16 %v3075
    %v5251 = vunpack.c.h.b16 %v3075
    %v5252 = vunpack.c.l.b16 %v3076
    %v5253 = vunpack.c.h.b16 %v3076
    %v5254 = vunpack.c.l.b16 %v3077
    %v5255 = vunpack.c.h.b16 %v3077
    %v5256 = vunpack.c.l.b16 %v3078
    %v5257 = vunpack.c.h.b16 %v3078
    %v5258 = vunpack.c.l.b16 %v3079
    %v5259 = vunpack.c.h.b16 %v3079
    %v5260 = vunpack.c.l.b16 %v3080
    %v5261 = vunpack.c.h.b16 %v3080
    %v5262 = vunpack.c.l.b16 %v3081
    %v5263 = vunpack.c.h.b16 %v3081
    %v5264 = vunpack.c.l.b16 %v3082
    %v5265 = vunpack.c.h.b16 %v3082
    %v5266 = vunpack.c.l.b16 %v3083
    %v5267 = vunpack.c.h.b16 %v3083
    %v5268 = vunpack.c.l.b16 %v3084
    %v5269 = vunpack.c.h.b16 %v3084
    %v5270 = vunpack.c.l.b16 %v3085
    %v5271 = vunpack.c.h.b16 %v3085
    %v5272 = vunpack.c.l.b16 %v3086
    %v5273 = vunpack.c.h.b16 %v3086
    %v5274 = vunpack.c.l.b16 %v3087
    %v5275 = vunpack.c.h.b16 %v3087
    %v5276 = vunpack.c.l.b16 %v3088
    %v5277 = vunpack.c.h.b16 %v3088
    %v5278 = vunpack.c.l.b16 %v3089
    %v5279 = vunpack.c.h.b16 %v3089
    %v5280 = vunpack.c.l.b16 %v3090
    %v5281 = vunpack.c.h.b16 %v3090
    %v5282 = vunpack.c.l.b16 %v3091
    %v5283 = vunpack.c.h.b16 %v3091
    %v5284 = vunpack.c.l.b16 %v3092
    %v5285 = vunpack.c.h.b16 %v3092
    %v5286 = vunpack.c.l.b16 %v3093
    %v5287 = vunpack.c.h.b16 %v3093
    %v5288 = vunpack.c.l.b16 %v3094
    %v5289 = vunpack.c.h.b16 %v3094
    %v5290 = vunpack.c.l.b16 %v3095
    %v5291 = vunpack.c.h.b16 %v3095
    %v5292 = vunpack.c.l.b16 %v3096
    %v5293 = vunpack.c.h.b16 %v3096
    %v5294 = vunpack.c.l.b16 %v3097
    %v5295 = vunpack.c.h.b16 %v3097
    %v5296 = vunpack.c.l.b16 %v3098
    %v5297 = vunpack.c.h.b16 %v3098
    %v5298 = vunpack.c.l.b16 %v3099
    %v5299 = vunpack.c.h.b16 %v3099
    %v5300 = vunpack.c.l.b16 %v3100
    %v5301 = vunpack.c.h.b16 %v3100
    %v5302 = vunpack.c.l.b16 %v3101
    %v5303 = vunpack.c.h.b16 %v3101
    %v5304 = vunpack.c.l.b16 %v3102
    %v5305 = vunpack.c.h.b16 %v3102
    %v5306 = vunpack.c.l.b16 %v3103
    %v5307 = vunpack.c.h.b16 %v3103
    %v5308 = vunpack.c.l.b16 %v3104
    %v5309 = vunpack.c.h.b16 %v3104
    %v5310 = vunpack.c.l.b16 %v3105
    %v5311 = vunpack.c.h.b16 %v3105
    %v5312 = vunpack.c.l.b16 %v3106
    %v5313 = vunpack.c.h.b16 %v3106
    %v5314 = vunpack.c.l.b16 %v3107
    %v5315 = vunpack.c.h.b16 %v3107
    %v5316 = vunpack.c.l.b16 %v3108
    %v5317 = vunpack.c.h.b16 %v3108
    %v5318 = vunpack.c.l.b16 %v3109
    %v5319 = vunpack.c.h.b16 %v3109
    %v5320 = vunpack.c.l.b16 %v3110
    %v5321 = vunpack.c.h.b16 %v3110
    %v5322 = vunpack.c.l.b16 %v3111
    %v5323 = vunpack.c.h.b16 %v3111
    %v5324 = vunpack.c.l.b16 %v3112
    %v5325 = vunpack.c.h.b16 %v3112
    %v5326 = vunpack.c.l.b16 %v3113
    %v5327 = vunpack.c.h.b16 %v3113
    %v5328 = vunpack.c.l.b16 %v3114
    %v5329 = vunpack.c.h.b16 %v3114
    %v5330 = vunpack.c.l.b16 %v3115
    %v5331 = vunpack.c.h.b16 %v3115
    %v5332 = vunpack.c.l.b16 %v3116
    %v5333 = vunpack.c.h.b16 %v3116
    %v5334 = vunpack.c.l.b16 %v3117
    %v5335 = vunpack.c.h.b16 %v3117
    %v5336 = vunpack.c.l.b16 %v3118
    %v5337 = vunpack.c.h.b16 %v3118
    %v5338 = vunpack.c.l.b16 %v3119
    %v5339 = vunpack.c.h.b16 %v3119
    %v5340 = vunpack.c.l.b16 %v3120
    %v5341 = vunpack.c.h.b16 %v3120
    %v5342 = vunpack.c.l.b16 %v3121
    %v5343 = vunpack.c.h.b16 %v3121
    %v5344 = vunpack.c.l.b16 %v3122
    %v5345 = vunpack.c.h.b16 %v3122
    %v5346 = vunpack.c.l.b16 %v3123
    %v5347 = vunpack.c.h.b16 %v3123
    %v5348 = vunpack.c.l.b16 %v3124
    %v5349 = vunpack.c.h.b16 %v3124
    %v5350 = vunpack.c.l.b16 %v3125
    %v5351 = vunpack.c.h.b16 %v3125
    %v5352 = vunpack.c.l.b16 %v3126
    %v5353 = vunpack.c.h.b16 %v3126
    %v5354 = vunpack.c.l.b16 %v3127
    %v5355 = vunpack.c.h.b16 %v3127
    %v5356 = vunpack.c.l.b16 %v3128
    %v5357 = vunpack.c.h.b16 %v3128
    %v5358 = vunpack.c.l.b16 %v3129
    %v5359 = vunpack.c.h.b16 %v3129
    %v5360 = vunpack.c.l.b16 %v3130
    %v5361 = vunpack.c.h.b16 %v3130
    %v5362 = vunpack.c.l.b16 %v3131
    %v5363 = vunpack.c.h.b16 %v3131
    %v5364 = vunpack.c.l.b16 %v3132
    %v5365 = vunpack.c.h.b16 %v3132
    %v5366 = vunpack.c.l.b16 %v3133
    %v5367 = vunpack.c.h.b16 %v3133
    %v5368 = vunpack.c.l.b16 %v3134
    %v5369 = vunpack.c.h.b16 %v3134
    %v5370 = vunpack.c.l.b16 %v3135
    %v5371 = vunpack.c.h.b16 %v3135
    %v5372 = vunpack.c.l.b16 %v3136
    %v5373 = vunpack.c.h.b16 %v3136
    %v5374 = vunpack.c.l.b16 %v3137
    %v5375 = vunpack.c.h.b16 %v3137
    %v5376 = vunpack.c.l.b16 %v3138
    %v5377 = vunpack.c.h.b16 %v3138
    %v5378 = vunpack.c.l.b16 %v3139
    %v5379 = vunpack.c.h.b16 %v3139
    %v5380 = vunpack.c.l.b16 %v3140
    %v5381 = vunpack.c.h.b16 %v3140
    %v5382 = vunpack.c.l.b16 %v3141
    %v5383 = vunpack.c.h.b16 %v3141
    %v5384 = vunpack.c.l.b16 %v3142
    %v5385 = vunpack.c.h.b16 %v3142
    %v5386 = vunpack.c.l.b16 %v3143
    %v5387 = vunpack.c.h.b16 %v3143
    %v5388 = vunpack.c.l.b16 %v3144
    %v5389 = vunpack.c.h.b16 %v3144
    %v5390 = vunpack.c.l.b16 %v3145
    %v5391 = vunpack.c.h.b16 %v3145
    %v5392 = vunpack.c.l.b16 %v3146
    %v5393 = vunpack.c.h.b16 %v3146
    %v5394 = vunpack.c.l.b16 %v3147
    %v5395 = vunpack.c.h.b16 %v3147
    %v5396 = vunpack.c.l.b16 %v3148
    %v5397 = vunpack.c.h.b16 %v3148
    %v5398 = vunpack.c.l.b16 %v3149
    %v5399 = vunpack.c.h.b16 %v3149
    %v5400 = vunpack.c.l.b16 %v3150
    %v5401 = vunpack.c.h.b16 %v3150
    %v5402 = vunpack.c.l.b16 %v3151
    %v5403 = vunpack.c.h.b16 %v3151
    %v5404 = vunpack.c.l.b16 %v3152
    %v5405 = vunpack.c.h.b16 %v3152
    %v5406 = vunpack.c.l.b16 %v3153
    %v5407 = vunpack.c.h.b16 %v3153
    %v5408 = vunpack.c.l.b16 %v3154
    %v5409 = vunpack.c.h.b16 %v3154
    %v5410 = vunpack.c.l.b16 %v3155
    %v5411 = vunpack.c.h.b16 %v3155
    %v5412 = vunpack.c.l.b16 %v3156
    %v5413 = vunpack.c.h.b16 %v3156
    %v5414 = vunpack.c.l.b16 %v3157
    %v5415 = vunpack.c.h.b16 %v3157
    %v5416 = vunpack.c.l.b16 %v3158
    %v5417 = vunpack.c.h.b16 %v3158
    %v5418 = vunpack.c.l.b16 %v3159
    %v5419 = vunpack.c.h.b16 %v3159
    %v5420 = vunpack.c.l.b16 %v3160
    %v5421 = vunpack.c.h.b16 %v3160
    %v5422 = vunpack.c.l.b16 %v3161
    %v5423 = vunpack.c.h.b16 %v3161
    %v5424 = vunpack.c.l.b16 %v3162
    %v5425 = vunpack.c.h.b16 %v3162
    %v5426 = vunpack.c.l.b16 %v3163
    %v5427 = vunpack.c.h.b16 %v3163
    %v5428 = vunpack.c.l.b16 %v3164
    %v5429 = vunpack.c.h.b16 %v3164
    %v5430 = vunpack.c.l.b16 %v3165
    %v5431 = vunpack.c.h.b16 %v3165
    %v5432 = vunpack.c.l.b16 %v3166
    %v5433 = vunpack.c.h.b16 %v3166
    %v5434 = vunpack.c.l.b16 %v3167
    %v5435 = vunpack.c.h.b16 %v3167
    %v5436 = vunpack.c.l.b16 %v3168
    %v5437 = vunpack.c.h.b16 %v3168
    %v5438 = vunpack.c.l.b16 %v3169
    %v5439 = vunpack.c.h.b16 %v3169
    %v5440 = vunpack.c.l.b16 %v3170
    %v5441 = vunpack.c.h.b16 %v3170
    %v5442 = vunpack.c.l.b16 %v3171
    %v5443 = vunpack.c.h.b16 %v3171
    %v5444 = vunpack.c.l.b16 %v3172
    %v5445 = vunpack.c.h.b16 %v3172
    %v5446 = vunpack.c.l.b16 %v3173
    %v5447 = vunpack.c.h.b16 %v3173
    %v5448 = vunpack.c.l.b16 %v3174
    %v5449 = vunpack.c.h.b16 %v3174
    %v5450 = vunpack.c.l.b16 %v3175
    %v5451 = vunpack.c.h.b16 %v3175
    %v5452 = vunpack.c.l.b16 %v3176
    %v5453 = vunpack.c.h.b16 %v3176
    %v5454 = vunpack.c.l.b16 %v3177
    %v5455 = vunpack.c.h.b16 %v3177
    %v5456 = vunpack.c.l.b16 %v3178
    %v5457 = vunpack.c.h.b16 %v3178
    %v5458 = vunpack.c.l.b16 %v3179
    %v5459 = vunpack.c.h.b16 %v3179
    %v5460 = vunpack.c.l.b16 %v3180
    %v5461 = vunpack.c.h.b16 %v3180
    %v5462 = vunpack.c.l.b16 %v3181
    %v5463 = vunpack.c.h.b16 %v3181
    %v5464 = vunpack.c.l.b16 %v3182
    %v5465 = vunpack.c.h.b16 %v3182
    %v5466 = vunpack.c.l.b16 %v3183
    %v5467 = vunpack.c.h.b16 %v3183
    %v5468 = vunpack.c.l.b16 %v3184
    %v5469 = vunpack.c.h.b16 %v3184
    %v5470 = vunpack.c.l.b16 %v3185
    %v5471 = vunpack.c.h.b16 %v3185
    %v5472 = vunpack.c.l.b16 %v3186
    %v5473 = vunpack.c.h.b16 %v3186
    %v5474 = vunpack.c.l.b16 %v3187
    %v5475 = vunpack.c.h.b16 %v3187
    %v5476 = vunpack.c.l.b16 %v3188
    %v5477 = vunpack.c.h.b16 %v3188
    %v5478 = vunpack.c.l.b16 %v3189
    %v5479 = vunpack.c.h.b16 %v3189
    %v5480 = vunpack.c.l.b16 %v3190
    %v5481 = vunpack.c.h.b16 %v3190
    %v5482 = vunpack.c.l.b16 %v3191
    %v5483 = vunpack.c.h.b16 %v3191
    %v5484 = vunpack.c.l.b16 %v3192
    %v5485 = vunpack.c.h.b16 %v3192
    %v5486 = vunpack.c.l.b16 %v3193
    %v5487 = vunpack.c.h.b16 %v3193
    %v5488 = vunpack.c.l.b16 %v3194
    %v5489 = vunpack.c.h.b16 %v3194
    %v5490 = vunpack.c.l.b16 %v3195
    %v5491 = vunpack.c.h.b16 %v3195
    %v5492 = vunpack.c.l.b16 %v3196
    %v5493 = vunpack.c.h.b16 %v3196
    %v5494 = vunpack.c.l.b16 %v3197
    %v5495 = vunpack.c.h.b16 %v3197
    %v5496 = vunpack.c.l.b16 %v3198
    %v5497 = vunpack.c.h.b16 %v3198
    %v5498 = vunpack.c.l.b16 %v3199
    %v5499 = vunpack.c.h.b16 %v3199
    %v5500 = vunpack.c.l.b16 %v3200
    %v5501 = vunpack.c.h.b16 %v3200
    %v5502 = vunpack.c.l.b16 %v3201
    %v5503 = vunpack.c.h.b16 %v3201
    %v5504 = vunpack.c.l.b16 %v3202
    %v5505 = vunpack.c.h.b16 %v3202
    %v5506 = vunpack.c.l.b16 %v3203
    %v5507 = vunpack.c.h.b16 %v3203
    %v5508 = vunpack.c.l.b16 %v3204
    %v5509 = vunpack.c.h.b16 %v3204
    %v5510 = vunpack.c.l.b16 %v3205
    %v5511 = vunpack.c.h.b16 %v3205
    %v5512 = vunpack.c.l.b16 %v3206
    %v5513 = vunpack.c.h.b16 %v3206
    %v5514 = vunpack.c.l.b16 %v3207
    %v5515 = vunpack.c.h.b16 %v3207
    %v5516 = vunpack.c.l.b16 %v3208
    %v5517 = vunpack.c.h.b16 %v3208
    %v5518 = vunpack.c.l.b16 %v3209
    %v5519 = vunpack.c.h.b16 %v3209
    %v5520 = vunpack.c.l.b16 %v3210
    %v5521 = vunpack.c.h.b16 %v3210
    %v5522 = vunpack.c.l.b16 %v3211
    %v5523 = vunpack.c.h.b16 %v3211
    %v5524 = vunpack.c.l.b16 %v3212
    %v5525 = vunpack.c.h.b16 %v3212
    %v5526 = vunpack.c.l.b16 %v3213
    %v5527 = vunpack.c.h.b16 %v3213
    %v5528 = vunpack.c.l.b16 %v3214
    %v5529 = vunpack.c.h.b16 %v3214
    %v5530 = vunpack.c.l.b16 %v3215
    %v5531 = vunpack.c.h.b16 %v3215
    %v5532 = vunpack.c.l.b16 %v3216
    %v5533 = vunpack.c.h.b16 %v3216
    %v5534 = vunpack.c.l.b16 %v3217
    %v5535 = vunpack.c.h.b16 %v3217
    %v5536 = vunpack.c.l.b16 %v3218
    %v5537 = vunpack.c.h.b16 %v3218
    %v5538 = vunpack.c.l.b16 %v3219
    %v5539 = vunpack.c.h.b16 %v3219
    %v5540 = vunpack.c.l.b16 %v3220
    %v5541 = vunpack.c.h.b16 %v3220
    %v5542 = vunpack.c.l.b16 %v3221
    %v5543 = vunpack.c.h.b16 %v3221
    %v5544 = vunpack.c.l.b16 %v3222
    %v5545 = vunpack.c.h.b16 %v3222
    %v5546 = vunpack.c.l.b16 %v3223
    %v5547 = vunpack.c.h.b16 %v3223
    %v5548 = vunpack.c.l.b16 %v3224
    %v5549 = vunpack.c.h.b16 %v3224
    %v5550 = vunpack.c.l.b16 %v3225
    %v5551 = vunpack.c.h.b16 %v3225
    %v5552 = vunpack.c.l.b16 %v3226
    %v5553 = vunpack.c.h.b16 %v3226
    %v5554 = vunpack.c.l.b16 %v3227
    %v5555 = vunpack.c.h.b16 %v3227
    %v5556 = vunpack.c.l.b16 %v3228
    %v5557 = vunpack.c.h.b16 %v3228
    %v5558 = vunpack.c.l.b16 %v3229
    %v5559 = vunpack.c.h.b16 %v3229
    %v5560 = vunpack.c.l.b16 %v3230
    %v5561 = vunpack.c.h.b16 %v3230
    %v5562 = vunpack.c.l.b16 %v3231
    %v5563 = vunpack.c.h.b16 %v3231
    %v5564 = vunpack.c.l.b16 %v3232
    %v5565 = vunpack.c.h.b16 %v3232
    %v5566 = vunpack.c.l.b16 %v3233
    %v5567 = vunpack.c.h.b16 %v3233
    %v5568 = vunpack.c.l.b16 %v3234
    %v5569 = vunpack.c.h.b16 %v3234
    %v5570 = vunpack.c.l.b16 %v3235
    %v5571 = vunpack.c.h.b16 %v3235
    %v5572 = vunpack.c.l.b16 %v3236
    %v5573 = vunpack.c.h.b16 %v3236
    %v5574 = vunpack.c.l.b16 %v3237
    %v5575 = vunpack.c.h.b16 %v3237
    %v5576 = vunpack.c.l.b16 %v3238
    %v5577 = vunpack.c.h.b16 %v3238
    %v5578 = vunpack.c.l.b16 %v3239
    %v5579 = vunpack.c.h.b16 %v3239
    %v5580 = vunpack.c.l.b16 %v3240
    %v5581 = vunpack.c.h.b16 %v3240
    %v5582 = vunpack.c.l.b16 %v3241
    %v5583 = vunpack.c.h.b16 %v3241
    %v5584 = vunpack.c.l.b16 %v3242
    %v5585 = vunpack.c.h.b16 %v3242
    %v5586 = vunpack.c.l.b16 %v3243
    %v5587 = vunpack.c.h.b16 %v3243
    %v5588 = vunpack.c.l.b16 %v3244
    %v5589 = vunpack.c.h.b16 %v3244
    %v5590 = vunpack.c.l.b16 %v3245
    %v5591 = vunpack.c.h.b16 %v3245
    %v5592 = vunpack.c.l.b16 %v3246
    %v5593 = vunpack.c.h.b16 %v3246
    %v5594 = vunpack.c.l.b16 %v3247
    %v5595 = vunpack.c.h.b16 %v3247
    %v5596 = vunpack.c.l.b16 %v3248
    %v5597 = vunpack.c.h.b16 %v3248
    %v5598 = vunpack.c.l.b16 %v3249
    %v5599 = vunpack.c.h.b16 %v3249
    %v5600 = vunpack.c.l.b16 %v3250
    %v5601 = vunpack.c.h.b16 %v3250
    %v5602 = vunpack.c.l.b16 %v3251
    %v5603 = vunpack.c.h.b16 %v3251
    %v5604 = vunpack.c.l.b16 %v3252
    %v5605 = vunpack.c.h.b16 %v3252
    %v5606 = vunpack.c.l.b16 %v3253
    %v5607 = vunpack.c.h.b16 %v3253
    %v5608 = vunpack.c.l.b16 %v3254
    %v5609 = vunpack.c.h.b16 %v3254
    %v5610 = vunpack.c.l.b16 %v3255
    %v5611 = vunpack.c.h.b16 %v3255
    %v5612 = vunpack.c.l.b16 %v3256
    %v5613 = vunpack.c.h.b16 %v3256
    %v5614 = vunpack.c.l.b16 %v3257
    %v5615 = vunpack.c.h.b16 %v3257
    %v5616 = vunpack.c.l.b16 %v3258
    %v5617 = vunpack.c.h.b16 %v3258
    %v5618 = vunpack.c.l.b16 %v3259
    %v5619 = vunpack.c.h.b16 %v3259
    %v5620 = vunpack.c.l.b16 %v3260
    %v5621 = vunpack.c.h.b16 %v3260
    %v5622 = vunpack.c.l.b16 %v3261
    %v5623 = vunpack.c.h.b16 %v3261
    %v5624 = vunpack.c.l.b16 %v3262
    %v5625 = vunpack.c.h.b16 %v3262
    %v5626 = vunpack.c.l.b16 %v3263
    %v5627 = vunpack.c.h.b16 %v3263
    %v5628 = vunpack.c.l.b16 %v3264
    %v5629 = vunpack.c.h.b16 %v3264
    %v5630 = vunpack.c.l.b16 %v3265
    %v5631 = vunpack.c.h.b16 %v3265
    %v5632 = vunpack.c.l.b16 %v3266
    %v5633 = vunpack.c.h.b16 %v3266
    %v5634 = vunpack.c.l.b16 %v3267
    %v5635 = vunpack.c.h.b16 %v3267
    %v5636 = vunpack.c.l.b16 %v3268
    %v5637 = vunpack.c.h.b16 %v3268
    %v5638 = vunpack.c.l.b16 %v3269
    %v5639 = vunpack.c.h.b16 %v3269
    %v5640 = vunpack.c.l.b16 %v3270
    %v5641 = vunpack.c.h.b16 %v3270
    %v5642 = vunpack.c.l.b16 %v3271
    %v5643 = vunpack.c.h.b16 %v3271
    %v5644 = vunpack.c.l.b16 %v3272
    %v5645 = vunpack.c.h.b16 %v3272
    %v5646 = vunpack.c.l.b16 %v3273
    %v5647 = vunpack.c.h.b16 %v3273
    %v5648 = vunpack.c.l.b16 %v3274
    %v5649 = vunpack.c.h.b16 %v3274
    %v5650 = vunpack.c.l.b16 %v3275
    %v5651 = vunpack.c.h.b16 %v3275
    %v5652 = vunpack.c.l.b16 %v3276
    %v5653 = vunpack.c.h.b16 %v3276
    %v5654 = vunpack.c.l.b16 %v3277
    %v5655 = vunpack.c.h.b16 %v3277
    %v5656 = vunpack.c.l.b16 %v3278
    %v5657 = vunpack.c.h.b16 %v3278
    %v5658 = vunpack.c.l.b16 %v3279
    %v5659 = vunpack.c.h.b16 %v3279
    %v5660 = vunpack.c.l.b16 %v3280
    %v5661 = vunpack.c.h.b16 %v3280
    %v5662 = vunpack.c.l.b16 %v3281
    %v5663 = vunpack.c.h.b16 %v3281
    %v5664 = vunpack.c.l.b16 %v3282
    %v5665 = vunpack.c.h.b16 %v3282
    %v5666 = vunpack.c.l.b16 %v3283
    %v5667 = vunpack.c.h.b16 %v3283
    %v5668 = vunpack.c.l.b16 %v3284
    %v5669 = vunpack.c.h.b16 %v3284
    %v5670 = vunpack.c.l.b16 %v3285
    %v5671 = vunpack.c.h.b16 %v3285
    %v5672 = vunpack.c.l.b16 %v3286
    %v5673 = vunpack.c.h.b16 %v3286
    %v5674 = vunpack.c.l.b16 %v3287
    %v5675 = vunpack.c.h.b16 %v3287
    %v5676 = vunpack.c.l.b16 %v3288
    %v5677 = vunpack.c.h.b16 %v3288
    %v5678 = vunpack.c.l.b16 %v3289
    %v5679 = vunpack.c.h.b16 %v3289
    %v5680 = vunpack.c.l.b16 %v3290
    %v5681 = vunpack.c.h.b16 %v3290
    %v5682 = vunpack.c.l.b16 %v3291
    %v5683 = vunpack.c.h.b16 %v3291
    %v5684 = vunpack.c.l.b16 %v3292
    %v5685 = vunpack.c.h.b16 %v3292
    %v5686 = vunpack.c.l.b16 %v3293
    %v5687 = vunpack.c.h.b16 %v3293
    %v5688 = vunpack.c.l.b16 %v3294
    %v5689 = vunpack.c.h.b16 %v3294
    %v5690 = vunpack.c.l.b16 %v3295
    %v5691 = vunpack.c.h.b16 %v3295
    %v5692 = vunpack.c.l.b16 %v3296
    %v5693 = vunpack.c.h.b16 %v3296
    %v5694 = vunpack.c.l.b16 %v3297
    %v5695 = vunpack.c.h.b16 %v3297
    %v5696 = vunpack.c.l.b16 %v3298
    %v5697 = vunpack.c.h.b16 %v3298
    %v5698 = vunpack.c.l.b16 %v3299
    %v5699 = vunpack.c.h.b16 %v3299
    %v5700 = vunpack.c.l.b16 %v3300
    %v5701 = vunpack.c.h.b16 %v3300
    %v5702 = vunpack.c.l.b16 %v3301
    %v5703 = vunpack.c.h.b16 %v3301
    %v5704 = vunpack.c.l.b16 %v3302
    %v5705 = vunpack.c.h.b16 %v3302
    %v5706 = vunpack.c.l.b16 %v3303
    %v5707 = vunpack.c.h.b16 %v3303
    %v5708 = vunpack.c.l.b16 %v3304
    %v5709 = vunpack.c.h.b16 %v3304
    %v5710 = vunpack.c.l.b16 %v3305
    %v5711 = vunpack.c.h.b16 %v3305
    %v5712 = vunpack.c.l.b16 %v3306
    %v5713 = vunpack.c.h.b16 %v3306
    %v5714 = vunpack.c.l.b16 %v3307
    %v5715 = vunpack.c.h.b16 %v3307
    %v5716 = vunpack.c.l.b16 %v3308
    %v5717 = vunpack.c.h.b16 %v3308
    %v5718 = vunpack.c.l.b16 %v3309
    %v5719 = vunpack.c.h.b16 %v3309
    %v5720 = vunpack.c.l.b16 %v3310
    %v5721 = vunpack.c.h.b16 %v3310
    %v5722 = vunpack.c.l.b16 %v3311
    %v5723 = vunpack.c.h.b16 %v3311
    %v5724 = vunpack.c.l.b16 %v3312
    %v5725 = vunpack.c.h.b16 %v3312
    %v5726 = vunpack.c.l.b16 %v3313
    %v5727 = vunpack.c.h.b16 %v3313
    %v5728 = vunpack.c.l.b16 %v3314
    %v5729 = vunpack.c.h.b16 %v3314
    %v5730 = vunpack.c.l.b16 %v3315
    %v5731 = vunpack.c.h.b16 %v3315
    %v5732 = vunpack.c.l.b16 %v3316
    %v5733 = vunpack.c.h.b16 %v3316
    %v5734 = vunpack.c.l.b16 %v3317
    %v5735 = vunpack.c.h.b16 %v3317
    %v5736 = vunpack.c.l.b16 %v3318
    %v5737 = vunpack.c.h.b16 %v3318
    %v5738 = vunpack.c.l.b16 %v3319
    %v5739 = vunpack.c.h.b16 %v3319
    %v5740 = vunpack.c.l.b16 %v3320
    %v5741 = vunpack.c.h.b16 %v3320
    %v5742 = vunpack.c.l.b16 %v3321
    %v5743 = vunpack.c.h.b16 %v3321
    %v5744 = vunpack.c.l.b16 %v3322
    %v5745 = vunpack.c.h.b16 %v3322
    %v5746 = vunpack.c.l.b16 %v3323
    %v5747 = vunpack.c.h.b16 %v3323
    %v5748 = vunpack.c.l.b16 %v3324
    %v5749 = vunpack.c.h.b16 %v3324
    %v5750 = vunpack.c.l.b16 %v3325
    %v5751 = vunpack.c.h.b16 %v3325
    %v5752 = vunpack.c.l.b16 %v3326
    %v5753 = vunpack.c.h.b16 %v3326
    %v5754 = vunpack.c.l.b16 %v3327
    %v5755 = vunpack.c.h.b16 %v3327
    %v5756 = vunpack.c.l.b16 %v3328
    %v5757 = vunpack.c.h.b16 %v3328
    %v5758 = vunpack.c.l.b16 %v3329
    %v5759 = vunpack.c.h.b16 %v3329
    %v5760 = vunpack.c.l.b16 %v3330
    %v5761 = vunpack.c.h.b16 %v3330
    %v5762 = vunpack.c.l.b16 %v3331
    %v5763 = vunpack.c.h.b16 %v3331
    %v5764 = vunpack.c.l.b16 %v3332
    %v5765 = vunpack.c.h.b16 %v3332
    %v5766 = vunpack.c.l.b16 %v3333
    %v5767 = vunpack.c.h.b16 %v3333
    %v5768 = vunpack.c.l.b16 %v3334
    %v5769 = vunpack.c.h.b16 %v3334
    %v5770 = vunpack.c.l.b16 %v3335
    %v5771 = vunpack.c.h.b16 %v3335
    %v5772 = vunpack.c.l.b16 %v3336
    %v5773 = vunpack.c.h.b16 %v3336
    %v5774 = vunpack.c.l.b16 %v3337
    %v5775 = vunpack.c.h.b16 %v3337
    %v5776 = vunpack.c.l.b16 %v3338
    %v5777 = vunpack.c.h.b16 %v3338
    %v5778 = vunpack.c.l.b16 %v3339
    %v5779 = vunpack.c.h.b16 %v3339
    %v5780 = vunpack.c.l.b16 %v3340
    %v5781 = vunpack.c.h.b16 %v3340
    %v5782 = vunpack.c.l.b16 %v3341
    %v5783 = vunpack.c.h.b16 %v3341
    %v5784 = vunpack.c.l.b16 %v3342
    %v5785 = vunpack.c.h.b16 %v3342
    %v5786 = vunpack.c.l.b16 %v3343
    %v5787 = vunpack.c.h.b16 %v3343
    %v5788 = vunpack.c.l.b16 %v3344
    %v5789 = vunpack.c.h.b16 %v3344
    %v5790 = vunpack.c.l.b16 %v3345
    %v5791 = vunpack.c.h.b16 %v3345
    %v5792 = vunpack.c.l.b16 %v3346
    %v5793 = vunpack.c.h.b16 %v3346
    %v5794 = vunpack.c.l.b16 %v3347
    %v5795 = vunpack.c.h.b16 %v3347
    %v5796 = vunpack.c.l.b16 %v3348
    %v5797 = vunpack.c.h.b16 %v3348
    %v5798 = vunpack.c.l.b16 %v3349
    %v5799 = vunpack.c.h.b16 %v3349
    %v5800 = vunpack.c.l.b16 %v3350
    %v5801 = vunpack.c.h.b16 %v3350
    %v5802 = vunpack.c.l.b16 %v3351
    %v5803 = vunpack.c.h.b16 %v3351
    %v5804 = vunpack.c.l.b16 %v3352
    %v5805 = vunpack.c.h.b16 %v3352
    %v5806 = vunpack.c.l.b16 %v3353
    %v5807 = vunpack.c.h.b16 %v3353
    %v5808 = vunpack.c.l.b16 %v3354
    %v5809 = vunpack.c.h.b16 %v3354
    %v5810 = vunpack.c.l.b16 %v3355
    %v5811 = vunpack.c.h.b16 %v3355
    %v5812 = vunpack.c.l.b16 %v3356
    %v5813 = vunpack.c.h.b16 %v3356
    %v5814 = vunpack.c.l.b16 %v3357
    %v5815 = vunpack.c.h.b16 %v3357
    %v5816 = vunpack.c.l.b16 %v3358
    %v5817 = vunpack.c.h.b16 %v3358
    %v5818 = vunpack.c.l.b16 %v3359
    %v5819 = vunpack.c.h.b16 %v3359
    %v5820 = vunpack.c.l.b16 %v3360
    %v5821 = vunpack.c.h.b16 %v3360
    %v5822 = vunpack.c.l.b16 %v3361
    %v5823 = vunpack.c.h.b16 %v3361
    %v5824 = vunpack.c.l.b16 %v3362
    %v5825 = vunpack.c.h.b16 %v3362
    %v5826 = vunpack.c.l.b16 %v3363
    %v5827 = vunpack.c.h.b16 %v3363
    %v5828 = vunpack.c.l.b16 %v3364
    %v5829 = vunpack.c.h.b16 %v3364
    %v5830 = vunpack.c.l.b16 %v3365
    %v5831 = vunpack.c.h.b16 %v3365
    %v5832 = vunpack.c.l.b16 %v3366
    %v5833 = vunpack.c.h.b16 %v3366
    %v5834 = vunpack.c.l.b16 %v3367
    %v5835 = vunpack.c.h.b16 %v3367
    %v5836 = vunpack.c.l.b16 %v3368
    %v5837 = vunpack.c.h.b16 %v3368
    %v5838 = vunpack.c.l.b16 %v3369
    %v5839 = vunpack.c.h.b16 %v3369
    %v5840 = vunpack.c.l.b16 %v3370
    %v5841 = vunpack.c.h.b16 %v3370
    %v5842 = vunpack.c.l.b16 %v3371
    %v5843 = vunpack.c.h.b16 %v3371
    %v5844 = vunpack.c.l.b16 %v3372
    %v5845 = vunpack.c.h.b16 %v3372
    %v5846 = vunpack.c.l.b16 %v3373
    %v5847 = vunpack.c.h.b16 %v3373
    %v5848 = vunpack.c.l.b16 %v3374
    %v5849 = vunpack.c.h.b16 %v3374
    %v5850 = vunpack.c.l.b16 %v3375
    %v5851 = vunpack.c.h.b16 %v3375
    %v5852 = vunpack.c.l.b16 %v3376
    %v5853 = vunpack.c.h.b16 %v3376
    %v5854 = vunpack.c.l.b16 %v3377
    %v5855 = vunpack.c.h.b16 %v3377
    %v5856 = vunpack.c.l.b16 %v3378
    %v5857 = vunpack.c.h.b16 %v3378
    %v5858 = vunpack.c.l.b16 %v3379
    %v5859 = vunpack.c.h.b16 %v3379
    %v5860 = vunpack.c.l.b16 %v3380
    %v5861 = vunpack.c.h.b16 %v3380
    %v5862 = vunpack.c.l.b16 %v3381
    %v5863 = vunpack.c.h.b16 %v3381
    %v5864 = vunpack.c.l.b16 %v3382
    %v5865 = vunpack.c.h.b16 %v3382
    %v5866 = vunpack.c.l.b16 %v3383
    %v5867 = vunpack.c.h.b16 %v3383
    %v5868 = vunpack.c.l.b16 %v3384
    %v5869 = vunpack.c.h.b16 %v3384
    %v5870 = vunpack.c.l.b16 %v3385
    %v5871 = vunpack.c.h.b16 %v3385
    %v5872 = vunpack.c.l.b16 %v3386
    %v5873 = vunpack.c.h.b16 %v3386
    %v5874 = vunpack.c.l.b16 %v3387
    %v5875 = vunpack.c.h.b16 %v3387
    %v5876 = vunpack.c.l.b16 %v3388
    %v5877 = vunpack.c.h.b16 %v3388
    %v5878 = vunpack.c.l.b16 %v3389
    %v5879 = vunpack.c.h.b16 %v3389
    %v5880 = vunpack.c.l.b16 %v3390
    %v5881 = vunpack.c.h.b16 %v3390
    %v5882 = vunpack.c.l.b16 %v3391
    %v5883 = vunpack.c.h.b16 %v3391
    %v5884 = vunpack.c.l.b16 %v3392
    %v5885 = vunpack.c.h.b16 %v3392
    %v5886 = vunpack.c.l.b16 %v3393
    %v5887 = vunpack.c.h.b16 %v3393
    %v5888 = vunpack.c.l.b16 %v3394
    %v5889 = vunpack.c.h.b16 %v3394
    %v5890 = vunpack.c.l.b16 %v3395
    %v5891 = vunpack.c.h.b16 %v3395
    %v5892 = vunpack.c.l.b16 %v3396
    %v5893 = vunpack.c.h.b16 %v3396
    %v5894 = vunpack.c.l.b16 %v3397
    %v5895 = vunpack.c.h.b16 %v3397
    %v5896 = vunpack.c.l.b16 %v3398
    %v5897 = vunpack.c.h.b16 %v3398
    %v5898 = vunpack.c.l.b16 %v3399
    %v5899 = vunpack.c.h.b16 %v3399
    %v5900 = vunpack.c.l.b16 %v3400
    %v5901 = vunpack.c.h.b16 %v3400
    %v5902 = vunpack.c.l.b16 %v3401
    %v5903 = vunpack.c.h.b16 %v3401
    %v5904 = vunpack.c.l.b16 %v3402
    %v5905 = vunpack.c.h.b16 %v3402
    %v5906 = vunpack.c.l.b16 %v3403
    %v5907 = vunpack.c.h.b16 %v3403
    %v5908 = vunpack.c.l.b16 %v3404
    %v5909 = vunpack.c.h.b16 %v3404
    %v5910 = vunpack.c.l.b16 %v3405
    %v5911 = vunpack.c.h.b16 %v3405
    %v5912 = vunpack.c.l.b16 %v3406
    %v5913 = vunpack.c.h.b16 %v3406
    %v5914 = vunpack.c.l.b16 %v3407
    %v5915 = vunpack.c.h.b16 %v3407
    %v5916 = vunpack.c.l.b16 %v3408
    %v5917 = vunpack.c.h.b16 %v3408
    %v5918 = vunpack.c.l.b16 %v3409
    %v5919 = vunpack.c.h.b16 %v3409
    %v5920 = vunpack.c.l.b16 %v3410
    %v5921 = vunpack.c.h.b16 %v3410
    %v5922 = vunpack.c.l.b16 %v3411
    %v5923 = vunpack.c.h.b16 %v3411
    %v5924 = vunpack.c.l.b16 %v3412
    %v5925 = vunpack.c.h.b16 %v3412
    %v5926 = vunpack.c.l.b16 %v3413
    %v5927 = vunpack.c.h.b16 %v3413
    %v5928 = vunpack.c.l.b16 %v3414
    %v5929 = vunpack.c.h.b16 %v3414
    %v5930 = vunpack.c.l.b16 %v3415
    %v5931 = vunpack.c.h.b16 %v3415
    %v5932 = vunpack.c.l.b16 %v3416
    %v5933 = vunpack.c.h.b16 %v3416
    %v5934 = vunpack.c.l.b16 %v3417
    %v5935 = vunpack.c.h.b16 %v3417
    %v5936 = vunpack.c.l.b16 %v3418
    %v5937 = vunpack.c.h.b16 %v3418
    %v5938 = vunpack.c.l.b16 %v3419
    %v5939 = vunpack.c.h.b16 %v3419
    %v5940 = vunpack.c.l.b16 %v3420
    %v5941 = vunpack.c.h.b16 %v3420
    %v5942 = vunpack.c.l.b16 %v3421
    %v5943 = vunpack.c.h.b16 %v3421
    %v5944 = vunpack.c.l.b16 %v3422
    %v5945 = vunpack.c.h.b16 %v3422
    %v5946 = vunpack.c.l.b16 %v3423
    %v5947 = vunpack.c.h.b16 %v3423
    %v5948 = vunpack.c.l.b16 %v3424
    %v5949 = vunpack.c.h.b16 %v3424
    %v5950 = vunpack.c.l.b16 %v3425
    %v5951 = vunpack.c.h.b16 %v3425
    %v5952 = vunpack.c.l.b16 %v3426
    %v5953 = vunpack.c.h.b16 %v3426
    %v5954 = vunpack.c.l.b16 %v3427
    %v5955 = vunpack.c.h.b16 %v3427
    %v5956 = vunpack.c.l.b16 %v3428
    %v5957 = vunpack.c.h.b16 %v3428
    %v5958 = vunpack.c.l.b16 %v3429
    %v5959 = vunpack.c.h.b16 %v3429
    %v5960 = vunpack.c.l.b16 %v3430
    %v5961 = vunpack.c.h.b16 %v3430
    %v5962 = vunpack.c.l.b16 %v3431
    %v5963 = vunpack.c.h.b16 %v3431
    %v5964 = vunpack.c.l.b16 %v3432
    %v5965 = vunpack.c.h.b16 %v3432
    %v5966 = vunpack.c.l.b16 %v3433
    %v5967 = vunpack.c.h.b16 %v3433
    %v5968 = vunpack.c.l.b16 %v3434
    %v5969 = vunpack.c.h.b16 %v3434
    %v5970 = vunpack.c.l.b16 %v3435
    %v5971 = vunpack.c.h.b16 %v3435
    %v5972 = vunpack.c.l.b16 %v3436
    %v5973 = vunpack.c.h.b16 %v3436
    %v5974 = vunpack.c.l.b16 %v3437
    %v5975 = vunpack.c.h.b16 %v3437
    %v5976 = vunpack.c.l.b16 %v3438
    %v5977 = vunpack.c.h.b16 %v3438
    %v5978 = vunpack.c.l.b16 %v3439
    %v5979 = vunpack.c.h.b16 %v3439
    %v5980 = vunpack.c.l.b16 %v3440
    %v5981 = vunpack.c.h.b16 %v3440
    %v5982 = vunpack.c.l.b16 %v3441
    %v5983 = vunpack.c.h.b16 %v3441
    %v5984 = vunpack.c.l.b16 %v3442
    %v5985 = vunpack.c.h.b16 %v3442
    %v5986 = vunpack.c.l.b16 %v3443
    %v5987 = vunpack.c.h.b16 %v3443
    %v5988 = vunpack.c.l.b16 %v3444
    %v5989 = vunpack.c.h.b16 %v3444
    %v5990 = vunpack.c.l.b16 %v3445
    %v5991 = vunpack.c.h.b16 %v3445
    %v5992 = vunpack.c.l.b16 %v3446
    %v5993 = vunpack.c.h.b16 %v3446
    %v5994 = vunpack.c.l.b16 %v3447
    %v5995 = vunpack.c.h.b16 %v3447
    %v5996 = vunpack.c.l.b16 %v3448
    %v5997 = vunpack.c.h.b16 %v3448
    %v5998 = vunpack.c.l.b16 %v3449
    %v5999 = vunpack.c.h.b16 %v3449
    %v6000 = vunpack.c.l.b16 %v3450
    %v6001 = vunpack.c.h.b16 %v3450
    %v6002 = vunpack.c.l.b16 %v3451
    %v6003 = vunpack.c.h.b16 %v3451
    %v6004 = vunpack.c.l.b16 %v3452
    %v6005 = vunpack.c.h.b16 %v3452
    %v6006 = vunpack.c.l.b16 %v3453
    %v6007 = vunpack.c.h.b16 %v3453
    %v6008 = vunpack.c.l.b16 %v3454
    %v6009 = vunpack.c.h.b16 %v3454
    %v6010 = vunpack.c.l.b16 %v3455
    %v6011 = vunpack.c.h.b16 %v3455
    %v6012 = vunpack.c.l.b16 %v3456
    %v6013 = vunpack.c.h.b16 %v3456
    %v6014 = vunpack.c.l.b16 %v3457
    %v6015 = vunpack.c.h.b16 %v3457
    %v6016 = vunpack.c.l.b16 %v3458
    %v6017 = vunpack.c.h.b16 %v3458
    %v6018 = vunpack.c.l.b16 %v3459
    %v6019 = vunpack.c.h.b16 %v3459
    %v6020 = vunpack.c.l.b16 %v3460
    %v6021 = vunpack.c.h.b16 %v3460
    %v6022 = vunpack.c.l.b16 %v3461
    %v6023 = vunpack.c.h.b16 %v3461
    %v6024 = vunpack.c.l.b16 %v3462
    %v6025 = vunpack.c.h.b16 %v3462
    %v6026 = vunpack.c.l.b16 %v3463
    %v6027 = vunpack.c.h.b16 %v3463
    %v6028 = vunpack.c.l.b16 %v3464
    %v6029 = vunpack.c.h.b16 %v3464
    %v6030 = vunpack.c.l.b16 %v3465
    %v6031 = vunpack.c.h.b16 %v3465
    %v6032 = vunpack.c.l.b16 %v3466
    %v6033 = vunpack.c.h.b16 %v3466
    %v6034 = vunpack.c.l.b16 %v3467
    %v6035 = vunpack.c.h.b16 %v3467
    %v6036 = vunpack.c.l.b16 %v3468
    %v6037 = vunpack.c.h.b16 %v3468
    %v6038 = vunpack.c.l.b16 %v3469
    %v6039 = vunpack.c.h.b16 %v3469
    %v6040 = vunpack.c.l.b16 %v3470
    %v6041 = vunpack.c.h.b16 %v3470
    %v6042 = vunpack.c.l.b16 %v3471
    %v6043 = vunpack.c.h.b16 %v3471
    %v6044 = vunpack.c.l.b16 %v3472
    %v6045 = vunpack.c.h.b16 %v3472
    %v6046 = vunpack.c.l.b16 %v3473
    %v6047 = vunpack.c.h.b16 %v3473
    %v6048 = vunpack.c.l.b16 %v3474
    %v6049 = vunpack.c.h.b16 %v3474
    %v6050 = vunpack.c.l.b16 %v3475
    %v6051 = vunpack.c.h.b16 %v3475
    %v6052 = vunpack.c.l.b16 %v3476
    %v6053 = vunpack.c.h.b16 %v3476
    %v6054 = vunpack.c.l.b16 %v3477
    %v6055 = vunpack.c.h.b16 %v3477
    %v6056 = vunpack.c.l.b16 %v3478
    %v6057 = vunpack.c.h.b16 %v3478
    %v6058 = vunpack.c.l.b16 %v3479
    %v6059 = vunpack.c.h.b16 %v3479
    %v6060 = vunpack.c.l.b16 %v3480
    %v6061 = vunpack.c.h.b16 %v3480
    %v6062 = vunpack.c.l.b16 %v3481
    %v6063 = vunpack.c.h.b16 %v3481
    %v6064 = vunpack.c.l.b16 %v3482
    %v6065 = vunpack.c.h.b16 %v3482
    %v6066 = vunpack.c.l.b16 %v3483
    %v6067 = vunpack.c.h.b16 %v3483
    %v6068 = vunpack.c.l.b16 %v3484
    %v6069 = vunpack.c.h.b16 %v3484
    %v6070 = vunpack.c.l.b16 %v3485
    %v6071 = vunpack.c.h.b16 %v3485
    %v6072 = vunpack.c.l.b16 %v3486
    %v6073 = vunpack.c.h.b16 %v3486
    %v6074 = vunpack.c.l.b16 %v3487
    %v6075 = vunpack.c.h.b16 %v3487
    %v6076 = vunpack.c.l.b16 %v3488
    %v6077 = vunpack.c.h.b16 %v3488
    %v6078 = vunpack.c.l.b16 %v3489
    %v6079 = vunpack.c.h.b16 %v3489
    %v6080 = vunpack.c.l.b16 %v3490
    %v6081 = vunpack.c.h.b16 %v3490
    %v6082 = vunpack.c.l.b16 %v3491
    %v6083 = vunpack.c.h.b16 %v3491
    %v6084 = vunpack.c.l.b16 %v3492
    %v6085 = vunpack.c.h.b16 %v3492
    %v6086 = vunpack.c.l.b16 %v3493
    %v6087 = vunpack.c.h.b16 %v3493
    %v6088 = vunpack.c.l.b16 %v3494
    %v6089 = vunpack.c.h.b16 %v3494
    %v6090 = vunpack.c.l.b16 %v3495
    %v6091 = vunpack.c.h.b16 %v3495
    %v6092 = vunpack.c.l.b16 %v3496
    %v6093 = vunpack.c.h.b16 %v3496
    %v6094 = vunpack.c.l.b16 %v3497
    %v6095 = vunpack.c.h.b16 %v3497
    %v6096 = vunpack.c.l.b16 %v3498
    %v6097 = vunpack.c.h.b16 %v3498
    %v6098 = vunpack.c.l.b16 %v3499
    %v6099 = vunpack.c.h.b16 %v3499
    %v6100 = vunpack.c.l.b16 %v3500
    %v6101 = vunpack.c.h.b16 %v3500
    %v6102 = vunpack.c.l.b16 %v3501
    %v6103 = vunpack.c.h.b16 %v3501
    %v6104 = vunpack.c.l.b16 %v3502
    %v6105 = vunpack.c.h.b16 %v3502
    %v6106 = vunpack.c.l.b16 %v3503
    %v6107 = vunpack.c.h.b16 %v3503
    %v6108 = vunpack.c.l.b16 %v3504
    %v6109 = vunpack.c.h.b16 %v3504
    %v6110 = vunpack.c.l.b16 %v3505
    %v6111 = vunpack.c.h.b16 %v3505
    %v6112 = vunpack.c.l.b16 %v3506
    %v6113 = vunpack.c.h.b16 %v3506
    %v6114 = vunpack.c.l.b16 %v3507
    %v6115 = vunpack.c.h.b16 %v3507
    %v6116 = vunpack.c.l.b16 %v3508
    %v6117 = vunpack.c.h.b16 %v3508
    %v6118 = vunpack.c.l.b16 %v3509
    %v6119 = vunpack.c.h.b16 %v3509
    %v6120 = vunpack.c.l.b16 %v3510
    %v6121 = vunpack.c.h.b16 %v3510
    %v6122 = vunpack.c.l.b16 %v3511
    %v6123 = vunpack.c.h.b16 %v3511
    %v6124 = vunpack.c.l.b16 %v3512
    %v6125 = vunpack.c.h.b16 %v3512
    %v6126 = vunpack.c.l.b16 %v3513
    %v6127 = vunpack.c.h.b16 %v3513
    %v6128 = vunpack.c.l.b16 %v3514
    %v6129 = vunpack.c.h.b16 %v3514
    %v6130 = vunpack.c.l.b16 %v3515
    %v6131 = vunpack.c.h.b16 %v3515
    %v6132 = vunpack.c.l.b16 %v3516
    %v6133 = vunpack.c.h.b16 %v3516
    %v6134 = vunpack.c.l.b16 %v3517
    %v6135 = vunpack.c.h.b16 %v3517
    %v6136 = vunpack.c.l.b16 %v3518
    %v6137 = vunpack.c.h.b16 %v3518
    %v6138 = vunpack.c.l.b16 %v3519
    %v6139 = vunpack.c.h.b16 %v3519
    %v6140 = vunpack.c.l.b16 %v3520
    %v6141 = vunpack.c.h.b16 %v3520
    %v6142 = vunpack.c.l.b16 %v3521
    %v6143 = vunpack.c.h.b16 %v3521
    %v6144 = vunpack.c.l.b16 %v3522
    %v6145 = vunpack.c.h.b16 %v3522
    %v6146 = vunpack.c.l.b16 %v3523
    %v6147 = vunpack.c.h.b16 %v3523
    %v6148 = vunpack.c.l.b16 %v3524
    %v6149 = vunpack.c.h.b16 %v3524
    %v6150 = vunpack.c.l.b16 %v3525
    %v6151 = vunpack.c.h.b16 %v3525
    %v6152 = vunpack.c.l.b16 %v3526
    %v6153 = vunpack.c.h.b16 %v3526
    %v6154 = vunpack.c.l.b16 %v3527
    %v6155 = vunpack.c.h.b16 %v3527
    %v6156 = vunpack.c.l.b16 %v3528
    %v6157 = vunpack.c.h.b16 %v3528
    %v6158 = vunpack.c.l.b16 %v3529
    %v6159 = vunpack.c.h.b16 %v3529
    %v6160 = vunpack.c.l.b16 %v3530
    %v6161 = vunpack.c.h.b16 %v3530
    %v6162 = vunpack.c.l.b16 %v3531
    %v6163 = vunpack.c.h.b16 %v3531
    %v6164 = vunpack.c.l.b16 %v3532
    %v6165 = vunpack.c.h.b16 %v3532
    %v6166 = vunpack.c.l.b16 %v3533
    %v6167 = vunpack.c.h.b16 %v3533
    %v6168 = vunpack.c.l.b16 %v3534
    %v6169 = vunpack.c.h.b16 %v3534
    %v6170 = vunpack.c.l.b16 %v3535
    %v6171 = vunpack.c.h.b16 %v3535
    %v6172 = vunpack.c.l.b16 %v3536
    %v6173 = vunpack.c.h.b16 %v3536
    %v6174 = vunpack.c.l.b16 %v3537
    %v6175 = vunpack.c.h.b16 %v3537
    %v6176 = vunpack.c.l.b16 %v3538
    %v6177 = vunpack.c.h.b16 %v3538
    %v6178 = vunpack.c.l.b16 %v3539
    %v6179 = vunpack.c.h.b16 %v3539
    %v6180 = vunpack.c.l.b16 %v3540
    %v6181 = vunpack.c.h.b16 %v3540
    %v6182 = vunpack.c.l.b16 %v3541
    %v6183 = vunpack.c.h.b16 %v3541
    %v6184 = vunpack.c.l.b16 %v3542
    %v6185 = vunpack.c.h.b16 %v3542
    %v6186 = vunpack.c.l.b16 %v3543
    %v6187 = vunpack.c.h.b16 %v3543
    %v6188 = vunpack.c.l.b16 %v3544
    %v6189 = vunpack.c.h.b16 %v3544
    %v6190 = vunpack.c.l.b16 %v3545
    %v6191 = vunpack.c.h.b16 %v3545
    %v6192 = vunpack.c.l.b16 %v3546
    %v6193 = vunpack.c.h.b16 %v3546
    %v6194 = vunpack.c.l.b16 %v3547
    %v6195 = vunpack.c.h.b16 %v3547
    %v6196 = vunpack.c.l.b16 %v3548
    %v6197 = vunpack.c.h.b16 %v3548
    %v6198 = vunpack.c.l.b16 %v3549
    %v6199 = vunpack.c.h.b16 %v3549
    %v6200 = vunpack.c.l.b16 %v3550
    %v6201 = vunpack.c.h.b16 %v3550
    %v6202 = vunpack.c.l.b16 %v3551
    %v6203 = vunpack.c.h.b16 %v3551
    %v6204 = vunpack.c.l.b16 %v3552
    %v6205 = vunpack.c.h.b16 %v3552
    %v6206 = vunpack.c.l.b16 %v3553
    %v6207 = vunpack.c.h.b16 %v3553
    %v6208 = vunpack.c.l.b16 %v3554
    %v6209 = vunpack.c.h.b16 %v3554
    %v6210 = vunpack.c.l.b16 %v3555
    %v6211 = vunpack.c.h.b16 %v3555
    %v6212 = vunpack.c.l.b16 %v3556
    %v6213 = vunpack.c.h.b16 %v3556
    %v6214 = vunpack.c.l.b16 %v3557
    %v6215 = vunpack.c.h.b16 %v3557
    %v6216 = vunpack.c.l.b16 %v3558
    %v6217 = vunpack.c.h.b16 %v3558
    %v6218 = vunpack.c.l.b16 %v3559
    %v6219 = vunpack.c.h.b16 %v3559
    %v6220 = vunpack.c.l.b16 %v3560
    %v6221 = vunpack.c.h.b16 %v3560
    %v6222 = vunpack.c.l.b16 %v3561
    %v6223 = vunpack.c.h.b16 %v3561
    %v6224 = vunpack.c.l.b16 %v3562
    %v6225 = vunpack.c.h.b16 %v3562
    %v6226 = vunpack.c.l.b16 %v3563
    %v6227 = vunpack.c.h.b16 %v3563
    %v6228 = vunpack.c.l.b16 %v3564
    %v6229 = vunpack.c.h.b16 %v3564
    %v6230 = vunpack.c.l.b16 %v3565
    %v6231 = vunpack.c.h.b16 %v3565
    %v6232 = vunpack.c.l.b16 %v3566
    %v6233 = vunpack.c.h.b16 %v3566
    %v6234 = vunpack.c.l.b16 %v3567
    %v6235 = vunpack.c.h.b16 %v3567
    %v6236 = vunpack.c.l.b16 %v3568
    %v6237 = vunpack.c.h.b16 %v3568
    %v6238 = vunpack.c.l.b16 %v3569
    %v6239 = vunpack.c.h.b16 %v3569
    %v6240 = vunpack.c.l.b16 %v3570
    %v6241 = vunpack.c.h.b16 %v3570
    %v6242 = vunpack.c.l.b16 %v3571
    %v6243 = vunpack.c.h.b16 %v3571
    %v6244 = vunpack.c.l.b16 %v3572
    %v6245 = vunpack.c.h.b16 %v3572
    %v6246 = vunpack.c.l.b16 %v3573
    %v6247 = vunpack.c.h.b16 %v3573
    %v6248 = vunpack.c.l.b16 %v3574
    %v6249 = vunpack.c.h.b16 %v3574
    %v6250 = vunpack.c.l.b16 %v3575
    %v6251 = vunpack.c.h.b16 %v3575
    %v6252 = vunpack.c.l.b16 %v3576
    %v6253 = vunpack.c.h.b16 %v3576
    %v6254 = vunpack.c.l.b16 %v3577
    %v6255 = vunpack.c.h.b16 %v3577
    %v6256 = vunpack.c.l.b16 %v3578
    %v6257 = vunpack.c.h.b16 %v3578
    %v6258 = vunpack.c.l.b16 %v3579
    %v6259 = vunpack.c.h.b16 %v3579
    %v6260 = vunpack.c.l.b16 %v3580
    %v6261 = vunpack.c.h.b16 %v3580
    %v6262 = vunpack.c.l.b16 %v3581
    %v6263 = vunpack.c.h.b16 %v3581
    %v6264 = vunpack.c.l.b16 %v3582
    %v6265 = vunpack.c.h.b16 %v3582
    %v6266 = vunpack.c.l.b16 %v3583
    %v6267 = vunpack.c.h.b16 %v3583
    %v6268 = vunpack.c.l.b16 %v3584
    %v6269 = vunpack.c.h.b16 %v3584
    %v6270 = vunpack.c.l.b16 %v3585
    %v6271 = vunpack.c.h.b16 %v3585
    %v6272 = vunpack.c.l.b16 %v3586
    %v6273 = vunpack.c.h.b16 %v3586
    %v6274 = vunpack.c.l.b16 %v3587
    %v6275 = vunpack.c.h.b16 %v3587
    %v6276 = vunpack.c.l.b16 %v3588
    %v6277 = vunpack.c.h.b16 %v3588
    %v6278 = vunpack.c.l.b16 %v3589
    %v6279 = vunpack.c.h.b16 %v3589
    %v6280 = vunpack.c.l.b16 %v3590
    %v6281 = vunpack.c.h.b16 %v3590
    %v6282 = vunpack.c.l.b16 %v3591
    %v6283 = vunpack.c.h.b16 %v3591
    %v6284 = vunpack.c.l.b16 %v3592
    %v6285 = vunpack.c.h.b16 %v3592
    %v6286 = vunpack.c.l.b16 %v3593
    %v6287 = vunpack.c.h.b16 %v3593
    %v6288 = vunpack.c.l.b16 %v3594
    %v6289 = vunpack.c.h.b16 %v3594
    %v6290 = vunpack.c.l.b16 %v3595
    %v6291 = vunpack.c.h.b16 %v3595
    %v6292 = vunpack.c.l.b16 %v3596
    %v6293 = vunpack.c.h.b16 %v3596
    %v6294 = vunpack.c.l.b16 %v3597
    %v6295 = vunpack.c.h.b16 %v3597
    %v6296 = vunpack.c.l.b16 %v3598
    %v6297 = vunpack.c.h.b16 %v3598
    %v6298 = vunpack.c.l.b16 %v3599
    %v6299 = vunpack.c.h.b16 %v3599
    %v6300 = vunpack.c.l.b16 %v3600
    %v6301 = vunpack.c.h.b16 %v3600
    %v6302 = vunpack.c.l.b16 %v3601
    %v6303 = vunpack.c.h.b16 %v3601
    %v6304 = vunpack.c.l.b16 %v3602
    %v6305 = vunpack.c.h.b16 %v3602
    %v6306 = vunpack.c.l.b16 %v3603
    %v6307 = vunpack.c.h.b16 %v3603
    %v6308 = vunpack.c.l.b16 %v3604
    %v6309 = vunpack.c.h.b16 %v3604
    %v6310 = vunpack.c.l.b16 %v3605
    %v6311 = vunpack.c.h.b16 %v3605
    %v6312 = vunpack.c.l.b16 %v3606
    %v6313 = vunpack.c.h.b16 %v3606
    %v6314 = vunpack.c.l.b16 %v3607
    %v6315 = vunpack.c.h.b16 %v3607
    %v6316 = vunpack.c.l.b16 %v3608
    %v6317 = vunpack.c.h.b16 %v3608
    %v6318 = vunpack.c.l.b16 %v3609
    %v6319 = vunpack.c.h.b16 %v3609
    %v6320 = vunpack.c.l.b16 %v3610
    %v6321 = vunpack.c.h.b16 %v3610
    %v6322 = vunpack.c.l.b16 %v3611
    %v6323 = vunpack.c.h.b16 %v3611
    %v6324 = vunpack.c.l.b16 %v3612
    %v6325 = vunpack.c.h.b16 %v3612
    %v6326 = vunpack.c.l.b16 %v3613
    %v6327 = vunpack.c.h.b16 %v3613
    %v6328 = vunpack.c.l.b16 %v3614
    %v6329 = vunpack.c.h.b16 %v3614
    %v6330 = vunpack.c.l.b16 %v3615
    %v6331 = vunpack.c.h.b16 %v3615
    %v6332 = vunpack.c.l.b16 %v3616
    %v6333 = vunpack.c.h.b16 %v3616
    %v6334 = vunpack.c.l.b16 %v3617
    %v6335 = vunpack.c.h.b16 %v3617
    %v6336 = vunpack.c.l.b16 %v3618
    %v6337 = vunpack.c.h.b16 %v3618
    %v6338 = vunpack.c.l.b16 %v3619
    %v6339 = vunpack.c.h.b16 %v3619
    %v6340 = vunpack.c.l.b16 %v3620
    %v6341 = vunpack.c.h.b16 %v3620
    %v6342 = vunpack.c.l.b16 %v3621
    %v6343 = vunpack.c.h.b16 %v3621
    %v6344 = vunpack.c.l.b16 %v3622
    %v6345 = vunpack.c.h.b16 %v3622
    %v6346 = vunpack.c.l.b16 %v3623
    %v6347 = vunpack.c.h.b16 %v3623
    %v6348 = vunpack.c.l.b16 %v3624
    %v6349 = vunpack.c.h.b16 %v3624
    %v6350 = vunpack.c.l.b16 %v3625
    %v6351 = vunpack.c.h.b16 %v3625
    %v6352 = vunpack.c.l.b16 %v3626
    %v6353 = vunpack.c.h.b16 %v3626
    %v6354 = vunpack.c.l.b16 %v3627
    %v6355 = vunpack.c.h.b16 %v3627
    %v6356 = vunpack.c.l.b16 %v3628
    %v6357 = vunpack.c.h.b16 %v3628
    %v6358 = vunpack.c.l.b16 %v3629
    %v6359 = vunpack.c.h.b16 %v3629
    %v6360 = vunpack.c.l.b16 %v3630
    %v6361 = vunpack.c.h.b16 %v3630
    %v6362 = vunpack.c.l.b16 %v3631
    %v6363 = vunpack.c.h.b16 %v3631
    %v6364 = vunpack.c.l.b16 %v3632
    %v6365 = vunpack.c.h.b16 %v3632
    %v6366 = vunpack.c.l.b16 %v3633
    %v6367 = vunpack.c.h.b16 %v3633
    %v6368 = vunpack.c.l.b16 %v3634
    %v6369 = vunpack.c.h.b16 %v3634
    %v6370 = vunpack.c.l.b16 %v3635
    %v6371 = vunpack.c.h.b16 %v3635
    %v6372 = vunpack.c.l.b16 %v3636
    %v6373 = vunpack.c.h.b16 %v3636
    %v6374 = vunpack.c.l.b16 %v3637
    %v6375 = vunpack.c.h.b16 %v3637
    %v6376 = vunpack.c.l.b16 %v3638
    %v6377 = vunpack.c.h.b16 %v3638
    %v6378 = vunpack.c.l.b16 %v3639
    %v6379 = vunpack.c.h.b16 %v3639
    %v6380 = vunpack.c.l.b16 %v3640
    %v6381 = vunpack.c.h.b16 %v3640
    %v6382 = vunpack.c.l.b16 %v3641
    %v6383 = vunpack.c.h.b16 %v3641
    %v6384 = vunpack.c.l.b16 %v3642
    %v6385 = vunpack.c.h.b16 %v3642
    %v6386 = vunpack.c.l.b16 %v3643
    %v6387 = vunpack.c.h.b16 %v3643
    %v6388 = vunpack.c.l.b16 %v3644
    %v6389 = vunpack.c.h.b16 %v3644
    %v6390 = vunpack.c.l.b16 %v3645
    %v6391 = vunpack.c.h.b16 %v3645
    %v6392 = vunpack.c.l.b16 %v3646
    %v6393 = vunpack.c.h.b16 %v3646
    %v6394 = vunpack.c.l.b16 %v3647
    %v6395 = vunpack.c.h.b16 %v3647
    %v6396 = vunpack.c.l.b16 %v3648
    %v6397 = vunpack.c.h.b16 %v3648
    %v6398 = vunpack.c.l.b16 %v3649
    %v6399 = vunpack.c.h.b16 %v3649
    %v6400 = vunpack.c.l.b16 %v3650
    %v6401 = vunpack.c.h.b16 %v3650
    %v6402 = vunpack.c.l.b16 %v3651
    %v6403 = vunpack.c.h.b16 %v3651
    %v6404 = vunpack.c.l.b16 %v3652
    %v6405 = vunpack.c.h.b16 %v3652
    %v6406 = vunpack.c.l.b16 %v3653
    %v6407 = vunpack.c.h.b16 %v3653
    %v6408 = vunpack.c.l.b16 %v3654
    %v6409 = vunpack.c.h.b16 %v3654
    %v6410 = vunpack.c.l.b16 %v3655
    %v6411 = vunpack.c.h.b16 %v3655
    %v6412 = vunpack.c.l.b16 %v3656
    %v6413 = vunpack.c.h.b16 %v3656
    %v6414 = vunpack.c.l.b16 %v3657
    %v6415 = vunpack.c.h.b16 %v3657
    %v6416 = vunpack.c.l.b16 %v3658
    %v6417 = vunpack.c.h.b16 %v3658
    %v6418 = vunpack.c.l.b16 %v3659
    %v6419 = vunpack.c.h.b16 %v3659
    %v6420 = vunpack.c.l.b16 %v3660
    %v6421 = vunpack.c.h.b16 %v3660
    %v6422 = vunpack.c.l.b16 %v3661
    %v6423 = vunpack.c.h.b16 %v3661
    %v6424 = vunpack.c.l.b16 %v3662
    %v6425 = vunpack.c.h.b16 %v3662
    %v6426 = vunpack.c.l.b16 %v3663
    %v6427 = vunpack.c.h.b16 %v3663
    %v6428 = vunpack.c.l.b16 %v3664
    %v6429 = vunpack.c.h.b16 %v3664
    %v6430 = vunpack.c.l.b16 %v3665
    %v6431 = vunpack.c.h.b16 %v3665
    %v6432 = vunpack.c.l.b16 %v3666
    %v6433 = vunpack.c.h.b16 %v3666
    %v6434 = vunpack.c.l.b16 %v3667
    %v6435 = vunpack.c.h.b16 %v3667
    %v6436 = vunpack.c.l.b16 %v3668
    %v6437 = vunpack.c.h.b16 %v3668
    %v6438 = vunpack.c.l.b16 %v3669
    %v6439 = vunpack.c.h.b16 %v3669
    %v6440 = vunpack.c.l.b16 %v3670
    %v6441 = vunpack.c.h.b16 %v3670
    %v6442 = vunpack.c.l.b16 %v3671
    %v6443 = vunpack.c.h.b16 %v3671
    %v6444 = vunpack.c.l.b16 %v3672
    %v6445 = vunpack.c.h.b16 %v3672
    %v6446 = vunpack.c.l.b16 %v3673
    %v6447 = vunpack.c.h.b16 %v3673
    %v6448 = vunpack.c.l.b16 %v3674
    %v6449 = vunpack.c.h.b16 %v3674
    %v6450 = vunpack.c.l.b16 %v3675
    %v6451 = vunpack.c.h.b16 %v3675
    %v6452 = vunpack.c.l.b16 %v3676
    %v6453 = vunpack.c.h.b16 %v3676
    %v6454 = vunpack.c.l.b16 %v3677
    %v6455 = vunpack.c.h.b16 %v3677
    %v6456 = vunpack.c.l.b16 %v3678
    %v6457 = vunpack.c.h.b16 %v3678
    %v6458 = vunpack.c.l.b16 %v3679
    %v6459 = vunpack.c.h.b16 %v3679
    %v6460 = vunpack.c.l.b16 %v3680
    %v6461 = vunpack.c.h.b16 %v3680
    %v6462 = vunpack.c.l.b16 %v3681
    %v6463 = vunpack.c.h.b16 %v3681
    %v6464 = vunpack.c.l.b16 %v3682
    %v6465 = vunpack.c.h.b16 %v3682
    %v6466 = vunpack.c.l.b16 %v3683
    %v6467 = vunpack.c.h.b16 %v3683
    %v6468 = vunpack.c.l.b16 %v3684
    %v6469 = vunpack.c.h.b16 %v3684
    %v6470 = vunpack.c.l.b16 %v3685
    %v6471 = vunpack.c.h.b16 %v3685
    %v6472 = vunpack.c.l.b16 %v3686
    %v6473 = vunpack.c.h.b16 %v3686
    %v6474 = vunpack.c.l.b16 %v3687
    %v6475 = vunpack.c.h.b16 %v3687
    %v6476 = vunpack.c.l.b16 %v3688
    %v6477 = vunpack.c.h.b16 %v3688
    %v6478 = vunpack.c.l.b16 %v3689
    %v6479 = vunpack.c.h.b16 %v3689
    %v6480 = vunpack.c.l.b16 %v3690
    %v6481 = vunpack.c.h.b16 %v3690
    %v6482 = vunpack.c.l.b16 %v3691
    %v6483 = vunpack.c.h.b16 %v3691
    %v6484 = vunpack.c.l.b16 %v3692
    %v6485 = vunpack.c.h.b16 %v3692
    %v6486 = vunpack.c.l.b16 %v3693
    %v6487 = vunpack.c.h.b16 %v3693
    %v6488 = vunpack.c.l.b16 %v3694
    %v6489 = vunpack.c.h.b16 %v3694
    %v6490 = vunpack.c.l.b16 %v3695
    %v6491 = vunpack.c.h.b16 %v3695
    %v6492 = vunpack.c.l.b16 %v3696
    %v6493 = vunpack.c.h.b16 %v3696
    %v6494 = vunpack.c.l.b16 %v3697
    %v6495 = vunpack.c.h.b16 %v3697
    %v6496 = vunpack.c.l.b16 %v3698
    %v6497 = vunpack.c.h.b16 %v3698
    %v6498 = vunpack.c.l.b16 %v3699
    %v6499 = vunpack.c.h.b16 %v3699
    %v6500 = vunpack.c.l.b16 %v3700
    %v6501 = vunpack.c.h.b16 %v3700
    %v6502 = vunpack.c.l.b16 %v3701
    %v6503 = vunpack.c.h.b16 %v3701
    %v6504 = vunpack.c.l.b16 %v3702
    %v6505 = vunpack.c.h.b16 %v3702
    %v6506 = vunpack.c.l.b16 %v3703
    %v6507 = vunpack.c.h.b16 %v3703
    %v6508 = vunpack.c.l.b16 %v3704
    %v6509 = vunpack.c.h.b16 %v3704
    %v6510 = vunpack.c.l.b16 %v3705
    %v6511 = vunpack.c.h.b16 %v3705
    %v6512 = vunpack.c.l.b16 %v3706
    %v6513 = vunpack.c.h.b16 %v3706
    %v6514 = vunpack.c.l.b16 %v3707
    %v6515 = vunpack.c.h.b16 %v3707
    %v6516 = vunpack.c.l.b16 %v3708
    %v6517 = vunpack.c.h.b16 %v3708
    %v6518 = vunpack.c.l.b16 %v3709
    %v6519 = vunpack.c.h.b16 %v3709
    %v6520 = vunpack.c.l.b16 %v3710
    %v6521 = vunpack.c.h.b16 %v3710
    %v6522 = vunpack.c.l.b16 %v3711
    %v6523 = vunpack.c.h.b16 %v3711
    %v6524 = vunpack.c.l.b16 %v3712
    %v6525 = vunpack.c.h.b16 %v3712
    %v6526 = vunpack.c.l.b16 %v3713
    %v6527 = vunpack.c.h.b16 %v3713
    %v6528 = vunpack.c.l.b16 %v3714
    %v6529 = vunpack.c.h.b16 %v3714
    %v6530 = vunpack.c.l.b16 %v3715
    %v6531 = vunpack.c.h.b16 %v3715
    %v6532 = vunpack.c.l.b16 %v3716
    %v6533 = vunpack.c.h.b16 %v3716
    %v6534 = vunpack.c.l.b16 %v3717
    %v6535 = vunpack.c.h.b16 %v3717
    %v6536 = vunpack.c.l.b16 %v3718
    %v6537 = vunpack.c.h.b16 %v3718
    %v6538 = vunpack.c.l.b16 %v3719
    %v6539 = vunpack.c.h.b16 %v3719
    %v6540 = vunpack.c.l.b16 %v3720
    %v6541 = vunpack.c.h.b16 %v3720
    %v6542 = vunpack.c.l.b16 %v3721
    %v6543 = vunpack.c.h.b16 %v3721
    %v6544 = vunpack.c.l.b16 %v3722
    %v6545 = vunpack.c.h.b16 %v3722
    %v6546 = vunpack.c.l.b16 %v3723
    %v6547 = vunpack.c.h.b16 %v3723
    %v6548 = vunpack.c.l.b16 %v3724
    %v6549 = vunpack.c.h.b16 %v3724
    %v6550 = vunpack.c.l.b16 %v3725
    %v6551 = vunpack.c.h.b16 %v3725
    %v6552 = vunpack.c.l.b16 %v3726
    %v6553 = vunpack.c.h.b16 %v3726
    %v6554 = vunpack.c.l.b16 %v3727
    %v6555 = vunpack.c.h.b16 %v3727
    %v6556 = vunpack.c.l.b16 %v3728
    %v6557 = vunpack.c.h.b16 %v3728
    %v6558 = vunpack.c.l.b16 %v3729
    %v6559 = vunpack.c.h.b16 %v3729
    %v6560 = vunpack.c.l.b16 %v3730
    %v6561 = vunpack.c.h.b16 %v3730
    %v6562 = vunpack.c.l.b16 %v3731
    %v6563 = vunpack.c.h.b16 %v3731
    %v6564 = vunpack.c.l.b16 %v3732
    %v6565 = vunpack.c.h.b16 %v3732
    %v6566 = vunpack.c.l.b16 %v3733
    %v6567 = vunpack.c.h.b16 %v3733
    %v6568 = vunpack.c.l.b16 %v3734
    %v6569 = vunpack.c.h.b16 %v3734
    %v6570 = vunpack.c.l.b16 %v3735
    %v6571 = vunpack.c.h.b16 %v3735
    %v6572 = vunpack.c.l.b16 %v3736
    %v6573 = vunpack.c.h.b16 %v3736
    %v6574 = vunpack.c.l.b16 %v3737
    %v6575 = vunpack.c.h.b16 %v3737
    %v6576 = vunpack.c.l.b16 %v3738
    %v6577 = vunpack.c.h.b16 %v3738
    %v6578 = vunpack.c.l.b16 %v3739
    %v6579 = vunpack.c.h.b16 %v3739
    %v6580 = vunpack.c.l.b16 %v3740
    %v6581 = vunpack.c.h.b16 %v3740
    %v6582 = vunpack.c.l.b16 %v3741
    %v6583 = vunpack.c.h.b16 %v3741
    %v6584 = vunpack.c.l.b16 %v3742
    %v6585 = vunpack.c.h.b16 %v3742
    %v6586 = vunpack.c.l.b16 %v3743
    %v6587 = vunpack.c.h.b16 %v3743
    %v6588 = vunpack.c.l.b16 %v3744
    %v6589 = vunpack.c.h.b16 %v3744
    %v6590 = vunpack.c.l.b16 %v3745
    %v6591 = vunpack.c.h.b16 %v3745
    %v6592 = vunpack.c.l.b16 %v3746
    %v6593 = vunpack.c.h.b16 %v3746
    %v6594 = vunpack.c.l.b16 %v3747
    %v6595 = vunpack.c.h.b16 %v3747
    %v6596 = vunpack.c.l.b16 %v3748
    %v6597 = vunpack.c.h.b16 %v3748
    %v6598 = vunpack.c.l.b16 %v3749
    %v6599 = vunpack.c.h.b16 %v3749
    %v6600 = vunpack.c.l.b16 %v3750
    %v6601 = vunpack.c.h.b16 %v3750
    %v6602 = vunpack.c.l.b16 %v3751
    %v6603 = vunpack.c.h.b16 %v3751
    %v6604 = vunpack.c.l.b16 %v3752
    %v6605 = vunpack.c.h.b16 %v3752
    %v6606 = vunpack.c.l.b16 %v3753
    %v6607 = vunpack.c.h.b16 %v3753
    %v6608 = vunpack.c.l.b16 %v3754
    %v6609 = vunpack.c.h.b16 %v3754
    %v6610 = vunpack.c.l.b16 %v3755
    %v6611 = vunpack.c.h.b16 %v3755
    %v6612 = vunpack.c.l.b16 %v3756
    %v6613 = vunpack.c.h.b16 %v3756
    %v6614 = vunpack.c.l.b16 %v3757
    %v6615 = vunpack.c.h.b16 %v3757
    %v6616 = vunpack.c.l.b16 %v3758
    %v6617 = vunpack.c.h.b16 %v3758
    %v6618 = vunpack.c.l.b16 %v3759
    %v6619 = vunpack.c.h.b16 %v3759
    %v6620 = vunpack.c.l.b16 %v3760
    %v6621 = vunpack.c.h.b16 %v3760
    %v6622 = vunpack.c.l.b16 %v3761
    %v6623 = vunpack.c.h.b16 %v3761
    %v6624 = vunpack.c.l.b16 %v3762
    %v6625 = vunpack.c.h.b16 %v3762
    %v6626 = vunpack.c.l.b16 %v3763
    %v6627 = vunpack.c.h.b16 %v3763
    %v6628 = vunpack.c.l.b16 %v3764
    %v6629 = vunpack.c.h.b16 %v3764
    %v6630 = vunpack.c.l.b16 %v3765
    %v6631 = vunpack.c.h.b16 %v3765
    %v6632 = vunpack.c.l.b16 %v3766
    %v6633 = vunpack.c.h.b16 %v3766
    %v6634 = vunpack.c.l.b16 %v3767
    %v6635 = vunpack.c.h.b16 %v3767
    %v6636 = vunpack.c.l.b16 %v3768
    %v6637 = vunpack.c.h.b16 %v3768
    %v6638 = vunpack.c.l.b16 %v3769
    %v6639 = vunpack.c.h.b16 %v3769
    %v6640 = vunpack.c.l.b16 %v3770
    %v6641 = vunpack.c.h.b16 %v3770
    %v6642 = vunpack.c.l.b16 %v3771
    %v6643 = vunpack.c.h.b16 %v3771
    %v6644 = vunpack.c.l.b16 %v3772
    %v6645 = vunpack.c.h.b16 %v3772
    %v6646 = vunpack.c.l.b16 %v3773
    %v6647 = vunpack.c.h.b16 %v3773
    %v6648 = vunpack.c.l.b16 %v3774
    %v6649 = vunpack.c.h.b16 %v3774
    %v6650 = vunpack.c.l.b16 %v3775
    %v6651 = vunpack.c.h.b16 %v3775
    %v6652 = vunpack.c.l.b16 %v3776
    %v6653 = vunpack.c.h.b16 %v3776
    %v6654 = vunpack.c.l.b16 %v3777
    %v6655 = vunpack.c.h.b16 %v3777
    %v6656 = vunpack.c.l.b16 %v3778
    %v6657 = vunpack.c.h.b16 %v3778
    %v6658 = vunpack.c.l.b16 %v3779
    %v6659 = vunpack.c.h.b16 %v3779
    %v6660 = vunpack.c.l.b16 %v3780
    %v6661 = vunpack.c.h.b16 %v3780
    %v6662 = vunpack.c.l.b16 %v3781
    %v6663 = vunpack.c.h.b16 %v3781
    %v6664 = vunpack.c.l.b16 %v3782
    %v6665 = vunpack.c.h.b16 %v3782
    %v6666 = vunpack.c.l.b16 %v3783
    %v6667 = vunpack.c.h.b16 %v3783
    %v6668 = vunpack.c.l.b16 %v3784
    %v6669 = vunpack.c.h.b16 %v3784
    %v6670 = vunpack.c.l.b16 %v3785
    %v6671 = vunpack.c.h.b16 %v3785
    %v6672 = vunpack.c.l.b16 %v3786
    %v6673 = vunpack.c.h.b16 %v3786
    %v6674 = vunpack.c.l.b16 %v3787
    %v6675 = vunpack.c.h.b16 %v3787
    %v6676 = vunpack.c.l.b16 %v3788
    %v6677 = vunpack.c.h.b16 %v3788
    %v6678 = vunpack.c.l.b16 %v3789
    %v6679 = vunpack.c.h.b16 %v3789
    %v6680 = vunpack.c.l.b16 %v3790
    %v6681 = vunpack.c.h.b16 %v3790
    %v6682 = vunpack.c.l.b16 %v3791
    %v6683 = vunpack.c.h.b16 %v3791
    %v6684 = vunpack.c.l.b16 %v3792
    %v6685 = vunpack.c.h.b16 %v3792
    %v6686 = vunpack.c.l.b16 %v3793
    %v6687 = vunpack.c.h.b16 %v3793
    %v6688 = vunpack.c.l.b16 %v3794
    %v6689 = vunpack.c.h.b16 %v3794
    %v6690 = vunpack.c.l.b16 %v3795
    %v6691 = vunpack.c.h.b16 %v3795
    %v6692 = vunpack.c.l.b16 %v3796
    %v6693 = vunpack.c.h.b16 %v3796
    %v6694 = vunpack.c.l.b16 %v3797
    %v6695 = vunpack.c.h.b16 %v3797
    %v6696 = vunpack.c.l.b16 %v3798
    %v6697 = vunpack.c.h.b16 %v3798
    %v6698 = vunpack.c.l.b16 %v3799
    %v6699 = vunpack.c.h.b16 %v3799
    %v6700 = vunpack.c.l.b16 %v3800
    %v6701 = vunpack.c.h.b16 %v3800
    %v6702 = vunpack.c.l.b16 %v3801
    %v6703 = vunpack.c.h.b16 %v3801
    %v6704 = vunpack.c.l.b16 %v3802
    %v6705 = vunpack.c.h.b16 %v3802
    %v6706 = vunpack.c.l.b16 %v3803
    %v6707 = vunpack.c.h.b16 %v3803
    %v6708 = vunpack.c.l.b16 %v3804
    %v6709 = vunpack.c.h.b16 %v3804
    %v6710 = vunpack.c.l.b16 %v3805
    %v6711 = vunpack.c.h.b16 %v3805
    %v6712 = vunpack.c.l.b16 %v3806
    %v6713 = vunpack.c.h.b16 %v3806
    %v6714 = vunpack.c.l.b16 %v3807
    %v6715 = vunpack.c.h.b16 %v3807
    %v6716 = vunpack.c.l.b16 %v3808
    %v6717 = vunpack.c.h.b16 %v3808
    %v6718 = vunpack.c.l.b16 %v3809
    %v6719 = vunpack.c.h.b16 %v3809
    %v6720 = vunpack.c.l.b16 %v3810
    %v6721 = vunpack.c.h.b16 %v3810
    %v6722 = vunpack.c.l.b16 %v3811
    %v6723 = vunpack.c.h.b16 %v3811
    %v6724 = vunpack.c.l.b16 %v3812
    %v6725 = vunpack.c.h.b16 %v3812
    %v6726 = vunpack.c.l.b16 %v3813
    %v6727 = vunpack.c.h.b16 %v3813
    %v6728 = vunpack.c.l.b16 %v3814
    %v6729 = vunpack.c.h.b16 %v3814
    %v6730 = vunpack.c.l.b16 %v3815
    %v6731 = vunpack.c.h.b16 %v3815
    %v6732 = vunpack.c.l.b16 %v3816
    %v6733 = vunpack.c.h.b16 %v3816
    %v6734 = vunpack.c.l.b16 %v3817
    %v6735 = vunpack.c.h.b16 %v3817
    %v6736 = vunpack.c.l.b16 %v3818
    %v6737 = vunpack.c.h.b16 %v3818
    %v6738 = vunpack.c.l.b16 %v3819
    %v6739 = vunpack.c.h.b16 %v3819
    %v6740 = vunpack.c.l.b16 %v3820
    %v6741 = vunpack.c.h.b16 %v3820
    %v6742 = vunpack.c.l.b16 %v3821
    %v6743 = vunpack.c.h.b16 %v3821
    %v6744 = vunpack.c.l.b16 %v3822
    %v6745 = vunpack.c.h.b16 %v3822
    %v6746 = vunpack.c.l.b16 %v3823
    %v6747 = vunpack.c.h.b16 %v3823
    %v6748 = vunpack.c.l.b16 %v3824
    %v6749 = vunpack.c.h.b16 %v3824
    %v6750 = vunpack.c.l.b16 %v3825
    %v6751 = vunpack.c.h.b16 %v3825
    %v6752 = vunpack.c.l.b16 %v3826
    %v6753 = vunpack.c.h.b16 %v3826
    %v6754 = vunpack.c.l.b16 %v3827
    %v6755 = vunpack.c.h.b16 %v3827
    %v6756 = vunpack.c.l.b16 %v3828
    %v6757 = vunpack.c.h.b16 %v3828
    %v6758 = vunpack.c.l.b16 %v3829
    %v6759 = vunpack.c.h.b16 %v3829
    %v6760 = vunpack.c.l.b16 %v3830
    %v6761 = vunpack.c.h.b16 %v3830
    %v6762 = vunpack.c.l.b16 %v3831
    %v6763 = vunpack.c.h.b16 %v3831
    %v6764 = vunpack.c.l.b16 %v3832
    %v6765 = vunpack.c.h.b16 %v3832
    %v6766 = vunpack.c.l.b16 %v3833
    %v6767 = vunpack.c.h.b16 %v3833
    %v6768 = vunpack.c.l.b16 %v3834
    %v6769 = vunpack.c.h.b16 %v3834
    %v6770 = vunpack.c.l.b16 %v3835
    %v6771 = vunpack.c.h.b16 %v3835
    %v6772 = vunpack.c.l.b16 %v3836
    %v6773 = vunpack.c.h.b16 %v3836
    %v6774 = vunpack.c.l.b16 %v3837
    %v6775 = vunpack.c.h.b16 %v3837
    %v6776 = vunpack.c.l.b16 %v3838
    %v6777 = vunpack.c.h.b16 %v3838
    %v6778 = vunpack.c.l.b16 %v3839
    %v6779 = vunpack.c.h.b16 %v3839
    %v6780 = vunpack.c.l.b16 %v3840
    %v6781 = vunpack.c.h.b16 %v3840
    %v6782 = vunpack.c.l.b16 %v3841
    %v6783 = vunpack.c.h.b16 %v3841
    %v6784 = vunpack.c.l.b16 %v3842
    %v6785 = vunpack.c.h.b16 %v3842
    %v6786 = vunpack.c.l.b16 %v3843
    %v6787 = vunpack.c.h.b16 %v3843
    %v6788 = vunpack.c.l.b16 %v3844
    %v6789 = vunpack.c.h.b16 %v3844
    %v6790 = vunpack.c.l.b16 %v3845
    %v6791 = vunpack.c.h.b16 %v3845
    %v6792 = vunpack.c.l.b16 %v3846
    %v6793 = vunpack.c.h.b16 %v3846
    %v6794 = vunpack.c.l.b16 %v3847
    %v6795 = vunpack.c.h.b16 %v3847
    %v6796 = vunpack.c.l.b16 %v3848
    %v6797 = vunpack.c.h.b16 %v3848
    %v6798 = vunpack.c.l.b16 %v3849
    %v6799 = vunpack.c.h.b16 %v3849
    %v6800 = vunpack.c.l.b16 %v3850
    %v6801 = vunpack.c.h.b16 %v3850
    %v6802 = vunpack.c.l.b16 %v3851
    %v6803 = vunpack.c.h.b16 %v3851
    %v6804 = vunpack.c.l.b16 %v3852
    %v6805 = vunpack.c.h.b16 %v3852
    %v6806 = vunpack.c.l.b16 %v3853
    %v6807 = vunpack.c.h.b16 %v3853
    %v6808 = vunpack.c.l.b16 %v3854
    %v6809 = vunpack.c.h.b16 %v3854
    %v6810 = vunpack.c.l.b16 %v3855
    %v6811 = vunpack.c.h.b16 %v3855
    %v6812 = vunpack.c.l.b16 %v3856
    %v6813 = vunpack.c.h.b16 %v3856
    %v6814 = vunpack.c.l.b16 %v3857
    %v6815 = vunpack.c.h.b16 %v3857
    %v6816 = vunpack.c.l.b16 %v3858
    %v6817 = vunpack.c.h.b16 %v3858
    %v6818 = vunpack.c.l.b16 %v3859
    %v6819 = vunpack.c.h.b16 %v3859
    %v6820 = vunpack.c.l.b16 %v3860
    %v6821 = vunpack.c.h.b16 %v3860
    %v6822 = vunpack.c.l.b16 %v3861
    %v6823 = vunpack.c.h.b16 %v3861
    %v6824 = vunpack.c.l.b16 %v3862
    %v6825 = vunpack.c.h.b16 %v3862
    %v6826 = vunpack.c.l.b16 %v3863
    %v6827 = vunpack.c.h.b16 %v3863
    %v6828 = vunpack.c.l.b16 %v3864
    %v6829 = vunpack.c.h.b16 %v3864
    %v6830 = vunpack.c.l.b16 %v3865
    %v6831 = vunpack.c.h.b16 %v3865
    %v6832 = vunpack.c.l.b16 %v3866
    %v6833 = vunpack.c.h.b16 %v3866
    %v6834 = vunpack.c.l.b16 %v3867
    %v6835 = vunpack.c.h.b16 %v3867
    %v6836 = vunpack.c.l.b16 %v3868
    %v6837 = vunpack.c.h.b16 %v3868
    %v6838 = vunpack.c.l.b16 %v3869
    %v6839 = vunpack.c.h.b16 %v3869
    %v6840 = vunpack.c.l.b16 %v3870
    %v6841 = vunpack.c.h.b16 %v3870
    %v6842 = vunpack.c.l.b16 %v3871
    %v6843 = vunpack.c.h.b16 %v3871
    %v6844 = vunpack.c.l.b16 %v3872
    %v6845 = vunpack.c.h.b16 %v3872
    %v6846 = vunpack.c.l.b16 %v3873
    %v6847 = vunpack.c.h.b16 %v3873
    %v6848 = vunpack.c.l.b16 %v3874
    %v6849 = vunpack.c.h.b16 %v3874
    %v6850 = vunpack.c.l.b16 %v3875
    %v6851 = vunpack.c.h.b16 %v3875
    %v6852 = vunpack.c.l.b16 %v3876
    %v6853 = vunpack.c.h.b16 %v3876
    %v6854 = vunpack.c.l.b16 %v3877
    %v6855 = vunpack.c.h.b16 %v3877
    %v6856 = vunpack.c.l.b16 %v3878
    %v6857 = vunpack.c.h.b16 %v3878
    %v6858 = vunpack.c.l.b16 %v3879
    %v6859 = vunpack.c.h.b16 %v3879
    %v6860 = vunpack.c.l.b16 %v3880
    %v6861 = vunpack.c.h.b16 %v3880
    %v6862 = vunpack.c.l.b16 %v3881
    %v6863 = vunpack.c.h.b16 %v3881
    %v6864 = vunpack.c.l.b16 %v3882
    %v6865 = vunpack.c.h.b16 %v3882
    %v6866 = vunpack.c.l.b16 %v3883
    %v6867 = vunpack.c.h.b16 %v3883
    %v6868 = vunpack.c.l.b16 %v3884
    %v6869 = vunpack.c.h.b16 %v3884
    %v6870 = vunpack.c.l.b16 %v3885
    %v6871 = vunpack.c.h.b16 %v3885
    %v6872 = vunpack.c.l.b16 %v3886
    %v6873 = vunpack.c.h.b16 %v3886
    %v6874 = vunpack.c.l.b16 %v3887
    %v6875 = vunpack.c.h.b16 %v3887
    %v6876 = vunpack.c.l.b16 %v3888
    %v6877 = vunpack.c.h.b16 %v3888
    %v6878 = vunpack.c.l.b16 %v3889
    %v6879 = vunpack.c.h.b16 %v3889
    %v6880 = vunpack.c.l.b16 %v3890
    %v6881 = vunpack.c.h.b16 %v3890
    %v6882 = vunpack.c.l.b16 %v3891
    %v6883 = vunpack.c.h.b16 %v3891
    %v6884 = vunpack.c.l.b16 %v3892
    %v6885 = vunpack.c.h.b16 %v3892
    %v6886 = vunpack.c.l.b16 %v3893
    %v6887 = vunpack.c.h.b16 %v3893
    %v6888 = vunpack.c.l.b16 %v3894
    %v6889 = vunpack.c.h.b16 %v3894
    %v6890 = vunpack.c.l.b16 %v3895
    %v6891 = vunpack.c.h.b16 %v3895
    %v6892 = vunpack.c.l.b16 %v3896
    %v6893 = vunpack.c.h.b16 %v3896
    %v6894 = vunpack.c.l.b16 %v3897
    %v6895 = vunpack.c.h.b16 %v3897
    %v6896 = vunpack.c.l.b16 %v3898
    %v6897 = vunpack.c.h.b16 %v3898
    %v6898 = vunpack.c.l.b16 %v3899
    %v6899 = vunpack.c.h.b16 %v3899
    %v6900 = vunpack.c.l.b16 %v3900
    %v6901 = vunpack.c.h.b16 %v3900
    %v6902 = vunpack.c.l.b16 %v3901
    %v6903 = vunpack.c.h.b16 %v3901
    %v6904 = vunpack.c.l.b16 %v3902
    %v6905 = vunpack.c.h.b16 %v3902
    %v6906 = vunpack.c.l.b16 %v3903
    %v6907 = vunpack.c.h.b16 %v3903
    %v6908 = vunpack.c.l.b16 %v3904
    %v6909 = vunpack.c.h.b16 %v3904
    %v6910 = vunpack.c.l.b16 %v3905
    %v6911 = vunpack.c.h.b16 %v3905
    %v6912 = vunpack.c.l.b16 %v3906
    %v6913 = vunpack.c.h.b16 %v3906
    %v6914 = vunpack.c.l.b16 %v3907
    %v6915 = vunpack.c.h.b16 %v3907
    %v6916 = vunpack.c.l.b16 %v3908
    %v6917 = vunpack.c.h.b16 %v3908
    %v6918 = vunpack.c.l.b16 %v3909
    %v6919 = vunpack.c.h.b16 %v3909
    %v6920 = vunpack.c.l.b16 %v3910
    %v6921 = vunpack.c.h.b16 %v3910
    %v6922 = vunpack.c.l.b16 %v3911
    %v6923 = vunpack.c.h.b16 %v3911
    %v6924 = vunpack.c.l.b16 %v3912
    %v6925 = vunpack.c.h.b16 %v3912
    %v6926 = vunpack.c.l.b16 %v3913
    %v6927 = vunpack.c.h.b16 %v3913
    %v6928 = vunpack.c.l.b16 %v3914
    %v6929 = vunpack.c.h.b16 %v3914
    %v6930 = vunpack.c.l.b16 %v3915
    %v6931 = vunpack.c.h.b16 %v3915
    %v6932 = vunpack.c.l.b16 %v3916
    %v6933 = vunpack.c.h.b16 %v3916
    %v6934 = vunpack.c.l.b16 %v3917
    %v6935 = vunpack.c.h.b16 %v3917
    %v6936 = vunpack.c.l.b16 %v3918
    %v6937 = vunpack.c.h.b16 %v3918
    %v6938 = vunpack.c.l.b16 %v3919
    %v6939 = vunpack.c.h.b16 %v3919
    %v6940 = vunpack.c.l.b16 %v3920
    %v6941 = vunpack.c.h.b16 %v3920
    %v6942 = vunpack.c.l.b16 %v3921
    %v6943 = vunpack.c.h.b16 %v3921
    %v6944 = vunpack.c.l.b16 %v3922
    %v6945 = vunpack.c.h.b16 %v3922
    %v6946 = vunpack.c.l.b16 %v3923
    %v6947 = vunpack.c.h.b16 %v3923
    %v6948 = vunpack.c.l.b16 %v3924
    %v6949 = vunpack.c.h.b16 %v3924
    %v6950 = vunpack.c.l.b16 %v3925
    %v6951 = vunpack.c.h.b16 %v3925
    %v6952 = vunpack.c.l.b16 %v3926
    %v6953 = vunpack.c.h.b16 %v3926
    %v6954 = vunpack.c.l.b16 %v3927
    %v6955 = vunpack.c.h.b16 %v3927
    %v6956 = vunpack.c.l.b16 %v3928
    %v6957 = vunpack.c.h.b16 %v3928
    %v6958 = vunpack.c.l.b16 %v3929
    %v6959 = vunpack.c.h.b16 %v3929
    %v6960 = vunpack.c.l.b16 %v3930
    %v6961 = vunpack.c.h.b16 %v3930
    %v6962 = vunpack.c.l.b16 %v3931
    %v6963 = vunpack.c.h.b16 %v3931
    %v6964 = vunpack.c.l.b16 %v3932
    %v6965 = vunpack.c.h.b16 %v3932
    %v6966 = vunpack.c.l.b16 %v3933
    %v6967 = vunpack.c.h.b16 %v3933
    %v6968 = vunpack.c.l.b16 %v3934
    %v6969 = vunpack.c.h.b16 %v3934
    %v6970 = vunpack.c.l.b16 %v3935
    %v6971 = vunpack.c.h.b16 %v3935
    %v6972 = vunpack.c.l.b16 %v3936
    %v6973 = vunpack.c.h.b16 %v3936
    %v6974 = vunpack.c.l.b16 %v3937
    %v6975 = vunpack.c.h.b16 %v3937
    %v6976 = vunpack.c.l.b16 %v3938
    %v6977 = vunpack.c.h.b16 %v3938
    %v6978 = vunpack.c.l.b16 %v3939
    %v6979 = vunpack.c.h.b16 %v3939
    %v6980 = vunpack.c.l.b16 %v3940
    %v6981 = vunpack.c.h.b16 %v3940
    %v6982 = vunpack.c.l.b16 %v3941
    %v6983 = vunpack.c.h.b16 %v3941
    %v6984 = vunpack.c.l.b16 %v3942
    %v6985 = vunpack.c.h.b16 %v3942
    %v6986 = vunpack.c.l.b16 %v3943
    %v6987 = vunpack.c.h.b16 %v3943
    %v6988 = vunpack.c.l.b16 %v3944
    %v6989 = vunpack.c.h.b16 %v3944
    %v6990 = vunpack.c.l.b16 %v3945
    %v6991 = vunpack.c.h.b16 %v3945
    %v6992 = vunpack.c.l.b16 %v3946
    %v6993 = vunpack.c.h.b16 %v3946
    %v6994 = vunpack.c.l.b16 %v3947
    %v6995 = vunpack.c.h.b16 %v3947
    %v6996 = vunpack.c.l.b16 %v3948
    %v6997 = vunpack.c.h.b16 %v3948
    %v6998 = vunpack.c.l.b16 %v3949
    %v6999 = vunpack.c.h.b16 %v3949
    %v7000 = vunpack.c.l.b16 %v3950
    %v7001 = vunpack.c.h.b16 %v3950
    %v7002 = vunpack.c.l.b16 %v3951
    %v7003 = vunpack.c.h.b16 %v3951
    %v7004 = vunpack.c.l.b16 %v3952
    %v7005 = vunpack.c.h.b16 %v3952
    %v7006 = vunpack.c.l.b16 %v3953
    %v7007 = vunpack.c.h.b16 %v3953
    %v7008 = vunpack.c.l.b16 %v3954
    %v7009 = vunpack.c.h.b16 %v3954
    %v7010 = vunpack.c.l.b16 %v3955
    %v7011 = vunpack.c.h.b16 %v3955
    %v7012 = vunpack.c.l.b16 %v3956
    %v7013 = vunpack.c.h.b16 %v3956
    %v7014 = vunpack.c.l.b16 %v3957
    %v7015 = vunpack.c.h.b16 %v3957
    %v7016 = vunpack.c.l.b16 %v3958
    %v7017 = vunpack.c.h.b16 %v3958
    %v7018 = vunpack.c.l.b16 %v3959
    %v7019 = vunpack.c.h.b16 %v3959
    %v7020 = vunpack.c.l.b16 %v3960
    %v7021 = vunpack.c.h.b16 %v3960
    %v7022 = vunpack.c.l.b16 %v3961
    %v7023 = vunpack.c.h.b16 %v3961
    %v7024 = vunpack.c.l.b16 %v3962
    %v7025 = vunpack.c.h.b16 %v3962
    %v7026 = vunpack.c.l.b16 %v3963
    %v7027 = vunpack.c.h.b16 %v3963
    %v7028 = vunpack.c.l.b16 %v3964
    %v7029 = vunpack.c.h.b16 %v3964
    %v7030 = vunpack.c.l.b16 %v3965
    %v7031 = vunpack.c.h.b16 %v3965
    %v7032 = vunpack.c.l.b16 %v3966
    %v7033 = vunpack.c.h.b16 %v3966
    %v7034 = vunpack.c.l.b16 %v3967
    %v7035 = vunpack.c.h.b16 %v3967
    %v7036 = vunpack.c.l.b16 %v3968
    %v7037 = vunpack.c.h.b16 %v3968
    %v7038 = vunpack.c.l.b16 %v3969
    %v7039 = vunpack.c.h.b16 %v3969
    %v7040 = vunpack.c.l.b16 %v3970
    %v7041 = vunpack.c.h.b16 %v3970
    %v7042 = vunpack.c.l.b16 %v3971
    %v7043 = vunpack.c.h.b16 %v3971
    %v7044 = vunpack.c.l.b16 %v3972
    %v7045 = vunpack.c.h.b16 %v3972
    %v7046 = vunpack.c.l.b16 %v3973
    %v7047 = vunpack.c.h.b16 %v3973
    %v7048 = vunpack.c.l.b16 %v3974
    %v7049 = vunpack.c.h.b16 %v3974
    %v7050 = vunpack.c.l.b16 %v3975
    %v7051 = vunpack.c.h.b16 %v3975
    %v7052 = vunpack.c.l.b16 %v3976
    %v7053 = vunpack.c.h.b16 %v3976
    %v7054 = vunpack.c.l.b16 %v3977
    %v7055 = vunpack.c.h.b16 %v3977
    %v7056 = vunpack.c.l.b16 %v3978
    %v7057 = vunpack.c.h.b16 %v3978
    %v7058 = vunpack.c.l.b16 %v3979
    %v7059 = vunpack.c.h.b16 %v3979
    %v7060 = vunpack.c.l.b16 %v3980
    %v7061 = vunpack.c.h.b16 %v3980
    %v7062 = vunpack.c.l.b16 %v3981
    %v7063 = vunpack.c.h.b16 %v3981
    %v7064 = vunpack.c.l.b16 %v3982
    %v7065 = vunpack.c.h.b16 %v3982
    %v7066 = vunpack.c.l.b16 %v3983
    %v7067 = vunpack.c.h.b16 %v3983
    %v7068 = vunpack.c.l.b16 %v3984
    %v7069 = vunpack.c.h.b16 %v3984
    %v7070 = vunpack.c.l.b16 %v3985
    %v7071 = vunpack.c.h.b16 %v3985
    %v7072 = vunpack.c.l.b16 %v3986
    %v7073 = vunpack.c.h.b16 %v3986
    %v7074 = vunpack.c.l.b16 %v3987
    %v7075 = vunpack.c.h.b16 %v3987
    %v7076 = vunpack.c.l.b16 %v3988
    %v7077 = vunpack.c.h.b16 %v3988
    %v7078 = vunpack.c.l.b16 %v3989
    %v7079 = vunpack.c.h.b16 %v3989
    %v7080 = vunpack.c.l.b16 %v3990
    %v7081 = vunpack.c.h.b16 %v3990
    %v7082 = vunpack.c.l.b16 %v3991
    %v7083 = vunpack.c.h.b16 %v3991
    %v7084 = vunpack.c.l.b16 %v3992
    %v7085 = vunpack.c.h.b16 %v3992
    %v7086 = vunpack.c.l.b16 %v3993
    %v7087 = vunpack.c.h.b16 %v3993
    %v7088 = vunpack.c.l.b16 %v3994
    %v7089 = vunpack.c.h.b16 %v3994
    %v7090 = vunpack.c.l.b16 %v3995
    %v7091 = vunpack.c.h.b16 %v3995
    %v7092 = vunpack.c.l.b16 %v3996
    %v7093 = vunpack.c.h.b16 %v3996
    %v7094 = vunpack.c.l.b16 %v3997
    %v7095 = vunpack.c.h.b16 %v3997
    %v7096 = vunpack.c.l.b16 %v3998
    %v7097 = vunpack.c.h.b16 %v3998
    %v7098 = vunpack.c.l.b16 %v3999
    %v7099 = vunpack.c.h.b16 %v3999
    %v7100 = vunpack.c.l.b16 %v4000
    %v7101 = vunpack.c.h.b16 %v4000
    %v7102 = vunpack.c.l.b16 %v4001
    %v7103 = vunpack.c.h.b16 %v4001
    %v7104 = vunpack.c.l.b16 %v4002
    %v7105 = vunpack.c.h.b16 %v4002
    %v7106 = vunpack.c.l.b16 %v4003
    %v7107 = vunpack.c.h.b16 %v4003
    %v7108 = vunpack.c.l.b16 %v4004
    %v7109 = vunpack.c.h.b16 %v4004
    %v7110 = vunpack.c.l.b16 %v4005
    %v7111 = vunpack.c.h.b16 %v4005
    %v7112 = vunpack.c.l.b16 %v4006
    %v7113 = vunpack.c.h.b16 %v4006
    %v7114 = vunpack.c.l.b16 %v4007
    %v7115 = vunpack.c.h.b16 %v4007
    %v7116 = vpack.c.b16 %v5084, %v5068
    %v7117 = vpack.c.b16 %v5085, %v5069
    %v7118 = vpack.c.b16 %v5086, %v5070
    %v7119 = vpack.c.b16 %v5087, %v5071
    %v7120 = vpack.c.b16 %v5088, %v5072
    %v7121 = vpack.c.b16 %v5089, %v5073
    %v7122 = vpack.c.b16 %v5090, %v5074
    %v7123 = vpack.c.b16 %v5091, %v5075
    %v7124 = vpack.c.b16 %v5092, %v5076
    %v7125 = vpack.c.b16 %v5093, %v5077
    %v7126 = vpack.c.b16 %v5094, %v5078
    %v7127 = vpack.c.b16 %v5095, %v5079
    %v7128 = vpack.c.b16 %v5096, %v5080
    %v7129 = vpack.c.b16 %v5097, %v5081
    %v7130 = vpack.c.b16 %v5098, %v5082
    %v7131 = vpack.c.b16 %v5099, %v5083
    %v7132 = vpack.c.b16 %v5116, %v5100
    %v7133 = vpack.c.b16 %v5117, %v5101
    %v7134 = vpack.c.b16 %v5118, %v5102
    %v7135 = vpack.c.b16 %v5119, %v5103
    %v7136 = vpack.c.b16 %v5120, %v5104
    %v7137 = vpack.c.b16 %v5121, %v5105
    %v7138 = vpack.c.b16 %v5122, %v5106
    %v7139 = vpack.c.b16 %v5123, %v5107
    %v7140 = vpack.c.b16 %v5124, %v5108
    %v7141 = vpack.c.b16 %v5125, %v5109
    %v7142 = vpack.c.b16 %v5126, %v5110
    %v7143 = vpack.c.b16 %v5127, %v5111
    %v7144 = vpack.c.b16 %v5128, %v5112
    %v7145 = vpack.c.b16 %v5129, %v5113
    %v7146 = vpack.c.b16 %v5130, %v5114
    %v7147 = vpack.c.b16 %v5131, %v5115
    %v7148 = vpack.c.b16 %v5148, %v5132
    %v7149 = vpack.c.b16 %v5149, %v5133
    %v7150 = vpack.c.b16 %v5150, %v5134
    %v7151 = vpack.c.b16 %v5151, %v5135
    %v7152 = vpack.c.b16 %v5152, %v5136
    %v7153 = vpack.c.b16 %v5153, %v5137
    %v7154 = vpack.c.b16 %v5154, %v5138
    %v7155 = vpack.c.b16 %v5155, %v5139
    %v7156 = vpack.c.b16 %v5156, %v5140
    %v7157 = vpack.c.b16 %v5157, %v5141
    %v7158 = vpack.c.b16 %v5158, %v5142
    %v7159 = vpack.c.b16 %v5159, %v5143
    %v7160 = vpack.c.b16 %v5160, %v5144
    %v7161 = vpack.c.b16 %v5161, %v5145
    %v7162 = vpack.c.b16 %v5162, %v5146
    %v7163 = vpack.c.b16 %v5163, %v5147
    %v7164 = vpack.c.b16 %v5180, %v5164
    %v7165 = vpack.c.b16 %v5181, %v5165
    %v7166 = vpack.c.b16 %v5182, %v5166
    %v7167 = vpack.c.b16 %v5183, %v5167
    %v7168 = vpack.c.b16 %v5184, %v5168
    %v7169 = vpack.c.b16 %v5185, %v5169
    %v7170 = vpack.c.b16 %v5186, %v5170
    %v7171 = vpack.c.b16 %v5187, %v5171
    %v7172 = vpack.c.b16 %v5188, %v5172
    %v7173 = vpack.c.b16 %v5189, %v5173
    %v7174 = vpack.c.b16 %v5190, %v5174
    %v7175 = vpack.c.b16 %v5191, %v5175
    %v7176 = vpack.c.b16 %v5192, %v5176
    %v7177 = vpack.c.b16 %v5193, %v5177
    %v7178 = vpack.c.b16 %v5194, %v5178
    %v7179 = vpack.c.b16 %v5195, %v5179
    %v7180 = vpack.c.b16 %v5212, %v5196
    %v7181 = vpack.c.b16 %v5213, %v5197
    %v7182 = vpack.c.b16 %v5214, %v5198
    %v7183 = vpack.c.b16 %v5215, %v5199
    %v7184 = vpack.c.b16 %v5216, %v5200
    %v7185 = vpack.c.b16 %v5217, %v5201
    %v7186 = vpack.c.b16 %v5218, %v5202
    %v7187 = vpack.c.b16 %v5219, %v5203
    %v7188 = vpack.c.b16 %v5220, %v5204
    %v7189 = vpack.c.b16 %v5221, %v5205
    %v7190 = vpack.c.b16 %v5222, %v5206
    %v7191 = vpack.c.b16 %v5223, %v5207
    %v7192 = vpack.c.b16 %v5224, %v5208
    %v7193 = vpack.c.b16 %v5225, %v5209
    %v7194 = vpack.c.b16 %v5226, %v5210
    %v7195 = vpack.c.b16 %v5227, %v5211
    %v7196 = vpack.c.b16 %v5244, %v5228
    %v7197 = vpack.c.b16 %v5245, %v5229
    %v7198 = vpack.c.b16 %v5246, %v5230
    %v7199 = vpack.c.b16 %v5247, %v5231
    %v7200 = vpack.c.b16 %v5248, %v5232
    %v7201 = vpack.c.b16 %v5249, %v5233
    %v7202 = vpack.c.b16 %v5250, %v5234
    %v7203 = vpack.c.b16 %v5251, %v5235
    %v7204 = vpack.c.b16 %v5252, %v5236
    %v7205 = vpack.c.b16 %v5253, %v5237
    %v7206 = vpack.c.b16 %v5254, %v5238
    %v7207 = vpack.c.b16 %v5255, %v5239
    %v7208 = vpack.c.b16 %v5256, %v5240
    %v7209 = vpack.c.b16 %v5257, %v5241
    %v7210 = vpack.c.b16 %v5258, %v5242
    %v7211 = vpack.c.b16 %v5259, %v5243
    %v7212 = vpack.c.b16 %v5276, %v5260
    %v7213 = vpack.c.b16 %v5277, %v5261
    %v7214 = vpack.c.b16 %v5278, %v5262
    %v7215 = vpack.c.b16 %v5279, %v5263
    %v7216 = vpack.c.b16 %v5280, %v5264
    %v7217 = vpack.c.b16 %v5281, %v5265
    %v7218 = vpack.c.b16 %v5282, %v5266
    %v7219 = vpack.c.b16 %v5283, %v5267
    %v7220 = vpack.c.b16 %v5284, %v5268
    %v7221 = vpack.c.b16 %v5285, %v5269
    %v7222 = vpack.c.b16 %v5286, %v5270
    %v7223 = vpack.c.b16 %v5287, %v5271
    %v7224 = vpack.c.b16 %v5288, %v5272
    %v7225 = vpack.c.b16 %v5289, %v5273
    %v7226 = vpack.c.b16 %v5290, %v5274
    %v7227 = vpack.c.b16 %v5291, %v5275
    %v7228 = vpack.c.b16 %v5308, %v5292
    %v7229 = vpack.c.b16 %v5309, %v5293
    %v7230 = vpack.c.b16 %v5310, %v5294
    %v7231 = vpack.c.b16 %v5311, %v5295
    %v7232 = vpack.c.b16 %v5312, %v5296
    %v7233 = vpack.c.b16 %v5313, %v5297
    %v7234 = vpack.c.b16 %v5314, %v5298
    %v7235 = vpack.c.b16 %v5315, %v5299
    %v7236 = vpack.c.b16 %v5316, %v5300
    %v7237 = vpack.c.b16 %v5317, %v5301
    %v7238 = vpack.c.b16 %v5318, %v5302
    %v7239 = vpack.c.b16 %v5319, %v5303
    %v7240 = vpack.c.b16 %v5320, %v5304
    %v7241 = vpack.c.b16 %v5321, %v5305
    %v7242 = vpack.c.b16 %v5322, %v5306
    %v7243 = vpack.c.b16 %v5323, %v5307
    %v7244 = vpack.c.b16 %v5340, %v5324
    %v7245 = vpack.c.b16 %v5341, %v5325
    %v7246 = vpack.c.b16 %v5342, %v5326
    %v7247 = vpack.c.b16 %v5343, %v5327
    %v7248 = vpack.c.b16 %v5344, %v5328
    %v7249 = vpack.c.b16 %v5345, %v5329
    %v7250 = vpack.c.b16 %v5346, %v5330
    %v7251 = vpack.c.b16 %v5347, %v5331
    %v7252 = vpack.c.b16 %v5348, %v5332
    %v7253 = vpack.c.b16 %v5349, %v5333
    %v7254 = vpack.c.b16 %v5350, %v5334
    %v7255 = vpack.c.b16 %v5351, %v5335
    %v7256 = vpack.c.b16 %v5352, %v5336
    %v7257 = vpack.c.b16 %v5353, %v5337
    %v7258 = vpack.c.b16 %v5354, %v5338
    %v7259 = vpack.c.b16 %v5355, %v5339
    %v7260 = vpack.c.b16 %v5372, %v5356
    %v7261 = vpack.c.b16 %v5373, %v5357
    %v7262 = vpack.c.b16 %v5374, %v5358
    %v7263 = vpack.c.b16 %v5375, %v5359
    %v7264 = vpack.c.b16 %v5376, %v5360
    %v7265 = vpack.c.b16 %v5377, %v5361
    %v7266 = vpack.c.b16 %v5378, %v5362
    %v7267 = vpack.c.b16 %v5379, %v5363
    %v7268 = vpack.c.b16 %v5380, %v5364
    %v7269 = vpack.c.b16 %v5381, %v5365
    %v7270 = vpack.c.b16 %v5382, %v5366
    %v7271 = vpack.c.b16 %v5383, %v5367
    %v7272 = vpack.c.b16 %v5384, %v5368
    %v7273 = vpack.c.b16 %v5385, %v5369
    %v7274 = vpack.c.b16 %v5386, %v5370
    %v7275 = vpack.c.b16 %v5387, %v5371
    %v7276 = vpack.c.b16 %v5404, %v5388
    %v7277 = vpack.c.b16 %v5405, %v5389
    %v7278 = vpack.c.b16 %v5406, %v5390
    %v7279 = vpack.c.b16 %v5407, %v5391
    %v7280 = vpack.c.b16 %v5408, %v5392
    %v7281 = vpack.c.b16 %v5409, %v5393
    %v7282 = vpack.c.b16 %v5410, %v5394
    %v7283 = vpack.c.b16 %v5411, %v5395
    %v7284 = vpack.c.b16 %v5412, %v5396
    %v7285 = vpack.c.b16 %v5413, %v5397
    %v7286 = vpack.c.b16 %v5414, %v5398
    %v7287 = vpack.c.b16 %v5415, %v5399
    %v7288 = vpack.c.b16 %v5416, %v5400
    %v7289 = vpack.c.b16 %v5417, %v5401
    %v7290 = vpack.c.b16 %v5418, %v5402
    %v7291 = vpack.c.b16 %v5419, %v5403
    %v7292 = vpack.c.b16 %v5436, %v5420
    %v7293 = vpack.c.b16 %v5437, %v5421
    %v7294 = vpack.c.b16 %v5438, %v5422
    %v7295 = vpack.c.b16 %v5439, %v5423
    %v7296 = vpack.c.b16 %v5440, %v5424
    %v7297 = vpack.c.b16 %v5441, %v5425
    %v7298 = vpack.c.b16 %v5442, %v5426
    %v7299 = vpack.c.b16 %v5443, %v5427
    %v7300 = vpack.c.b16 %v5444, %v5428
    %v7301 = vpack.c.b16 %v5445, %v5429
    %v7302 = vpack.c.b16 %v5446, %v5430
    %v7303 = vpack.c.b16 %v5447, %v5431
    %v7304 = vpack.c.b16 %v5448, %v5432
    %v7305 = vpack.c.b16 %v5449, %v5433
    %v7306 = vpack.c.b16 %v5450, %v5434
    %v7307 = vpack.c.b16 %v5451, %v5435
    %v7308 = vpack.c.b16 %v5468, %v5452
    %v7309 = vpack.c.b16 %v5469, %v5453
    %v7310 = vpack.c.b16 %v5470, %v5454
    %v7311 = vpack.c.b16 %v5471, %v5455
    %v7312 = vpack.c.b16 %v5472, %v5456
    %v7313 = vpack.c.b16 %v5473, %v5457
    %v7314 = vpack.c.b16 %v5474, %v5458
    %v7315 = vpack.c.b16 %v5475, %v5459
    %v7316 = vpack.c.b16 %v5476, %v5460
    %v7317 = vpack.c.b16 %v5477, %v5461
    %v7318 = vpack.c.b16 %v5478, %v5462
    %v7319 = vpack.c.b16 %v5479, %v5463
    %v7320 = vpack.c.b16 %v5480, %v5464
    %v7321 = vpack.c.b16 %v5481, %v5465
    %v7322 = vpack.c.b16 %v5482, %v5466
    %v7323 = vpack.c.b16 %v5483, %v5467
    %v7324 = vpack.c.b16 %v5500, %v5484
    %v7325 = vpack.c.b16 %v5501, %v5485
    %v7326 = vpack.c.b16 %v5502, %v5486
    %v7327 = vpack.c.b16 %v5503, %v5487
    %v7328 = vpack.c.b16 %v5504, %v5488
    %v7329 = vpack.c.b16 %v5505, %v5489
    %v7330 = vpack.c.b16 %v5506, %v5490
    %v7331 = vpack.c.b16 %v5507, %v5491
    %v7332 = vpack.c.b16 %v5508, %v5492
    %v7333 = vpack.c.b16 %v5509, %v5493
    %v7334 = vpack.c.b16 %v5510, %v5494
    %v7335 = vpack.c.b16 %v5511, %v5495
    %v7336 = vpack.c.b16 %v5512, %v5496
    %v7337 = vpack.c.b16 %v5513, %v5497
    %v7338 = vpack.c.b16 %v5514, %v5498
    %v7339 = vpack.c.b16 %v5515, %v5499
    %v7340 = vpack.c.b16 %v5532, %v5516
    %v7341 = vpack.c.b16 %v5533, %v5517
    %v7342 = vpack.c.b16 %v5534, %v5518
    %v7343 = vpack.c.b16 %v5535, %v5519
    %v7344 = vpack.c.b16 %v5536, %v5520
    %v7345 = vpack.c.b16 %v5537, %v5521
    %v7346 = vpack.c.b16 %v5538, %v5522
    %v7347 = vpack.c.b16 %v5539, %v5523
    %v7348 = vpack.c.b16 %v5540, %v5524
    %v7349 = vpack.c.b16 %v5541, %v5525
    %v7350 = vpack.c.b16 %v5542, %v5526
    %v7351 = vpack.c.b16 %v5543, %v5527
    %v7352 = vpack.c.b16 %v5544, %v5528
    %v7353 = vpack.c.b16 %v5545, %v5529
    %v7354 = vpack.c.b16 %v5546, %v5530
    %v7355 = vpack.c.b16 %v5547, %v5531
    %v7356 = vpack.c.b16 %v5564, %v5548
    %v7357 = vpack.c.b16 %v5565, %v5549
    %v7358 = vpack.c.b16 %v5566, %v5550
    %v7359 = vpack.c.b16 %v5567, %v5551
    %v7360 = vpack.c.b16 %v5568, %v5552
    %v7361 = vpack.c.b16 %v5569, %v5553
    %v7362 = vpack.c.b16 %v5570, %v5554
    %v7363 = vpack.c.b16 %v5571, %v5555
    %v7364 = vpack.c.b16 %v5572, %v5556
    %v7365 = vpack.c.b16 %v5573, %v5557
    %v7366 = vpack.c.b16 %v5574, %v5558
    %v7367 = vpack.c.b16 %v5575, %v5559
    %v7368 = vpack.c.b16 %v5576, %v5560
    %v7369 = vpack.c.b16 %v5577, %v5561
    %v7370 = vpack.c.b16 %v5578, %v5562
    %v7371 = vpack.c.b16 %v5579, %v5563
    %v7372 = vpack.c.b16 %v5596, %v5580
    %v7373 = vpack.c.b16 %v5597, %v5581
    %v7374 = vpack.c.b16 %v5598, %v5582
    %v7375 = vpack.c.b16 %v5599, %v5583
    %v7376 = vpack.c.b16 %v5600, %v5584
    %v7377 = vpack.c.b16 %v5601, %v5585
    %v7378 = vpack.c.b16 %v5602, %v5586
    %v7379 = vpack.c.b16 %v5603, %v5587
    %v7380 = vpack.c.b16 %v5604, %v5588
    %v7381 = vpack.c.b16 %v5605, %v5589
    %v7382 = vpack.c.b16 %v5606, %v5590
    %v7383 = vpack.c.b16 %v5607, %v5591
    %v7384 = vpack.c.b16 %v5608, %v5592
    %v7385 = vpack.c.b16 %v5609, %v5593
    %v7386 = vpack.c.b16 %v5610, %v5594
    %v7387 = vpack.c.b16 %v5611, %v5595
    %v7388 = vpack.c.b16 %v5628, %v5612
    %v7389 = vpack.c.b16 %v5629, %v5613
    %v7390 = vpack.c.b16 %v5630, %v5614
    %v7391 = vpack.c.b16 %v5631, %v5615
    %v7392 = vpack.c.b16 %v5632, %v5616
    %v7393 = vpack.c.b16 %v5633, %v5617
    %v7394 = vpack.c.b16 %v5634, %v5618
    %v7395 = vpack.c.b16 %v5635, %v5619
    %v7396 = vpack.c.b16 %v5636, %v5620
    %v7397 = vpack.c.b16 %v5637, %v5621
    %v7398 = vpack.c.b16 %v5638, %v5622
    %v7399 = vpack.c.b16 %v5639, %v5623
    %v7400 = vpack.c.b16 %v5640, %v5624
    %v7401 = vpack.c.b16 %v5641, %v5625
    %v7402 = vpack.c.b16 %v5642, %v5626
    %v7403 = vpack.c.b16 %v5643, %v5627
    %v7404 = vpack.c.b16 %v5660, %v5644
    %v7405 = vpack.c.b16 %v5661, %v5645
    %v7406 = vpack.c.b16 %v5662, %v5646
    %v7407 = vpack.c.b16 %v5663, %v5647
    %v7408 = vpack.c.b16 %v5664, %v5648
    %v7409 = vpack.c.b16 %v5665, %v5649
    %v7410 = vpack.c.b16 %v5666, %v5650
    %v7411 = vpack.c.b16 %v5667, %v5651
    %v7412 = vpack.c.b16 %v5668, %v5652
    %v7413 = vpack.c.b16 %v5669, %v5653
    %v7414 = vpack.c.b16 %v5670, %v5654
    %v7415 = vpack.c.b16 %v5671, %v5655
    %v7416 = vpack.c.b16 %v5672, %v5656
    %v7417 = vpack.c.b16 %v5673, %v5657
    %v7418 = vpack.c.b16 %v5674, %v5658
    %v7419 = vpack.c.b16 %v5675, %v5659
    %v7420 = vpack.c.b16 %v5692, %v5676
    %v7421 = vpack.c.b16 %v5693, %v5677
    %v7422 = vpack.c.b16 %v5694, %v5678
    %v7423 = vpack.c.b16 %v5695, %v5679
    %v7424 = vpack.c.b16 %v5696, %v5680
    %v7425 = vpack.c.b16 %v5697, %v5681
    %v7426 = vpack.c.b16 %v5698, %v5682
    %v7427 = vpack.c.b16 %v5699, %v5683
    %v7428 = vpack.c.b16 %v5700, %v5684
    %v7429 = vpack.c.b16 %v5701, %v5685
    %v7430 = vpack.c.b16 %v5702, %v5686
    %v7431 = vpack.c.b16 %v5703, %v5687
    %v7432 = vpack.c.b16 %v5704, %v5688
    %v7433 = vpack.c.b16 %v5705, %v5689
    %v7434 = vpack.c.b16 %v5706, %v5690
    %v7435 = vpack.c.b16 %v5707, %v5691
    %v7436 = vpack.c.b16 %v5724, %v5708
    %v7437 = vpack.c.b16 %v5725, %v5709
    %v7438 = vpack.c.b16 %v5726, %v5710
    %v7439 = vpack.c.b16 %v5727, %v5711
    %v7440 = vpack.c.b16 %v5728, %v5712
    %v7441 = vpack.c.b16 %v5729, %v5713
    %v7442 = vpack.c.b16 %v5730, %v5714
    %v7443 = vpack.c.b16 %v5731, %v5715
    %v7444 = vpack.c.b16 %v5732, %v5716
    %v7445 = vpack.c.b16 %v5733, %v5717
    %v7446 = vpack.c.b16 %v5734, %v5718
    %v7447 = vpack.c.b16 %v5735, %v5719
    %v7448 = vpack.c.b16 %v5736, %v5720
    %v7449 = vpack.c.b16 %v5737, %v5721
    %v7450 = vpack.c.b16 %v5738, %v5722
    %v7451 = vpack.c.b16 %v5739, %v5723
    %v7452 = vpack.c.b16 %v5756, %v5740
    %v7453 = vpack.c.b16 %v5757, %v5741
    %v7454 = vpack.c.b16 %v5758, %v5742
    %v7455 = vpack.c.b16 %v5759, %v5743
    %v7456 = vpack.c.b16 %v5760, %v5744
    %v7457 = vpack.c.b16 %v5761, %v5745
    %v7458 = vpack.c.b16 %v5762, %v5746
    %v7459 = vpack.c.b16 %v5763, %v5747
    %v7460 = vpack.c.b16 %v5764, %v5748
    %v7461 = vpack.c.b16 %v5765, %v5749
    %v7462 = vpack.c.b16 %v5766, %v5750
    %v7463 = vpack.c.b16 %v5767, %v5751
    %v7464 = vpack.c.b16 %v5768, %v5752
    %v7465 = vpack.c.b16 %v5769, %v5753
    %v7466 = vpack.c.b16 %v5770, %v5754
    %v7467 = vpack.c.b16 %v5771, %v5755
    %v7468 = vpack.c.b16 %v5788, %v5772
    %v7469 = vpack.c.b16 %v5789, %v5773
    %v7470 = vpack.c.b16 %v5790, %v5774
    %v7471 = vpack.c.b16 %v5791, %v5775
    %v7472 = vpack.c.b16 %v5792, %v5776
    %v7473 = vpack.c.b16 %v5793, %v5777
    %v7474 = vpack.c.b16 %v5794, %v5778
    %v7475 = vpack.c.b16 %v5795, %v5779
    %v7476 = vpack.c.b16 %v5796, %v5780
    %v7477 = vpack.c.b16 %v5797, %v5781
    %v7478 = vpack.c.b16 %v5798, %v5782
    %v7479 = vpack.c.b16 %v5799, %v5783
    %v7480 = vpack.c.b16 %v5800, %v5784
    %v7481 = vpack.c.b16 %v5801, %v5785
    %v7482 = vpack.c.b16 %v5802, %v5786
    %v7483 = vpack.c.b16 %v5803, %v5787
    %v7484 = vpack.c.b16 %v5820, %v5804
    %v7485 = vpack.c.b16 %v5821, %v5805
    %v7486 = vpack.c.b16 %v5822, %v5806
    %v7487 = vpack.c.b16 %v5823, %v5807
    %v7488 = vpack.c.b16 %v5824, %v5808
    %v7489 = vpack.c.b16 %v5825, %v5809
    %v7490 = vpack.c.b16 %v5826, %v5810
    %v7491 = vpack.c.b16 %v5827, %v5811
    %v7492 = vpack.c.b16 %v5828, %v5812
    %v7493 = vpack.c.b16 %v5829, %v5813
    %v7494 = vpack.c.b16 %v5830, %v5814
    %v7495 = vpack.c.b16 %v5831, %v5815
    %v7496 = vpack.c.b16 %v5832, %v5816
    %v7497 = vpack.c.b16 %v5833, %v5817
    %v7498 = vpack.c.b16 %v5834, %v5818
    %v7499 = vpack.c.b16 %v5835, %v5819
    %v7500 = vpack.c.b16 %v5852, %v5836
    %v7501 = vpack.c.b16 %v5853, %v5837
    %v7502 = vpack.c.b16 %v5854, %v5838
    %v7503 = vpack.c.b16 %v5855, %v5839
    %v7504 = vpack.c.b16 %v5856, %v5840
    %v7505 = vpack.c.b16 %v5857, %v5841
    %v7506 = vpack.c.b16 %v5858, %v5842
    %v7507 = vpack.c.b16 %v5859, %v5843
    %v7508 = vpack.c.b16 %v5860, %v5844
    %v7509 = vpack.c.b16 %v5861, %v5845
    %v7510 = vpack.c.b16 %v5862, %v5846
    %v7511 = vpack.c.b16 %v5863, %v5847
    %v7512 = vpack.c.b16 %v5864, %v5848
    %v7513 = vpack.c.b16 %v5865, %v5849
    %v7514 = vpack.c.b16 %v5866, %v5850
    %v7515 = vpack.c.b16 %v5867, %v5851
    %v7516 = vpack.c.b16 %v5884, %v5868
    %v7517 = vpack.c.b16 %v5885, %v5869
    %v7518 = vpack.c.b16 %v5886, %v5870
    %v7519 = vpack.c.b16 %v5887, %v5871
    %v7520 = vpack.c.b16 %v5888, %v5872
    %v7521 = vpack.c.b16 %v5889, %v5873
    %v7522 = vpack.c.b16 %v5890, %v5874
    %v7523 = vpack.c.b16 %v5891, %v5875
    %v7524 = vpack.c.b16 %v5892, %v5876
    %v7525 = vpack.c.b16 %v5893, %v5877
    %v7526 = vpack.c.b16 %v5894, %v5878
    %v7527 = vpack.c.b16 %v5895, %v5879
    %v7528 = vpack.c.b16 %v5896, %v5880
    %v7529 = vpack.c.b16 %v5897, %v5881
    %v7530 = vpack.c.b16 %v5898, %v5882
    %v7531 = vpack.c.b16 %v5899, %v5883
    %v7532 = vpack.c.b16 %v5916, %v5900
    %v7533 = vpack.c.b16 %v5917, %v5901
    %v7534 = vpack.c.b16 %v5918, %v5902
    %v7535 = vpack.c.b16 %v5919, %v5903
    %v7536 = vpack.c.b16 %v5920, %v5904
    %v7537 = vpack.c.b16 %v5921, %v5905
    %v7538 = vpack.c.b16 %v5922, %v5906
    %v7539 = vpack.c.b16 %v5923, %v5907
    %v7540 = vpack.c.b16 %v5924, %v5908
    %v7541 = vpack.c.b16 %v5925, %v5909
    %v7542 = vpack.c.b16 %v5926, %v5910
    %v7543 = vpack.c.b16 %v5927, %v5911
    %v7544 = vpack.c.b16 %v5928, %v5912
    %v7545 = vpack.c.b16 %v5929, %v5913
    %v7546 = vpack.c.b16 %v5930, %v5914
    %v7547 = vpack.c.b16 %v5931, %v5915
    %v7548 = vpack.c.b16 %v5948, %v5932
    %v7549 = vpack.c.b16 %v5949, %v5933
    %v7550 = vpack.c.b16 %v5950, %v5934
    %v7551 = vpack.c.b16 %v5951, %v5935
    %v7552 = vpack.c.b16 %v5952, %v5936
    %v7553 = vpack.c.b16 %v5953, %v5937
    %v7554 = vpack.c.b16 %v5954, %v5938
    %v7555 = vpack.c.b16 %v5955, %v5939
    %v7556 = vpack.c.b16 %v5956, %v5940
    %v7557 = vpack.c.b16 %v5957, %v5941
    %v7558 = vpack.c.b16 %v5958, %v5942
    %v7559 = vpack.c.b16 %v5959, %v5943
    %v7560 = vpack.c.b16 %v5960, %v5944
    %v7561 = vpack.c.b16 %v5961, %v5945
    %v7562 = vpack.c.b16 %v5962, %v5946
    %v7563 = vpack.c.b16 %v5963, %v5947
    %v7564 = vpack.c.b16 %v5980, %v5964
    %v7565 = vpack.c.b16 %v5981, %v5965
    %v7566 = vpack.c.b16 %v5982, %v5966
    %v7567 = vpack.c.b16 %v5983, %v5967
    %v7568 = vpack.c.b16 %v5984, %v5968
    %v7569 = vpack.c.b16 %v5985, %v5969
    %v7570 = vpack.c.b16 %v5986, %v5970
    %v7571 = vpack.c.b16 %v5987, %v5971
    %v7572 = vpack.c.b16 %v5988, %v5972
    %v7573 = vpack.c.b16 %v5989, %v5973
    %v7574 = vpack.c.b16 %v5990, %v5974
    %v7575 = vpack.c.b16 %v5991, %v5975
    %v7576 = vpack.c.b16 %v5992, %v5976
    %v7577 = vpack.c.b16 %v5993, %v5977
    %v7578 = vpack.c.b16 %v5994, %v5978
    %v7579 = vpack.c.b16 %v5995, %v5979
    %v7580 = vpack.c.b16 %v6012, %v5996
    %v7581 = vpack.c.b16 %v6013, %v5997
    %v7582 = vpack.c.b16 %v6014, %v5998
    %v7583 = vpack.c.b16 %v6015, %v5999
    %v7584 = vpack.c.b16 %v6016, %v6000
    %v7585 = vpack.c.b16 %v6017, %v6001
    %v7586 = vpack.c.b16 %v6018, %v6002
    %v7587 = vpack.c.b16 %v6019, %v6003
    %v7588 = vpack.c.b16 %v6020, %v6004
    %v7589 = vpack.c.b16 %v6021, %v6005
    %v7590 = vpack.c.b16 %v6022, %v6006
    %v7591 = vpack.c.b16 %v6023, %v6007
    %v7592 = vpack.c.b16 %v6024, %v6008
    %v7593 = vpack.c.b16 %v6025, %v6009
    %v7594 = vpack.c.b16 %v6026, %v6010
    %v7595 = vpack.c.b16 %v6027, %v6011
    %v7596 = vpack.c.b16 %v6044, %v6028
    %v7597 = vpack.c.b16 %v6045, %v6029
    %v7598 = vpack.c.b16 %v6046, %v6030
    %v7599 = vpack.c.b16 %v6047, %v6031
    %v7600 = vpack.c.b16 %v6048, %v6032
    %v7601 = vpack.c.b16 %v6049, %v6033
    %v7602 = vpack.c.b16 %v6050, %v6034
    %v7603 = vpack.c.b16 %v6051, %v6035
    %v7604 = vpack.c.b16 %v6052, %v6036
    %v7605 = vpack.c.b16 %v6053, %v6037
    %v7606 = vpack.c.b16 %v6054, %v6038
    %v7607 = vpack.c.b16 %v6055, %v6039
    %v7608 = vpack.c.b16 %v6056, %v6040
    %v7609 = vpack.c.b16 %v6057, %v6041
    %v7610 = vpack.c.b16 %v6058, %v6042
    %v7611 = vpack.c.b16 %v6059, %v6043
    %v7612 = vpack.c.b16 %v6076, %v6060
    %v7613 = vpack.c.b16 %v6077, %v6061
    %v7614 = vpack.c.b16 %v6078, %v6062
    %v7615 = vpack.c.b16 %v6079, %v6063
    %v7616 = vpack.c.b16 %v6080, %v6064
    %v7617 = vpack.c.b16 %v6081, %v6065
    %v7618 = vpack.c.b16 %v6082, %v6066
    %v7619 = vpack.c.b16 %v6083, %v6067
    %v7620 = vpack.c.b16 %v6084, %v6068
    %v7621 = vpack.c.b16 %v6085, %v6069
    %v7622 = vpack.c.b16 %v6086, %v6070
    %v7623 = vpack.c.b16 %v6087, %v6071
    %v7624 = vpack.c.b16 %v6088, %v6072
    %v7625 = vpack.c.b16 %v6089, %v6073
    %v7626 = vpack.c.b16 %v6090, %v6074
    %v7627 = vpack.c.b16 %v6091, %v6075
    %v7628 = vpack.c.b16 %v6108, %v6092
    %v7629 = vpack.c.b16 %v6109, %v6093
    %v7630 = vpack.c.b16 %v6110, %v6094
    %v7631 = vpack.c.b16 %v6111, %v6095
    %v7632 = vpack.c.b16 %v6112, %v6096
    %v7633 = vpack.c.b16 %v6113, %v6097
    %v7634 = vpack.c.b16 %v6114, %v6098
    %v7635 = vpack.c.b16 %v6115, %v6099
    %v7636 = vpack.c.b16 %v6116, %v6100
    %v7637 = vpack.c.b16 %v6117, %v6101
    %v7638 = vpack.c.b16 %v6118, %v6102
    %v7639 = vpack.c.b16 %v6119, %v6103
    %v7640 = vpack.c.b16 %v6120, %v6104
    %v7641 = vpack.c.b16 %v6121, %v6105
    %v7642 = vpack.c.b16 %v6122, %v6106
    %v7643 = vpack.c.b16 %v6123, %v6107
    %v7644 = vpack.c.b16 %v6140, %v6124
    %v7645 = vpack.c.b16 %v6141, %v6125
    %v7646 = vpack.c.b16 %v6142, %v6126
    %v7647 = vpack.c.b16 %v6143, %v6127
    %v7648 = vpack.c.b16 %v6144, %v6128
    %v7649 = vpack.c.b16 %v6145, %v6129
    %v7650 = vpack.c.b16 %v6146, %v6130
    %v7651 = vpack.c.b16 %v6147, %v6131
    %v7652 = vpack.c.b16 %v6148, %v6132
    %v7653 = vpack.c.b16 %v6149, %v6133
    %v7654 = vpack.c.b16 %v6150, %v6134
    %v7655 = vpack.c.b16 %v6151, %v6135
    %v7656 = vpack.c.b16 %v6152, %v6136
    %v7657 = vpack.c.b16 %v6153, %v6137
    %v7658 = vpack.c.b16 %v6154, %v6138
    %v7659 = vpack.c.b16 %v6155, %v6139
    %v7660 = vpack.c.b16 %v6172, %v6156
    %v7661 = vpack.c.b16 %v6173, %v6157
    %v7662 = vpack.c.b16 %v6174, %v6158
    %v7663 = vpack.c.b16 %v6175, %v6159
    %v7664 = vpack.c.b16 %v6176, %v6160
    %v7665 = vpack.c.b16 %v6177, %v6161
    %v7666 = vpack.c.b16 %v6178, %v6162
    %v7667 = vpack.c.b16 %v6179, %v6163
    %v7668 = vpack.c.b16 %v6180, %v6164
    %v7669 = vpack.c.b16 %v6181, %v6165
    %v7670 = vpack.c.b16 %v6182, %v6166
    %v7671 = vpack.c.b16 %v6183, %v6167
    %v7672 = vpack.c.b16 %v6184, %v6168
    %v7673 = vpack.c.b16 %v6185, %v6169
    %v7674 = vpack.c.b16 %v6186, %v6170
    %v7675 = vpack.c.b16 %v6187, %v6171
    %v7676 = vpack.c.b16 %v6204, %v6188
    %v7677 = vpack.c.b16 %v6205, %v6189
    %v7678 = vpack.c.b16 %v6206, %v6190
    %v7679 = vpack.c.b16 %v6207, %v6191
    %v7680 = vpack.c.b16 %v6208, %v6192
    %v7681 = vpack.c.b16 %v6209, %v6193
    %v7682 = vpack.c.b16 %v6210, %v6194
    %v7683 = vpack.c.b16 %v6211, %v6195
    %v7684 = vpack.c.b16 %v6212, %v6196
    %v7685 = vpack.c.b16 %v6213, %v6197
    %v7686 = vpack.c.b16 %v6214, %v6198
    %v7687 = vpack.c.b16 %v6215, %v6199
    %v7688 = vpack.c.b16 %v6216, %v6200
    %v7689 = vpack.c.b16 %v6217, %v6201
    %v7690 = vpack.c.b16 %v6218, %v6202
    %v7691 = vpack.c.b16 %v6219, %v6203
    %v7692 = vpack.c.b16 %v6236, %v6220
    %v7693 = vpack.c.b16 %v6237, %v6221
    %v7694 = vpack.c.b16 %v6238, %v6222
    %v7695 = vpack.c.b16 %v6239, %v6223
    %v7696 = vpack.c.b16 %v6240, %v6224
    %v7697 = vpack.c.b16 %v6241, %v6225
    %v7698 = vpack.c.b16 %v6242, %v6226
    %v7699 = vpack.c.b16 %v6243, %v6227
    %v7700 = vpack.c.b16 %v6244, %v6228
    %v7701 = vpack.c.b16 %v6245, %v6229
    %v7702 = vpack.c.b16 %v6246, %v6230
    %v7703 = vpack.c.b16 %v6247, %v6231
    %v7704 = vpack.c.b16 %v6248, %v6232
    %v7705 = vpack.c.b16 %v6249, %v6233
    %v7706 = vpack.c.b16 %v6250, %v6234
    %v7707 = vpack.c.b16 %v6251, %v6235
    %v7708 = vpack.c.b16 %v6268, %v6252
    %v7709 = vpack.c.b16 %v6269, %v6253
    %v7710 = vpack.c.b16 %v6270, %v6254
    %v7711 = vpack.c.b16 %v6271, %v6255
    %v7712 = vpack.c.b16 %v6272, %v6256
    %v7713 = vpack.c.b16 %v6273, %v6257
    %v7714 = vpack.c.b16 %v6274, %v6258
    %v7715 = vpack.c.b16 %v6275, %v6259
    %v7716 = vpack.c.b16 %v6276, %v6260
    %v7717 = vpack.c.b16 %v6277, %v6261
    %v7718 = vpack.c.b16 %v6278, %v6262
    %v7719 = vpack.c.b16 %v6279, %v6263
    %v7720 = vpack.c.b16 %v6280, %v6264
    %v7721 = vpack.c.b16 %v6281, %v6265
    %v7722 = vpack.c.b16 %v6282, %v6266
    %v7723 = vpack.c.b16 %v6283, %v6267
    %v7724 = vpack.c.b16 %v6300, %v6284
    %v7725 = vpack.c.b16 %v6301, %v6285
    %v7726 = vpack.c.b16 %v6302, %v6286
    %v7727 = vpack.c.b16 %v6303, %v6287
    %v7728 = vpack.c.b16 %v6304, %v6288
    %v7729 = vpack.c.b16 %v6305, %v6289
    %v7730 = vpack.c.b16 %v6306, %v6290
    %v7731 = vpack.c.b16 %v6307, %v6291
    %v7732 = vpack.c.b16 %v6308, %v6292
    %v7733 = vpack.c.b16 %v6309, %v6293
    %v7734 = vpack.c.b16 %v6310, %v6294
    %v7735 = vpack.c.b16 %v6311, %v6295
    %v7736 = vpack.c.b16 %v6312, %v6296
    %v7737 = vpack.c.b16 %v6313, %v6297
    %v7738 = vpack.c.b16 %v6314, %v6298
    %v7739 = vpack.c.b16 %v6315, %v6299
    %v7740 = vpack.c.b16 %v6332, %v6316
    %v7741 = vpack.c.b16 %v6333, %v6317
    %v7742 = vpack.c.b16 %v6334, %v6318
    %v7743 = vpack.c.b16 %v6335, %v6319
    %v7744 = vpack.c.b16 %v6336, %v6320
    %v7745 = vpack.c.b16 %v6337, %v6321
    %v7746 = vpack.c.b16 %v6338, %v6322
    %v7747 = vpack.c.b16 %v6339, %v6323
    %v7748 = vpack.c.b16 %v6340, %v6324
    %v7749 = vpack.c.b16 %v6341, %v6325
    %v7750 = vpack.c.b16 %v6342, %v6326
    %v7751 = vpack.c.b16 %v6343, %v6327
    %v7752 = vpack.c.b16 %v6344, %v6328
    %v7753 = vpack.c.b16 %v6345, %v6329
    %v7754 = vpack.c.b16 %v6346, %v6330
    %v7755 = vpack.c.b16 %v6347, %v6331
    %v7756 = vpack.c.b16 %v6364, %v6348
    %v7757 = vpack.c.b16 %v6365, %v6349
    %v7758 = vpack.c.b16 %v6366, %v6350
    %v7759 = vpack.c.b16 %v6367, %v6351
    %v7760 = vpack.c.b16 %v6368, %v6352
    %v7761 = vpack.c.b16 %v6369, %v6353
    %v7762 = vpack.c.b16 %v6370, %v6354
    %v7763 = vpack.c.b16 %v6371, %v6355
    %v7764 = vpack.c.b16 %v6372, %v6356
    %v7765 = vpack.c.b16 %v6373, %v6357
    %v7766 = vpack.c.b16 %v6374, %v6358
    %v7767 = vpack.c.b16 %v6375, %v6359
    %v7768 = vpack.c.b16 %v6376, %v6360
    %v7769 = vpack.c.b16 %v6377, %v6361
    %v7770 = vpack.c.b16 %v6378, %v6362
    %v7771 = vpack.c.b16 %v6379, %v6363
    %v7772 = vpack.c.b16 %v6396, %v6380
    %v7773 = vpack.c.b16 %v6397, %v6381
    %v7774 = vpack.c.b16 %v6398, %v6382
    %v7775 = vpack.c.b16 %v6399, %v6383
    %v7776 = vpack.c.b16 %v6400, %v6384
    %v7777 = vpack.c.b16 %v6401, %v6385
    %v7778 = vpack.c.b16 %v6402, %v6386
    %v7779 = vpack.c.b16 %v6403, %v6387
    %v7780 = vpack.c.b16 %v6404, %v6388
    %v7781 = vpack.c.b16 %v6405, %v6389
    %v7782 = vpack.c.b16 %v6406, %v6390
    %v7783 = vpack.c.b16 %v6407, %v6391
    %v7784 = vpack.c.b16 %v6408, %v6392
    %v7785 = vpack.c.b16 %v6409, %v6393
    %v7786 = vpack.c.b16 %v6410, %v6394
    %v7787 = vpack.c.b16 %v6411, %v6395
    %v7788 = vpack.c.b16 %v6428, %v6412
    %v7789 = vpack.c.b16 %v6429, %v6413
    %v7790 = vpack.c.b16 %v6430, %v6414
    %v7791 = vpack.c.b16 %v6431, %v6415
    %v7792 = vpack.c.b16 %v6432, %v6416
    %v7793 = vpack.c.b16 %v6433, %v6417
    %v7794 = vpack.c.b16 %v6434, %v6418
    %v7795 = vpack.c.b16 %v6435, %v6419
    %v7796 = vpack.c.b16 %v6436, %v6420
    %v7797 = vpack.c.b16 %v6437, %v6421
    %v7798 = vpack.c.b16 %v6438, %v6422
    %v7799 = vpack.c.b16 %v6439, %v6423
    %v7800 = vpack.c.b16 %v6440, %v6424
    %v7801 = vpack.c.b16 %v6441, %v6425
    %v7802 = vpack.c.b16 %v6442, %v6426
    %v7803 = vpack.c.b16 %v6443, %v6427
    %v7804 = vpack.c.b16 %v6460, %v6444
    %v7805 = vpack.c.b16 %v6461, %v6445
    %v7806 = vpack.c.b16 %v6462, %v6446
    %v7807 = vpack.c.b16 %v6463, %v6447
    %v7808 = vpack.c.b16 %v6464, %v6448
    %v7809 = vpack.c.b16 %v6465, %v6449
    %v7810 = vpack.c.b16 %v6466, %v6450
    %v7811 = vpack.c.b16 %v6467, %v6451
    %v7812 = vpack.c.b16 %v6468, %v6452
    %v7813 = vpack.c.b16 %v6469, %v6453
    %v7814 = vpack.c.b16 %v6470, %v6454
    %v7815 = vpack.c.b16 %v6471, %v6455
    %v7816 = vpack.c.b16 %v6472, %v6456
    %v7817 = vpack.c.b16 %v6473, %v6457
    %v7818 = vpack.c.b16 %v6474, %v6458
    %v7819 = vpack.c.b16 %v6475, %v6459
    %v7820 = vpack.c.b16 %v6492, %v6476
    %v7821 = vpack.c.b16 %v6493, %v6477
    %v7822 = vpack.c.b16 %v6494, %v6478
    %v7823 = vpack.c.b16 %v6495, %v6479
    %v7824 = vpack.c.b16 %v6496, %v6480
    %v7825 = vpack.c.b16 %v6497, %v6481
    %v7826 = vpack.c.b16 %v6498, %v6482
    %v7827 = vpack.c.b16 %v6499, %v6483
    %v7828 = vpack.c.b16 %v6500, %v6484
    %v7829 = vpack.c.b16 %v6501, %v6485
    %v7830 = vpack.c.b16 %v6502, %v6486
    %v7831 = vpack.c.b16 %v6503, %v6487
    %v7832 = vpack.c.b16 %v6504, %v6488
    %v7833 = vpack.c.b16 %v6505, %v6489
    %v7834 = vpack.c.b16 %v6506, %v6490
    %v7835 = vpack.c.b16 %v6507, %v6491
    %v7836 = vpack.c.b16 %v6524, %v6508
    %v7837 = vpack.c.b16 %v6525, %v6509
    %v7838 = vpack.c.b16 %v6526, %v6510
    %v7839 = vpack.c.b16 %v6527, %v6511
    %v7840 = vpack.c.b16 %v6528, %v6512
    %v7841 = vpack.c.b16 %v6529, %v6513
    %v7842 = vpack.c.b16 %v6530, %v6514
    %v7843 = vpack.c.b16 %v6531, %v6515
    %v7844 = vpack.c.b16 %v6532, %v6516
    %v7845 = vpack.c.b16 %v6533, %v6517
    %v7846 = vpack.c.b16 %v6534, %v6518
    %v7847 = vpack.c.b16 %v6535, %v6519
    %v7848 = vpack.c.b16 %v6536, %v6520
    %v7849 = vpack.c.b16 %v6537, %v6521
    %v7850 = vpack.c.b16 %v6538, %v6522
    %v7851 = vpack.c.b16 %v6539, %v6523
    %v7852 = vpack.c.b16 %v6556, %v6540
    %v7853 = vpack.c.b16 %v6557, %v6541
    %v7854 = vpack.c.b16 %v6558, %v6542
    %v7855 = vpack.c.b16 %v6559, %v6543
    %v7856 = vpack.c.b16 %v6560, %v6544
    %v7857 = vpack.c.b16 %v6561, %v6545
    %v7858 = vpack.c.b16 %v6562, %v6546
    %v7859 = vpack.c.b16 %v6563, %v6547
    %v7860 = vpack.c.b16 %v6564, %v6548
    %v7861 = vpack.c.b16 %v6565, %v6549
    %v7862 = vpack.c.b16 %v6566, %v6550
    %v7863 = vpack.c.b16 %v6567, %v6551
    %v7864 = vpack.c.b16 %v6568, %v6552
    %v7865 = vpack.c.b16 %v6569, %v6553
    %v7866 = vpack.c.b16 %v6570, %v6554
    %v7867 = vpack.c.b16 %v6571, %v6555
    %v7868 = vpack.c.b16 %v6588, %v6572
    %v7869 = vpack.c.b16 %v6589, %v6573
    %v7870 = vpack.c.b16 %v6590, %v6574
    %v7871 = vpack.c.b16 %v6591, %v6575
    %v7872 = vpack.c.b16 %v6592, %v6576
    %v7873 = vpack.c.b16 %v6593, %v6577
    %v7874 = vpack.c.b16 %v6594, %v6578
    %v7875 = vpack.c.b16 %v6595, %v6579
    %v7876 = vpack.c.b16 %v6596, %v6580
    %v7877 = vpack.c.b16 %v6597, %v6581
    %v7878 = vpack.c.b16 %v6598, %v6582
    %v7879 = vpack.c.b16 %v6599, %v6583
    %v7880 = vpack.c.b16 %v6600, %v6584
    %v7881 = vpack.c.b16 %v6601, %v6585
    %v7882 = vpack.c.b16 %v6602, %v6586
    %v7883 = vpack.c.b16 %v6603, %v6587
    %v7884 = vpack.c.b16 %v6620, %v6604
    %v7885 = vpack.c.b16 %v6621, %v6605
    %v7886 = vpack.c.b16 %v6622, %v6606
    %v7887 = vpack.c.b16 %v6623, %v6607
    %v7888 = vpack.c.b16 %v6624, %v6608
    %v7889 = vpack.c.b16 %v6625, %v6609
    %v7890 = vpack.c.b16 %v6626, %v6610
    %v7891 = vpack.c.b16 %v6627, %v6611
    %v7892 = vpack.c.b16 %v6628, %v6612
    %v7893 = vpack.c.b16 %v6629, %v6613
    %v7894 = vpack.c.b16 %v6630, %v6614
    %v7895 = vpack.c.b16 %v6631, %v6615
    %v7896 = vpack.c.b16 %v6632, %v6616
    %v7897 = vpack.c.b16 %v6633, %v6617
    %v7898 = vpack.c.b16 %v6634, %v6618
    %v7899 = vpack.c.b16 %v6635, %v6619
    %v7900 = vpack.c.b16 %v6652, %v6636
    %v7901 = vpack.c.b16 %v6653, %v6637
    %v7902 = vpack.c.b16 %v6654, %v6638
    %v7903 = vpack.c.b16 %v6655, %v6639
    %v7904 = vpack.c.b16 %v6656, %v6640
    %v7905 = vpack.c.b16 %v6657, %v6641
    %v7906 = vpack.c.b16 %v6658, %v6642
    %v7907 = vpack.c.b16 %v6659, %v6643
    %v7908 = vpack.c.b16 %v6660, %v6644
    %v7909 = vpack.c.b16 %v6661, %v6645
    %v7910 = vpack.c.b16 %v6662, %v6646
    %v7911 = vpack.c.b16 %v6663, %v6647
    %v7912 = vpack.c.b16 %v6664, %v6648
    %v7913 = vpack.c.b16 %v6665, %v6649
    %v7914 = vpack.c.b16 %v6666, %v6650
    %v7915 = vpack.c.b16 %v6667, %v6651
    %v7916 = vpack.c.b16 %v6684, %v6668
    %v7917 = vpack.c.b16 %v6685, %v6669
    %v7918 = vpack.c.b16 %v6686, %v6670
    %v7919 = vpack.c.b16 %v6687, %v6671
    %v7920 = vpack.c.b16 %v6688, %v6672
    %v7921 = vpack.c.b16 %v6689, %v6673
    %v7922 = vpack.c.b16 %v6690, %v6674
    %v7923 = vpack.c.b16 %v6691, %v6675
    %v7924 = vpack.c.b16 %v6692, %v6676
    %v7925 = vpack.c.b16 %v6693, %v6677
    %v7926 = vpack.c.b16 %v6694, %v6678
    %v7927 = vpack.c.b16 %v6695, %v6679
    %v7928 = vpack.c.b16 %v6696, %v6680
    %v7929 = vpack.c.b16 %v6697, %v6681
    %v7930 = vpack.c.b16 %v6698, %v6682
    %v7931 = vpack.c.b16 %v6699, %v6683
    %v7932 = vpack.c.b16 %v6716, %v6700
    %v7933 = vpack.c.b16 %v6717, %v6701
    %v7934 = vpack.c.b16 %v6718, %v6702
    %v7935 = vpack.c.b16 %v6719, %v6703
    %v7936 = vpack.c.b16 %v6720, %v6704
    %v7937 = vpack.c.b16 %v6721, %v6705
    %v7938 = vpack.c.b16 %v6722, %v6706
    %v7939 = vpack.c.b16 %v6723, %v6707
    %v7940 = vpack.c.b16 %v6724, %v6708
    %v7941 = vpack.c.b16 %v6725, %v6709
    %v7942 = vpack.c.b16 %v6726, %v6710
    %v7943 = vpack.c.b16 %v6727, %v6711
    %v7944 = vpack.c.b16 %v6728, %v6712
    %v7945 = vpack.c.b16 %v6729, %v6713
    %v7946 = vpack.c.b16 %v6730, %v6714
    %v7947 = vpack.c.b16 %v6731, %v6715
    %v7948 = vpack.c.b16 %v6748, %v6732
    %v7949 = vpack.c.b16 %v6749, %v6733
    %v7950 = vpack.c.b16 %v6750, %v6734
    %v7951 = vpack.c.b16 %v6751, %v6735
    %v7952 = vpack.c.b16 %v6752, %v6736
    %v7953 = vpack.c.b16 %v6753, %v6737
    %v7954 = vpack.c.b16 %v6754, %v6738
    %v7955 = vpack.c.b16 %v6755, %v6739
    %v7956 = vpack.c.b16 %v6756, %v6740
    %v7957 = vpack.c.b16 %v6757, %v6741
    %v7958 = vpack.c.b16 %v6758, %v6742
    %v7959 = vpack.c.b16 %v6759, %v6743
    %v7960 = vpack.c.b16 %v6760, %v6744
    %v7961 = vpack.c.b16 %v6761, %v6745
    %v7962 = vpack.c.b16 %v6762, %v6746
    %v7963 = vpack.c.b16 %v6763, %v6747
    %v7964 = vpack.c.b16 %v6780, %v6764
    %v7965 = vpack.c.b16 %v6781, %v6765
    %v7966 = vpack.c.b16 %v6782, %v6766
    %v7967 = vpack.c.b16 %v6783, %v6767
    %v7968 = vpack.c.b16 %v6784, %v6768
    %v7969 = vpack.c.b16 %v6785, %v6769
    %v7970 = vpack.c.b16 %v6786, %v6770
    %v7971 = vpack.c.b16 %v6787, %v6771
    %v7972 = vpack.c.b16 %v6788, %v6772
    %v7973 = vpack.c.b16 %v6789, %v6773
    %v7974 = vpack.c.b16 %v6790, %v6774
    %v7975 = vpack.c.b16 %v6791, %v6775
    %v7976 = vpack.c.b16 %v6792, %v6776
    %v7977 = vpack.c.b16 %v6793, %v6777
    %v7978 = vpack.c.b16 %v6794, %v6778
    %v7979 = vpack.c.b16 %v6795, %v6779
    %v7980 = vpack.c.b16 %v6812, %v6796
    %v7981 = vpack.c.b16 %v6813, %v6797
    %v7982 = vpack.c.b16 %v6814, %v6798
    %v7983 = vpack.c.b16 %v6815, %v6799
    %v7984 = vpack.c.b16 %v6816, %v6800
    %v7985 = vpack.c.b16 %v6817, %v6801
    %v7986 = vpack.c.b16 %v6818, %v6802
    %v7987 = vpack.c.b16 %v6819, %v6803
    %v7988 = vpack.c.b16 %v6820, %v6804
    %v7989 = vpack.c.b16 %v6821, %v6805
    %v7990 = vpack.c.b16 %v6822, %v6806
    %v7991 = vpack.c.b16 %v6823, %v6807
    %v7992 = vpack.c.b16 %v6824, %v6808
    %v7993 = vpack.c.b16 %v6825, %v6809
    %v7994 = vpack.c.b16 %v6826, %v6810
    %v7995 = vpack.c.b16 %v6827, %v6811
    %v7996 = vpack.c.b16 %v6844, %v6828
    %v7997 = vpack.c.b16 %v6845, %v6829
    %v7998 = vpack.c.b16 %v6846, %v6830
    %v7999 = vpack.c.b16 %v6847, %v6831
    %v8000 = vpack.c.b16 %v6848, %v6832
    %v8001 = vpack.c.b16 %v6849, %v6833
    %v8002 = vpack.c.b16 %v6850, %v6834
    %v8003 = vpack.c.b16 %v6851, %v6835
    %v8004 = vpack.c.b16 %v6852, %v6836
    %v8005 = vpack.c.b16 %v6853, %v6837
    %v8006 = vpack.c.b16 %v6854, %v6838
    %v8007 = vpack.c.b16 %v6855, %v6839
    %v8008 = vpack.c.b16 %v6856, %v6840
    %v8009 = vpack.c.b16 %v6857, %v6841
    %v8010 = vpack.c.b16 %v6858, %v6842
    %v8011 = vpack.c.b16 %v6859, %v6843
    %v8012 = vpack.c.b16 %v6876, %v6860
    %v8013 = vpack.c.b16 %v6877, %v6861
    %v8014 = vpack.c.b16 %v6878, %v6862
    %v8015 = vpack.c.b16 %v6879, %v6863
    %v8016 = vpack.c.b16 %v6880, %v6864
    %v8017 = vpack.c.b16 %v6881, %v6865
    %v8018 = vpack.c.b16 %v6882, %v6866
    %v8019 = vpack.c.b16 %v6883, %v6867
    %v8020 = vpack.c.b16 %v6884, %v6868
    %v8021 = vpack.c.b16 %v6885, %v6869
    %v8022 = vpack.c.b16 %v6886, %v6870
    %v8023 = vpack.c.b16 %v6887, %v6871
    %v8024 = vpack.c.b16 %v6888, %v6872
    %v8025 = vpack.c.b16 %v6889, %v6873
    %v8026 = vpack.c.b16 %v6890, %v6874
    %v8027 = vpack.c.b16 %v6891, %v6875
    %v8028 = vpack.c.b16 %v6908, %v6892
    %v8029 = vpack.c.b16 %v6909, %v6893
    %v8030 = vpack.c.b16 %v6910, %v6894
    %v8031 = vpack.c.b16 %v6911, %v6895
    %v8032 = vpack.c.b16 %v6912, %v6896
    %v8033 = vpack.c.b16 %v6913, %v6897
    %v8034 = vpack.c.b16 %v6914, %v6898
    %v8035 = vpack.c.b16 %v6915, %v6899
    %v8036 = vpack.c.b16 %v6916, %v6900
    %v8037 = vpack.c.b16 %v6917, %v6901
    %v8038 = vpack.c.b16 %v6918, %v6902
    %v8039 = vpack.c.b16 %v6919, %v6903
    %v8040 = vpack.c.b16 %v6920, %v6904
    %v8041 = vpack.c.b16 %v6921, %v6905
    %v8042 = vpack.c.b16 %v6922, %v6906
    %v8043 = vpack.c.b16 %v6923, %v6907
    %v8044 = vpack.c.b16 %v6940, %v6924
    %v8045 = vpack.c.b16 %v6941, %v6925
    %v8046 = vpack.c.b16 %v6942, %v6926
    %v8047 = vpack.c.b16 %v6943, %v6927
    %v8048 = vpack.c.b16 %v6944, %v6928
    %v8049 = vpack.c.b16 %v6945, %v6929
    %v8050 = vpack.c.b16 %v6946, %v6930
    %v8051 = vpack.c.b16 %v6947, %v6931
    %v8052 = vpack.c.b16 %v6948, %v6932
    %v8053 = vpack.c.b16 %v6949, %v6933
    %v8054 = vpack.c.b16 %v6950, %v6934
    %v8055 = vpack.c.b16 %v6951, %v6935
    %v8056 = vpack.c.b16 %v6952, %v6936
    %v8057 = vpack.c.b16 %v6953, %v6937
    %v8058 = vpack.c.b16 %v6954, %v6938
    %v8059 = vpack.c.b16 %v6955, %v6939
    %v8060 = vpack.c.b16 %v6972, %v6956
    %v8061 = vpack.c.b16 %v6973, %v6957
    %v8062 = vpack.c.b16 %v6974, %v6958
    %v8063 = vpack.c.b16 %v6975, %v6959
    %v8064 = vpack.c.b16 %v6976, %v6960
    %v8065 = vpack.c.b16 %v6977, %v6961
    %v8066 = vpack.c.b16 %v6978, %v6962
    %v8067 = vpack.c.b16 %v6979, %v6963
    %v8068 = vpack.c.b16 %v6980, %v6964
    %v8069 = vpack.c.b16 %v6981, %v6965
    %v8070 = vpack.c.b16 %v6982, %v6966
    %v8071 = vpack.c.b16 %v6983, %v6967
    %v8072 = vpack.c.b16 %v6984, %v6968
    %v8073 = vpack.c.b16 %v6985, %v6969
    %v8074 = vpack.c.b16 %v6986, %v6970
    %v8075 = vpack.c.b16 %v6987, %v6971
    %v8076 = vpack.c.b16 %v7004, %v6988
    %v8077 = vpack.c.b16 %v7005, %v6989
    %v8078 = vpack.c.b16 %v7006, %v6990
    %v8079 = vpack.c.b16 %v7007, %v6991
    %v8080 = vpack.c.b16 %v7008, %v6992
    %v8081 = vpack.c.b16 %v7009, %v6993
    %v8082 = vpack.c.b16 %v7010, %v6994
    %v8083 = vpack.c.b16 %v7011, %v6995
    %v8084 = vpack.c.b16 %v7012, %v6996
    %v8085 = vpack.c.b16 %v7013, %v6997
    %v8086 = vpack.c.b16 %v7014, %v6998
    %v8087 = vpack.c.b16 %v7015, %v6999
    %v8088 = vpack.c.b16 %v7016, %v7000
    %v8089 = vpack.c.b16 %v7017, %v7001
    %v8090 = vpack.c.b16 %v7018, %v7002
    %v8091 = vpack.c.b16 %v7019, %v7003
    %v8092 = vpack.c.b16 %v7036, %v7020
    %v8093 = vpack.c.b16 %v7037, %v7021
    %v8094 = vpack.c.b16 %v7038, %v7022
    %v8095 = vpack.c.b16 %v7039, %v7023
    %v8096 = vpack.c.b16 %v7040, %v7024
    %v8097 = vpack.c.b16 %v7041, %v7025
    %v8098 = vpack.c.b16 %v7042, %v7026
    %v8099 = vpack.c.b16 %v7043, %v7027
    %v8100 = vpack.c.b16 %v7044, %v7028
    %v8101 = vpack.c.b16 %v7045, %v7029
    %v8102 = vpack.c.b16 %v7046, %v7030
    %v8103 = vpack.c.b16 %v7047, %v7031
    %v8104 = vpack.c.b16 %v7048, %v7032
    %v8105 = vpack.c.b16 %v7049, %v7033
    %v8106 = vpack.c.b16 %v7050, %v7034
    %v8107 = vpack.c.b16 %v7051, %v7035
    %v8108 = vpack.c.b16 %v7068, %v7052
    %v8109 = vpack.c.b16 %v7069, %v7053
    %v8110 = vpack.c.b16 %v7070, %v7054
    %v8111 = vpack.c.b16 %v7071, %v7055
    %v8112 = vpack.c.b16 %v7072, %v7056
    %v8113 = vpack.c.b16 %v7073, %v7057
    %v8114 = vpack.c.b16 %v7074, %v7058
    %v8115 = vpack.c.b16 %v7075, %v7059
    %v8116 = vpack.c.b16 %v7076, %v7060
    %v8117 = vpack.c.b16 %v7077, %v7061
    %v8118 = vpack.c.b16 %v7078, %v7062
    %v8119 = vpack.c.b16 %v7079, %v7063
    %v8120 = vpack.c.b16 %v7080, %v7064
    %v8121 = vpack.c.b16 %v7081, %v7065
    %v8122 = vpack.c.b16 %v7082, %v7066
    %v8123 = vpack.c.b16 %v7083, %v7067
    %v8124 = vpack.c.b16 %v7100, %v7084
    %v8125 = vpack.c.b16 %v7101, %v7085
    %v8126 = vpack.c.b16 %v7102, %v7086
    %v8127 = vpack.c.b16 %v7103, %v7087
    %v8128 = vpack.c.b16 %v7104, %v7088
    %v8129 = vpack.c.b16 %v7105, %v7089
    %v8130 = vpack.c.b16 %v7106, %v7090
    %v8131 = vpack.c.b16 %v7107, %v7091
    %v8132 = vpack.c.b16 %v7108, %v7092
    %v8133 = vpack.c.b16 %v7109, %v7093
    %v8134 = vpack.c.b16 %v7110, %v7094
    %v8135 = vpack.c.b16 %v7111, %v7095
    %v8136 = vpack.c.b16 %v7112, %v7096
    %v8137 = vpack.c.b16 %v7113, %v7097
    %v8138 = vpack.c.b16 %v7114, %v7098
    %v8139 = vpack.c.b16 %v7115, %v7099
    %9164 = vmatpush.bf16.msra.mxu0 %v7228
    %9165 = vmatpush.bf16.msra.mxu0 %v7212
    %9166 = vmatpush.bf16.msra.mxu0 %v7196
    %9167 = vmatpush.bf16.msra.mxu0 %v7180
    %9168 = vmatpush.bf16.msra.mxu0 %v7164
    %9169 = vmatpush.bf16.msra.mxu0 %v7148
    %9170 = vmatpush.bf16.msra.mxu0 %v7132
    %9171 = vmatpush.bf16.msra.mxu0 %v7116
    %9172 = vmatmul.bf16.gmra.mxu0 %v2976
    %v9173 = vpop.f32.mrf.mxu0
    %v9174 = vadd.f32 %v4012, %v9173
    %v9175 = vpop.f32.mrf.mxu0
    %9176 = vdwg.mxu0
    %9177 = vmatpush.bf16.msra.mxu0 %v7356
    %9178 = vmatpush.bf16.msra.mxu0 %v7340
    %9179 = vmatpush.bf16.msra.mxu0 %v7324
    %9180 = vmatpush.bf16.msra.mxu0 %v7308
    %9181 = vmatpush.bf16.msra.mxu0 %v7292
    %9182 = vmatpush.bf16.msra.mxu0 %v7276
    %9183 = vmatpush.bf16.msra.mxu0 %v7260
    %9184 = vmatpush.bf16.msra.mxu0 %v7244
    %9185 = vmatmul.bf16.gmra.mxu0 %v2977
    %v9186 = vpop.f32.mrf.mxu0
    %v9187 = vadd.f32 %v9174, %v9186
    %v9188 = vpop.f32.mrf.mxu0
    %9189 = vdwg.mxu0
    %9190 = vmatpush.bf16.msra.mxu0 %v7484
    %9191 = vmatpush.bf16.msra.mxu0 %v7468
    %9192 = vmatpush.bf16.msra.mxu0 %v7452
    %9193 = vmatpush.bf16.msra.mxu0 %v7436
    %9194 = vmatpush.bf16.msra.mxu0 %v7420
    %9195 = vmatpush.bf16.msra.mxu0 %v7404
    %9196 = vmatpush.bf16.msra.mxu0 %v7388
    %9197 = vmatpush.bf16.msra.mxu0 %v7372
    %9198 = vmatmul.bf16.gmra.mxu0 %v2978
    %v9199 = vpop.f32.mrf.mxu0
    %v9200 = vadd.f32 %v9187, %v9199
    %v9201 = vpop.f32.mrf.mxu0
    %9202 = vdwg.mxu0
    %9203 = vmatpush.bf16.msra.mxu0 %v7612
    %9204 = vmatpush.bf16.msra.mxu0 %v7596
    %9205 = vmatpush.bf16.msra.mxu0 %v7580
    %9206 = vmatpush.bf16.msra.mxu0 %v7564
    %9207 = vmatpush.bf16.msra.mxu0 %v7548
    %9208 = vmatpush.bf16.msra.mxu0 %v7532
    %9209 = vmatpush.bf16.msra.mxu0 %v7516
    %9210 = vmatpush.bf16.msra.mxu0 %v7500
    %9211 = vmatmul.bf16.gmra.mxu0 %v2979
    %v9212 = vpop.f32.mrf.mxu0
    %v9213 = vadd.f32 %v9200, %v9212
    %v9214 = vpop.f32.mrf.mxu0
    %9215 = vdwg.mxu0
    %9216 = vmatpush.bf16.msra.mxu0 %v7740
    %9217 = vmatpush.bf16.msra.mxu0 %v7724
    %9218 = vmatpush.bf16.msra.mxu0 %v7708
    %9219 = vmatpush.bf16.msra.mxu0 %v7692
    %9220 = vmatpush.bf16.msra.mxu0 %v7676
    %9221 = vmatpush.bf16.msra.mxu0 %v7660
    %9222 = vmatpush.bf16.msra.mxu0 %v7644
    %9223 = vmatpush.bf16.msra.mxu0 %v7628
    %9224 = vmatmul.bf16.gmra.mxu0 %v2980
    %v9225 = vpop.f32.mrf.mxu0
    %v9226 = vadd.f32 %v9213, %v9225
    %v9227 = vpop.f32.mrf.mxu0
    %9228 = vdwg.mxu0
    %9229 = vmatpush.bf16.msra.mxu0 %v7868
    %9230 = vmatpush.bf16.msra.mxu0 %v7852
    %9231 = vmatpush.bf16.msra.mxu0 %v7836
    %9232 = vmatpush.bf16.msra.mxu0 %v7820
    %9233 = vmatpush.bf16.msra.mxu0 %v7804
    %9234 = vmatpush.bf16.msra.mxu0 %v7788
    %9235 = vmatpush.bf16.msra.mxu0 %v7772
    %9236 = vmatpush.bf16.msra.mxu0 %v7756
    %9237 = vmatmul.bf16.gmra.mxu0 %v2981
    %v9238 = vpop.f32.mrf.mxu0
    %v9239 = vadd.f32 %v9226, %v9238
    %v9240 = vpop.f32.mrf.mxu0
    %9241 = vdwg.mxu0
    %9242 = vmatpush.bf16.msra.mxu0 %v7996
    %9243 = vmatpush.bf16.msra.mxu0 %v7980
    %9244 = vmatpush.bf16.msra.mxu0 %v7964
    %9245 = vmatpush.bf16.msra.mxu0 %v7948
    %9246 = vmatpush.bf16.msra.mxu0 %v7932
    %9247 = vmatpush.bf16.msra.mxu0 %v7916
    %9248 = vmatpush.bf16.msra.mxu0 %v7900
    %9249 = vmatpush.bf16.msra.mxu0 %v7884
    %9250 = vmatmul.bf16.gmra.mxu0 %v2982
    %v9251 = vpop.f32.mrf.mxu0
    %v9252 = vadd.f32 %v9239, %v9251
    %v9253 = vpop.f32.mrf.mxu0
    %9254 = vdwg.mxu0
    %9255 = vmatpush.bf16.msra.mxu0 %v8124
    %9256 = vmatpush.bf16.msra.mxu0 %v8108
    %9257 = vmatpush.bf16.msra.mxu0 %v8092
    %9258 = vmatpush.bf16.msra.mxu0 %v8076
    %9259 = vmatpush.bf16.msra.mxu0 %v8060
    %9260 = vmatpush.bf16.msra.mxu0 %v8044
    %9261 = vmatpush.bf16.msra.mxu0 %v8028
    %9262 = vmatpush.bf16.msra.mxu0 %v8012
    %9263 = vmatmul.bf16.gmra.mxu0 %v2983
    %v9264 = vpop.f32.mrf.mxu0
    %v9265 = vadd.f32 %v9252, %v9264
    %v9266 = vpop.f32.mrf.mxu0
    %9267 = vdwg.mxu0
    %9268 = vmatpush.bf16.msra.mxu0 %v7229
    %9269 = vmatpush.bf16.msra.mxu0 %v7213
    %9270 = vmatpush.bf16.msra.mxu0 %v7197
    %9271 = vmatpush.bf16.msra.mxu0 %v7181
    %9272 = vmatpush.bf16.msra.mxu0 %v7165
    %9273 = vmatpush.bf16.msra.mxu0 %v7149
    %9274 = vmatpush.bf16.msra.mxu0 %v7133
    %9275 = vmatpush.bf16.msra.mxu0 %v7117
    %9276 = vmatmul.bf16.gmra.mxu0 %v2976
    %v9277 = vpop.f32.mrf.mxu0
    %v9278 = vadd.f32 %v4013, %v9277
    %v9279 = vpop.f32.mrf.mxu0
    %9280 = vdwg.mxu0
    %9281 = vmatpush.bf16.msra.mxu0 %v7357
    %9282 = vmatpush.bf16.msra.mxu0 %v7341
    %9283 = vmatpush.bf16.msra.mxu0 %v7325
    %9284 = vmatpush.bf16.msra.mxu0 %v7309
    %9285 = vmatpush.bf16.msra.mxu0 %v7293
    %9286 = vmatpush.bf16.msra.mxu0 %v7277
    %9287 = vmatpush.bf16.msra.mxu0 %v7261
    %9288 = vmatpush.bf16.msra.mxu0 %v7245
    %9289 = vmatmul.bf16.gmra.mxu0 %v2977
    %v9290 = vpop.f32.mrf.mxu0
    %v9291 = vadd.f32 %v9278, %v9290
    %v9292 = vpop.f32.mrf.mxu0
    %9293 = vdwg.mxu0
    %9294 = vmatpush.bf16.msra.mxu0 %v7485
    %9295 = vmatpush.bf16.msra.mxu0 %v7469
    %9296 = vmatpush.bf16.msra.mxu0 %v7453
    %9297 = vmatpush.bf16.msra.mxu0 %v7437
    %9298 = vmatpush.bf16.msra.mxu0 %v7421
    %9299 = vmatpush.bf16.msra.mxu0 %v7405
    %9300 = vmatpush.bf16.msra.mxu0 %v7389
    %9301 = vmatpush.bf16.msra.mxu0 %v7373
    %9302 = vmatmul.bf16.gmra.mxu0 %v2978
    %v9303 = vpop.f32.mrf.mxu0
    %v9304 = vadd.f32 %v9291, %v9303
    %v9305 = vpop.f32.mrf.mxu0
    %9306 = vdwg.mxu0
    %9307 = vmatpush.bf16.msra.mxu0 %v7613
    %9308 = vmatpush.bf16.msra.mxu0 %v7597
    %9309 = vmatpush.bf16.msra.mxu0 %v7581
    %9310 = vmatpush.bf16.msra.mxu0 %v7565
    %9311 = vmatpush.bf16.msra.mxu0 %v7549
    %9312 = vmatpush.bf16.msra.mxu0 %v7533
    %9313 = vmatpush.bf16.msra.mxu0 %v7517
    %9314 = vmatpush.bf16.msra.mxu0 %v7501
    %9315 = vmatmul.bf16.gmra.mxu0 %v2979
    %v9316 = vpop.f32.mrf.mxu0
    %v9317 = vadd.f32 %v9304, %v9316
    %v9318 = vpop.f32.mrf.mxu0
    %9319 = vdwg.mxu0
    %9320 = vmatpush.bf16.msra.mxu0 %v7741
    %9321 = vmatpush.bf16.msra.mxu0 %v7725
    %9322 = vmatpush.bf16.msra.mxu0 %v7709
    %9323 = vmatpush.bf16.msra.mxu0 %v7693
    %9324 = vmatpush.bf16.msra.mxu0 %v7677
    %9325 = vmatpush.bf16.msra.mxu0 %v7661
    %9326 = vmatpush.bf16.msra.mxu0 %v7645
    %9327 = vmatpush.bf16.msra.mxu0 %v7629
    %9328 = vmatmul.bf16.gmra.mxu0 %v2980
    %v9329 = vpop.f32.mrf.mxu0
    %v9330 = vadd.f32 %v9317, %v9329
    %v9331 = vpop.f32.mrf.mxu0
    %9332 = vdwg.mxu0
    %9333 = vmatpush.bf16.msra.mxu0 %v7869
    %9334 = vmatpush.bf16.msra.mxu0 %v7853
    %9335 = vmatpush.bf16.msra.mxu0 %v7837
    %9336 = vmatpush.bf16.msra.mxu0 %v7821
    %9337 = vmatpush.bf16.msra.mxu0 %v7805
    %9338 = vmatpush.bf16.msra.mxu0 %v7789
    %9339 = vmatpush.bf16.msra.mxu0 %v7773
    %9340 = vmatpush.bf16.msra.mxu0 %v7757
    %9341 = vmatmul.bf16.gmra.mxu0 %v2981
    %v9342 = vpop.f32.mrf.mxu0
    %v9343 = vadd.f32 %v9330, %v9342
    %v9344 = vpop.f32.mrf.mxu0
    %9345 = vdwg.mxu0
    %9346 = vmatpush.bf16.msra.mxu0 %v7997
    %9347 = vmatpush.bf16.msra.mxu0 %v7981
    %9348 = vmatpush.bf16.msra.mxu0 %v7965
    %9349 = vmatpush.bf16.msra.mxu0 %v7949
    %9350 = vmatpush.bf16.msra.mxu0 %v7933
    %9351 = vmatpush.bf16.msra.mxu0 %v7917
    %9352 = vmatpush.bf16.msra.mxu0 %v7901
    %9353 = vmatpush.bf16.msra.mxu0 %v7885
    %9354 = vmatmul.bf16.gmra.mxu0 %v2982
    %v9355 = vpop.f32.mrf.mxu0
    %v9356 = vadd.f32 %v9343, %v9355
    %v9357 = vpop.f32.mrf.mxu0
    %9358 = vdwg.mxu0
    %9359 = vmatpush.bf16.msra.mxu0 %v8125
    %9360 = vmatpush.bf16.msra.mxu0 %v8109
    %9361 = vmatpush.bf16.msra.mxu0 %v8093
    %9362 = vmatpush.bf16.msra.mxu0 %v8077
    %9363 = vmatpush.bf16.msra.mxu0 %v8061
    %9364 = vmatpush.bf16.msra.mxu0 %v8045
    %9365 = vmatpush.bf16.msra.mxu0 %v8029
    %9366 = vmatpush.bf16.msra.mxu0 %v8013
    %9367 = vmatmul.bf16.gmra.mxu0 %v2983
    %v9368 = vpop.f32.mrf.mxu0
    %v9369 = vadd.f32 %v9356, %v9368
    %v9370 = vpop.f32.mrf.mxu0
    %9371 = vdwg.mxu0
    %9372 = vmatpush.bf16.msra.mxu0 %v7230
    %9373 = vmatpush.bf16.msra.mxu0 %v7214
    %9374 = vmatpush.bf16.msra.mxu0 %v7198
    %9375 = vmatpush.bf16.msra.mxu0 %v7182
    %9376 = vmatpush.bf16.msra.mxu0 %v7166
    %9377 = vmatpush.bf16.msra.mxu0 %v7150
    %9378 = vmatpush.bf16.msra.mxu0 %v7134
    %9379 = vmatpush.bf16.msra.mxu0 %v7118
    %9380 = vmatmul.bf16.gmra.mxu0 %v2976
    %v9381 = vpop.f32.mrf.mxu0
    %v9382 = vadd.f32 %v4014, %v9381
    %v9383 = vpop.f32.mrf.mxu0
    %9384 = vdwg.mxu0
    %9385 = vmatpush.bf16.msra.mxu0 %v7358
    %9386 = vmatpush.bf16.msra.mxu0 %v7342
    %9387 = vmatpush.bf16.msra.mxu0 %v7326
    %9388 = vmatpush.bf16.msra.mxu0 %v7310
    %9389 = vmatpush.bf16.msra.mxu0 %v7294
    %9390 = vmatpush.bf16.msra.mxu0 %v7278
    %9391 = vmatpush.bf16.msra.mxu0 %v7262
    %9392 = vmatpush.bf16.msra.mxu0 %v7246
    %9393 = vmatmul.bf16.gmra.mxu0 %v2977
    %v9394 = vpop.f32.mrf.mxu0
    %v9395 = vadd.f32 %v9382, %v9394
    %v9396 = vpop.f32.mrf.mxu0
    %9397 = vdwg.mxu0
    %9398 = vmatpush.bf16.msra.mxu0 %v7486
    %9399 = vmatpush.bf16.msra.mxu0 %v7470
    %9400 = vmatpush.bf16.msra.mxu0 %v7454
    %9401 = vmatpush.bf16.msra.mxu0 %v7438
    %9402 = vmatpush.bf16.msra.mxu0 %v7422
    %9403 = vmatpush.bf16.msra.mxu0 %v7406
    %9404 = vmatpush.bf16.msra.mxu0 %v7390
    %9405 = vmatpush.bf16.msra.mxu0 %v7374
    %9406 = vmatmul.bf16.gmra.mxu0 %v2978
    %v9407 = vpop.f32.mrf.mxu0
    %v9408 = vadd.f32 %v9395, %v9407
    %v9409 = vpop.f32.mrf.mxu0
    %9410 = vdwg.mxu0
    %9411 = vmatpush.bf16.msra.mxu0 %v7614
    %9412 = vmatpush.bf16.msra.mxu0 %v7598
    %9413 = vmatpush.bf16.msra.mxu0 %v7582
    %9414 = vmatpush.bf16.msra.mxu0 %v7566
    %9415 = vmatpush.bf16.msra.mxu0 %v7550
    %9416 = vmatpush.bf16.msra.mxu0 %v7534
    %9417 = vmatpush.bf16.msra.mxu0 %v7518
    %9418 = vmatpush.bf16.msra.mxu0 %v7502
    %9419 = vmatmul.bf16.gmra.mxu0 %v2979
    %v9420 = vpop.f32.mrf.mxu0
    %v9421 = vadd.f32 %v9408, %v9420
    %v9422 = vpop.f32.mrf.mxu0
    %9423 = vdwg.mxu0
    %9424 = vmatpush.bf16.msra.mxu0 %v7742
    %9425 = vmatpush.bf16.msra.mxu0 %v7726
    %9426 = vmatpush.bf16.msra.mxu0 %v7710
    %9427 = vmatpush.bf16.msra.mxu0 %v7694
    %9428 = vmatpush.bf16.msra.mxu0 %v7678
    %9429 = vmatpush.bf16.msra.mxu0 %v7662
    %9430 = vmatpush.bf16.msra.mxu0 %v7646
    %9431 = vmatpush.bf16.msra.mxu0 %v7630
    %9432 = vmatmul.bf16.gmra.mxu0 %v2980
    %v9433 = vpop.f32.mrf.mxu0
    %v9434 = vadd.f32 %v9421, %v9433
    %v9435 = vpop.f32.mrf.mxu0
    %9436 = vdwg.mxu0
    %9437 = vmatpush.bf16.msra.mxu0 %v7870
    %9438 = vmatpush.bf16.msra.mxu0 %v7854
    %9439 = vmatpush.bf16.msra.mxu0 %v7838
    %9440 = vmatpush.bf16.msra.mxu0 %v7822
    %9441 = vmatpush.bf16.msra.mxu0 %v7806
    %9442 = vmatpush.bf16.msra.mxu0 %v7790
    %9443 = vmatpush.bf16.msra.mxu0 %v7774
    %9444 = vmatpush.bf16.msra.mxu0 %v7758
    %9445 = vmatmul.bf16.gmra.mxu0 %v2981
    %v9446 = vpop.f32.mrf.mxu0
    %v9447 = vadd.f32 %v9434, %v9446
    %v9448 = vpop.f32.mrf.mxu0
    %9449 = vdwg.mxu0
    %9450 = vmatpush.bf16.msra.mxu0 %v7998
    %9451 = vmatpush.bf16.msra.mxu0 %v7982
    %9452 = vmatpush.bf16.msra.mxu0 %v7966
    %9453 = vmatpush.bf16.msra.mxu0 %v7950
    %9454 = vmatpush.bf16.msra.mxu0 %v7934
    %9455 = vmatpush.bf16.msra.mxu0 %v7918
    %9456 = vmatpush.bf16.msra.mxu0 %v7902
    %9457 = vmatpush.bf16.msra.mxu0 %v7886
    %9458 = vmatmul.bf16.gmra.mxu0 %v2982
    %v9459 = vpop.f32.mrf.mxu0
    %v9460 = vadd.f32 %v9447, %v9459
    %v9461 = vpop.f32.mrf.mxu0
    %9462 = vdwg.mxu0
    %9463 = vmatpush.bf16.msra.mxu0 %v8126
    %9464 = vmatpush.bf16.msra.mxu0 %v8110
    %9465 = vmatpush.bf16.msra.mxu0 %v8094
    %9466 = vmatpush.bf16.msra.mxu0 %v8078
    %9467 = vmatpush.bf16.msra.mxu0 %v8062
    %9468 = vmatpush.bf16.msra.mxu0 %v8046
    %9469 = vmatpush.bf16.msra.mxu0 %v8030
    %9470 = vmatpush.bf16.msra.mxu0 %v8014
    %9471 = vmatmul.bf16.gmra.mxu0 %v2983
    %v9472 = vpop.f32.mrf.mxu0
    %v9473 = vadd.f32 %v9460, %v9472
    %v9474 = vpop.f32.mrf.mxu0
    %9475 = vdwg.mxu0
    %9476 = vmatpush.bf16.msra.mxu0 %v7231
    %9477 = vmatpush.bf16.msra.mxu0 %v7215
    %9478 = vmatpush.bf16.msra.mxu0 %v7199
    %9479 = vmatpush.bf16.msra.mxu0 %v7183
    %9480 = vmatpush.bf16.msra.mxu0 %v7167
    %9481 = vmatpush.bf16.msra.mxu0 %v7151
    %9482 = vmatpush.bf16.msra.mxu0 %v7135
    %9483 = vmatpush.bf16.msra.mxu0 %v7119
    %9484 = vmatmul.bf16.gmra.mxu0 %v2976
    %v9485 = vpop.f32.mrf.mxu0
    %v9486 = vadd.f32 %v4015, %v9485
    %v9487 = vpop.f32.mrf.mxu0
    %9488 = vdwg.mxu0
    %9489 = vmatpush.bf16.msra.mxu0 %v7359
    %9490 = vmatpush.bf16.msra.mxu0 %v7343
    %9491 = vmatpush.bf16.msra.mxu0 %v7327
    %9492 = vmatpush.bf16.msra.mxu0 %v7311
    %9493 = vmatpush.bf16.msra.mxu0 %v7295
    %9494 = vmatpush.bf16.msra.mxu0 %v7279
    %9495 = vmatpush.bf16.msra.mxu0 %v7263
    %9496 = vmatpush.bf16.msra.mxu0 %v7247
    %9497 = vmatmul.bf16.gmra.mxu0 %v2977
    %v9498 = vpop.f32.mrf.mxu0
    %v9499 = vadd.f32 %v9486, %v9498
    %v9500 = vpop.f32.mrf.mxu0
    %9501 = vdwg.mxu0
    %9502 = vmatpush.bf16.msra.mxu0 %v7487
    %9503 = vmatpush.bf16.msra.mxu0 %v7471
    %9504 = vmatpush.bf16.msra.mxu0 %v7455
    %9505 = vmatpush.bf16.msra.mxu0 %v7439
    %9506 = vmatpush.bf16.msra.mxu0 %v7423
    %9507 = vmatpush.bf16.msra.mxu0 %v7407
    %9508 = vmatpush.bf16.msra.mxu0 %v7391
    %9509 = vmatpush.bf16.msra.mxu0 %v7375
    %9510 = vmatmul.bf16.gmra.mxu0 %v2978
    %v9511 = vpop.f32.mrf.mxu0
    %v9512 = vadd.f32 %v9499, %v9511
    %v9513 = vpop.f32.mrf.mxu0
    %9514 = vdwg.mxu0
    %9515 = vmatpush.bf16.msra.mxu0 %v7615
    %9516 = vmatpush.bf16.msra.mxu0 %v7599
    %9517 = vmatpush.bf16.msra.mxu0 %v7583
    %9518 = vmatpush.bf16.msra.mxu0 %v7567
    %9519 = vmatpush.bf16.msra.mxu0 %v7551
    %9520 = vmatpush.bf16.msra.mxu0 %v7535
    %9521 = vmatpush.bf16.msra.mxu0 %v7519
    %9522 = vmatpush.bf16.msra.mxu0 %v7503
    %9523 = vmatmul.bf16.gmra.mxu0 %v2979
    %v9524 = vpop.f32.mrf.mxu0
    %v9525 = vadd.f32 %v9512, %v9524
    %v9526 = vpop.f32.mrf.mxu0
    %9527 = vdwg.mxu0
    %9528 = vmatpush.bf16.msra.mxu0 %v7743
    %9529 = vmatpush.bf16.msra.mxu0 %v7727
    %9530 = vmatpush.bf16.msra.mxu0 %v7711
    %9531 = vmatpush.bf16.msra.mxu0 %v7695
    %9532 = vmatpush.bf16.msra.mxu0 %v7679
    %9533 = vmatpush.bf16.msra.mxu0 %v7663
    %9534 = vmatpush.bf16.msra.mxu0 %v7647
    %9535 = vmatpush.bf16.msra.mxu0 %v7631
    %9536 = vmatmul.bf16.gmra.mxu0 %v2980
    %v9537 = vpop.f32.mrf.mxu0
    %v9538 = vadd.f32 %v9525, %v9537
    %v9539 = vpop.f32.mrf.mxu0
    %9540 = vdwg.mxu0
    %9541 = vmatpush.bf16.msra.mxu0 %v7871
    %9542 = vmatpush.bf16.msra.mxu0 %v7855
    %9543 = vmatpush.bf16.msra.mxu0 %v7839
    %9544 = vmatpush.bf16.msra.mxu0 %v7823
    %9545 = vmatpush.bf16.msra.mxu0 %v7807
    %9546 = vmatpush.bf16.msra.mxu0 %v7791
    %9547 = vmatpush.bf16.msra.mxu0 %v7775
    %9548 = vmatpush.bf16.msra.mxu0 %v7759
    %9549 = vmatmul.bf16.gmra.mxu0 %v2981
    %v9550 = vpop.f32.mrf.mxu0
    %v9551 = vadd.f32 %v9538, %v9550
    %v9552 = vpop.f32.mrf.mxu0
    %9553 = vdwg.mxu0
    %9554 = vmatpush.bf16.msra.mxu0 %v7999
    %9555 = vmatpush.bf16.msra.mxu0 %v7983
    %9556 = vmatpush.bf16.msra.mxu0 %v7967
    %9557 = vmatpush.bf16.msra.mxu0 %v7951
    %9558 = vmatpush.bf16.msra.mxu0 %v7935
    %9559 = vmatpush.bf16.msra.mxu0 %v7919
    %9560 = vmatpush.bf16.msra.mxu0 %v7903
    %9561 = vmatpush.bf16.msra.mxu0 %v7887
    %9562 = vmatmul.bf16.gmra.mxu0 %v2982
    %v9563 = vpop.f32.mrf.mxu0
    %v9564 = vadd.f32 %v9551, %v9563
    %v9565 = vpop.f32.mrf.mxu0
    %9566 = vdwg.mxu0
    %9567 = vmatpush.bf16.msra.mxu0 %v8127
    %9568 = vmatpush.bf16.msra.mxu0 %v8111
    %9569 = vmatpush.bf16.msra.mxu0 %v8095
    %9570 = vmatpush.bf16.msra.mxu0 %v8079
    %9571 = vmatpush.bf16.msra.mxu0 %v8063
    %9572 = vmatpush.bf16.msra.mxu0 %v8047
    %9573 = vmatpush.bf16.msra.mxu0 %v8031
    %9574 = vmatpush.bf16.msra.mxu0 %v8015
    %9575 = vmatmul.bf16.gmra.mxu0 %v2983
    %v9576 = vpop.f32.mrf.mxu0
    %v9577 = vadd.f32 %v9564, %v9576
    %v9578 = vpop.f32.mrf.mxu0
    %9579 = vdwg.mxu0
    %9580 = vmatpush.bf16.msra.mxu0 %v7232
    %9581 = vmatpush.bf16.msra.mxu0 %v7216
    %9582 = vmatpush.bf16.msra.mxu0 %v7200
    %9583 = vmatpush.bf16.msra.mxu0 %v7184
    %9584 = vmatpush.bf16.msra.mxu0 %v7168
    %9585 = vmatpush.bf16.msra.mxu0 %v7152
    %9586 = vmatpush.bf16.msra.mxu0 %v7136
    %9587 = vmatpush.bf16.msra.mxu0 %v7120
    %9588 = vmatmul.bf16.gmra.mxu0 %v2976
    %v9589 = vpop.f32.mrf.mxu0
    %v9590 = vadd.f32 %v4016, %v9589
    %v9591 = vpop.f32.mrf.mxu0
    %9592 = vdwg.mxu0
    %9593 = vmatpush.bf16.msra.mxu0 %v7360
    %9594 = vmatpush.bf16.msra.mxu0 %v7344
    %9595 = vmatpush.bf16.msra.mxu0 %v7328
    %9596 = vmatpush.bf16.msra.mxu0 %v7312
    %9597 = vmatpush.bf16.msra.mxu0 %v7296
    %9598 = vmatpush.bf16.msra.mxu0 %v7280
    %9599 = vmatpush.bf16.msra.mxu0 %v7264
    %9600 = vmatpush.bf16.msra.mxu0 %v7248
    %9601 = vmatmul.bf16.gmra.mxu0 %v2977
    %v9602 = vpop.f32.mrf.mxu0
    %v9603 = vadd.f32 %v9590, %v9602
    %v9604 = vpop.f32.mrf.mxu0
    %9605 = vdwg.mxu0
    %9606 = vmatpush.bf16.msra.mxu0 %v7488
    %9607 = vmatpush.bf16.msra.mxu0 %v7472
    %9608 = vmatpush.bf16.msra.mxu0 %v7456
    %9609 = vmatpush.bf16.msra.mxu0 %v7440
    %9610 = vmatpush.bf16.msra.mxu0 %v7424
    %9611 = vmatpush.bf16.msra.mxu0 %v7408
    %9612 = vmatpush.bf16.msra.mxu0 %v7392
    %9613 = vmatpush.bf16.msra.mxu0 %v7376
    %9614 = vmatmul.bf16.gmra.mxu0 %v2978
    %v9615 = vpop.f32.mrf.mxu0
    %v9616 = vadd.f32 %v9603, %v9615
    %v9617 = vpop.f32.mrf.mxu0
    %9618 = vdwg.mxu0
    %9619 = vmatpush.bf16.msra.mxu0 %v7616
    %9620 = vmatpush.bf16.msra.mxu0 %v7600
    %9621 = vmatpush.bf16.msra.mxu0 %v7584
    %9622 = vmatpush.bf16.msra.mxu0 %v7568
    %9623 = vmatpush.bf16.msra.mxu0 %v7552
    %9624 = vmatpush.bf16.msra.mxu0 %v7536
    %9625 = vmatpush.bf16.msra.mxu0 %v7520
    %9626 = vmatpush.bf16.msra.mxu0 %v7504
    %9627 = vmatmul.bf16.gmra.mxu0 %v2979
    %v9628 = vpop.f32.mrf.mxu0
    %v9629 = vadd.f32 %v9616, %v9628
    %v9630 = vpop.f32.mrf.mxu0
    %9631 = vdwg.mxu0
    %9632 = vmatpush.bf16.msra.mxu0 %v7744
    %9633 = vmatpush.bf16.msra.mxu0 %v7728
    %9634 = vmatpush.bf16.msra.mxu0 %v7712
    %9635 = vmatpush.bf16.msra.mxu0 %v7696
    %9636 = vmatpush.bf16.msra.mxu0 %v7680
    %9637 = vmatpush.bf16.msra.mxu0 %v7664
    %9638 = vmatpush.bf16.msra.mxu0 %v7648
    %9639 = vmatpush.bf16.msra.mxu0 %v7632
    %9640 = vmatmul.bf16.gmra.mxu0 %v2980
    %v9641 = vpop.f32.mrf.mxu0
    %v9642 = vadd.f32 %v9629, %v9641
    %v9643 = vpop.f32.mrf.mxu0
    %9644 = vdwg.mxu0
    %9645 = vmatpush.bf16.msra.mxu0 %v7872
    %9646 = vmatpush.bf16.msra.mxu0 %v7856
    %9647 = vmatpush.bf16.msra.mxu0 %v7840
    %9648 = vmatpush.bf16.msra.mxu0 %v7824
    %9649 = vmatpush.bf16.msra.mxu0 %v7808
    %9650 = vmatpush.bf16.msra.mxu0 %v7792
    %9651 = vmatpush.bf16.msra.mxu0 %v7776
    %9652 = vmatpush.bf16.msra.mxu0 %v7760
    %9653 = vmatmul.bf16.gmra.mxu0 %v2981
    %v9654 = vpop.f32.mrf.mxu0
    %v9655 = vadd.f32 %v9642, %v9654
    %v9656 = vpop.f32.mrf.mxu0
    %9657 = vdwg.mxu0
    %9658 = vmatpush.bf16.msra.mxu0 %v8000
    %9659 = vmatpush.bf16.msra.mxu0 %v7984
    %9660 = vmatpush.bf16.msra.mxu0 %v7968
    %9661 = vmatpush.bf16.msra.mxu0 %v7952
    %9662 = vmatpush.bf16.msra.mxu0 %v7936
    %9663 = vmatpush.bf16.msra.mxu0 %v7920
    %9664 = vmatpush.bf16.msra.mxu0 %v7904
    %9665 = vmatpush.bf16.msra.mxu0 %v7888
    %9666 = vmatmul.bf16.gmra.mxu0 %v2982
    %v9667 = vpop.f32.mrf.mxu0
    %v9668 = vadd.f32 %v9655, %v9667
    %v9669 = vpop.f32.mrf.mxu0
    %9670 = vdwg.mxu0
    %9671 = vmatpush.bf16.msra.mxu0 %v8128
    %9672 = vmatpush.bf16.msra.mxu0 %v8112
    %9673 = vmatpush.bf16.msra.mxu0 %v8096
    %9674 = vmatpush.bf16.msra.mxu0 %v8080
    %9675 = vmatpush.bf16.msra.mxu0 %v8064
    %9676 = vmatpush.bf16.msra.mxu0 %v8048
    %9677 = vmatpush.bf16.msra.mxu0 %v8032
    %9678 = vmatpush.bf16.msra.mxu0 %v8016
    %9679 = vmatmul.bf16.gmra.mxu0 %v2983
    %v9680 = vpop.f32.mrf.mxu0
    %v9681 = vadd.f32 %v9668, %v9680
    %v9682 = vpop.f32.mrf.mxu0
    %9683 = vdwg.mxu0
    %9684 = vmatpush.bf16.msra.mxu0 %v7233
    %9685 = vmatpush.bf16.msra.mxu0 %v7217
    %9686 = vmatpush.bf16.msra.mxu0 %v7201
    %9687 = vmatpush.bf16.msra.mxu0 %v7185
    %9688 = vmatpush.bf16.msra.mxu0 %v7169
    %9689 = vmatpush.bf16.msra.mxu0 %v7153
    %9690 = vmatpush.bf16.msra.mxu0 %v7137
    %9691 = vmatpush.bf16.msra.mxu0 %v7121
    %9692 = vmatmul.bf16.gmra.mxu0 %v2976
    %v9693 = vpop.f32.mrf.mxu0
    %v9694 = vadd.f32 %v4017, %v9693
    %v9695 = vpop.f32.mrf.mxu0
    %9696 = vdwg.mxu0
    %9697 = vmatpush.bf16.msra.mxu0 %v7361
    %9698 = vmatpush.bf16.msra.mxu0 %v7345
    %9699 = vmatpush.bf16.msra.mxu0 %v7329
    %9700 = vmatpush.bf16.msra.mxu0 %v7313
    %9701 = vmatpush.bf16.msra.mxu0 %v7297
    %9702 = vmatpush.bf16.msra.mxu0 %v7281
    %9703 = vmatpush.bf16.msra.mxu0 %v7265
    %9704 = vmatpush.bf16.msra.mxu0 %v7249
    %9705 = vmatmul.bf16.gmra.mxu0 %v2977
    %v9706 = vpop.f32.mrf.mxu0
    %v9707 = vadd.f32 %v9694, %v9706
    %v9708 = vpop.f32.mrf.mxu0
    %9709 = vdwg.mxu0
    %9710 = vmatpush.bf16.msra.mxu0 %v7489
    %9711 = vmatpush.bf16.msra.mxu0 %v7473
    %9712 = vmatpush.bf16.msra.mxu0 %v7457
    %9713 = vmatpush.bf16.msra.mxu0 %v7441
    %9714 = vmatpush.bf16.msra.mxu0 %v7425
    %9715 = vmatpush.bf16.msra.mxu0 %v7409
    %9716 = vmatpush.bf16.msra.mxu0 %v7393
    %9717 = vmatpush.bf16.msra.mxu0 %v7377
    %9718 = vmatmul.bf16.gmra.mxu0 %v2978
    %v9719 = vpop.f32.mrf.mxu0
    %v9720 = vadd.f32 %v9707, %v9719
    %v9721 = vpop.f32.mrf.mxu0
    %9722 = vdwg.mxu0
    %9723 = vmatpush.bf16.msra.mxu0 %v7617
    %9724 = vmatpush.bf16.msra.mxu0 %v7601
    %9725 = vmatpush.bf16.msra.mxu0 %v7585
    %9726 = vmatpush.bf16.msra.mxu0 %v7569
    %9727 = vmatpush.bf16.msra.mxu0 %v7553
    %9728 = vmatpush.bf16.msra.mxu0 %v7537
    %9729 = vmatpush.bf16.msra.mxu0 %v7521
    %9730 = vmatpush.bf16.msra.mxu0 %v7505
    %9731 = vmatmul.bf16.gmra.mxu0 %v2979
    %v9732 = vpop.f32.mrf.mxu0
    %v9733 = vadd.f32 %v9720, %v9732
    %v9734 = vpop.f32.mrf.mxu0
    %9735 = vdwg.mxu0
    %9736 = vmatpush.bf16.msra.mxu0 %v7745
    %9737 = vmatpush.bf16.msra.mxu0 %v7729
    %9738 = vmatpush.bf16.msra.mxu0 %v7713
    %9739 = vmatpush.bf16.msra.mxu0 %v7697
    %9740 = vmatpush.bf16.msra.mxu0 %v7681
    %9741 = vmatpush.bf16.msra.mxu0 %v7665
    %9742 = vmatpush.bf16.msra.mxu0 %v7649
    %9743 = vmatpush.bf16.msra.mxu0 %v7633
    %9744 = vmatmul.bf16.gmra.mxu0 %v2980
    %v9745 = vpop.f32.mrf.mxu0
    %v9746 = vadd.f32 %v9733, %v9745
    %v9747 = vpop.f32.mrf.mxu0
    %9748 = vdwg.mxu0
    %9749 = vmatpush.bf16.msra.mxu0 %v7873
    %9750 = vmatpush.bf16.msra.mxu0 %v7857
    %9751 = vmatpush.bf16.msra.mxu0 %v7841
    %9752 = vmatpush.bf16.msra.mxu0 %v7825
    %9753 = vmatpush.bf16.msra.mxu0 %v7809
    %9754 = vmatpush.bf16.msra.mxu0 %v7793
    %9755 = vmatpush.bf16.msra.mxu0 %v7777
    %9756 = vmatpush.bf16.msra.mxu0 %v7761
    %9757 = vmatmul.bf16.gmra.mxu0 %v2981
    %v9758 = vpop.f32.mrf.mxu0
    %v9759 = vadd.f32 %v9746, %v9758
    %v9760 = vpop.f32.mrf.mxu0
    %9761 = vdwg.mxu0
    %9762 = vmatpush.bf16.msra.mxu0 %v8001
    %9763 = vmatpush.bf16.msra.mxu0 %v7985
    %9764 = vmatpush.bf16.msra.mxu0 %v7969
    %9765 = vmatpush.bf16.msra.mxu0 %v7953
    %9766 = vmatpush.bf16.msra.mxu0 %v7937
    %9767 = vmatpush.bf16.msra.mxu0 %v7921
    %9768 = vmatpush.bf16.msra.mxu0 %v7905
    %9769 = vmatpush.bf16.msra.mxu0 %v7889
    %9770 = vmatmul.bf16.gmra.mxu0 %v2982
    %v9771 = vpop.f32.mrf.mxu0
    %v9772 = vadd.f32 %v9759, %v9771
    %v9773 = vpop.f32.mrf.mxu0
    %9774 = vdwg.mxu0
    %9775 = vmatpush.bf16.msra.mxu0 %v8129
    %9776 = vmatpush.bf16.msra.mxu0 %v8113
    %9777 = vmatpush.bf16.msra.mxu0 %v8097
    %9778 = vmatpush.bf16.msra.mxu0 %v8081
    %9779 = vmatpush.bf16.msra.mxu0 %v8065
    %9780 = vmatpush.bf16.msra.mxu0 %v8049
    %9781 = vmatpush.bf16.msra.mxu0 %v8033
    %9782 = vmatpush.bf16.msra.mxu0 %v8017
    %9783 = vmatmul.bf16.gmra.mxu0 %v2983
    %v9784 = vpop.f32.mrf.mxu0
    %v9785 = vadd.f32 %v9772, %v9784
    %v9786 = vpop.f32.mrf.mxu0
    %9787 = vdwg.mxu0
    %9788 = vmatpush.bf16.msra.mxu0 %v7234
    %9789 = vmatpush.bf16.msra.mxu0 %v7218
    %9790 = vmatpush.bf16.msra.mxu0 %v7202
    %9791 = vmatpush.bf16.msra.mxu0 %v7186
    %9792 = vmatpush.bf16.msra.mxu0 %v7170
    %9793 = vmatpush.bf16.msra.mxu0 %v7154
    %9794 = vmatpush.bf16.msra.mxu0 %v7138
    %9795 = vmatpush.bf16.msra.mxu0 %v7122
    %9796 = vmatmul.bf16.gmra.mxu0 %v2976
    %v9797 = vpop.f32.mrf.mxu0
    %v9798 = vadd.f32 %v4018, %v9797
    %v9799 = vpop.f32.mrf.mxu0
    %9800 = vdwg.mxu0
    %9801 = vmatpush.bf16.msra.mxu0 %v7362
    %9802 = vmatpush.bf16.msra.mxu0 %v7346
    %9803 = vmatpush.bf16.msra.mxu0 %v7330
    %9804 = vmatpush.bf16.msra.mxu0 %v7314
    %9805 = vmatpush.bf16.msra.mxu0 %v7298
    %9806 = vmatpush.bf16.msra.mxu0 %v7282
    %9807 = vmatpush.bf16.msra.mxu0 %v7266
    %9808 = vmatpush.bf16.msra.mxu0 %v7250
    %9809 = vmatmul.bf16.gmra.mxu0 %v2977
    %v9810 = vpop.f32.mrf.mxu0
    %v9811 = vadd.f32 %v9798, %v9810
    %v9812 = vpop.f32.mrf.mxu0
    %9813 = vdwg.mxu0
    %9814 = vmatpush.bf16.msra.mxu0 %v7490
    %9815 = vmatpush.bf16.msra.mxu0 %v7474
    %9816 = vmatpush.bf16.msra.mxu0 %v7458
    %9817 = vmatpush.bf16.msra.mxu0 %v7442
    %9818 = vmatpush.bf16.msra.mxu0 %v7426
    %9819 = vmatpush.bf16.msra.mxu0 %v7410
    %9820 = vmatpush.bf16.msra.mxu0 %v7394
    %9821 = vmatpush.bf16.msra.mxu0 %v7378
    %9822 = vmatmul.bf16.gmra.mxu0 %v2978
    %v9823 = vpop.f32.mrf.mxu0
    %v9824 = vadd.f32 %v9811, %v9823
    %v9825 = vpop.f32.mrf.mxu0
    %9826 = vdwg.mxu0
    %9827 = vmatpush.bf16.msra.mxu0 %v7618
    %9828 = vmatpush.bf16.msra.mxu0 %v7602
    %9829 = vmatpush.bf16.msra.mxu0 %v7586
    %9830 = vmatpush.bf16.msra.mxu0 %v7570
    %9831 = vmatpush.bf16.msra.mxu0 %v7554
    %9832 = vmatpush.bf16.msra.mxu0 %v7538
    %9833 = vmatpush.bf16.msra.mxu0 %v7522
    %9834 = vmatpush.bf16.msra.mxu0 %v7506
    %9835 = vmatmul.bf16.gmra.mxu0 %v2979
    %v9836 = vpop.f32.mrf.mxu0
    %v9837 = vadd.f32 %v9824, %v9836
    %v9838 = vpop.f32.mrf.mxu0
    %9839 = vdwg.mxu0
    %9840 = vmatpush.bf16.msra.mxu0 %v7746
    %9841 = vmatpush.bf16.msra.mxu0 %v7730
    %9842 = vmatpush.bf16.msra.mxu0 %v7714
    %9843 = vmatpush.bf16.msra.mxu0 %v7698
    %9844 = vmatpush.bf16.msra.mxu0 %v7682
    %9845 = vmatpush.bf16.msra.mxu0 %v7666
    %9846 = vmatpush.bf16.msra.mxu0 %v7650
    %9847 = vmatpush.bf16.msra.mxu0 %v7634
    %9848 = vmatmul.bf16.gmra.mxu0 %v2980
    %v9849 = vpop.f32.mrf.mxu0
    %v9850 = vadd.f32 %v9837, %v9849
    %v9851 = vpop.f32.mrf.mxu0
    %9852 = vdwg.mxu0
    %9853 = vmatpush.bf16.msra.mxu0 %v7874
    %9854 = vmatpush.bf16.msra.mxu0 %v7858
    %9855 = vmatpush.bf16.msra.mxu0 %v7842
    %9856 = vmatpush.bf16.msra.mxu0 %v7826
    %9857 = vmatpush.bf16.msra.mxu0 %v7810
    %9858 = vmatpush.bf16.msra.mxu0 %v7794
    %9859 = vmatpush.bf16.msra.mxu0 %v7778
    %9860 = vmatpush.bf16.msra.mxu0 %v7762
    %9861 = vmatmul.bf16.gmra.mxu0 %v2981
    %v9862 = vpop.f32.mrf.mxu0
    %v9863 = vadd.f32 %v9850, %v9862
    %v9864 = vpop.f32.mrf.mxu0
    %9865 = vdwg.mxu0
    %9866 = vmatpush.bf16.msra.mxu0 %v8002
    %9867 = vmatpush.bf16.msra.mxu0 %v7986
    %9868 = vmatpush.bf16.msra.mxu0 %v7970
    %9869 = vmatpush.bf16.msra.mxu0 %v7954
    %9870 = vmatpush.bf16.msra.mxu0 %v7938
    %9871 = vmatpush.bf16.msra.mxu0 %v7922
    %9872 = vmatpush.bf16.msra.mxu0 %v7906
    %9873 = vmatpush.bf16.msra.mxu0 %v7890
    %9874 = vmatmul.bf16.gmra.mxu0 %v2982
    %v9875 = vpop.f32.mrf.mxu0
    %v9876 = vadd.f32 %v9863, %v9875
    %v9877 = vpop.f32.mrf.mxu0
    %9878 = vdwg.mxu0
    %9879 = vmatpush.bf16.msra.mxu0 %v8130
    %9880 = vmatpush.bf16.msra.mxu0 %v8114
    %9881 = vmatpush.bf16.msra.mxu0 %v8098
    %9882 = vmatpush.bf16.msra.mxu0 %v8082
    %9883 = vmatpush.bf16.msra.mxu0 %v8066
    %9884 = vmatpush.bf16.msra.mxu0 %v8050
    %9885 = vmatpush.bf16.msra.mxu0 %v8034
    %9886 = vmatpush.bf16.msra.mxu0 %v8018
    %9887 = vmatmul.bf16.gmra.mxu0 %v2983
    %v9888 = vpop.f32.mrf.mxu0
    %v9889 = vadd.f32 %v9876, %v9888
    %v9890 = vpop.f32.mrf.mxu0
    %9891 = vdwg.mxu0
    %9892 = vmatpush.bf16.msra.mxu0 %v7235
    %9893 = vmatpush.bf16.msra.mxu0 %v7219
    %9894 = vmatpush.bf16.msra.mxu0 %v7203
    %9895 = vmatpush.bf16.msra.mxu0 %v7187
    %9896 = vmatpush.bf16.msra.mxu0 %v7171
    %9897 = vmatpush.bf16.msra.mxu0 %v7155
    %9898 = vmatpush.bf16.msra.mxu0 %v7139
    %9899 = vmatpush.bf16.msra.mxu0 %v7123
    %9900 = vmatmul.bf16.gmra.mxu0 %v2976
    %v9901 = vpop.f32.mrf.mxu0
    %v9902 = vadd.f32 %v4019, %v9901
    %v9903 = vpop.f32.mrf.mxu0
    %9904 = vdwg.mxu0
    %9905 = vmatpush.bf16.msra.mxu0 %v7363
    %9906 = vmatpush.bf16.msra.mxu0 %v7347
    %9907 = vmatpush.bf16.msra.mxu0 %v7331
    %9908 = vmatpush.bf16.msra.mxu0 %v7315
    %9909 = vmatpush.bf16.msra.mxu0 %v7299
    %9910 = vmatpush.bf16.msra.mxu0 %v7283
    %9911 = vmatpush.bf16.msra.mxu0 %v7267
    %9912 = vmatpush.bf16.msra.mxu0 %v7251
    %9913 = vmatmul.bf16.gmra.mxu0 %v2977
    %v9914 = vpop.f32.mrf.mxu0
    %v9915 = vadd.f32 %v9902, %v9914
    %v9916 = vpop.f32.mrf.mxu0
    %9917 = vdwg.mxu0
    %9918 = vmatpush.bf16.msra.mxu0 %v7491
    %9919 = vmatpush.bf16.msra.mxu0 %v7475
    %9920 = vmatpush.bf16.msra.mxu0 %v7459
    %9921 = vmatpush.bf16.msra.mxu0 %v7443
    %9922 = vmatpush.bf16.msra.mxu0 %v7427
    %9923 = vmatpush.bf16.msra.mxu0 %v7411
    %9924 = vmatpush.bf16.msra.mxu0 %v7395
    %9925 = vmatpush.bf16.msra.mxu0 %v7379
    %9926 = vmatmul.bf16.gmra.mxu0 %v2978
    %v9927 = vpop.f32.mrf.mxu0
    %v9928 = vadd.f32 %v9915, %v9927
    %v9929 = vpop.f32.mrf.mxu0
    %9930 = vdwg.mxu0
    %9931 = vmatpush.bf16.msra.mxu0 %v7619
    %9932 = vmatpush.bf16.msra.mxu0 %v7603
    %9933 = vmatpush.bf16.msra.mxu0 %v7587
    %9934 = vmatpush.bf16.msra.mxu0 %v7571
    %9935 = vmatpush.bf16.msra.mxu0 %v7555
    %9936 = vmatpush.bf16.msra.mxu0 %v7539
    %9937 = vmatpush.bf16.msra.mxu0 %v7523
    %9938 = vmatpush.bf16.msra.mxu0 %v7507
    %9939 = vmatmul.bf16.gmra.mxu0 %v2979
    %v9940 = vpop.f32.mrf.mxu0
    %v9941 = vadd.f32 %v9928, %v9940
    %v9942 = vpop.f32.mrf.mxu0
    %9943 = vdwg.mxu0
    %9944 = vmatpush.bf16.msra.mxu0 %v7747
    %9945 = vmatpush.bf16.msra.mxu0 %v7731
    %9946 = vmatpush.bf16.msra.mxu0 %v7715
    %9947 = vmatpush.bf16.msra.mxu0 %v7699
    %9948 = vmatpush.bf16.msra.mxu0 %v7683
    %9949 = vmatpush.bf16.msra.mxu0 %v7667
    %9950 = vmatpush.bf16.msra.mxu0 %v7651
    %9951 = vmatpush.bf16.msra.mxu0 %v7635
    %9952 = vmatmul.bf16.gmra.mxu0 %v2980
    %v9953 = vpop.f32.mrf.mxu0
    %v9954 = vadd.f32 %v9941, %v9953
    %v9955 = vpop.f32.mrf.mxu0
    %9956 = vdwg.mxu0
    %9957 = vmatpush.bf16.msra.mxu0 %v7875
    %9958 = vmatpush.bf16.msra.mxu0 %v7859
    %9959 = vmatpush.bf16.msra.mxu0 %v7843
    %9960 = vmatpush.bf16.msra.mxu0 %v7827
    %9961 = vmatpush.bf16.msra.mxu0 %v7811
    %9962 = vmatpush.bf16.msra.mxu0 %v7795
    %9963 = vmatpush.bf16.msra.mxu0 %v7779
    %9964 = vmatpush.bf16.msra.mxu0 %v7763
    %9965 = vmatmul.bf16.gmra.mxu0 %v2981
    %v9966 = vpop.f32.mrf.mxu0
    %v9967 = vadd.f32 %v9954, %v9966
    %v9968 = vpop.f32.mrf.mxu0
    %9969 = vdwg.mxu0
    %9970 = vmatpush.bf16.msra.mxu0 %v8003
    %9971 = vmatpush.bf16.msra.mxu0 %v7987
    %9972 = vmatpush.bf16.msra.mxu0 %v7971
    %9973 = vmatpush.bf16.msra.mxu0 %v7955
    %9974 = vmatpush.bf16.msra.mxu0 %v7939
    %9975 = vmatpush.bf16.msra.mxu0 %v7923
    %9976 = vmatpush.bf16.msra.mxu0 %v7907
    %9977 = vmatpush.bf16.msra.mxu0 %v7891
    %9978 = vmatmul.bf16.gmra.mxu0 %v2982
    %v9979 = vpop.f32.mrf.mxu0
    %v9980 = vadd.f32 %v9967, %v9979
    %v9981 = vpop.f32.mrf.mxu0
    %9982 = vdwg.mxu0
    %9983 = vmatpush.bf16.msra.mxu0 %v8131
    %9984 = vmatpush.bf16.msra.mxu0 %v8115
    %9985 = vmatpush.bf16.msra.mxu0 %v8099
    %9986 = vmatpush.bf16.msra.mxu0 %v8083
    %9987 = vmatpush.bf16.msra.mxu0 %v8067
    %9988 = vmatpush.bf16.msra.mxu0 %v8051
    %9989 = vmatpush.bf16.msra.mxu0 %v8035
    %9990 = vmatpush.bf16.msra.mxu0 %v8019
    %9991 = vmatmul.bf16.gmra.mxu0 %v2983
    %v9992 = vpop.f32.mrf.mxu0
    %v9993 = vadd.f32 %v9980, %v9992
    %v9994 = vpop.f32.mrf.mxu0
    %9995 = vdwg.mxu0
    %9996 = vmatpush.bf16.msra.mxu0 %v7236
    %9997 = vmatpush.bf16.msra.mxu0 %v7220
    %9998 = vmatpush.bf16.msra.mxu0 %v7204
    %9999 = vmatpush.bf16.msra.mxu0 %v7188
    %10000 = vmatpush.bf16.msra.mxu0 %v7172
    %10001 = vmatpush.bf16.msra.mxu0 %v7156
    %10002 = vmatpush.bf16.msra.mxu0 %v7140
    %10003 = vmatpush.bf16.msra.mxu0 %v7124
    %10004 = vmatmul.bf16.gmra.mxu0 %v2976
    %v10005 = vpop.f32.mrf.mxu0
    %v10006 = vadd.f32 %v4020, %v10005
    %v10007 = vpop.f32.mrf.mxu0
    %10008 = vdwg.mxu0
    %10009 = vmatpush.bf16.msra.mxu0 %v7364
    %10010 = vmatpush.bf16.msra.mxu0 %v7348
    %10011 = vmatpush.bf16.msra.mxu0 %v7332
    %10012 = vmatpush.bf16.msra.mxu0 %v7316
    %10013 = vmatpush.bf16.msra.mxu0 %v7300
    %10014 = vmatpush.bf16.msra.mxu0 %v7284
    %10015 = vmatpush.bf16.msra.mxu0 %v7268
    %10016 = vmatpush.bf16.msra.mxu0 %v7252
    %10017 = vmatmul.bf16.gmra.mxu0 %v2977
    %v10018 = vpop.f32.mrf.mxu0
    %v10019 = vadd.f32 %v10006, %v10018
    %v10020 = vpop.f32.mrf.mxu0
    %10021 = vdwg.mxu0
    %10022 = vmatpush.bf16.msra.mxu0 %v7492
    %10023 = vmatpush.bf16.msra.mxu0 %v7476
    %10024 = vmatpush.bf16.msra.mxu0 %v7460
    %10025 = vmatpush.bf16.msra.mxu0 %v7444
    %10026 = vmatpush.bf16.msra.mxu0 %v7428
    %10027 = vmatpush.bf16.msra.mxu0 %v7412
    %10028 = vmatpush.bf16.msra.mxu0 %v7396
    %10029 = vmatpush.bf16.msra.mxu0 %v7380
    %10030 = vmatmul.bf16.gmra.mxu0 %v2978
    %v10031 = vpop.f32.mrf.mxu0
    %v10032 = vadd.f32 %v10019, %v10031
    %v10033 = vpop.f32.mrf.mxu0
    %10034 = vdwg.mxu0
    %10035 = vmatpush.bf16.msra.mxu0 %v7620
    %10036 = vmatpush.bf16.msra.mxu0 %v7604
    %10037 = vmatpush.bf16.msra.mxu0 %v7588
    %10038 = vmatpush.bf16.msra.mxu0 %v7572
    %10039 = vmatpush.bf16.msra.mxu0 %v7556
    %10040 = vmatpush.bf16.msra.mxu0 %v7540
    %10041 = vmatpush.bf16.msra.mxu0 %v7524
    %10042 = vmatpush.bf16.msra.mxu0 %v7508
    %10043 = vmatmul.bf16.gmra.mxu0 %v2979
    %v10044 = vpop.f32.mrf.mxu0
    %v10045 = vadd.f32 %v10032, %v10044
    %v10046 = vpop.f32.mrf.mxu0
    %10047 = vdwg.mxu0
    %10048 = vmatpush.bf16.msra.mxu0 %v7748
    %10049 = vmatpush.bf16.msra.mxu0 %v7732
    %10050 = vmatpush.bf16.msra.mxu0 %v7716
    %10051 = vmatpush.bf16.msra.mxu0 %v7700
    %10052 = vmatpush.bf16.msra.mxu0 %v7684
    %10053 = vmatpush.bf16.msra.mxu0 %v7668
    %10054 = vmatpush.bf16.msra.mxu0 %v7652
    %10055 = vmatpush.bf16.msra.mxu0 %v7636
    %10056 = vmatmul.bf16.gmra.mxu0 %v2980
    %v10057 = vpop.f32.mrf.mxu0
    %v10058 = vadd.f32 %v10045, %v10057
    %v10059 = vpop.f32.mrf.mxu0
    %10060 = vdwg.mxu0
    %10061 = vmatpush.bf16.msra.mxu0 %v7876
    %10062 = vmatpush.bf16.msra.mxu0 %v7860
    %10063 = vmatpush.bf16.msra.mxu0 %v7844
    %10064 = vmatpush.bf16.msra.mxu0 %v7828
    %10065 = vmatpush.bf16.msra.mxu0 %v7812
    %10066 = vmatpush.bf16.msra.mxu0 %v7796
    %10067 = vmatpush.bf16.msra.mxu0 %v7780
    %10068 = vmatpush.bf16.msra.mxu0 %v7764
    %10069 = vmatmul.bf16.gmra.mxu0 %v2981
    %v10070 = vpop.f32.mrf.mxu0
    %v10071 = vadd.f32 %v10058, %v10070
    %v10072 = vpop.f32.mrf.mxu0
    %10073 = vdwg.mxu0
    %10074 = vmatpush.bf16.msra.mxu0 %v8004
    %10075 = vmatpush.bf16.msra.mxu0 %v7988
    %10076 = vmatpush.bf16.msra.mxu0 %v7972
    %10077 = vmatpush.bf16.msra.mxu0 %v7956
    %10078 = vmatpush.bf16.msra.mxu0 %v7940
    %10079 = vmatpush.bf16.msra.mxu0 %v7924
    %10080 = vmatpush.bf16.msra.mxu0 %v7908
    %10081 = vmatpush.bf16.msra.mxu0 %v7892
    %10082 = vmatmul.bf16.gmra.mxu0 %v2982
    %v10083 = vpop.f32.mrf.mxu0
    %v10084 = vadd.f32 %v10071, %v10083
    %v10085 = vpop.f32.mrf.mxu0
    %10086 = vdwg.mxu0
    %10087 = vmatpush.bf16.msra.mxu0 %v8132
    %10088 = vmatpush.bf16.msra.mxu0 %v8116
    %10089 = vmatpush.bf16.msra.mxu0 %v8100
    %10090 = vmatpush.bf16.msra.mxu0 %v8084
    %10091 = vmatpush.bf16.msra.mxu0 %v8068
    %10092 = vmatpush.bf16.msra.mxu0 %v8052
    %10093 = vmatpush.bf16.msra.mxu0 %v8036
    %10094 = vmatpush.bf16.msra.mxu0 %v8020
    %10095 = vmatmul.bf16.gmra.mxu0 %v2983
    %v10096 = vpop.f32.mrf.mxu0
    %v10097 = vadd.f32 %v10084, %v10096
    %v10098 = vpop.f32.mrf.mxu0
    %10099 = vdwg.mxu0
    %10100 = vmatpush.bf16.msra.mxu0 %v7237
    %10101 = vmatpush.bf16.msra.mxu0 %v7221
    %10102 = vmatpush.bf16.msra.mxu0 %v7205
    %10103 = vmatpush.bf16.msra.mxu0 %v7189
    %10104 = vmatpush.bf16.msra.mxu0 %v7173
    %10105 = vmatpush.bf16.msra.mxu0 %v7157
    %10106 = vmatpush.bf16.msra.mxu0 %v7141
    %10107 = vmatpush.bf16.msra.mxu0 %v7125
    %10108 = vmatmul.bf16.gmra.mxu0 %v2976
    %v10109 = vpop.f32.mrf.mxu0
    %v10110 = vadd.f32 %v4021, %v10109
    %v10111 = vpop.f32.mrf.mxu0
    %10112 = vdwg.mxu0
    %10113 = vmatpush.bf16.msra.mxu0 %v7365
    %10114 = vmatpush.bf16.msra.mxu0 %v7349
    %10115 = vmatpush.bf16.msra.mxu0 %v7333
    %10116 = vmatpush.bf16.msra.mxu0 %v7317
    %10117 = vmatpush.bf16.msra.mxu0 %v7301
    %10118 = vmatpush.bf16.msra.mxu0 %v7285
    %10119 = vmatpush.bf16.msra.mxu0 %v7269
    %10120 = vmatpush.bf16.msra.mxu0 %v7253
    %10121 = vmatmul.bf16.gmra.mxu0 %v2977
    %v10122 = vpop.f32.mrf.mxu0
    %v10123 = vadd.f32 %v10110, %v10122
    %v10124 = vpop.f32.mrf.mxu0
    %10125 = vdwg.mxu0
    %10126 = vmatpush.bf16.msra.mxu0 %v7493
    %10127 = vmatpush.bf16.msra.mxu0 %v7477
    %10128 = vmatpush.bf16.msra.mxu0 %v7461
    %10129 = vmatpush.bf16.msra.mxu0 %v7445
    %10130 = vmatpush.bf16.msra.mxu0 %v7429
    %10131 = vmatpush.bf16.msra.mxu0 %v7413
    %10132 = vmatpush.bf16.msra.mxu0 %v7397
    %10133 = vmatpush.bf16.msra.mxu0 %v7381
    %10134 = vmatmul.bf16.gmra.mxu0 %v2978
    %v10135 = vpop.f32.mrf.mxu0
    %v10136 = vadd.f32 %v10123, %v10135
    %v10137 = vpop.f32.mrf.mxu0
    %10138 = vdwg.mxu0
    %10139 = vmatpush.bf16.msra.mxu0 %v7621
    %10140 = vmatpush.bf16.msra.mxu0 %v7605
    %10141 = vmatpush.bf16.msra.mxu0 %v7589
    %10142 = vmatpush.bf16.msra.mxu0 %v7573
    %10143 = vmatpush.bf16.msra.mxu0 %v7557
    %10144 = vmatpush.bf16.msra.mxu0 %v7541
    %10145 = vmatpush.bf16.msra.mxu0 %v7525
    %10146 = vmatpush.bf16.msra.mxu0 %v7509
    %10147 = vmatmul.bf16.gmra.mxu0 %v2979
    %v10148 = vpop.f32.mrf.mxu0
    %v10149 = vadd.f32 %v10136, %v10148
    %v10150 = vpop.f32.mrf.mxu0
    %10151 = vdwg.mxu0
    %10152 = vmatpush.bf16.msra.mxu0 %v7749
    %10153 = vmatpush.bf16.msra.mxu0 %v7733
    %10154 = vmatpush.bf16.msra.mxu0 %v7717
    %10155 = vmatpush.bf16.msra.mxu0 %v7701
    %10156 = vmatpush.bf16.msra.mxu0 %v7685
    %10157 = vmatpush.bf16.msra.mxu0 %v7669
    %10158 = vmatpush.bf16.msra.mxu0 %v7653
    %10159 = vmatpush.bf16.msra.mxu0 %v7637
    %10160 = vmatmul.bf16.gmra.mxu0 %v2980
    %v10161 = vpop.f32.mrf.mxu0
    %v10162 = vadd.f32 %v10149, %v10161
    %v10163 = vpop.f32.mrf.mxu0
    %10164 = vdwg.mxu0
    %10165 = vmatpush.bf16.msra.mxu0 %v7877
    %10166 = vmatpush.bf16.msra.mxu0 %v7861
    %10167 = vmatpush.bf16.msra.mxu0 %v7845
    %10168 = vmatpush.bf16.msra.mxu0 %v7829
    %10169 = vmatpush.bf16.msra.mxu0 %v7813
    %10170 = vmatpush.bf16.msra.mxu0 %v7797
    %10171 = vmatpush.bf16.msra.mxu0 %v7781
    %10172 = vmatpush.bf16.msra.mxu0 %v7765
    %10173 = vmatmul.bf16.gmra.mxu0 %v2981
    %v10174 = vpop.f32.mrf.mxu0
    %v10175 = vadd.f32 %v10162, %v10174
    %v10176 = vpop.f32.mrf.mxu0
    %10177 = vdwg.mxu0
    %10178 = vmatpush.bf16.msra.mxu0 %v8005
    %10179 = vmatpush.bf16.msra.mxu0 %v7989
    %10180 = vmatpush.bf16.msra.mxu0 %v7973
    %10181 = vmatpush.bf16.msra.mxu0 %v7957
    %10182 = vmatpush.bf16.msra.mxu0 %v7941
    %10183 = vmatpush.bf16.msra.mxu0 %v7925
    %10184 = vmatpush.bf16.msra.mxu0 %v7909
    %10185 = vmatpush.bf16.msra.mxu0 %v7893
    %10186 = vmatmul.bf16.gmra.mxu0 %v2982
    %v10187 = vpop.f32.mrf.mxu0
    %v10188 = vadd.f32 %v10175, %v10187
    %v10189 = vpop.f32.mrf.mxu0
    %10190 = vdwg.mxu0
    %10191 = vmatpush.bf16.msra.mxu0 %v8133
    %10192 = vmatpush.bf16.msra.mxu0 %v8117
    %10193 = vmatpush.bf16.msra.mxu0 %v8101
    %10194 = vmatpush.bf16.msra.mxu0 %v8085
    %10195 = vmatpush.bf16.msra.mxu0 %v8069
    %10196 = vmatpush.bf16.msra.mxu0 %v8053
    %10197 = vmatpush.bf16.msra.mxu0 %v8037
    %10198 = vmatpush.bf16.msra.mxu0 %v8021
    %10199 = vmatmul.bf16.gmra.mxu0 %v2983
    %v10200 = vpop.f32.mrf.mxu0
    %v10201 = vadd.f32 %v10188, %v10200
    %v10202 = vpop.f32.mrf.mxu0
    %10203 = vdwg.mxu0
    %10204 = vmatpush.bf16.msra.mxu0 %v7238
    %10205 = vmatpush.bf16.msra.mxu0 %v7222
    %10206 = vmatpush.bf16.msra.mxu0 %v7206
    %10207 = vmatpush.bf16.msra.mxu0 %v7190
    %10208 = vmatpush.bf16.msra.mxu0 %v7174
    %10209 = vmatpush.bf16.msra.mxu0 %v7158
    %10210 = vmatpush.bf16.msra.mxu0 %v7142
    %10211 = vmatpush.bf16.msra.mxu0 %v7126
    %10212 = vmatmul.bf16.gmra.mxu0 %v2976
    %v10213 = vpop.f32.mrf.mxu0
    %v10214 = vadd.f32 %v4022, %v10213
    %v10215 = vpop.f32.mrf.mxu0
    %10216 = vdwg.mxu0
    %10217 = vmatpush.bf16.msra.mxu0 %v7366
    %10218 = vmatpush.bf16.msra.mxu0 %v7350
    %10219 = vmatpush.bf16.msra.mxu0 %v7334
    %10220 = vmatpush.bf16.msra.mxu0 %v7318
    %10221 = vmatpush.bf16.msra.mxu0 %v7302
    %10222 = vmatpush.bf16.msra.mxu0 %v7286
    %10223 = vmatpush.bf16.msra.mxu0 %v7270
    %10224 = vmatpush.bf16.msra.mxu0 %v7254
    %10225 = vmatmul.bf16.gmra.mxu0 %v2977
    %v10226 = vpop.f32.mrf.mxu0
    %v10227 = vadd.f32 %v10214, %v10226
    %v10228 = vpop.f32.mrf.mxu0
    %10229 = vdwg.mxu0
    %10230 = vmatpush.bf16.msra.mxu0 %v7494
    %10231 = vmatpush.bf16.msra.mxu0 %v7478
    %10232 = vmatpush.bf16.msra.mxu0 %v7462
    %10233 = vmatpush.bf16.msra.mxu0 %v7446
    %10234 = vmatpush.bf16.msra.mxu0 %v7430
    %10235 = vmatpush.bf16.msra.mxu0 %v7414
    %10236 = vmatpush.bf16.msra.mxu0 %v7398
    %10237 = vmatpush.bf16.msra.mxu0 %v7382
    %10238 = vmatmul.bf16.gmra.mxu0 %v2978
    %v10239 = vpop.f32.mrf.mxu0
    %v10240 = vadd.f32 %v10227, %v10239
    %v10241 = vpop.f32.mrf.mxu0
    %10242 = vdwg.mxu0
    %10243 = vmatpush.bf16.msra.mxu0 %v7622
    %10244 = vmatpush.bf16.msra.mxu0 %v7606
    %10245 = vmatpush.bf16.msra.mxu0 %v7590
    %10246 = vmatpush.bf16.msra.mxu0 %v7574
    %10247 = vmatpush.bf16.msra.mxu0 %v7558
    %10248 = vmatpush.bf16.msra.mxu0 %v7542
    %10249 = vmatpush.bf16.msra.mxu0 %v7526
    %10250 = vmatpush.bf16.msra.mxu0 %v7510
    %10251 = vmatmul.bf16.gmra.mxu0 %v2979
    %v10252 = vpop.f32.mrf.mxu0
    %v10253 = vadd.f32 %v10240, %v10252
    %v10254 = vpop.f32.mrf.mxu0
    %10255 = vdwg.mxu0
    %10256 = vmatpush.bf16.msra.mxu0 %v7750
    %10257 = vmatpush.bf16.msra.mxu0 %v7734
    %10258 = vmatpush.bf16.msra.mxu0 %v7718
    %10259 = vmatpush.bf16.msra.mxu0 %v7702
    %10260 = vmatpush.bf16.msra.mxu0 %v7686
    %10261 = vmatpush.bf16.msra.mxu0 %v7670
    %10262 = vmatpush.bf16.msra.mxu0 %v7654
    %10263 = vmatpush.bf16.msra.mxu0 %v7638
    %10264 = vmatmul.bf16.gmra.mxu0 %v2980
    %v10265 = vpop.f32.mrf.mxu0
    %v10266 = vadd.f32 %v10253, %v10265
    %v10267 = vpop.f32.mrf.mxu0
    %10268 = vdwg.mxu0
    %10269 = vmatpush.bf16.msra.mxu0 %v7878
    %10270 = vmatpush.bf16.msra.mxu0 %v7862
    %10271 = vmatpush.bf16.msra.mxu0 %v7846
    %10272 = vmatpush.bf16.msra.mxu0 %v7830
    %10273 = vmatpush.bf16.msra.mxu0 %v7814
    %10274 = vmatpush.bf16.msra.mxu0 %v7798
    %10275 = vmatpush.bf16.msra.mxu0 %v7782
    %10276 = vmatpush.bf16.msra.mxu0 %v7766
    %10277 = vmatmul.bf16.gmra.mxu0 %v2981
    %v10278 = vpop.f32.mrf.mxu0
    %v10279 = vadd.f32 %v10266, %v10278
    %v10280 = vpop.f32.mrf.mxu0
    %10281 = vdwg.mxu0
    %10282 = vmatpush.bf16.msra.mxu0 %v8006
    %10283 = vmatpush.bf16.msra.mxu0 %v7990
    %10284 = vmatpush.bf16.msra.mxu0 %v7974
    %10285 = vmatpush.bf16.msra.mxu0 %v7958
    %10286 = vmatpush.bf16.msra.mxu0 %v7942
    %10287 = vmatpush.bf16.msra.mxu0 %v7926
    %10288 = vmatpush.bf16.msra.mxu0 %v7910
    %10289 = vmatpush.bf16.msra.mxu0 %v7894
    %10290 = vmatmul.bf16.gmra.mxu0 %v2982
    %v10291 = vpop.f32.mrf.mxu0
    %v10292 = vadd.f32 %v10279, %v10291
    %v10293 = vpop.f32.mrf.mxu0
    %10294 = vdwg.mxu0
    %10295 = vmatpush.bf16.msra.mxu0 %v8134
    %10296 = vmatpush.bf16.msra.mxu0 %v8118
    %10297 = vmatpush.bf16.msra.mxu0 %v8102
    %10298 = vmatpush.bf16.msra.mxu0 %v8086
    %10299 = vmatpush.bf16.msra.mxu0 %v8070
    %10300 = vmatpush.bf16.msra.mxu0 %v8054
    %10301 = vmatpush.bf16.msra.mxu0 %v8038
    %10302 = vmatpush.bf16.msra.mxu0 %v8022
    %10303 = vmatmul.bf16.gmra.mxu0 %v2983
    %v10304 = vpop.f32.mrf.mxu0
    %v10305 = vadd.f32 %v10292, %v10304
    %v10306 = vpop.f32.mrf.mxu0
    %10307 = vdwg.mxu0
    %10308 = vmatpush.bf16.msra.mxu0 %v7239
    %10309 = vmatpush.bf16.msra.mxu0 %v7223
    %10310 = vmatpush.bf16.msra.mxu0 %v7207
    %10311 = vmatpush.bf16.msra.mxu0 %v7191
    %10312 = vmatpush.bf16.msra.mxu0 %v7175
    %10313 = vmatpush.bf16.msra.mxu0 %v7159
    %10314 = vmatpush.bf16.msra.mxu0 %v7143
    %10315 = vmatpush.bf16.msra.mxu0 %v7127
    %10316 = vmatmul.bf16.gmra.mxu0 %v2976
    %v10317 = vpop.f32.mrf.mxu0
    %v10318 = vadd.f32 %v4023, %v10317
    %v10319 = vpop.f32.mrf.mxu0
    %10320 = vdwg.mxu0
    %10321 = vmatpush.bf16.msra.mxu0 %v7367
    %10322 = vmatpush.bf16.msra.mxu0 %v7351
    %10323 = vmatpush.bf16.msra.mxu0 %v7335
    %10324 = vmatpush.bf16.msra.mxu0 %v7319
    %10325 = vmatpush.bf16.msra.mxu0 %v7303
    %10326 = vmatpush.bf16.msra.mxu0 %v7287
    %10327 = vmatpush.bf16.msra.mxu0 %v7271
    %10328 = vmatpush.bf16.msra.mxu0 %v7255
    %10329 = vmatmul.bf16.gmra.mxu0 %v2977
    %v10330 = vpop.f32.mrf.mxu0
    %v10331 = vadd.f32 %v10318, %v10330
    %v10332 = vpop.f32.mrf.mxu0
    %10333 = vdwg.mxu0
    %10334 = vmatpush.bf16.msra.mxu0 %v7495
    %10335 = vmatpush.bf16.msra.mxu0 %v7479
    %10336 = vmatpush.bf16.msra.mxu0 %v7463
    %10337 = vmatpush.bf16.msra.mxu0 %v7447
    %10338 = vmatpush.bf16.msra.mxu0 %v7431
    %10339 = vmatpush.bf16.msra.mxu0 %v7415
    %10340 = vmatpush.bf16.msra.mxu0 %v7399
    %10341 = vmatpush.bf16.msra.mxu0 %v7383
    %10342 = vmatmul.bf16.gmra.mxu0 %v2978
    %v10343 = vpop.f32.mrf.mxu0
    %v10344 = vadd.f32 %v10331, %v10343
    %v10345 = vpop.f32.mrf.mxu0
    %10346 = vdwg.mxu0
    %10347 = vmatpush.bf16.msra.mxu0 %v7623
    %10348 = vmatpush.bf16.msra.mxu0 %v7607
    %10349 = vmatpush.bf16.msra.mxu0 %v7591
    %10350 = vmatpush.bf16.msra.mxu0 %v7575
    %10351 = vmatpush.bf16.msra.mxu0 %v7559
    %10352 = vmatpush.bf16.msra.mxu0 %v7543
    %10353 = vmatpush.bf16.msra.mxu0 %v7527
    %10354 = vmatpush.bf16.msra.mxu0 %v7511
    %10355 = vmatmul.bf16.gmra.mxu0 %v2979
    %v10356 = vpop.f32.mrf.mxu0
    %v10357 = vadd.f32 %v10344, %v10356
    %v10358 = vpop.f32.mrf.mxu0
    %10359 = vdwg.mxu0
    %10360 = vmatpush.bf16.msra.mxu0 %v7751
    %10361 = vmatpush.bf16.msra.mxu0 %v7735
    %10362 = vmatpush.bf16.msra.mxu0 %v7719
    %10363 = vmatpush.bf16.msra.mxu0 %v7703
    %10364 = vmatpush.bf16.msra.mxu0 %v7687
    %10365 = vmatpush.bf16.msra.mxu0 %v7671
    %10366 = vmatpush.bf16.msra.mxu0 %v7655
    %10367 = vmatpush.bf16.msra.mxu0 %v7639
    %10368 = vmatmul.bf16.gmra.mxu0 %v2980
    %v10369 = vpop.f32.mrf.mxu0
    %v10370 = vadd.f32 %v10357, %v10369
    %v10371 = vpop.f32.mrf.mxu0
    %10372 = vdwg.mxu0
    %10373 = vmatpush.bf16.msra.mxu0 %v7879
    %10374 = vmatpush.bf16.msra.mxu0 %v7863
    %10375 = vmatpush.bf16.msra.mxu0 %v7847
    %10376 = vmatpush.bf16.msra.mxu0 %v7831
    %10377 = vmatpush.bf16.msra.mxu0 %v7815
    %10378 = vmatpush.bf16.msra.mxu0 %v7799
    %10379 = vmatpush.bf16.msra.mxu0 %v7783
    %10380 = vmatpush.bf16.msra.mxu0 %v7767
    %10381 = vmatmul.bf16.gmra.mxu0 %v2981
    %v10382 = vpop.f32.mrf.mxu0
    %v10383 = vadd.f32 %v10370, %v10382
    %v10384 = vpop.f32.mrf.mxu0
    %10385 = vdwg.mxu0
    %10386 = vmatpush.bf16.msra.mxu0 %v8007
    %10387 = vmatpush.bf16.msra.mxu0 %v7991
    %10388 = vmatpush.bf16.msra.mxu0 %v7975
    %10389 = vmatpush.bf16.msra.mxu0 %v7959
    %10390 = vmatpush.bf16.msra.mxu0 %v7943
    %10391 = vmatpush.bf16.msra.mxu0 %v7927
    %10392 = vmatpush.bf16.msra.mxu0 %v7911
    %10393 = vmatpush.bf16.msra.mxu0 %v7895
    %10394 = vmatmul.bf16.gmra.mxu0 %v2982
    %v10395 = vpop.f32.mrf.mxu0
    %v10396 = vadd.f32 %v10383, %v10395
    %v10397 = vpop.f32.mrf.mxu0
    %10398 = vdwg.mxu0
    %10399 = vmatpush.bf16.msra.mxu0 %v8135
    %10400 = vmatpush.bf16.msra.mxu0 %v8119
    %10401 = vmatpush.bf16.msra.mxu0 %v8103
    %10402 = vmatpush.bf16.msra.mxu0 %v8087
    %10403 = vmatpush.bf16.msra.mxu0 %v8071
    %10404 = vmatpush.bf16.msra.mxu0 %v8055
    %10405 = vmatpush.bf16.msra.mxu0 %v8039
    %10406 = vmatpush.bf16.msra.mxu0 %v8023
    %10407 = vmatmul.bf16.gmra.mxu0 %v2983
    %v10408 = vpop.f32.mrf.mxu0
    %v10409 = vadd.f32 %v10396, %v10408
    %v10410 = vpop.f32.mrf.mxu0
    %10411 = vdwg.mxu0
    %10412 = vmatpush.bf16.msra.mxu0 %v7240
    %10413 = vmatpush.bf16.msra.mxu0 %v7224
    %10414 = vmatpush.bf16.msra.mxu0 %v7208
    %10415 = vmatpush.bf16.msra.mxu0 %v7192
    %10416 = vmatpush.bf16.msra.mxu0 %v7176
    %10417 = vmatpush.bf16.msra.mxu0 %v7160
    %10418 = vmatpush.bf16.msra.mxu0 %v7144
    %10419 = vmatpush.bf16.msra.mxu0 %v7128
    %10420 = vmatmul.bf16.gmra.mxu0 %v2976
    %v10421 = vpop.f32.mrf.mxu0
    %v10422 = vadd.f32 %v4024, %v10421
    %v10423 = vpop.f32.mrf.mxu0
    %10424 = vdwg.mxu0
    %10425 = vmatpush.bf16.msra.mxu0 %v7368
    %10426 = vmatpush.bf16.msra.mxu0 %v7352
    %10427 = vmatpush.bf16.msra.mxu0 %v7336
    %10428 = vmatpush.bf16.msra.mxu0 %v7320
    %10429 = vmatpush.bf16.msra.mxu0 %v7304
    %10430 = vmatpush.bf16.msra.mxu0 %v7288
    %10431 = vmatpush.bf16.msra.mxu0 %v7272
    %10432 = vmatpush.bf16.msra.mxu0 %v7256
    %10433 = vmatmul.bf16.gmra.mxu0 %v2977
    %v10434 = vpop.f32.mrf.mxu0
    %v10435 = vadd.f32 %v10422, %v10434
    %v10436 = vpop.f32.mrf.mxu0
    %10437 = vdwg.mxu0
    %10438 = vmatpush.bf16.msra.mxu0 %v7496
    %10439 = vmatpush.bf16.msra.mxu0 %v7480
    %10440 = vmatpush.bf16.msra.mxu0 %v7464
    %10441 = vmatpush.bf16.msra.mxu0 %v7448
    %10442 = vmatpush.bf16.msra.mxu0 %v7432
    %10443 = vmatpush.bf16.msra.mxu0 %v7416
    %10444 = vmatpush.bf16.msra.mxu0 %v7400
    %10445 = vmatpush.bf16.msra.mxu0 %v7384
    %10446 = vmatmul.bf16.gmra.mxu0 %v2978
    %v10447 = vpop.f32.mrf.mxu0
    %v10448 = vadd.f32 %v10435, %v10447
    %v10449 = vpop.f32.mrf.mxu0
    %10450 = vdwg.mxu0
    %10451 = vmatpush.bf16.msra.mxu0 %v7624
    %10452 = vmatpush.bf16.msra.mxu0 %v7608
    %10453 = vmatpush.bf16.msra.mxu0 %v7592
    %10454 = vmatpush.bf16.msra.mxu0 %v7576
    %10455 = vmatpush.bf16.msra.mxu0 %v7560
    %10456 = vmatpush.bf16.msra.mxu0 %v7544
    %10457 = vmatpush.bf16.msra.mxu0 %v7528
    %10458 = vmatpush.bf16.msra.mxu0 %v7512
    %10459 = vmatmul.bf16.gmra.mxu0 %v2979
    %v10460 = vpop.f32.mrf.mxu0
    %v10461 = vadd.f32 %v10448, %v10460
    %v10462 = vpop.f32.mrf.mxu0
    %10463 = vdwg.mxu0
    %10464 = vmatpush.bf16.msra.mxu0 %v7752
    %10465 = vmatpush.bf16.msra.mxu0 %v7736
    %10466 = vmatpush.bf16.msra.mxu0 %v7720
    %10467 = vmatpush.bf16.msra.mxu0 %v7704
    %10468 = vmatpush.bf16.msra.mxu0 %v7688
    %10469 = vmatpush.bf16.msra.mxu0 %v7672
    %10470 = vmatpush.bf16.msra.mxu0 %v7656
    %10471 = vmatpush.bf16.msra.mxu0 %v7640
    %10472 = vmatmul.bf16.gmra.mxu0 %v2980
    %v10473 = vpop.f32.mrf.mxu0
    %v10474 = vadd.f32 %v10461, %v10473
    %v10475 = vpop.f32.mrf.mxu0
    %10476 = vdwg.mxu0
    %10477 = vmatpush.bf16.msra.mxu0 %v7880
    %10478 = vmatpush.bf16.msra.mxu0 %v7864
    %10479 = vmatpush.bf16.msra.mxu0 %v7848
    %10480 = vmatpush.bf16.msra.mxu0 %v7832
    %10481 = vmatpush.bf16.msra.mxu0 %v7816
    %10482 = vmatpush.bf16.msra.mxu0 %v7800
    %10483 = vmatpush.bf16.msra.mxu0 %v7784
    %10484 = vmatpush.bf16.msra.mxu0 %v7768
    %10485 = vmatmul.bf16.gmra.mxu0 %v2981
    %v10486 = vpop.f32.mrf.mxu0
    %v10487 = vadd.f32 %v10474, %v10486
    %v10488 = vpop.f32.mrf.mxu0
    %10489 = vdwg.mxu0
    %10490 = vmatpush.bf16.msra.mxu0 %v8008
    %10491 = vmatpush.bf16.msra.mxu0 %v7992
    %10492 = vmatpush.bf16.msra.mxu0 %v7976
    %10493 = vmatpush.bf16.msra.mxu0 %v7960
    %10494 = vmatpush.bf16.msra.mxu0 %v7944
    %10495 = vmatpush.bf16.msra.mxu0 %v7928
    %10496 = vmatpush.bf16.msra.mxu0 %v7912
    %10497 = vmatpush.bf16.msra.mxu0 %v7896
    %10498 = vmatmul.bf16.gmra.mxu0 %v2982
    %v10499 = vpop.f32.mrf.mxu0
    %v10500 = vadd.f32 %v10487, %v10499
    %v10501 = vpop.f32.mrf.mxu0
    %10502 = vdwg.mxu0
    %10503 = vmatpush.bf16.msra.mxu0 %v8136
    %10504 = vmatpush.bf16.msra.mxu0 %v8120
    %10505 = vmatpush.bf16.msra.mxu0 %v8104
    %10506 = vmatpush.bf16.msra.mxu0 %v8088
    %10507 = vmatpush.bf16.msra.mxu0 %v8072
    %10508 = vmatpush.bf16.msra.mxu0 %v8056
    %10509 = vmatpush.bf16.msra.mxu0 %v8040
    %10510 = vmatpush.bf16.msra.mxu0 %v8024
    %10511 = vmatmul.bf16.gmra.mxu0 %v2983
    %v10512 = vpop.f32.mrf.mxu0
    %v10513 = vadd.f32 %v10500, %v10512
    %v10514 = vpop.f32.mrf.mxu0
    %10515 = vdwg.mxu0
    %10516 = vmatpush.bf16.msra.mxu0 %v7241
    %10517 = vmatpush.bf16.msra.mxu0 %v7225
    %10518 = vmatpush.bf16.msra.mxu0 %v7209
    %10519 = vmatpush.bf16.msra.mxu0 %v7193
    %10520 = vmatpush.bf16.msra.mxu0 %v7177
    %10521 = vmatpush.bf16.msra.mxu0 %v7161
    %10522 = vmatpush.bf16.msra.mxu0 %v7145
    %10523 = vmatpush.bf16.msra.mxu0 %v7129
    %10524 = vmatmul.bf16.gmra.mxu0 %v2976
    %v10525 = vpop.f32.mrf.mxu0
    %v10526 = vadd.f32 %v4025, %v10525
    %v10527 = vpop.f32.mrf.mxu0
    %10528 = vdwg.mxu0
    %10529 = vmatpush.bf16.msra.mxu0 %v7369
    %10530 = vmatpush.bf16.msra.mxu0 %v7353
    %10531 = vmatpush.bf16.msra.mxu0 %v7337
    %10532 = vmatpush.bf16.msra.mxu0 %v7321
    %10533 = vmatpush.bf16.msra.mxu0 %v7305
    %10534 = vmatpush.bf16.msra.mxu0 %v7289
    %10535 = vmatpush.bf16.msra.mxu0 %v7273
    %10536 = vmatpush.bf16.msra.mxu0 %v7257
    %10537 = vmatmul.bf16.gmra.mxu0 %v2977
    %v10538 = vpop.f32.mrf.mxu0
    %v10539 = vadd.f32 %v10526, %v10538
    %v10540 = vpop.f32.mrf.mxu0
    %10541 = vdwg.mxu0
    %10542 = vmatpush.bf16.msra.mxu0 %v7497
    %10543 = vmatpush.bf16.msra.mxu0 %v7481
    %10544 = vmatpush.bf16.msra.mxu0 %v7465
    %10545 = vmatpush.bf16.msra.mxu0 %v7449
    %10546 = vmatpush.bf16.msra.mxu0 %v7433
    %10547 = vmatpush.bf16.msra.mxu0 %v7417
    %10548 = vmatpush.bf16.msra.mxu0 %v7401
    %10549 = vmatpush.bf16.msra.mxu0 %v7385
    %10550 = vmatmul.bf16.gmra.mxu0 %v2978
    %v10551 = vpop.f32.mrf.mxu0
    %v10552 = vadd.f32 %v10539, %v10551
    %v10553 = vpop.f32.mrf.mxu0
    %10554 = vdwg.mxu0
    %10555 = vmatpush.bf16.msra.mxu0 %v7625
    %10556 = vmatpush.bf16.msra.mxu0 %v7609
    %10557 = vmatpush.bf16.msra.mxu0 %v7593
    %10558 = vmatpush.bf16.msra.mxu0 %v7577
    %10559 = vmatpush.bf16.msra.mxu0 %v7561
    %10560 = vmatpush.bf16.msra.mxu0 %v7545
    %10561 = vmatpush.bf16.msra.mxu0 %v7529
    %10562 = vmatpush.bf16.msra.mxu0 %v7513
    %10563 = vmatmul.bf16.gmra.mxu0 %v2979
    %v10564 = vpop.f32.mrf.mxu0
    %v10565 = vadd.f32 %v10552, %v10564
    %v10566 = vpop.f32.mrf.mxu0
    %10567 = vdwg.mxu0
    %10568 = vmatpush.bf16.msra.mxu0 %v7753
    %10569 = vmatpush.bf16.msra.mxu0 %v7737
    %10570 = vmatpush.bf16.msra.mxu0 %v7721
    %10571 = vmatpush.bf16.msra.mxu0 %v7705
    %10572 = vmatpush.bf16.msra.mxu0 %v7689
    %10573 = vmatpush.bf16.msra.mxu0 %v7673
    %10574 = vmatpush.bf16.msra.mxu0 %v7657
    %10575 = vmatpush.bf16.msra.mxu0 %v7641
    %10576 = vmatmul.bf16.gmra.mxu0 %v2980
    %v10577 = vpop.f32.mrf.mxu0
    %v10578 = vadd.f32 %v10565, %v10577
    %v10579 = vpop.f32.mrf.mxu0
    %10580 = vdwg.mxu0
    %10581 = vmatpush.bf16.msra.mxu0 %v7881
    %10582 = vmatpush.bf16.msra.mxu0 %v7865
    %10583 = vmatpush.bf16.msra.mxu0 %v7849
    %10584 = vmatpush.bf16.msra.mxu0 %v7833
    %10585 = vmatpush.bf16.msra.mxu0 %v7817
    %10586 = vmatpush.bf16.msra.mxu0 %v7801
    %10587 = vmatpush.bf16.msra.mxu0 %v7785
    %10588 = vmatpush.bf16.msra.mxu0 %v7769
    %10589 = vmatmul.bf16.gmra.mxu0 %v2981
    %v10590 = vpop.f32.mrf.mxu0
    %v10591 = vadd.f32 %v10578, %v10590
    %v10592 = vpop.f32.mrf.mxu0
    %10593 = vdwg.mxu0
    %10594 = vmatpush.bf16.msra.mxu0 %v8009
    %10595 = vmatpush.bf16.msra.mxu0 %v7993
    %10596 = vmatpush.bf16.msra.mxu0 %v7977
    %10597 = vmatpush.bf16.msra.mxu0 %v7961
    %10598 = vmatpush.bf16.msra.mxu0 %v7945
    %10599 = vmatpush.bf16.msra.mxu0 %v7929
    %10600 = vmatpush.bf16.msra.mxu0 %v7913
    %10601 = vmatpush.bf16.msra.mxu0 %v7897
    %10602 = vmatmul.bf16.gmra.mxu0 %v2982
    %v10603 = vpop.f32.mrf.mxu0
    %v10604 = vadd.f32 %v10591, %v10603
    %v10605 = vpop.f32.mrf.mxu0
    %10606 = vdwg.mxu0
    %10607 = vmatpush.bf16.msra.mxu0 %v8137
    %10608 = vmatpush.bf16.msra.mxu0 %v8121
    %10609 = vmatpush.bf16.msra.mxu0 %v8105
    %10610 = vmatpush.bf16.msra.mxu0 %v8089
    %10611 = vmatpush.bf16.msra.mxu0 %v8073
    %10612 = vmatpush.bf16.msra.mxu0 %v8057
    %10613 = vmatpush.bf16.msra.mxu0 %v8041
    %10614 = vmatpush.bf16.msra.mxu0 %v8025
    %10615 = vmatmul.bf16.gmra.mxu0 %v2983
    %v10616 = vpop.f32.mrf.mxu0
    %v10617 = vadd.f32 %v10604, %v10616
    %v10618 = vpop.f32.mrf.mxu0
    %10619 = vdwg.mxu0
    %10620 = vmatpush.bf16.msra.mxu0 %v7242
    %10621 = vmatpush.bf16.msra.mxu0 %v7226
    %10622 = vmatpush.bf16.msra.mxu0 %v7210
    %10623 = vmatpush.bf16.msra.mxu0 %v7194
    %10624 = vmatpush.bf16.msra.mxu0 %v7178
    %10625 = vmatpush.bf16.msra.mxu0 %v7162
    %10626 = vmatpush.bf16.msra.mxu0 %v7146
    %10627 = vmatpush.bf16.msra.mxu0 %v7130
    %10628 = vmatmul.bf16.gmra.mxu0 %v2976
    %v10629 = vpop.f32.mrf.mxu0
    %v10630 = vadd.f32 %v4026, %v10629
    %v10631 = vpop.f32.mrf.mxu0
    %10632 = vdwg.mxu0
    %10633 = vmatpush.bf16.msra.mxu0 %v7370
    %10634 = vmatpush.bf16.msra.mxu0 %v7354
    %10635 = vmatpush.bf16.msra.mxu0 %v7338
    %10636 = vmatpush.bf16.msra.mxu0 %v7322
    %10637 = vmatpush.bf16.msra.mxu0 %v7306
    %10638 = vmatpush.bf16.msra.mxu0 %v7290
    %10639 = vmatpush.bf16.msra.mxu0 %v7274
    %10640 = vmatpush.bf16.msra.mxu0 %v7258
    %10641 = vmatmul.bf16.gmra.mxu0 %v2977
    %v10642 = vpop.f32.mrf.mxu0
    %v10643 = vadd.f32 %v10630, %v10642
    %v10644 = vpop.f32.mrf.mxu0
    %10645 = vdwg.mxu0
    %10646 = vmatpush.bf16.msra.mxu0 %v7498
    %10647 = vmatpush.bf16.msra.mxu0 %v7482
    %10648 = vmatpush.bf16.msra.mxu0 %v7466
    %10649 = vmatpush.bf16.msra.mxu0 %v7450
    %10650 = vmatpush.bf16.msra.mxu0 %v7434
    %10651 = vmatpush.bf16.msra.mxu0 %v7418
    %10652 = vmatpush.bf16.msra.mxu0 %v7402
    %10653 = vmatpush.bf16.msra.mxu0 %v7386
    %10654 = vmatmul.bf16.gmra.mxu0 %v2978
    %v10655 = vpop.f32.mrf.mxu0
    %v10656 = vadd.f32 %v10643, %v10655
    %v10657 = vpop.f32.mrf.mxu0
    %10658 = vdwg.mxu0
    %10659 = vmatpush.bf16.msra.mxu0 %v7626
    %10660 = vmatpush.bf16.msra.mxu0 %v7610
    %10661 = vmatpush.bf16.msra.mxu0 %v7594
    %10662 = vmatpush.bf16.msra.mxu0 %v7578
    %10663 = vmatpush.bf16.msra.mxu0 %v7562
    %10664 = vmatpush.bf16.msra.mxu0 %v7546
    %10665 = vmatpush.bf16.msra.mxu0 %v7530
    %10666 = vmatpush.bf16.msra.mxu0 %v7514
    %10667 = vmatmul.bf16.gmra.mxu0 %v2979
    %v10668 = vpop.f32.mrf.mxu0
    %v10669 = vadd.f32 %v10656, %v10668
    %v10670 = vpop.f32.mrf.mxu0
    %10671 = vdwg.mxu0
    %10672 = vmatpush.bf16.msra.mxu0 %v7754
    %10673 = vmatpush.bf16.msra.mxu0 %v7738
    %10674 = vmatpush.bf16.msra.mxu0 %v7722
    %10675 = vmatpush.bf16.msra.mxu0 %v7706
    %10676 = vmatpush.bf16.msra.mxu0 %v7690
    %10677 = vmatpush.bf16.msra.mxu0 %v7674
    %10678 = vmatpush.bf16.msra.mxu0 %v7658
    %10679 = vmatpush.bf16.msra.mxu0 %v7642
    %10680 = vmatmul.bf16.gmra.mxu0 %v2980
    %v10681 = vpop.f32.mrf.mxu0
    %v10682 = vadd.f32 %v10669, %v10681
    %v10683 = vpop.f32.mrf.mxu0
    %10684 = vdwg.mxu0
    %10685 = vmatpush.bf16.msra.mxu0 %v7882
    %10686 = vmatpush.bf16.msra.mxu0 %v7866
    %10687 = vmatpush.bf16.msra.mxu0 %v7850
    %10688 = vmatpush.bf16.msra.mxu0 %v7834
    %10689 = vmatpush.bf16.msra.mxu0 %v7818
    %10690 = vmatpush.bf16.msra.mxu0 %v7802
    %10691 = vmatpush.bf16.msra.mxu0 %v7786
    %10692 = vmatpush.bf16.msra.mxu0 %v7770
    %10693 = vmatmul.bf16.gmra.mxu0 %v2981
    %v10694 = vpop.f32.mrf.mxu0
    %v10695 = vadd.f32 %v10682, %v10694
    %v10696 = vpop.f32.mrf.mxu0
    %10697 = vdwg.mxu0
    %10698 = vmatpush.bf16.msra.mxu0 %v8010
    %10699 = vmatpush.bf16.msra.mxu0 %v7994
    %10700 = vmatpush.bf16.msra.mxu0 %v7978
    %10701 = vmatpush.bf16.msra.mxu0 %v7962
    %10702 = vmatpush.bf16.msra.mxu0 %v7946
    %10703 = vmatpush.bf16.msra.mxu0 %v7930
    %10704 = vmatpush.bf16.msra.mxu0 %v7914
    %10705 = vmatpush.bf16.msra.mxu0 %v7898
    %10706 = vmatmul.bf16.gmra.mxu0 %v2982
    %v10707 = vpop.f32.mrf.mxu0
    %v10708 = vadd.f32 %v10695, %v10707
    %v10709 = vpop.f32.mrf.mxu0
    %10710 = vdwg.mxu0
    %10711 = vmatpush.bf16.msra.mxu0 %v8138
    %10712 = vmatpush.bf16.msra.mxu0 %v8122
    %10713 = vmatpush.bf16.msra.mxu0 %v8106
    %10714 = vmatpush.bf16.msra.mxu0 %v8090
    %10715 = vmatpush.bf16.msra.mxu0 %v8074
    %10716 = vmatpush.bf16.msra.mxu0 %v8058
    %10717 = vmatpush.bf16.msra.mxu0 %v8042
    %10718 = vmatpush.bf16.msra.mxu0 %v8026
    %10719 = vmatmul.bf16.gmra.mxu0 %v2983
    %v10720 = vpop.f32.mrf.mxu0
    %v10721 = vadd.f32 %v10708, %v10720
    %v10722 = vpop.f32.mrf.mxu0
    %10723 = vdwg.mxu0
    %10724 = vmatpush.bf16.msra.mxu0 %v7243
    %10725 = vmatpush.bf16.msra.mxu0 %v7227
    %10726 = vmatpush.bf16.msra.mxu0 %v7211
    %10727 = vmatpush.bf16.msra.mxu0 %v7195
    %10728 = vmatpush.bf16.msra.mxu0 %v7179
    %10729 = vmatpush.bf16.msra.mxu0 %v7163
    %10730 = vmatpush.bf16.msra.mxu0 %v7147
    %10731 = vmatpush.bf16.msra.mxu0 %v7131
    %10732 = vmatmul.bf16.gmra.mxu0 %v2976
    %v10733 = vpop.f32.mrf.mxu0
    %v10734 = vadd.f32 %v4027, %v10733
    %v10735 = vpop.f32.mrf.mxu0
    %10736 = vdwg.mxu0
    %10737 = vmatpush.bf16.msra.mxu0 %v7371
    %10738 = vmatpush.bf16.msra.mxu0 %v7355
    %10739 = vmatpush.bf16.msra.mxu0 %v7339
    %10740 = vmatpush.bf16.msra.mxu0 %v7323
    %10741 = vmatpush.bf16.msra.mxu0 %v7307
    %10742 = vmatpush.bf16.msra.mxu0 %v7291
    %10743 = vmatpush.bf16.msra.mxu0 %v7275
    %10744 = vmatpush.bf16.msra.mxu0 %v7259
    %10745 = vmatmul.bf16.gmra.mxu0 %v2977
    %v10746 = vpop.f32.mrf.mxu0
    %v10747 = vadd.f32 %v10734, %v10746
    %v10748 = vpop.f32.mrf.mxu0
    %10749 = vdwg.mxu0
    %10750 = vmatpush.bf16.msra.mxu0 %v7499
    %10751 = vmatpush.bf16.msra.mxu0 %v7483
    %10752 = vmatpush.bf16.msra.mxu0 %v7467
    %10753 = vmatpush.bf16.msra.mxu0 %v7451
    %10754 = vmatpush.bf16.msra.mxu0 %v7435
    %10755 = vmatpush.bf16.msra.mxu0 %v7419
    %10756 = vmatpush.bf16.msra.mxu0 %v7403
    %10757 = vmatpush.bf16.msra.mxu0 %v7387
    %10758 = vmatmul.bf16.gmra.mxu0 %v2978
    %v10759 = vpop.f32.mrf.mxu0
    %v10760 = vadd.f32 %v10747, %v10759
    %v10761 = vpop.f32.mrf.mxu0
    %10762 = vdwg.mxu0
    %10763 = vmatpush.bf16.msra.mxu0 %v7627
    %10764 = vmatpush.bf16.msra.mxu0 %v7611
    %10765 = vmatpush.bf16.msra.mxu0 %v7595
    %10766 = vmatpush.bf16.msra.mxu0 %v7579
    %10767 = vmatpush.bf16.msra.mxu0 %v7563
    %10768 = vmatpush.bf16.msra.mxu0 %v7547
    %10769 = vmatpush.bf16.msra.mxu0 %v7531
    %10770 = vmatpush.bf16.msra.mxu0 %v7515
    %10771 = vmatmul.bf16.gmra.mxu0 %v2979
    %v10772 = vpop.f32.mrf.mxu0
    %v10773 = vadd.f32 %v10760, %v10772
    %v10774 = vpop.f32.mrf.mxu0
    %10775 = vdwg.mxu0
    %10776 = vmatpush.bf16.msra.mxu0 %v7755
    %10777 = vmatpush.bf16.msra.mxu0 %v7739
    %10778 = vmatpush.bf16.msra.mxu0 %v7723
    %10779 = vmatpush.bf16.msra.mxu0 %v7707
    %10780 = vmatpush.bf16.msra.mxu0 %v7691
    %10781 = vmatpush.bf16.msra.mxu0 %v7675
    %10782 = vmatpush.bf16.msra.mxu0 %v7659
    %10783 = vmatpush.bf16.msra.mxu0 %v7643
    %10784 = vmatmul.bf16.gmra.mxu0 %v2980
    %v10785 = vpop.f32.mrf.mxu0
    %v10786 = vadd.f32 %v10773, %v10785
    %v10787 = vpop.f32.mrf.mxu0
    %10788 = vdwg.mxu0
    %10789 = vmatpush.bf16.msra.mxu0 %v7883
    %10790 = vmatpush.bf16.msra.mxu0 %v7867
    %10791 = vmatpush.bf16.msra.mxu0 %v7851
    %10792 = vmatpush.bf16.msra.mxu0 %v7835
    %10793 = vmatpush.bf16.msra.mxu0 %v7819
    %10794 = vmatpush.bf16.msra.mxu0 %v7803
    %10795 = vmatpush.bf16.msra.mxu0 %v7787
    %10796 = vmatpush.bf16.msra.mxu0 %v7771
    %10797 = vmatmul.bf16.gmra.mxu0 %v2981
    %v10798 = vpop.f32.mrf.mxu0
    %v10799 = vadd.f32 %v10786, %v10798
    %v10800 = vpop.f32.mrf.mxu0
    %10801 = vdwg.mxu0
    %10802 = vmatpush.bf16.msra.mxu0 %v8011
    %10803 = vmatpush.bf16.msra.mxu0 %v7995
    %10804 = vmatpush.bf16.msra.mxu0 %v7979
    %10805 = vmatpush.bf16.msra.mxu0 %v7963
    %10806 = vmatpush.bf16.msra.mxu0 %v7947
    %10807 = vmatpush.bf16.msra.mxu0 %v7931
    %10808 = vmatpush.bf16.msra.mxu0 %v7915
    %10809 = vmatpush.bf16.msra.mxu0 %v7899
    %10810 = vmatmul.bf16.gmra.mxu0 %v2982
    %v10811 = vpop.f32.mrf.mxu0
    %v10812 = vadd.f32 %v10799, %v10811
    %v10813 = vpop.f32.mrf.mxu0
    %10814 = vdwg.mxu0
    %10815 = vmatpush.bf16.msra.mxu0 %v8139
    %10816 = vmatpush.bf16.msra.mxu0 %v8123
    %10817 = vmatpush.bf16.msra.mxu0 %v8107
    %10818 = vmatpush.bf16.msra.mxu0 %v8091
    %10819 = vmatpush.bf16.msra.mxu0 %v8075
    %10820 = vmatpush.bf16.msra.mxu0 %v8059
    %10821 = vmatpush.bf16.msra.mxu0 %v8043
    %10822 = vmatpush.bf16.msra.mxu0 %v8027
    %10823 = vmatmul.bf16.gmra.mxu0 %v2983
    %v10824 = vpop.f32.mrf.mxu0
    %v10825 = vadd.f32 %v10812, %v10824
    %v10826 = vpop.f32.mrf.mxu0
    %10827 = vdwg.mxu0
    %10828 = vst [vmem:[#allocation17] sm:$0xff] %v9265
    %10829 = vst [vmem:[#allocation17 + $0x8] sm:$0xff] %v9369
    %10830 = vst [vmem:[#allocation17 + $0x10] sm:$0xff] %v9473
    %10831 = vst [vmem:[#allocation17 + $0x18] sm:$0xff] %v9577
    %10832 = vst [vmem:[#allocation17 + $0x20] sm:$0xff] %v9681
    %10833 = vst [vmem:[#allocation17 + $0x28] sm:$0xff] %v9785
    %10834 = vst [vmem:[#allocation17 + $0x30] sm:$0xff] %v9889
    %10835 = vst [vmem:[#allocation17 + $0x38] sm:$0xff] %v9993
    %10836 = vst [vmem:[#allocation17 + $0x40] sm:$0xff] %v10097
    %10837 = vst [vmem:[#allocation17 + $0x48] sm:$0xff] %v10201
    %10838 = vst [vmem:[#allocation17 + $0x50] sm:$0xff] %v10305
    %10839 = vst [vmem:[#allocation17 + $0x58] sm:$0xff] %v10409
    %10840 = vst [vmem:[#allocation17 + $0x60] sm:$0xff] %v10513
    %10841 = vst [vmem:[#allocation17 + $0x68] sm:$0xff] %v10617
    %10842 = vst [vmem:[#allocation17 + $0x70] sm:$0xff] %v10721
    %10843 = vst [vmem:[#allocation17 + $0x78] sm:$0xff] %v10825
    // Predicated region
    $region82: #{zip_ssl_forward.1} parent=1 // pred_check
      _
    $region83: #{zip_ssl_forward.1} parent=1 // pred_check_branch
      %10845 = sbr.rel (0) target = $region85
    $region84: #{zip_ssl_forward.1} parent=1 // pred_region
      %10847 = vsyncadd [#allocation4], 0
      %s10849 = sshll.u32 [#allocation17], 4
      %s10850 = int_to_ptr.vmem [resolvable:$true] %s10849
      %s10851 = sshll.u32 %s11, 4
      %s10852 = int_to_ptr.hbm [resolvable:$true] %s10851
      %10854 = dma.vmem_to_hbm [thread:$0]  %s10850, 2048, %s10852, [#allocation4]
    $region85: #{zip_ssl_forward.1} parent=1 // pred_fallthru
      _
    // Predicated region
    $region86: #{zip_ssl_forward.1} parent=1 // pred_check
      _
    $region87: #{zip_ssl_forward.1} parent=1 // pred_check_branch
      %10856 = sbr.rel (0) target = $region89
    $region88: #{zip_ssl_forward.1} parent=1 // pred_region
      %10858 = dma.done [#allocation4], 2048
    $region89: #{zip_ssl_forward.1} parent=1 // pred_fallthru
      _
    %10859 = vsyncpa [#allocation3], 1
    %10860 = vsyncpa [#allocation6], 1
    %10861 = vsyncpa [#allocation9], 1
    %10862 = vsyncpa [#allocation12], 1
    %10863 = vsyncpa [#allocation15], 1
    %10864 = vsyncpa [#allocation4], 1

</llo_original>
